<compile_context>
chip_gen: v5e
topology: v5e:2x2
jax: 0.10.0
libtpu: 0.0.40
codegen_flags: <defaults>
</compile_context>

<pallas_src>
import jax
import jax.numpy as jnp
from jax.experimental import pallas as pl
from jax.experimental.pallas import tpu as pltpu


# ---------------------------------------------------------------------------
# Fused kernel: conv1+pool -> conv2+pool -> FC for `chunk` images per grid step
# ---------------------------------------------------------------------------

def fused_cnn_kernel(p1_ref, w1_ref, b1_ref, w2_ref, b2_ref, wfc_ref, bfc_ref,
                     o_ref, x2s_ref):
    # p1_ref : (chunk, 224, 36) bf16  conv1 patches; rows=(parity d, u, v<8), cols=6x6 window
    # w1_ref : (36, 64)  bf16         conv1 weights, 4 pool phases stacked along N
    # b1_ref : (1, 16)   f32
    # w2_ref : (3, 3, 64, 128) bf16   conv2 as 3x3 conv over space-to-depth grid, 4 phases on N
    # b2_ref : (1, 32)   f32
    # wfc_ref: (1568, 128) bf16       FC weight (HWC row order), N padded 10 -> 128
    # bfc_ref: (1, 128)  f32
    # o_ref  : (1, chunk, 128) f32    logits (cols >= 10 sliced off outside)
    # x2s_ref: (chunk, 9, 16, 64) bf16 scratch: padded conv2 input in space-to-depth layout
    chunk = p1_ref.shape[0]

    # ---- conv1 (+bias+ReLU+2x2 maxpool): one MXU matmul, phases on lanes ---------------
    p1 = p1_ref[...].reshape(chunk * 224, 36)
    z = jnp.dot(p1, w1_ref[...], preferred_element_type=jnp.float32)      # (chunk*224, 64)
    z = z.reshape(chunk, 4, 7, 8, 64)                                     # (b, d, u, v, phase*16+co)
    z = jnp.maximum(jnp.maximum(z[..., 0:16], z[..., 16:32]),
                    jnp.maximum(z[..., 32:48], z[..., 48:64]))            # max over pool phases
    z = jnp.maximum(z + b1_ref[...], 0.0).astype(jnp.bfloat16)            # (chunk, 4, 7, 8, 16)

    # ---- scatter pooled conv1 output into the space-to-depth padded conv2 input --------
    x2s_ref[...] = jnp.zeros(x2s_ref.shape, x2s_ref.dtype)
    for d in range(4):
        x2s_ref[:, 1:8, 1:8, d * 16:(d + 1) * 16] = z[:, d, :, :7, :]

    # ---- conv2 (+bias+ReLU+2x2 maxpool): 3x3 conv over the s2d grid, 9 matmuls ----------
    acc = jnp.zeros((chunk, 7, 7, 128), jnp.float32)
    for a in range(3):
        lhs = x2s_ref[:, a:a + 7, :, :].reshape(chunk * 7 * 16, 64)       # bf16
        for c in range(3):
            y = jnp.dot(lhs, w2_ref[a, c], preferred_element_type=jnp.float32)
            y = y.reshape(chunk, 7, 16, 128)
            acc = acc + y[:, :, c:c + 7, :]
    m = jnp.maximum(jnp.maximum(acc[..., 0:32], acc[..., 32:64]),
                    jnp.maximum(acc[..., 64:96], acc[..., 96:128]))       # max over pool phases
    feat = jnp.maximum(m + b2_ref[...], 0.0).astype(jnp.bfloat16)         # (chunk, 7, 7, 32)

    # ---- FC fused in the epilogue: HWC flatten via lane concat + one matmul -------------
    flat = jnp.concatenate([feat[:, i, j, :] for i in range(7) for j in range(7)],
                           axis=-1)                                       # (chunk, 1568)
    o_ref[0] = (jnp.dot(flat, wfc_ref[...], preferred_element_type=jnp.float32)
                + bfc_ref[...])


# ---------------------------------------------------------------------------
# Wrapper-side conv1 patch construction (raw 28x28 input only, ~16 KB/img)
# ---------------------------------------------------------------------------

def _build_conv1_patches(x_b28):
    """(B, 28, 28) -> (B, 224, 36): rows=(parity d, u, v padded to 8), cols=6x6 window."""
    B = x_b28.shape[0]
    xp = jnp.pad(x_b28, ((0, 0), (2, 2), (2, 2)))                         # (B, 32, 32)
    taps = jnp.stack([xp[:, i:i + 27, j:j + 27]
                      for i in range(6) for j in range(6)], axis=-1)      # (B, 27, 27, 36)
    blocks = []
    for ry in range(2):
        for rx in range(2):
            blk = taps[:, 2 * ry::4, 2 * rx::4, :]                        # (B, 7, 7, 36)
            blocks.append(jnp.pad(blk, ((0, 0), (0, 0), (0, 1), (0, 0)))) # pad v: 7 -> 8
    p = jnp.stack(blocks, axis=1)                                         # (B, 4, 7, 8, 36)
    return p.reshape(B, 224, 36)


# ---------------------------------------------------------------------------
# Forward
# ---------------------------------------------------------------------------

def cnn_forward(x_nchw, params):
    # x_nchw: (B, 1, 28, 28), same convention as the PyTorch module.
    B = x_nchw.shape[0]
    chunk = max(1, min(8, B // 2)) if B >= 2 else 1     # keep >= 2 (even) grid steps
    Bp = -(-B // chunk) * chunk
    x = x_nchw[:, 0, :, :]
    if Bp != B:
        x = jnp.pad(x, ((0, Bp - B), (0, 0), (0, 0)))
    p1 = _build_conv1_patches(x).astype(jnp.bfloat16)                     # (Bp, 224, 36)
    nsteps = Bp // chunk

    flops = (2 * Bp * 224 * 36 * 64 + 9 * 2 * Bp * 112 * 64 * 128 + 2 * Bp * 1568 * 128)
    bytes_acc = (p1.size * 2 + params["w1k"].size * 2 + params["w2k"].size * 2
                 + params["wfck"].size * 2 + Bp * 128 * 4)

    out = pl.pallas_call(
        fused_cnn_kernel,
        out_shape=jax.ShapeDtypeStruct((nsteps, chunk, 128), jnp.float32),
        grid=(nsteps,),
        in_specs=[
            pl.BlockSpec((chunk, 224, 36), lambda i: (i, 0, 0)),
            pl.BlockSpec((36, 64), lambda i: (0, 0)),
            pl.BlockSpec((1, 16), lambda i: (0, 0)),
            pl.BlockSpec((3, 3, 64, 128), lambda i: (0, 0, 0, 0)),
            pl.BlockSpec((1, 32), lambda i: (0, 0)),
            pl.BlockSpec((1568, 128), lambda i: (0, 0)),
            pl.BlockSpec((1, 128), lambda i: (0, 0)),
        ],
        out_specs=pl.BlockSpec((1, chunk, 128), lambda i: (i, 0, 0)),
        scratch_shapes=[pltpu.VMEM((chunk, 9, 16, 64), jnp.bfloat16)],
        compiler_params=pltpu.CompilerParams(dimension_semantics=("parallel",)),
        cost_estimate=pl.CostEstimate(flops=flops, transcendentals=0,
                                      bytes_accessed=bytes_acc),
    )(p1, params["w1k"], params["b1k"], params["w2k"], params["b2k"],
      params["wfck"], params["bfck"])

    return out.reshape(Bp, 128)[:B, :10]


# ---------------------------------------------------------------------------
# Params (PyTorch-equivalent init) + one-time packing into kernel form
# ---------------------------------------------------------------------------

def _pack_kernel_params(w1, b1, w2, b2, wfc_hwc, bfc):
    # conv1: embed the 5x5 kernel at offset (ph, pw) inside a 6x6 window per pool phase.
    w1k = jnp.zeros((6, 6, 4, 16), jnp.float32)
    for ph in range(2):
        for pw in range(2):
            w1k = w1k.at[ph:ph + 5, pw:pw + 5, 2 * ph + pw, :].set(w1[:, :, 0, :])
    w1k = w1k.reshape(36, 64)

    # conv2: a stride-2 5x5 conv == 3x3 conv over the space-to-depth grid (64 in-channels);
    # stack one copy per pool phase along the output-channel dim (-> 128).
    w2k = jnp.zeros((3, 3, 4, 16, 4, 32), jnp.float32)
    for ph in range(2):
        for pw in range(2):
            g = 2 * ph + pw
            for a in range(3):
                for r in range(2):
                    kh = 2 * a + r - ph
                    if not 0 <= kh < 5:
                        continue
                    for c in range(3):
                        for s in range(2):
                            kw = 2 * c + s - pw
                            if not 0 <= kw < 5:
                                continue
                            w2k = w2k.at[a, c, 2 * r + s, :, g, :].set(w2[kh, kw])
    w2k = w2k.reshape(3, 3, 64, 128)

    wfck = jnp.zeros((1568, 128), jnp.float32).at[:, :10].set(wfc_hwc)
    bfck = jnp.zeros((1, 128), jnp.float32).at[0, :10].set(bfc)

    return {
        "w1k": w1k.astype(jnp.bfloat16),
        "b1k": b1.reshape(1, 16).astype(jnp.float32),
        "w2k": w2k.astype(jnp.bfloat16),
        "b2k": b2.reshape(1, 32).astype(jnp.float32),
        "wfck": wfck.astype(jnp.bfloat16),
        "bfck": bfck,
    }


def init_params(key):
    k1, k2, k3, k4, k5, k6 = jax.random.split(key, 6)

    def u(k, shape, fan_in):
        bound = 1.0 / jnp.sqrt(fan_in)
        return jax.random.uniform(k, shape, jnp.float32, -bound, bound)

    w1 = u(k1, (5, 5, 1, 16), 25.0)          # conv1 weight, HWIO
    b1 = u(k2, (16,), 25.0)
    w2 = u(k3, (5, 5, 16, 32), 400.0)        # conv2 weight, HWIO
    b2 = u(k4, (32,), 400.0)
    wfc_chw = u(k5, (32 * 7 * 7, 10), 1568.0)   # rows in PyTorch (C,H,W)-flatten order
    bfc = u(k6, (10,), 1568.0)

    # Permute FC rows once to (H,W,C)-flatten order so the NHWC conv2 output flattens
    # directly (semantics identical to the PyTorch module).
    wfc_hwc = wfc_chw.reshape(32, 7, 7, 10).transpose(1, 2, 0, 3).reshape(1568, 10)

    params = {"w1": w1, "b1": b1, "w2": w2, "b2": b2, "wfc": wfc_hwc, "bfc": bfc}
    params.update(_pack_kernel_params(w1, b1, w2, b2, wfc_hwc, bfc))
    return params


# ---------------------------------------------------------------------------
# Pure-JAX reference
# ---------------------------------------------------------------------------

def reference_forward(x_nchw, params, dtype=jnp.float32):
    x = jnp.transpose(x_nchw, (0, 2, 3, 1))

    def block(x, w, b):
        y = jax.lax.conv_general_dilated(
            x.astype(dtype), w.astype(dtype), (1, 1), "SAME",
            dimension_numbers=("NHWC", "HWIO", "NHWC"),
            preferred_element_type=jnp.float32)
        y = jnp.maximum(y + b, 0.0)
        return jax.lax.reduce_window(y, -jnp.inf, jax.lax.max,
                                     (1, 2, 2, 1), (1, 2, 2, 1), "VALID")

    y = block(x, params["w1"], params["b1"])
    y = block(y, params["w2"], params["b2"])
    y = y.reshape(y.shape[0], -1)                           # NHWC flatten matches wfc rows
    out = jnp.dot(y.astype(dtype), params["wfc"].astype(dtype),
                  preferred_element_type=jnp.float32)
    return out + params["bfc"]


if __name__ == "__main__":
    params = init_params(jax.random.PRNGKey(42))
    x = jax.random.normal(jax.random.PRNGKey(0), (8, 1, 28, 28), jnp.float32)

    fwd = jax.jit(cnn_forward)
    out = jax.block_until_ready(fwd(x, params))
    assert out.shape == (8, 10), out.shape

    # Tight check vs a precision-matched (bf16 operands, f32 accumulation) reference.
    ref_bf16 = jax.block_until_ready(reference_forward(x, params, dtype=jnp.bfloat16))
    assert jnp.allclose(out, ref_bf16, atol=5e-3, rtol=5e-3), \
        float(jnp.max(jnp.abs(out - ref_bf16)))

    # Loose sanity check vs the full-f32 reference (kernel uses bf16 operands).
    ref_f32 = jax.block_until_ready(reference_forward(x, params, dtype=jnp.float32))
    assert jnp.allclose(out, ref_f32, atol=5e-2, rtol=5e-2), \
        float(jnp.max(jnp.abs(out - ref_f32)))

    print("KERNEL_OK")
</pallas_src>

<mosaic_0001>
module attributes {stable_mosaic.version = 11 : i64} {
  func.func @fused_cnn_kernel(%arg0: i32, %arg1: memref<4x224x36xbf16, #tpu.memory_space<vmem>>, %arg2: memref<36x64xbf16, #tpu.memory_space<vmem>>, %arg3: memref<1x16xf32, #tpu.memory_space<vmem>>, %arg4: memref<3x3x64x128xbf16, #tpu.memory_space<vmem>>, %arg5: memref<1x32xf32, #tpu.memory_space<vmem>>, %arg6: memref<1568x128xbf16, #tpu.memory_space<vmem>>, %arg7: memref<1x128xf32, #tpu.memory_space<vmem>>, %arg8: memref<1x4x128xf32, #tpu.memory_space<vmem>>, %arg9: memref<4x9x16x64xbf16, #tpu.memory_space<vmem>>) attributes {dimension_semantics = [#tpu.dimension_semantics<parallel>], iteration_bounds = array<i64: 2>, scalar_prefetch = 0 : i64, scratch_operands = 1 : i64, tpu.core_type = #tpu.core_type<tc>, window_params = [{transform_indices = @transform_0, window_bounds = array<i64: 4, 224, 36>}, {pipeline_mode = #tpu.pipeline_mode<synchronous>, transform_indices = @transform_1, window_bounds = array<i64: 36, 64>}, {pipeline_mode = #tpu.pipeline_mode<synchronous>, transform_indices = @transform_2, window_bounds = array<i64: 1, 16>}, {pipeline_mode = #tpu.pipeline_mode<synchronous>, transform_indices = @transform_3, window_bounds = array<i64: 3, 3, 64, 128>}, {pipeline_mode = #tpu.pipeline_mode<synchronous>, transform_indices = @transform_4, window_bounds = array<i64: 1, 32>}, {pipeline_mode = #tpu.pipeline_mode<synchronous>, transform_indices = @transform_5, window_bounds = array<i64: 1568, 128>}, {pipeline_mode = #tpu.pipeline_mode<synchronous>, transform_indices = @transform_6, window_bounds = array<i64: 1, 128>}, {transform_indices = @transform_7, window_bounds = array<i64: 1, 4, 128>}]} {
    %c0 = arith.constant 0 : index
    %c0_0 = arith.constant 0 : index
    %c0_1 = arith.constant 0 : index
    %0 = vector.load %arg1[%c0, %c0_0, %c0_1] : memref<4x224x36xbf16, #tpu.memory_space<vmem>>, vector<4x224x36xbf16>
    %1 = vector.shape_cast %0 : vector<4x224x36xbf16> to vector<896x36xbf16>
    %c0_2 = arith.constant 0 : index
    %c0_3 = arith.constant 0 : index
    %2 = vector.load %arg2[%c0_2, %c0_3] : memref<36x64xbf16, #tpu.memory_space<vmem>>, vector<36x64xbf16>
    %cst = arith.constant dense<0.000000e+00> : vector<896x64xf32>
    %3 = tpu.matmul %1, %2, %cst {dimension_numbers = #tpu.dot_dimension_numbers<[1], [0], [0], [1], [0, 0, 1, 1], [], []>} : vector<896x36xbf16>, vector<36x64xbf16>, vector<896x64xf32> -> vector<896x64xf32>
    %4 = vector.shape_cast %3 : vector<896x64xf32> to vector<4x4x7x8x64xf32>
    %5 = vector.extract_strided_slice %4 {offsets = [0, 0, 0, 0, 0], sizes = [4, 4, 7, 8, 16], strides = [1, 1, 1, 1, 1]} : vector<4x4x7x8x64xf32> to vector<4x4x7x8x16xf32>
    %6 = vector.extract_strided_slice %4 {offsets = [0, 0, 0, 0, 16], sizes = [4, 4, 7, 8, 16], strides = [1, 1, 1, 1, 1]} : vector<4x4x7x8x64xf32> to vector<4x4x7x8x16xf32>
    %7 = arith.maximumf %5, %6 : vector<4x4x7x8x16xf32>
    %8 = vector.extract_strided_slice %4 {offsets = [0, 0, 0, 0, 32], sizes = [4, 4, 7, 8, 16], strides = [1, 1, 1, 1, 1]} : vector<4x4x7x8x64xf32> to vector<4x4x7x8x16xf32>
    %9 = vector.extract_strided_slice %4 {offsets = [0, 0, 0, 0, 48], sizes = [4, 4, 7, 8, 16], strides = [1, 1, 1, 1, 1]} : vector<4x4x7x8x64xf32> to vector<4x4x7x8x16xf32>
    %10 = arith.maximumf %8, %9 : vector<4x4x7x8x16xf32>
    %11 = arith.maximumf %7, %10 : vector<4x4x7x8x16xf32>
    %c0_4 = arith.constant 0 : index
    %c0_5 = arith.constant 0 : index
    %12 = vector.load %arg3[%c0_4, %c0_5] : memref<1x16xf32, #tpu.memory_space<vmem>>, vector<1x16xf32>
    %13 = vector.shape_cast %12 : vector<1x16xf32> to vector<1x1x1x1x16xf32>
    %14 = vector.broadcast %13 : vector<1x1x1x1x16xf32> to vector<4x4x7x8x16xf32>
    %15 = arith.addf %11, %14 : vector<4x4x7x8x16xf32>
    %cst_6 = arith.constant 0.000000e+00 : f32
    %16 = vector.broadcast %cst_6 : f32 to vector<4x4x7x8x16xf32>
    %17 = arith.maximumf %15, %16 : vector<4x4x7x8x16xf32>
    %18 = arith.truncf %17 : vector<4x4x7x8x16xf32> to vector<4x4x7x8x16xbf16>
    %cst_7 = arith.constant 0.000000e+00 : bf16
    %19 = vector.broadcast %cst_7 : bf16 to vector<4x9x16x64xbf16>
    %c0_8 = arith.constant 0 : index
    %c0_9 = arith.constant 0 : index
    %c0_10 = arith.constant 0 : index
    %c0_11 = arith.constant 0 : index
    %20 = vector.load %arg9[%c0_8, %c0_9, %c0_10, %c0_11] : memref<4x9x16x64xbf16, #tpu.memory_space<vmem>>, vector<4x9x16x64xbf16>
    tpu.vector_store %arg9[%c0_8, %c0_9, %c0_10, %c0_11], %19 {strides = array<i32>} : memref<4x9x16x64xbf16, #tpu.memory_space<vmem>>, vector<4x9x16x64xbf16>,
    %21 = vector.extract_strided_slice %18 {offsets = [0, 0, 0, 0, 0], sizes = [4, 1, 7, 7, 16], strides = [1, 1, 1, 1, 1]} : vector<4x4x7x8x16xbf16> to vector<4x1x7x7x16xbf16>
    %22 = vector.shape_cast %21 : vector<4x1x7x7x16xbf16> to vector<4x7x7x16xbf16>
    %c0_12 = arith.constant 0 : index
    %c1 = arith.constant 1 : index
    %c1_13 = arith.constant 1 : index
    %c0_14 = arith.constant 0 : index
    %23 = vector.load %arg9[%c0_12, %c1, %c1_13, %c0_14] : memref<4x9x16x64xbf16, #tpu.memory_space<vmem>>, vector<4x7x7x16xbf16>
    tpu.vector_store %arg9[%c0_12, %c1, %c1_13, %c0_14], %22 {strides = array<i32>} : memref<4x9x16x64xbf16, #tpu.memory_space<vmem>>, vector<4x7x7x16xbf16>,
    %24 = vector.extract_strided_slice %18 {offsets = [0, 1, 0, 0, 0], sizes = [4, 1, 7, 7, 16], strides = [1, 1, 1, 1, 1]} : vector<4x4x7x8x16xbf16> to vector<4x1x7x7x16xbf16>
    %25 = vector.shape_cast %24 : vector<4x1x7x7x16xbf16> to vector<4x7x7x16xbf16>
    %c0_15 = arith.constant 0 : index
    %c1_16 = arith.constant 1 : index
    %c1_17 = arith.constant 1 : index
    %c16 = arith.constant 16 : index
    %26 = vector.load %arg9[%c0_15, %c1_16, %c1_17, %c16] : memref<4x9x16x64xbf16, #tpu.memory_space<vmem>>, vector<4x7x7x16xbf16>
    tpu.vector_store %arg9[%c0_15, %c1_16, %c1_17, %c16], %25 {strides = array<i32>} : memref<4x9x16x64xbf16, #tpu.memory_space<vmem>>, vector<4x7x7x16xbf16>,
    %27 = vector.extract_strided_slice %18 {offsets = [0, 2, 0, 0, 0], sizes = [4, 1, 7, 7, 16], strides = [1, 1, 1, 1, 1]} : vector<4x4x7x8x16xbf16> to vector<4x1x7x7x16xbf16>
    %28 = vector.shape_cast %27 : vector<4x1x7x7x16xbf16> to vector<4x7x7x16xbf16>
    %c0_18 = arith.constant 0 : index
    %c1_19 = arith.constant 1 : index
    %c1_20 = arith.constant 1 : index
    %c32 = arith.constant 32 : index
    %29 = vector.load %arg9[%c0_18, %c1_19, %c1_20, %c32] : memref<4x9x16x64xbf16, #tpu.memory_space<vmem>>, vector<4x7x7x16xbf16>
    tpu.vector_store %arg9[%c0_18, %c1_19, %c1_20, %c32], %28 {strides = array<i32>} : memref<4x9x16x64xbf16, #tpu.memory_space<vmem>>, vector<4x7x7x16xbf16>,
    %30 = vector.extract_strided_slice %18 {offsets = [0, 3, 0, 0, 0], sizes = [4, 1, 7, 7, 16], strides = [1, 1, 1, 1, 1]} : vector<4x4x7x8x16xbf16> to vector<4x1x7x7x16xbf16>
    %31 = vector.shape_cast %30 : vector<4x1x7x7x16xbf16> to vector<4x7x7x16xbf16>
    %c0_21 = arith.constant 0 : index
    %c1_22 = arith.constant 1 : index
    %c1_23 = arith.constant 1 : index
    %c48 = arith.constant 48 : index
    %32 = vector.load %arg9[%c0_21, %c1_22, %c1_23, %c48] : memref<4x9x16x64xbf16, #tpu.memory_space<vmem>>, vector<4x7x7x16xbf16>
    tpu.vector_store %arg9[%c0_21, %c1_22, %c1_23, %c48], %31 {strides = array<i32>} : memref<4x9x16x64xbf16, #tpu.memory_space<vmem>>, vector<4x7x7x16xbf16>,
    %cst_24 = arith.constant 0.000000e+00 : f32
    %33 = vector.broadcast %cst_24 : f32 to vector<4x7x7x128xf32>
    %c0_25 = arith.constant 0 : index
    %c0_26 = arith.constant 0 : index
    %c0_27 = arith.constant 0 : index
    %c0_28 = arith.constant 0 : index
    %34 = vector.load %arg9[%c0_25, %c0_26, %c0_27, %c0_28] : memref<4x9x16x64xbf16, #tpu.memory_space<vmem>>, vector<4x7x16x64xbf16>
    %35 = vector.shape_cast %34 : vector<4x7x16x64xbf16> to vector<448x64xbf16>
    %c0_29 = arith.constant 0 : index
    %c0_30 = arith.constant 0 : index
    %c0_31 = arith.constant 0 : index
    %c0_32 = arith.constant 0 : index
    %36 = vector.load %arg4[%c0_29, %c0_30, %c0_31, %c0_32] : memref<3x3x64x128xbf16, #tpu.memory_space<vmem>>, vector<1x1x64x128xbf16>
    %37 = vector.shape_cast %36 : vector<1x1x64x128xbf16> to vector<64x128xbf16>
    %cst_33 = arith.constant dense<0.000000e+00> : vector<448x128xf32>
    %38 = tpu.matmul %35, %37, %cst_33 {dimension_numbers = #tpu.dot_dimension_numbers<[1], [0], [0], [1], [0, 0, 1, 1], [], []>} : vector<448x64xbf16>, vector<64x128xbf16>, vector<448x128xf32> -> vector<448x128xf32>
    %39 = vector.shape_cast %38 : vector<448x128xf32> to vector<4x7x16x128xf32>
    %40 = vector.extract_strided_slice %39 {offsets = [0, 0, 0, 0], sizes = [4, 7, 7, 128], strides = [1, 1, 1, 1]} : vector<4x7x16x128xf32> to vector<4x7x7x128xf32>
    %41 = arith.addf %33, %40 : vector<4x7x7x128xf32>
    %c0_34 = arith.constant 0 : index
    %c1_35 = arith.constant 1 : index
    %c0_36 = arith.constant 0 : index
    %c0_37 = arith.constant 0 : index
    %42 = vector.load %arg4[%c0_34, %c1_35, %c0_36, %c0_37] : memref<3x3x64x128xbf16, #tpu.memory_space<vmem>>, vector<1x1x64x128xbf16>
    %43 = vector.shape_cast %42 : vector<1x1x64x128xbf16> to vector<64x128xbf16>
    %cst_38 = arith.constant dense<0.000000e+00> : vector<448x128xf32>
    %44 = tpu.matmul %35, %43, %cst_38 {dimension_numbers = #tpu.dot_dimension_numbers<[1], [0], [0], [1], [0, 0, 1, 1], [], []>} : vector<448x64xbf16>, vector<64x128xbf16>, vector<448x128xf32> -> vector<448x128xf32>
    %45 = vector.shape_cast %44 : vector<448x128xf32> to vector<4x7x16x128xf32>
    %46 = vector.extract_strided_slice %45 {offsets = [0, 0, 1, 0], sizes = [4, 7, 7, 128], strides = [1, 1, 1, 1]} : vector<4x7x16x128xf32> to vector<4x7x7x128xf32>
    %47 = arith.addf %41, %46 : vector<4x7x7x128xf32>
    %c0_39 = arith.constant 0 : index
    %c2 = arith.constant 2 : index
    %c0_40 = arith.constant 0 : index
    %c0_41 = arith.constant 0 : index
    %48 = vector.load %arg4[%c0_39, %c2, %c0_40, %c0_41] : memref<3x3x64x128xbf16, #tpu.memory_space<vmem>>, vector<1x1x64x128xbf16>
    %49 = vector.shape_cast %48 : vector<1x1x64x128xbf16> to vector<64x128xbf16>
    %cst_42 = arith.constant dense<0.000000e+00> : vector<448x128xf32>
    %50 = tpu.matmul %35, %49, %cst_42 {dimension_numbers = #tpu.dot_dimension_numbers<[1], [0], [0], [1], [0, 0, 1, 1], [], []>} : vector<448x64xbf16>, vector<64x128xbf16>, vector<448x128xf32> -> vector<448x128xf32>
    %51 = vector.shape_cast %50 : vector<448x128xf32> to vector<4x7x16x128xf32>
    %52 = vector.extract_strided_slice %51 {offsets = [0, 0, 2, 0], sizes = [4, 7, 7, 128], strides = [1, 1, 1, 1]} : vector<4x7x16x128xf32> to vector<4x7x7x128xf32>
    %53 = arith.addf %47, %52 : vector<4x7x7x128xf32>
    %c0_43 = arith.constant 0 : index
    %c1_44 = arith.constant 1 : index
    %c0_45 = arith.constant 0 : index
    %c0_46 = arith.constant 0 : index
    %54 = vector.load %arg9[%c0_43, %c1_44, %c0_45, %c0_46] : memref<4x9x16x64xbf16, #tpu.memory_space<vmem>>, vector<4x7x16x64xbf16>
    %55 = vector.shape_cast %54 : vector<4x7x16x64xbf16> to vector<448x64xbf16>
    %c1_47 = arith.constant 1 : index
    %c0_48 = arith.constant 0 : index
    %c0_49 = arith.constant 0 : index
    %c0_50 = arith.constant 0 : index
    %56 = vector.load %arg4[%c1_47, %c0_48, %c0_49, %c0_50] : memref<3x3x64x128xbf16, #tpu.memory_space<vmem>>, vector<1x1x64x128xbf16>
    %57 = vector.shape_cast %56 : vector<1x1x64x128xbf16> to vector<64x128xbf16>
    %cst_51 = arith.constant dense<0.000000e+00> : vector<448x128xf32>
    %58 = tpu.matmul %55, %57, %cst_51 {dimension_numbers = #tpu.dot_dimension_numbers<[1], [0], [0], [1], [0, 0, 1, 1], [], []>} : vector<448x64xbf16>, vector<64x128xbf16>, vector<448x128xf32> -> vector<448x128xf32>
    %59 = vector.shape_cast %58 : vector<448x128xf32> to vector<4x7x16x128xf32>
    %60 = vector.extract_strided_slice %59 {offsets = [0, 0, 0, 0], sizes = [4, 7, 7, 128], strides = [1, 1, 1, 1]} : vector<4x7x16x128xf32> to vector<4x7x7x128xf32>
    %61 = arith.addf %53, %60 : vector<4x7x7x128xf32>
    %c1_52 = arith.constant 1 : index
    %c1_53 = arith.constant 1 : index
    %c0_54 = arith.constant 0 : index
    %c0_55 = arith.constant 0 : index
    %62 = vector.load %arg4[%c1_52, %c1_53, %c0_54, %c0_55] : memref<3x3x64x128xbf16, #tpu.memory_space<vmem>>, vector<1x1x64x128xbf16>
    %63 = vector.shape_cast %62 : vector<1x1x64x128xbf16> to vector<64x128xbf16>
    %cst_56 = arith.constant dense<0.000000e+00> : vector<448x128xf32>
    %64 = tpu.matmul %55, %63, %cst_56 {dimension_numbers = #tpu.dot_dimension_numbers<[1], [0], [0], [1], [0, 0, 1, 1], [], []>} : vector<448x64xbf16>, vector<64x128xbf16>, vector<448x128xf32> -> vector<448x128xf32>
    %65 = vector.shape_cast %64 : vector<448x128xf32> to vector<4x7x16x128xf32>
    %66 = vector.extract_strided_slice %65 {offsets = [0, 0, 1, 0], sizes = [4, 7, 7, 128], strides = [1, 1, 1, 1]} : vector<4x7x16x128xf32> to vector<4x7x7x128xf32>
    %67 = arith.addf %61, %66 : vector<4x7x7x128xf32>
    %c1_57 = arith.constant 1 : index
    %c2_58 = arith.constant 2 : index
    %c0_59 = arith.constant 0 : index
    %c0_60 = arith.constant 0 : index
    %68 = vector.load %arg4[%c1_57, %c2_58, %c0_59, %c0_60] : memref<3x3x64x128xbf16, #tpu.memory_space<vmem>>, vector<1x1x64x128xbf16>
    %69 = vector.shape_cast %68 : vector<1x1x64x128xbf16> to vector<64x128xbf16>
    %cst_61 = arith.constant dense<0.000000e+00> : vector<448x128xf32>
    %70 = tpu.matmul %55, %69, %cst_61 {dimension_numbers = #tpu.dot_dimension_numbers<[1], [0], [0], [1], [0, 0, 1, 1], [], []>} : vector<448x64xbf16>, vector<64x128xbf16>, vector<448x128xf32> -> vector<448x128xf32>
    %71 = vector.shape_cast %70 : vector<448x128xf32> to vector<4x7x16x128xf32>
    %72 = vector.extract_strided_slice %71 {offsets = [0, 0, 2, 0], sizes = [4, 7, 7, 128], strides = [1, 1, 1, 1]} : vector<4x7x16x128xf32> to vector<4x7x7x128xf32>
    %73 = arith.addf %67, %72 : vector<4x7x7x128xf32>
    %c0_62 = arith.constant 0 : index
    %c2_63 = arith.constant 2 : index
    %c0_64 = arith.constant 0 : index
    %c0_65 = arith.constant 0 : index
    %74 = vector.load %arg9[%c0_62, %c2_63, %c0_64, %c0_65] : memref<4x9x16x64xbf16, #tpu.memory_space<vmem>>, vector<4x7x16x64xbf16>
    %75 = vector.shape_cast %74 : vector<4x7x16x64xbf16> to vector<448x64xbf16>
    %c2_66 = arith.constant 2 : index
    %c0_67 = arith.constant 0 : index
    %c0_68 = arith.constant 0 : index
    %c0_69 = arith.constant 0 : index
    %76 = vector.load %arg4[%c2_66, %c0_67, %c0_68, %c0_69] : memref<3x3x64x128xbf16, #tpu.memory_space<vmem>>, vector<1x1x64x128xbf16>
    %77 = vector.shape_cast %76 : vector<1x1x64x128xbf16> to vector<64x128xbf16>
    %cst_70 = arith.constant dense<0.000000e+00> : vector<448x128xf32>
    %78 = tpu.matmul %75, %77, %cst_70 {dimension_numbers = #tpu.dot_dimension_numbers<[1], [0], [0], [1], [0, 0, 1, 1], [], []>} : vector<448x64xbf16>, vector<64x128xbf16>, vector<448x128xf32> -> vector<448x128xf32>
    %79 = vector.shape_cast %78 : vector<448x128xf32> to vector<4x7x16x128xf32>
    %80 = vector.extract_strided_slice %79 {offsets = [0, 0, 0, 0], sizes = [4, 7, 7, 128], strides = [1, 1, 1, 1]} : vector<4x7x16x128xf32> to vector<4x7x7x128xf32>
    %81 = arith.addf %73, %80 : vector<4x7x7x128xf32>
    %c2_71 = arith.constant 2 : index
    %c1_72 = arith.constant 1 : index
    %c0_73 = arith.constant 0 : index
    %c0_74 = arith.constant 0 : index
    %82 = vector.load %arg4[%c2_71, %c1_72, %c0_73, %c0_74] : memref<3x3x64x128xbf16, #tpu.memory_space<vmem>>, vector<1x1x64x128xbf16>
    %83 = vector.shape_cast %82 : vector<1x1x64x128xbf16> to vector<64x128xbf16>
    %cst_75 = arith.constant dense<0.000000e+00> : vector<448x128xf32>
    %84 = tpu.matmul %75, %83, %cst_75 {dimension_numbers = #tpu.dot_dimension_numbers<[1], [0], [0], [1], [0, 0, 1, 1], [], []>} : vector<448x64xbf16>, vector<64x128xbf16>, vector<448x128xf32> -> vector<448x128xf32>
    %85 = vector.shape_cast %84 : vector<448x128xf32> to vector<4x7x16x128xf32>
    %86 = vector.extract_strided_slice %85 {offsets = [0, 0, 1, 0], sizes = [4, 7, 7, 128], strides = [1, 1, 1, 1]} : vector<4x7x16x128xf32> to vector<4x7x7x128xf32>
    %87 = arith.addf %81, %86 : vector<4x7x7x128xf32>
    %c2_76 = arith.constant 2 : index
    %c2_77 = arith.constant 2 : index
    %c0_78 = arith.constant 0 : index
    %c0_79 = arith.constant 0 : index
    %88 = vector.load %arg4[%c2_76, %c2_77, %c0_78, %c0_79] : memref<3x3x64x128xbf16, #tpu.memory_space<vmem>>, vector<1x1x64x128xbf16>
    %89 = vector.shape_cast %88 : vector<1x1x64x128xbf16> to vector<64x128xbf16>
    %cst_80 = arith.constant dense<0.000000e+00> : vector<448x128xf32>
    %90 = tpu.matmul %75, %89, %cst_80 {dimension_numbers = #tpu.dot_dimension_numbers<[1], [0], [0], [1], [0, 0, 1, 1], [], []>} : vector<448x64xbf16>, vector<64x128xbf16>, vector<448x128xf32> -> vector<448x128xf32>
    %91 = vector.shape_cast %90 : vector<448x128xf32> to vector<4x7x16x128xf32>
    %92 = vector.extract_strided_slice %91 {offsets = [0, 0, 2, 0], sizes = [4, 7, 7, 128], strides = [1, 1, 1, 1]} : vector<4x7x16x128xf32> to vector<4x7x7x128xf32>
    %93 = arith.addf %87, %92 : vector<4x7x7x128xf32>
    %94 = vector.extract_strided_slice %93 {offsets = [0, 0, 0, 0], sizes = [4, 7, 7, 32], strides = [1, 1, 1, 1]} : vector<4x7x7x128xf32> to vector<4x7x7x32xf32>
    %95 = vector.extract_strided_slice %93 {offsets = [0, 0, 0, 32], sizes = [4, 7, 7, 32], strides = [1, 1, 1, 1]} : vector<4x7x7x128xf32> to vector<4x7x7x32xf32>
    %96 = arith.maximumf %94, %95 : vector<4x7x7x32xf32>
    %97 = vector.extract_strided_slice %93 {offsets = [0, 0, 0, 64], sizes = [4, 7, 7, 32], strides = [1, 1, 1, 1]} : vector<4x7x7x128xf32> to vector<4x7x7x32xf32>
    %98 = vector.extract_strided_slice %93 {offsets = [0, 0, 0, 96], sizes = [4, 7, 7, 32], strides = [1, 1, 1, 1]} : vector<4x7x7x128xf32> to vector<4x7x7x32xf32>
    %99 = arith.maximumf %97, %98 : vector<4x7x7x32xf32>
    %100 = arith.maximumf %96, %99 : vector<4x7x7x32xf32>
    %c0_81 = arith.constant 0 : index
    %c0_82 = arith.constant 0 : index
    %101 = vector.load %arg5[%c0_81, %c0_82] : memref<1x32xf32, #tpu.memory_space<vmem>>, vector<1x32xf32>
    %102 = vector.shape_cast %101 : vector<1x32xf32> to vector<1x1x1x32xf32>
    %103 = vector.broadcast %102 : vector<1x1x1x32xf32> to vector<4x7x7x32xf32>
    %104 = arith.addf %100, %103 : vector<4x7x7x32xf32>
    %cst_83 = arith.constant 0.000000e+00 : f32
    %105 = vector.broadcast %cst_83 : f32 to vector<4x7x7x32xf32>
    %106 = arith.maximumf %104, %105 : vector<4x7x7x32xf32>
    %107 = arith.truncf %106 : vector<4x7x7x32xf32> to vector<4x7x7x32xbf16>
    %108 = vector.extract_strided_slice %107 {offsets = [0, 0, 0, 0], sizes = [4, 1, 1, 32], strides = [1, 1, 1, 1]} : vector<4x7x7x32xbf16> to vector<4x1x1x32xbf16>
    %109 = vector.shape_cast %108 : vector<4x1x1x32xbf16> to vector<4x32xbf16>
    %110 = vector.extract_strided_slice %107 {offsets = [0, 0, 1, 0], sizes = [4, 1, 1, 32], strides = [1, 1, 1, 1]} : vector<4x7x7x32xbf16> to vector<4x1x1x32xbf16>
    %111 = vector.shape_cast %110 : vector<4x1x1x32xbf16> to vector<4x32xbf16>
    %112 = vector.extract_strided_slice %107 {offsets = [0, 0, 2, 0], sizes = [4, 1, 1, 32], strides = [1, 1, 1, 1]} : vector<4x7x7x32xbf16> to vector<4x1x1x32xbf16>
    %113 = vector.shape_cast %112 : vector<4x1x1x32xbf16> to vector<4x32xbf16>
    %114 = vector.extract_strided_slice %107 {offsets = [0, 0, 3, 0], sizes = [4, 1, 1, 32], strides = [1, 1, 1, 1]} : vector<4x7x7x32xbf16> to vector<4x1x1x32xbf16>
    %115 = vector.shape_cast %114 : vector<4x1x1x32xbf16> to vector<4x32xbf16>
    %116 = vector.extract_strided_slice %107 {offsets = [0, 0, 4, 0], sizes = [4, 1, 1, 32], strides = [1, 1, 1, 1]} : vector<4x7x7x32xbf16> to vector<4x1x1x32xbf16>
    %117 = vector.shape_cast %116 : vector<4x1x1x32xbf16> to vector<4x32xbf16>
    %118 = vector.extract_strided_slice %107 {offsets = [0, 0, 5, 0], sizes = [4, 1, 1, 32], strides = [1, 1, 1, 1]} : vector<4x7x7x32xbf16> to vector<4x1x1x32xbf16>
    %119 = vector.shape_cast %118 : vector<4x1x1x32xbf16> to vector<4x32xbf16>
    %120 = vector.extract_strided_slice %107 {offsets = [0, 0, 6, 0], sizes = [4, 1, 1, 32], strides = [1, 1, 1, 1]} : vector<4x7x7x32xbf16> to vector<4x1x1x32xbf16>
    %121 = vector.shape_cast %120 : vector<4x1x1x32xbf16> to vector<4x32xbf16>
    %122 = vector.extract_strided_slice %107 {offsets = [0, 1, 0, 0], sizes = [4, 1, 1, 32], strides = [1, 1, 1, 1]} : vector<4x7x7x32xbf16> to vector<4x1x1x32xbf16>
    %123 = vector.shape_cast %122 : vector<4x1x1x32xbf16> to vector<4x32xbf16>
    %124 = vector.extract_strided_slice %107 {offsets = [0, 1, 1, 0], sizes = [4, 1, 1, 32], strides = [1, 1, 1, 1]} : vector<4x7x7x32xbf16> to vector<4x1x1x32xbf16>
    %125 = vector.shape_cast %124 : vector<4x1x1x32xbf16> to vector<4x32xbf16>
    %126 = vector.extract_strided_slice %107 {offsets = [0, 1, 2, 0], sizes = [4, 1, 1, 32], strides = [1, 1, 1, 1]} : vector<4x7x7x32xbf16> to vector<4x1x1x32xbf16>
    %127 = vector.shape_cast %126 : vector<4x1x1x32xbf16> to vector<4x32xbf16>
    %128 = vector.extract_strided_slice %107 {offsets = [0, 1, 3, 0], sizes = [4, 1, 1, 32], strides = [1, 1, 1, 1]} : vector<4x7x7x32xbf16> to vector<4x1x1x32xbf16>
    %129 = vector.shape_cast %128 : vector<4x1x1x32xbf16> to vector<4x32xbf16>
    %130 = vector.extract_strided_slice %107 {offsets = [0, 1, 4, 0], sizes = [4, 1, 1, 32], strides = [1, 1, 1, 1]} : vector<4x7x7x32xbf16> to vector<4x1x1x32xbf16>
    %131 = vector.shape_cast %130 : vector<4x1x1x32xbf16> to vector<4x32xbf16>
    %132 = vector.extract_strided_slice %107 {offsets = [0, 1, 5, 0], sizes = [4, 1, 1, 32], strides = [1, 1, 1, 1]} : vector<4x7x7x32xbf16> to vector<4x1x1x32xbf16>
    %133 = vector.shape_cast %132 : vector<4x1x1x32xbf16> to vector<4x32xbf16>
    %134 = vector.extract_strided_slice %107 {offsets = [0, 1, 6, 0], sizes = [4, 1, 1, 32], strides = [1, 1, 1, 1]} : vector<4x7x7x32xbf16> to vector<4x1x1x32xbf16>
    %135 = vector.shape_cast %134 : vector<4x1x1x32xbf16> to vector<4x32xbf16>
    %136 = vector.extract_strided_slice %107 {offsets = [0, 2, 0, 0], sizes = [4, 1, 1, 32], strides = [1, 1, 1, 1]} : vector<4x7x7x32xbf16> to vector<4x1x1x32xbf16>
    %137 = vector.shape_cast %136 : vector<4x1x1x32xbf16> to vector<4x32xbf16>
    %138 = vector.extract_strided_slice %107 {offsets = [0, 2, 1, 0], sizes = [4, 1, 1, 32], strides = [1, 1, 1, 1]} : vector<4x7x7x32xbf16> to vector<4x1x1x32xbf16>
    %139 = vector.shape_cast %138 : vector<4x1x1x32xbf16> to vector<4x32xbf16>
    %140 = vector.extract_strided_slice %107 {offsets = [0, 2, 2, 0], sizes = [4, 1, 1, 32], strides = [1, 1, 1, 1]} : vector<4x7x7x32xbf16> to vector<4x1x1x32xbf16>
    %141 = vector.shape_cast %140 : vector<4x1x1x32xbf16> to vector<4x32xbf16>
    %142 = vector.extract_strided_slice %107 {offsets = [0, 2, 3, 0], sizes = [4, 1, 1, 32], strides = [1, 1, 1, 1]} : vector<4x7x7x32xbf16> to vector<4x1x1x32xbf16>
    %143 = vector.shape_cast %142 : vector<4x1x1x32xbf16> to vector<4x32xbf16>
    %144 = vector.extract_strided_slice %107 {offsets = [0, 2, 4, 0], sizes = [4, 1, 1, 32], strides = [1, 1, 1, 1]} : vector<4x7x7x32xbf16> to vector<4x1x1x32xbf16>
    %145 = vector.shape_cast %144 : vector<4x1x1x32xbf16> to vector<4x32xbf16>
    %146 = vector.extract_strided_slice %107 {offsets = [0, 2, 5, 0], sizes = [4, 1, 1, 32], strides = [1, 1, 1, 1]} : vector<4x7x7x32xbf16> to vector<4x1x1x32xbf16>
    %147 = vector.shape_cast %146 : vector<4x1x1x32xbf16> to vector<4x32xbf16>
    %148 = vector.extract_strided_slice %107 {offsets = [0, 2, 6, 0], sizes = [4, 1, 1, 32], strides = [1, 1, 1, 1]} : vector<4x7x7x32xbf16> to vector<4x1x1x32xbf16>
    %149 = vector.shape_cast %148 : vector<4x1x1x32xbf16> to vector<4x32xbf16>
    %150 = vector.extract_strided_slice %107 {offsets = [0, 3, 0, 0], sizes = [4, 1, 1, 32], strides = [1, 1, 1, 1]} : vector<4x7x7x32xbf16> to vector<4x1x1x32xbf16>
    %151 = vector.shape_cast %150 : vector<4x1x1x32xbf16> to vector<4x32xbf16>
    %152 = vector.extract_strided_slice %107 {offsets = [0, 3, 1, 0], sizes = [4, 1, 1, 32], strides = [1, 1, 1, 1]} : vector<4x7x7x32xbf16> to vector<4x1x1x32xbf16>
    %153 = vector.shape_cast %152 : vector<4x1x1x32xbf16> to vector<4x32xbf16>
    %154 = vector.extract_strided_slice %107 {offsets = [0, 3, 2, 0], sizes = [4, 1, 1, 32], strides = [1, 1, 1, 1]} : vector<4x7x7x32xbf16> to vector<4x1x1x32xbf16>
    %155 = vector.shape_cast %154 : vector<4x1x1x32xbf16> to vector<4x32xbf16>
    %156 = vector.extract_strided_slice %107 {offsets = [0, 3, 3, 0], sizes = [4, 1, 1, 32], strides = [1, 1, 1, 1]} : vector<4x7x7x32xbf16> to vector<4x1x1x32xbf16>
    %157 = vector.shape_cast %156 : vector<4x1x1x32xbf16> to vector<4x32xbf16>
    %158 = vector.extract_strided_slice %107 {offsets = [0, 3, 4, 0], sizes = [4, 1, 1, 32], strides = [1, 1, 1, 1]} : vector<4x7x7x32xbf16> to vector<4x1x1x32xbf16>
    %159 = vector.shape_cast %158 : vector<4x1x1x32xbf16> to vector<4x32xbf16>
    %160 = vector.extract_strided_slice %107 {offsets = [0, 3, 5, 0], sizes = [4, 1, 1, 32], strides = [1, 1, 1, 1]} : vector<4x7x7x32xbf16> to vector<4x1x1x32xbf16>
    %161 = vector.shape_cast %160 : vector<4x1x1x32xbf16> to vector<4x32xbf16>
    %162 = vector.extract_strided_slice %107 {offsets = [0, 3, 6, 0], sizes = [4, 1, 1, 32], strides = [1, 1, 1, 1]} : vector<4x7x7x32xbf16> to vector<4x1x1x32xbf16>
    %163 = vector.shape_cast %162 : vector<4x1x1x32xbf16> to vector<4x32xbf16>
    %164 = vector.extract_strided_slice %107 {offsets = [0, 4, 0, 0], sizes = [4, 1, 1, 32], strides = [1, 1, 1, 1]} : vector<4x7x7x32xbf16> to vector<4x1x1x32xbf16>
    %165 = vector.shape_cast %164 : vector<4x1x1x32xbf16> to vector<4x32xbf16>
    %166 = vector.extract_strided_slice %107 {offsets = [0, 4, 1, 0], sizes = [4, 1, 1, 32], strides = [1, 1, 1, 1]} : vector<4x7x7x32xbf16> to vector<4x1x1x32xbf16>
    %167 = vector.shape_cast %166 : vector<4x1x1x32xbf16> to vector<4x32xbf16>
    %168 = vector.extract_strided_slice %107 {offsets = [0, 4, 2, 0], sizes = [4, 1, 1, 32], strides = [1, 1, 1, 1]} : vector<4x7x7x32xbf16> to vector<4x1x1x32xbf16>
    %169 = vector.shape_cast %168 : vector<4x1x1x32xbf16> to vector<4x32xbf16>
    %170 = vector.extract_strided_slice %107 {offsets = [0, 4, 3, 0], sizes = [4, 1, 1, 32], strides = [1, 1, 1, 1]} : vector<4x7x7x32xbf16> to vector<4x1x1x32xbf16>
    %171 = vector.shape_cast %170 : vector<4x1x1x32xbf16> to vector<4x32xbf16>
    %172 = vector.extract_strided_slice %107 {offsets = [0, 4, 4, 0], sizes = [4, 1, 1, 32], strides = [1, 1, 1, 1]} : vector<4x7x7x32xbf16> to vector<4x1x1x32xbf16>
    %173 = vector.shape_cast %172 : vector<4x1x1x32xbf16> to vector<4x32xbf16>
    %174 = vector.extract_strided_slice %107 {offsets = [0, 4, 5, 0], sizes = [4, 1, 1, 32], strides = [1, 1, 1, 1]} : vector<4x7x7x32xbf16> to vector<4x1x1x32xbf16>
    %175 = vector.shape_cast %174 : vector<4x1x1x32xbf16> to vector<4x32xbf16>
    %176 = vector.extract_strided_slice %107 {offsets = [0, 4, 6, 0], sizes = [4, 1, 1, 32], strides = [1, 1, 1, 1]} : vector<4x7x7x32xbf16> to vector<4x1x1x32xbf16>
    %177 = vector.shape_cast %176 : vector<4x1x1x32xbf16> to vector<4x32xbf16>
    %178 = vector.extract_strided_slice %107 {offsets = [0, 5, 0, 0], sizes = [4, 1, 1, 32], strides = [1, 1, 1, 1]} : vector<4x7x7x32xbf16> to vector<4x1x1x32xbf16>
    %179 = vector.shape_cast %178 : vector<4x1x1x32xbf16> to vector<4x32xbf16>
    %180 = vector.extract_strided_slice %107 {offsets = [0, 5, 1, 0], sizes = [4, 1, 1, 32], strides = [1, 1, 1, 1]} : vector<4x7x7x32xbf16> to vector<4x1x1x32xbf16>
    %181 = vector.shape_cast %180 : vector<4x1x1x32xbf16> to vector<4x32xbf16>
    %182 = vector.extract_strided_slice %107 {offsets = [0, 5, 2, 0], sizes = [4, 1, 1, 32], strides = [1, 1, 1, 1]} : vector<4x7x7x32xbf16> to vector<4x1x1x32xbf16>
    %183 = vector.shape_cast %182 : vector<4x1x1x32xbf16> to vector<4x32xbf16>
    %184 = vector.extract_strided_slice %107 {offsets = [0, 5, 3, 0], sizes = [4, 1, 1, 32], strides = [1, 1, 1, 1]} : vector<4x7x7x32xbf16> to vector<4x1x1x32xbf16>
    %185 = vector.shape_cast %184 : vector<4x1x1x32xbf16> to vector<4x32xbf16>
    %186 = vector.extract_strided_slice %107 {offsets = [0, 5, 4, 0], sizes = [4, 1, 1, 32], strides = [1, 1, 1, 1]} : vector<4x7x7x32xbf16> to vector<4x1x1x32xbf16>
    %187 = vector.shape_cast %186 : vector<4x1x1x32xbf16> to vector<4x32xbf16>
    %188 = vector.extract_strided_slice %107 {offsets = [0, 5, 5, 0], sizes = [4, 1, 1, 32], strides = [1, 1, 1, 1]} : vector<4x7x7x32xbf16> to vector<4x1x1x32xbf16>
    %189 = vector.shape_cast %188 : vector<4x1x1x32xbf16> to vector<4x32xbf16>
    %190 = vector.extract_strided_slice %107 {offsets = [0, 5, 6, 0], sizes = [4, 1, 1, 32], strides = [1, 1, 1, 1]} : vector<4x7x7x32xbf16> to vector<4x1x1x32xbf16>
    %191 = vector.shape_cast %190 : vector<4x1x1x32xbf16> to vector<4x32xbf16>
    %192 = vector.extract_strided_slice %107 {offsets = [0, 6, 0, 0], sizes = [4, 1, 1, 32], strides = [1, 1, 1, 1]} : vector<4x7x7x32xbf16> to vector<4x1x1x32xbf16>
    %193 = vector.shape_cast %192 : vector<4x1x1x32xbf16> to vector<4x32xbf16>
    %194 = vector.extract_strided_slice %107 {offsets = [0, 6, 1, 0], sizes = [4, 1, 1, 32], strides = [1, 1, 1, 1]} : vector<4x7x7x32xbf16> to vector<4x1x1x32xbf16>
    %195 = vector.shape_cast %194 : vector<4x1x1x32xbf16> to vector<4x32xbf16>
    %196 = vector.extract_strided_slice %107 {offsets = [0, 6, 2, 0], sizes = [4, 1, 1, 32], strides = [1, 1, 1, 1]} : vector<4x7x7x32xbf16> to vector<4x1x1x32xbf16>
    %197 = vector.shape_cast %196 : vector<4x1x1x32xbf16> to vector<4x32xbf16>
    %198 = vector.extract_strided_slice %107 {offsets = [0, 6, 3, 0], sizes = [4, 1, 1, 32], strides = [1, 1, 1, 1]} : vector<4x7x7x32xbf16> to vector<4x1x1x32xbf16>
    %199 = vector.shape_cast %198 : vector<4x1x1x32xbf16> to vector<4x32xbf16>
    %200 = vector.extract_strided_slice %107 {offsets = [0, 6, 4, 0], sizes = [4, 1, 1, 32], strides = [1, 1, 1, 1]} : vector<4x7x7x32xbf16> to vector<4x1x1x32xbf16>
    %201 = vector.shape_cast %200 : vector<4x1x1x32xbf16> to vector<4x32xbf16>
    %202 = vector.extract_strided_slice %107 {offsets = [0, 6, 5, 0], sizes = [4, 1, 1, 32], strides = [1, 1, 1, 1]} : vector<4x7x7x32xbf16> to vector<4x1x1x32xbf16>
    %203 = vector.shape_cast %202 : vector<4x1x1x32xbf16> to vector<4x32xbf16>
    %204 = vector.extract_strided_slice %107 {offsets = [0, 6, 6, 0], sizes = [4, 1, 1, 32], strides = [1, 1, 1, 1]} : vector<4x7x7x32xbf16> to vector<4x1x1x32xbf16>
    %205 = vector.shape_cast %204 : vector<4x1x1x32xbf16> to vector<4x32xbf16>
    %206 = tpu.concatenate %109, %111, %113, %115, %117, %119, %121, %123, %125, %127, %129, %131, %133, %135, %137, %139 in 1 : vector<4x32xbf16>, vector<4x32xbf16>, vector<4x32xbf16>, vector<4x32xbf16>, vector<4x32xbf16>, vector<4x32xbf16>, vector<4x32xbf16>, vector<4x32xbf16>, vector<4x32xbf16>, vector<4x32xbf16>, vector<4x32xbf16>, vector<4x32xbf16>, vector<4x32xbf16>, vector<4x32xbf16>, vector<4x32xbf16>, vector<4x32xbf16> -> vector<4x512xbf16>
    %207 = tpu.concatenate %141, %143, %145, %147, %149, %151, %153, %155, %157, %159, %161, %163, %165, %167, %169, %171 in 1 : vector<4x32xbf16>, vector<4x32xbf16>, vector<4x32xbf16>, vector<4x32xbf16>, vector<4x32xbf16>, vector<4x32xbf16>, vector<4x32xbf16>, vector<4x32xbf16>, vector<4x32xbf16>, vector<4x32xbf16>, vector<4x32xbf16>, vector<4x32xbf16>, vector<4x32xbf16>, vector<4x32xbf16>, vector<4x32xbf16>, vector<4x32xbf16> -> vector<4x512xbf16>
    %208 = tpu.concatenate %173, %175, %177, %179, %181, %183, %185, %187, %189, %191, %193, %195, %197, %199, %201, %203 in 1 : vector<4x32xbf16>, vector<4x32xbf16>, vector<4x32xbf16>, vector<4x32xbf16>, vector<4x32xbf16>, vector<4x32xbf16>, vector<4x32xbf16>, vector<4x32xbf16>, vector<4x32xbf16>, vector<4x32xbf16>, vector<4x32xbf16>, vector<4x32xbf16>, vector<4x32xbf16>, vector<4x32xbf16>, vector<4x32xbf16>, vector<4x32xbf16> -> vector<4x512xbf16>
    %209 = tpu.concatenate %206, %207, %208, %205 in 1 : vector<4x512xbf16>, vector<4x512xbf16>, vector<4x512xbf16>, vector<4x32xbf16> -> vector<4x1568xbf16>
    %c0_84 = arith.constant 0 : index
    %c0_85 = arith.constant 0 : index
    %210 = vector.load %arg6[%c0_84, %c0_85] : memref<1568x128xbf16, #tpu.memory_space<vmem>>, vector<1568x128xbf16>
    %cst_86 = arith.constant dense<0.000000e+00> : vector<4x128xf32>
    %211 = tpu.matmul %209, %210, %cst_86 {dimension_numbers = #tpu.dot_dimension_numbers<[1], [0], [0], [1], [0, 0, 1, 1], [], []>} : vector<4x1568xbf16>, vector<1568x128xbf16>, vector<4x128xf32> -> vector<4x128xf32>
    %c0_87 = arith.constant 0 : index
    %c0_88 = arith.constant 0 : index
    %212 = vector.load %arg7[%c0_87, %c0_88] : memref<1x128xf32, #tpu.memory_space<vmem>>, vector<1x128xf32>
    %213 = vector.broadcast %212 : vector<1x128xf32> to vector<4x128xf32>
    %214 = arith.addf %211, %213 : vector<4x128xf32>
    %c0_89 = arith.constant 0 : index
    %c0_90 = arith.constant 0 : index
    %c0_91 = arith.constant 0 : index
    %215 = vector.load %arg8[%c0_89, %c0_90, %c0_91] : memref<1x4x128xf32, #tpu.memory_space<vmem>>, vector<1x4x128xf32>
    %216 = vector.shape_cast %215 : vector<1x4x128xf32> to vector<4x128xf32>
    %217 = vector.shape_cast %214 : vector<4x128xf32> to vector<1x4x128xf32>
    tpu.vector_store %arg8[%c0_89, %c0_90, %c0_91], %217 {strides = array<i32>} : memref<1x4x128xf32, #tpu.memory_space<vmem>>, vector<1x4x128xf32>,
    return
  }
  func.func @transform_0(%arg0: i32) -> (i32, i32, i32) {
    %c0_i32 = arith.constant 0 : i32
    %c0_i32_0 = arith.constant 0 : i32
    %c0_i32_1 = arith.constant 0 : i32
    return %arg0, %c0_i32, %c0_i32_0 : i32, i32, i32
  }
  func.func @transform_1(%arg0: i32) -> (i32, i32) {
    %c0_i32 = arith.constant 0 : i32
    %c0_i32_0 = arith.constant 0 : i32
    %c0_i32_1 = arith.constant 0 : i32
    return %c0_i32, %c0_i32_0 : i32, i32
  }
  func.func @transform_2(%arg0: i32) -> (i32, i32) {
    %c0_i32 = arith.constant 0 : i32
    %c0_i32_0 = arith.constant 0 : i32
    %c0_i32_1 = arith.constant 0 : i32
    return %c0_i32, %c0_i32_0 : i32, i32
  }
  func.func @transform_3(%arg0: i32) -> (i32, i32, i32, i32) {
    %c0_i32 = arith.constant 0 : i32
    %c0_i32_0 = arith.constant 0 : i32
    %c0_i32_1 = arith.constant 0 : i32
    %c0_i32_2 = arith.constant 0 : i32
    %c0_i32_3 = arith.constant 0 : i32
    return %c0_i32, %c0_i32_0, %c0_i32_1, %c0_i32_2 : i32, i32, i32, i32
  }
  func.func @transform_4(%arg0: i32) -> (i32, i32) {
    %c0_i32 = arith.constant 0 : i32
    %c0_i32_0 = arith.constant 0 : i32
    %c0_i32_1 = arith.constant 0 : i32
    return %c0_i32, %c0_i32_0 : i32, i32
  }
  func.func @transform_5(%arg0: i32) -> (i32, i32) {
    %c0_i32 = arith.constant 0 : i32
    %c0_i32_0 = arith.constant 0 : i32
    %c0_i32_1 = arith.constant 0 : i32
    return %c0_i32, %c0_i32_0 : i32, i32
  }
  func.func @transform_6(%arg0: i32) -> (i32, i32) {
    %c0_i32 = arith.constant 0 : i32
    %c0_i32_0 = arith.constant 0 : i32
    %c0_i32_1 = arith.constant 0 : i32
    return %c0_i32, %c0_i32_0 : i32, i32
  }
  func.func @transform_7(%arg0: i32) -> (i32, i32, i32) {
    %c0_i32 = arith.constant 0 : i32
    %c0_i32_0 = arith.constant 0 : i32
    %c0_i32_1 = arith.constant 0 : i32
    return %arg0, %c0_i32, %c0_i32_0 : i32, i32, i32
  }
}

</mosaic_0001>

<llo_original>
// kernel: cnn_forward.1
$region0: #{cnn_forward.1}
  #allocation0 [shape = 'u32[]', space=smem, size = 0x4, offset = 0x4, fixed_abs, tag = 'smem constant byte address 0x4 - core index']
  #allocation1 [shape = 'u32[72,128]{1,0:T(1,128)}', space=vmem, size = 0x9000, scoped, tag = 'internal scratch']
  #allocation2 [shape = 'bf16[4,9,16,64]{3,2,1,0:T(8,128)(2,1)}', space=vmem, size = 0x24000, scoped, tag = 'scratch operand']
  %s0 = inlined_call_operand.vmem [shape: bf16[8,224,36], index: 0, kind: input, shape index: {}]
  %s1 = inlined_call_operand.vmem [shape: bf16[36,64], index: 1, kind: input, shape index: {}]
  %s2 = inlined_call_operand.vmem [shape: f32[1,16], index: 2, kind: input, shape index: {}]
  %s3 = inlined_call_operand.vmem [shape: bf16[3,3,64,128], index: 3, kind: input, shape index: {}]
  %s4 = inlined_call_operand.vmem [shape: f32[1,32], index: 4, kind: input, shape index: {}]
  %s5 = inlined_call_operand.vmem [shape: bf16[1568,128], index: 5, kind: input, shape index: {}]
  %s6 = inlined_call_operand.vmem [shape: f32[1,128], index: 6, kind: input, shape index: {}]
  %s7 = inlined_call_operand.hbm [shape: f32[2,4,128], index: 7, kind: output, shape index: {}]
  %s8 = sld [smem:[#allocation0]]
  $region61: #{cnn_forward.1} parent=0
    _
  %s10 = ssub.s32 1, %s8
  %s11 = scalar_select 0, %s10, %s8
  $region1: #{cnn_forward.1} parent=0
    #allocation3 [shape = 'u8[4096]{0}', space=vmem, size = 0x1000, scoped, tag = 'output window, operand 0']
    #allocation4 [shape = 's32[2]{0}', space=sflag, size = 0x8, scoped, tag = 'scoped memory for cnn_forward.1']
    %12 = vsyncpa [#allocation4], 0
    %s13 = scalar_lea.sflag [#allocation4], 1
    %14 = vsyncpa %s13, 0
    loop: start=0, step=1, limit=4
    $region2: #{cnn_forward.1} parent=1 // loop_pre_header
      _
    $region3: #{cnn_forward.1} parent=1 // loop_header
      %s16 = sphi 0, %s20
      %p17 = scmp.ge.s32.totalorder %s16, 4
      %s26 = sphi 0, %s28
      %s29 = sphi 0, %s26
      %s30 = sphi 0, %s29
      %s46 = sphi 0, %s30
      %s50 = sphi 0, %s50
      %s52 = sphi 0, %s50
      %s53 = sphi 0, %s52
      %s67 = sphi 0, %s53
      %s71 = sphi 0, %s71
      %s73 = sphi 0, %s71
      %s74 = sphi 0, %s73
      %s88 = sphi 0, %s74
      %s92 = sphi 0, %s92
      %s94 = sphi 0, %s92
      %s95 = sphi 0, %s94
      %s109 = sphi 0, %s95
      %s113 = sphi 0, %s113
      %s115 = sphi 0, %s113
      %s116 = sphi 0, %s115
      %s130 = sphi 0, %s116
      %s134 = sphi 0, %s134
      %s136 = sphi 0, %s134
      %s137 = sphi 0, %s136
      %s151 = sphi 0, %s137
      %s155 = sphi 0, %s155
      %s157 = sphi 0, %s155
      %s158 = sphi 0, %s157
      %s172 = sphi 0, %s158
      %s178 = sphi 0, %s180
      %s181 = sphi 0, %s178
      %s182 = sphi 0, %s181
      %s198 = sphi 0, %s182
    $region4: #{cnn_forward.1} parent=1 // loop_header_branch
      %19 = sbr.rel (%p17) target = $region8
    $region5: #{cnn_forward.1} parent=1 // loop_body
      %s21 = ssub.s32 %s16, 1
      %s22 = ssub.s32 %s16, 2
      %s23 = sadd.s32 %s16, 1
      %s24 = ssub.s32 %s16, %s23
      %p25 = scmp.eq.s32.totalorder %s24, 0
      %s27 = sadd.s32 %s26, 1
      %s28 = scalar_select %p25, %s26, %s27
      %p31 = pneg %p25
      %p32 = scmp.eq.s32.totalorder %s16, 1
      %p33 = por %p31, %p32
      %p34 = scmp.ne.s32.totalorder %s26, %s29
      %p35 = scmp.eq.s32.totalorder %s16, 0
      %p36 = por %p34, %p35
      %p37 = scmp.ne.s32.totalorder %s26, %s29
      %p38 = scmp.eq.s32.totalorder %s21, 1
      %p39 = por %p37, %p38
      %p40 = scmp.ne.s32.totalorder %s29, %s30
      %p41 = scmp.eq.s32.totalorder %s21, 0
      %p42 = por %p40, %p41
      %p43 = scmp.ne.s32.totalorder %s29, %s30
      %p44 = scmp.eq.s32.totalorder %s22, 1
      %p45 = por %p43, %p44
      %p47 = scmp.ne.s32.totalorder %s30, %s46
      %p48 = scmp.eq.s32.totalorder %s22, 0
      %p49 = por %p47, %p48
      %s51 = sadd.s32 %s50, 1
      %p54 = scmp.eq.s32.totalorder %s16, 1
      %p55 = scmp.ne.s32.totalorder %s50, %s52
      %p56 = scmp.eq.s32.totalorder %s16, 0
      %p57 = por %p55, %p56
      %p58 = scmp.ne.s32.totalorder %s50, %s52
      %p59 = scmp.eq.s32.totalorder %s21, 1
      %p60 = por %p58, %p59
      %p61 = scmp.ne.s32.totalorder %s52, %s53
      %p62 = scmp.eq.s32.totalorder %s21, 0
      %p63 = por %p61, %p62
      %p64 = scmp.ne.s32.totalorder %s52, %s53
      %p65 = scmp.eq.s32.totalorder %s22, 1
      %p66 = por %p64, %p65
      %p68 = scmp.ne.s32.totalorder %s53, %s67
      %p69 = scmp.eq.s32.totalorder %s22, 0
      %p70 = por %p68, %p69
      %s72 = sadd.s32 %s71, 1
      %p75 = scmp.eq.s32.totalorder %s16, 1
      %p76 = scmp.ne.s32.totalorder %s71, %s73
      %p77 = scmp.eq.s32.totalorder %s16, 0
      %p78 = por %p76, %p77
      %p79 = scmp.ne.s32.totalorder %s71, %s73
      %p80 = scmp.eq.s32.totalorder %s21, 1
      %p81 = por %p79, %p80
      %p82 = scmp.ne.s32.totalorder %s73, %s74
      %p83 = scmp.eq.s32.totalorder %s21, 0
      %p84 = por %p82, %p83
      %p85 = scmp.ne.s32.totalorder %s73, %s74
      %p86 = scmp.eq.s32.totalorder %s22, 1
      %p87 = por %p85, %p86
      %p89 = scmp.ne.s32.totalorder %s74, %s88
      %p90 = scmp.eq.s32.totalorder %s22, 0
      %p91 = por %p89, %p90
      %s93 = sadd.s32 %s92, 1
      %p96 = scmp.eq.s32.totalorder %s16, 1
      %p97 = scmp.ne.s32.totalorder %s92, %s94
      %p98 = scmp.eq.s32.totalorder %s16, 0
      %p99 = por %p97, %p98
      %p100 = scmp.ne.s32.totalorder %s92, %s94
      %p101 = scmp.eq.s32.totalorder %s21, 1
      %p102 = por %p100, %p101
      %p103 = scmp.ne.s32.totalorder %s94, %s95
      %p104 = scmp.eq.s32.totalorder %s21, 0
      %p105 = por %p103, %p104
      %p106 = scmp.ne.s32.totalorder %s94, %s95
      %p107 = scmp.eq.s32.totalorder %s22, 1
      %p108 = por %p106, %p107
      %p110 = scmp.ne.s32.totalorder %s95, %s109
      %p111 = scmp.eq.s32.totalorder %s22, 0
      %p112 = por %p110, %p111
      %s114 = sadd.s32 %s113, 1
      %p117 = scmp.eq.s32.totalorder %s16, 1
      %p118 = scmp.ne.s32.totalorder %s113, %s115
      %p119 = scmp.eq.s32.totalorder %s16, 0
      %p120 = por %p118, %p119
      %p121 = scmp.ne.s32.totalorder %s113, %s115
      %p122 = scmp.eq.s32.totalorder %s21, 1
      %p123 = por %p121, %p122
      %p124 = scmp.ne.s32.totalorder %s115, %s116
      %p125 = scmp.eq.s32.totalorder %s21, 0
      %p126 = por %p124, %p125
      %p127 = scmp.ne.s32.totalorder %s115, %s116
      %p128 = scmp.eq.s32.totalorder %s22, 1
      %p129 = por %p127, %p128
      %p131 = scmp.ne.s32.totalorder %s116, %s130
      %p132 = scmp.eq.s32.totalorder %s22, 0
      %p133 = por %p131, %p132
      %s135 = sadd.s32 %s134, 1
      %p138 = scmp.eq.s32.totalorder %s16, 1
      %p139 = scmp.ne.s32.totalorder %s134, %s136
      %p140 = scmp.eq.s32.totalorder %s16, 0
      %p141 = por %p139, %p140
      %p142 = scmp.ne.s32.totalorder %s134, %s136
      %p143 = scmp.eq.s32.totalorder %s21, 1
      %p144 = por %p142, %p143
      %p145 = scmp.ne.s32.totalorder %s136, %s137
      %p146 = scmp.eq.s32.totalorder %s21, 0
      %p147 = por %p145, %p146
      %p148 = scmp.ne.s32.totalorder %s136, %s137
      %p149 = scmp.eq.s32.totalorder %s22, 1
      %p150 = por %p148, %p149
      %p152 = scmp.ne.s32.totalorder %s137, %s151
      %p153 = scmp.eq.s32.totalorder %s22, 0
      %p154 = por %p152, %p153
      %s156 = sadd.s32 %s155, 1
      %p159 = scmp.eq.s32.totalorder %s16, 1
      %p160 = scmp.ne.s32.totalorder %s155, %s157
      %p161 = scmp.eq.s32.totalorder %s16, 0
      %p162 = por %p160, %p161
      %p163 = scmp.ne.s32.totalorder %s155, %s157
      %p164 = scmp.eq.s32.totalorder %s21, 1
      %p165 = por %p163, %p164
      %p166 = scmp.ne.s32.totalorder %s157, %s158
      %p167 = scmp.eq.s32.totalorder %s21, 0
      %p168 = por %p166, %p167
      %p169 = scmp.ne.s32.totalorder %s157, %s158
      %p170 = scmp.eq.s32.totalorder %s22, 1
      %p171 = por %p169, %p170
      %p173 = scmp.ne.s32.totalorder %s158, %s172
      %p174 = scmp.eq.s32.totalorder %s22, 0
      %p175 = por %p173, %p174
      %s176 = ssub.s32 %s16, %s23
      %p177 = scmp.eq.s32.totalorder %s176, 0
      %s179 = sadd.s32 %s178, 1
      %s180 = scalar_select %p177, %s178, %s179
      %p183 = pneg %p177
      %p184 = scmp.eq.s32.totalorder %s16, 1
      %p185 = por %p183, %p184
      %p186 = scmp.ne.s32.totalorder %s178, %s181
      %p187 = scmp.eq.s32.totalorder %s16, 0
      %p188 = por %p186, %p187
      %p189 = scmp.ne.s32.totalorder %s178, %s181
      %p190 = scmp.eq.s32.totalorder %s21, 1
      %p191 = por %p189, %p190
      %p192 = scmp.ne.s32.totalorder %s181, %s182
      %p193 = scmp.eq.s32.totalorder %s21, 0
      %p194 = por %p192, %p193
      %p195 = scmp.ne.s32.totalorder %s181, %s182
      %p196 = scmp.eq.s32.totalorder %s22, 1
      %p197 = por %p195, %p196
      %p199 = scmp.ne.s32.totalorder %s182, %s198
      %p200 = scmp.eq.s32.totalorder %s22, 0
      %p201 = por %p199, %p200
      %p202 = scmp.le.s32.totalorder 1, %s16
      %p203 = scmp.lt.s32.totalorder %s16, 3
      %p204 = pnand %p202, %p203
      %p205 = pneg %p204
      // Predicated region
      $region9: #{cnn_forward.1} parent=5 // pred_check
        _
      $region10: #{cnn_forward.1} parent=5 // pred_check_branch
        %207 = sbr.rel (%p204) target = $region12
      $region11: #{cnn_forward.1} parent=5 // pred_region
        %s208 = ssub.s32 %s16, 1
        // Predicated region
        $region13: #{cnn_forward.1} parent=11 // pred_check
          %p209 = pneg %p63
        $region14: #{cnn_forward.1} parent=11 // pred_check_branch
          %211 = sbr.rel (%p209) target = $region16
        $region15: #{cnn_forward.1} parent=11 // pred_region
          _
        $region16: #{cnn_forward.1} parent=11 // pred_fallthru
          _
        // Predicated region
        $region17: #{cnn_forward.1} parent=11 // pred_check
          %p212 = pneg %p84
        $region18: #{cnn_forward.1} parent=11 // pred_check_branch
          %214 = sbr.rel (%p212) target = $region20
        $region19: #{cnn_forward.1} parent=11 // pred_region
          _
        $region20: #{cnn_forward.1} parent=11 // pred_fallthru
          _
        // Predicated region
        $region21: #{cnn_forward.1} parent=11 // pred_check
          %p215 = pneg %p105
        $region22: #{cnn_forward.1} parent=11 // pred_check_branch
          %217 = sbr.rel (%p215) target = $region24
        $region23: #{cnn_forward.1} parent=11 // pred_region
          _
        $region24: #{cnn_forward.1} parent=11 // pred_fallthru
          _
        // Predicated region
        $region25: #{cnn_forward.1} parent=11 // pred_check
          %p218 = pneg %p126
        $region26: #{cnn_forward.1} parent=11 // pred_check_branch
          %220 = sbr.rel (%p218) target = $region28
        $region27: #{cnn_forward.1} parent=11 // pred_region
          _
        $region28: #{cnn_forward.1} parent=11 // pred_fallthru
          _
        // Predicated region
        $region29: #{cnn_forward.1} parent=11 // pred_check
          %p221 = pneg %p147
        $region30: #{cnn_forward.1} parent=11 // pred_check_branch
          %223 = sbr.rel (%p221) target = $region32
        $region31: #{cnn_forward.1} parent=11 // pred_region
          _
        $region32: #{cnn_forward.1} parent=11 // pred_fallthru
          _
        // Predicated region
        $region33: #{cnn_forward.1} parent=11 // pred_check
          %p224 = pneg %p168
        $region34: #{cnn_forward.1} parent=11 // pred_check_branch
          %226 = sbr.rel (%p224) target = $region36
        $region35: #{cnn_forward.1} parent=11 // pred_region
          _
        $region36: #{cnn_forward.1} parent=11 // pred_fallthru
          _
      $region12: #{cnn_forward.1} parent=5 // pred_fallthru
        _
      %p227 = scmp.lt.s32.totalorder %s16, 2
      // Predicated region
      $region37: #{cnn_forward.1} parent=5 // pred_check
        %p228 = pneg %p227
      $region38: #{cnn_forward.1} parent=5 // pred_check_branch
        %230 = sbr.rel (%p228) target = $region40
      $region39: #{cnn_forward.1} parent=5 // pred_region
        // Predicated region
        $region41: #{cnn_forward.1} parent=39 // pred_check
          %p231 = pneg %p36
        $region42: #{cnn_forward.1} parent=39 // pred_check_branch
          %233 = sbr.rel (%p231) target = $region44
        $region43: #{cnn_forward.1} parent=39 // pred_region
          %s234 = smul.u32 4, %s16
          %p235 = scmp.lt.s32.totalorder %s234, 7
          %s236 = scalar_select %p235, %s234, 7
          %s237 = smul.addr %s236, 28
          %s238 = smul.addr %s237, 4
          %s239 = scalar_lea.vmem %s0, %s238
          %s240 = smul.u32 4, %s16
        $region44: #{cnn_forward.1} parent=39 // pred_fallthru
          _
      $region40: #{cnn_forward.1} parent=5 // pred_fallthru
        _
      %p241 = scmp.le.s32.totalorder 1, %s16
      %p242 = scmp.lt.s32.totalorder %s16, 3
      %p243 = pnand %p241, %p242
      %p244 = pneg %p243
      // Predicated region
      $region45: #{cnn_forward.1} parent=5 // pred_check
        _
      $region46: #{cnn_forward.1} parent=5 // pred_check_branch
        %246 = sbr.rel (%p243) target = $region48
      $region47: #{cnn_forward.1} parent=5 // pred_region
        %s247 = ssub.s32 %s16, 1
        %s248 = smul.u32 4, %s21
        %p249 = scmp.lt.s32.totalorder %s248, 7
        %s250 = scalar_select %p249, %s248, 7
        %s251 = smul.addr %s250, 28
        %s252 = smul.addr %s251, 4
        %s253 = scalar_lea.vmem %s0, %s252
        %p254 = pneg %p42
        %p255 = pneg %p39
        %p256 = pneg %p63
        %p257 = pneg %p60
        %p258 = pneg %p84
        %p259 = pneg %p81
        %p260 = pneg %p105
        %p261 = pneg %p102
        %p262 = pneg %p126
        %p263 = pneg %p123
        %p264 = pneg %p147
        %p265 = pneg %p144
        %p266 = pneg %p168
        %p267 = pneg %p165
        %p268 = pneg %p194
        %p269 = pneg %p191
        %s270 = sand.u32 %s181, 1
        %s271 = scalar_lea.sflag [#allocation4], %s270
        %s272 = sand.u32 %s181, 1
        %s273 = smul.addr %s272, 4
        %s274 = scalar_lea.vmem [#allocation3], %s273
        %s275 = smul.u32 4, %s21
        %p276 = scmp.lt.s32.totalorder %s275, 7
        %s277 = scalar_select %p276, %s275, 7
        %s278 = smul.addr %s277, 28
        %s279 = smul.addr %s278, 4
        %s280 = scalar_lea.vmem %s0, %s279
        %s281 = smul.u32 4, %s21
        %v283 = vld [vmem:[%s280] sm:$0xf]
        %v284 = vld [vmem:[%s280 + $0x4] sm:$0xf]
        %v285 = vld [vmem:[%s280 + $0x8] sm:$0xf]
        %v286 = vld [vmem:[%s280 + $0xc] sm:$0xf]
        %v287 = vld [vmem:[%s280 + $0x10] sm:$0xf]
        %v288 = vld [vmem:[%s280 + $0x14] sm:$0xf]
        %v289 = vld [vmem:[%s280 + $0x18] sm:$0xf]
        %v290 = vld [vmem:[%s280 + $0x1c] sm:$0xf]
        %v291 = vld [vmem:[%s280 + $0x20] sm:$0xf]
        %v292 = vld [vmem:[%s280 + $0x24] sm:$0xf]
        %v293 = vld [vmem:[%s280 + $0x28] sm:$0xf]
        %v294 = vld [vmem:[%s280 + $0x2c] sm:$0xf]
        %v295 = vld [vmem:[%s280 + $0x30] sm:$0xf]
        %v296 = vld [vmem:[%s280 + $0x34] sm:$0xf]
        %v297 = vld [vmem:[%s280 + $0x38] sm:$0xf]
        %v298 = vld [vmem:[%s280 + $0x3c] sm:$0xf]
        %v299 = vld [vmem:[%s280 + $0x40] sm:$0xf]
        %v300 = vld [vmem:[%s280 + $0x44] sm:$0xf]
        %v301 = vld [vmem:[%s280 + $0x48] sm:$0xf]
        %v302 = vld [vmem:[%s280 + $0x4c] sm:$0xf]
        %v303 = vld [vmem:[%s280 + $0x50] sm:$0xf]
        %v304 = vld [vmem:[%s280 + $0x54] sm:$0xf]
        %v305 = vld [vmem:[%s280 + $0x58] sm:$0xf]
        %v306 = vld [vmem:[%s280 + $0x5c] sm:$0xf]
        %v307 = vld [vmem:[%s280 + $0x60] sm:$0xf]
        %v308 = vld [vmem:[%s280 + $0x64] sm:$0xf]
        %v309 = vld [vmem:[%s280 + $0x68] sm:$0xf]
        %v310 = vld [vmem:[%s280 + $0x6c] sm:$0xf]
        %v311 = vld [vmem:[%s280 + $0x70] sm:$0xf]
        %v312 = vld [vmem:[%s280 + $0x74] sm:$0xf]
        %v313 = vld [vmem:[%s280 + $0x78] sm:$0xf]
        %v314 = vld [vmem:[%s280 + $0x7c] sm:$0xf]
        %v315 = vld [vmem:[%s280 + $0x80] sm:$0xf]
        %v316 = vld [vmem:[%s280 + $0x84] sm:$0xf]
        %v317 = vld [vmem:[%s280 + $0x88] sm:$0xf]
        %v318 = vld [vmem:[%s280 + $0x8c] sm:$0xf]
        %v319 = vld [vmem:[%s280 + $0x90] sm:$0xf]
        %v320 = vld [vmem:[%s280 + $0x94] sm:$0xf]
        %v321 = vld [vmem:[%s280 + $0x98] sm:$0xf]
        %v322 = vld [vmem:[%s280 + $0x9c] sm:$0xf]
        %v323 = vld [vmem:[%s280 + $0xa0] sm:$0xf]
        %v324 = vld [vmem:[%s280 + $0xa4] sm:$0xf]
        %v325 = vld [vmem:[%s280 + $0xa8] sm:$0xf]
        %v326 = vld [vmem:[%s280 + $0xac] sm:$0xf]
        %v327 = vld [vmem:[%s280 + $0xb0] sm:$0xf]
        %v328 = vld [vmem:[%s280 + $0xb4] sm:$0xf]
        %v329 = vld [vmem:[%s280 + $0xb8] sm:$0xf]
        %v330 = vld [vmem:[%s280 + $0xbc] sm:$0xf]
        %v331 = vld [vmem:[%s280 + $0xc0] sm:$0xf]
        %v332 = vld [vmem:[%s280 + $0xc4] sm:$0xf]
        %v333 = vld [vmem:[%s280 + $0xc8] sm:$0xf]
        %v334 = vld [vmem:[%s280 + $0xcc] sm:$0xf]
        %v335 = vld [vmem:[%s280 + $0xd0] sm:$0xf]
        %v336 = vld [vmem:[%s280 + $0xd4] sm:$0xf]
        %v337 = vld [vmem:[%s280 + $0xd8] sm:$0xf]
        %v338 = vld [vmem:[%s280 + $0xdc] sm:$0xf]
        %v339 = vld [vmem:[%s280 + $0xe0] sm:$0xf]
        %v340 = vld [vmem:[%s280 + $0xe4] sm:$0xf]
        %v341 = vld [vmem:[%s280 + $0xe8] sm:$0xf]
        %v342 = vld [vmem:[%s280 + $0xec] sm:$0xf]
        %v343 = vld [vmem:[%s280 + $0xf0] sm:$0xf]
        %v344 = vld [vmem:[%s280 + $0xf4] sm:$0xf]
        %v345 = vld [vmem:[%s280 + $0xf8] sm:$0xf]
        %v346 = vld [vmem:[%s280 + $0xfc] sm:$0xf]
        %v347 = vld [vmem:[%s280 + $0x100] sm:$0xf]
        %v348 = vld [vmem:[%s280 + $0x104] sm:$0xf]
        %v349 = vld [vmem:[%s280 + $0x108] sm:$0xf]
        %v350 = vld [vmem:[%s280 + $0x10c] sm:$0xf]
        %v351 = vld [vmem:[%s280 + $0x110] sm:$0xf]
        %v352 = vld [vmem:[%s280 + $0x114] sm:$0xf]
        %v353 = vld [vmem:[%s280 + $0x118] sm:$0xf]
        %v354 = vld [vmem:[%s280 + $0x11c] sm:$0xf]
        %v355 = vld [vmem:[%s280 + $0x120] sm:$0xf]
        %v356 = vld [vmem:[%s280 + $0x124] sm:$0xf]
        %v357 = vld [vmem:[%s280 + $0x128] sm:$0xf]
        %v358 = vld [vmem:[%s280 + $0x12c] sm:$0xf]
        %v359 = vld [vmem:[%s280 + $0x130] sm:$0xf]
        %v360 = vld [vmem:[%s280 + $0x134] sm:$0xf]
        %v361 = vld [vmem:[%s280 + $0x138] sm:$0xf]
        %v362 = vld [vmem:[%s280 + $0x13c] sm:$0xf]
        %v363 = vld [vmem:[%s280 + $0x140] sm:$0xf]
        %v364 = vld [vmem:[%s280 + $0x144] sm:$0xf]
        %v365 = vld [vmem:[%s280 + $0x148] sm:$0xf]
        %v366 = vld [vmem:[%s280 + $0x14c] sm:$0xf]
        %v367 = vld [vmem:[%s280 + $0x150] sm:$0xf]
        %v368 = vld [vmem:[%s280 + $0x154] sm:$0xf]
        %v369 = vld [vmem:[%s280 + $0x158] sm:$0xf]
        %v370 = vld [vmem:[%s280 + $0x15c] sm:$0xf]
        %v371 = vld [vmem:[%s280 + $0x160] sm:$0xf]
        %v372 = vld [vmem:[%s280 + $0x164] sm:$0xf]
        %v373 = vld [vmem:[%s280 + $0x168] sm:$0xf]
        %v374 = vld [vmem:[%s280 + $0x16c] sm:$0xf]
        %v375 = vld [vmem:[%s280 + $0x170] sm:$0xf]
        %v376 = vld [vmem:[%s280 + $0x174] sm:$0xf]
        %v377 = vld [vmem:[%s280 + $0x178] sm:$0xf]
        %v378 = vld [vmem:[%s280 + $0x17c] sm:$0xf]
        %v379 = vld [vmem:[%s280 + $0x180] sm:$0xf]
        %v380 = vld [vmem:[%s280 + $0x184] sm:$0xf]
        %v381 = vld [vmem:[%s280 + $0x188] sm:$0xf]
        %v382 = vld [vmem:[%s280 + $0x18c] sm:$0xf]
        %v383 = vld [vmem:[%s280 + $0x190] sm:$0xf]
        %v384 = vld [vmem:[%s280 + $0x194] sm:$0xf]
        %v385 = vld [vmem:[%s280 + $0x198] sm:$0xf]
        %v386 = vld [vmem:[%s280 + $0x19c] sm:$0xf]
        %v387 = vld [vmem:[%s280 + $0x1a0] sm:$0xf]
        %v388 = vld [vmem:[%s280 + $0x1a4] sm:$0xf]
        %v389 = vld [vmem:[%s280 + $0x1a8] sm:$0xf]
        %v390 = vld [vmem:[%s280 + $0x1ac] sm:$0xf]
        %v391 = vld [vmem:[%s280 + $0x1b0] sm:$0xf]
        %v392 = vld [vmem:[%s280 + $0x1b4] sm:$0xf]
        %v393 = vld [vmem:[%s280 + $0x1b8] sm:$0xf]
        %v394 = vld [vmem:[%s280 + $0x1bc] sm:$0xf]
        %v395 = vld [vmem:[%s1] sm:$0xf]
        %v396 = vld [vmem:[%s1 + $0x4] sm:$0xf]
        %v397 = vld [vmem:[%s1 + $0x8] sm:$0xf]
        %v398 = vld [vmem:[%s1 + $0xc] sm:$0xf]
        %v399 = vld [vmem:[%s1 + $0x10] sm:$0x3]
        %v512 = vunpack.c.l.b16 %v283
        %v513 = vunpack.c.l.b16 %v284
        %v514 = vunpack.c.l.b16 %v285
        %v515 = vunpack.c.l.b16 %v286
        %v516 = vunpack.c.l.b16 %v287
        %v517 = vunpack.c.l.b16 %v288
        %v518 = vunpack.c.l.b16 %v289
        %v519 = vunpack.c.l.b16 %v290
        %v520 = vunpack.c.l.b16 %v291
        %v521 = vunpack.c.l.b16 %v292
        %v522 = vunpack.c.l.b16 %v293
        %v523 = vunpack.c.l.b16 %v294
        %v524 = vunpack.c.l.b16 %v295
        %v525 = vunpack.c.l.b16 %v296
        %v526 = vunpack.c.l.b16 %v297
        %v527 = vunpack.c.l.b16 %v298
        %v528 = vunpack.c.l.b16 %v299
        %v529 = vunpack.c.l.b16 %v300
        %v530 = vunpack.c.l.b16 %v301
        %v531 = vunpack.c.l.b16 %v302
        %v532 = vunpack.c.l.b16 %v303
        %v533 = vunpack.c.l.b16 %v304
        %v534 = vunpack.c.l.b16 %v305
        %v535 = vunpack.c.l.b16 %v306
        %v536 = vunpack.c.l.b16 %v307
        %v537 = vunpack.c.l.b16 %v308
        %v538 = vunpack.c.l.b16 %v309
        %v539 = vunpack.c.l.b16 %v310
        %v540 = vunpack.c.l.b16 %v311
        %v541 = vunpack.c.l.b16 %v312
        %v542 = vunpack.c.l.b16 %v313
        %v543 = vunpack.c.l.b16 %v314
        %v544 = vunpack.c.l.b16 %v315
        %v545 = vunpack.c.l.b16 %v316
        %v546 = vunpack.c.l.b16 %v317
        %v547 = vunpack.c.l.b16 %v318
        %v548 = vunpack.c.l.b16 %v319
        %v549 = vunpack.c.l.b16 %v320
        %v550 = vunpack.c.l.b16 %v321
        %v551 = vunpack.c.l.b16 %v322
        %v552 = vunpack.c.l.b16 %v323
        %v553 = vunpack.c.l.b16 %v324
        %v554 = vunpack.c.l.b16 %v325
        %v555 = vunpack.c.l.b16 %v326
        %v556 = vunpack.c.l.b16 %v327
        %v557 = vunpack.c.l.b16 %v328
        %v558 = vunpack.c.l.b16 %v329
        %v559 = vunpack.c.l.b16 %v330
        %v560 = vunpack.c.l.b16 %v331
        %v561 = vunpack.c.l.b16 %v332
        %v562 = vunpack.c.l.b16 %v333
        %v563 = vunpack.c.l.b16 %v334
        %v564 = vunpack.c.l.b16 %v335
        %v565 = vunpack.c.l.b16 %v336
        %v566 = vunpack.c.l.b16 %v337
        %v567 = vunpack.c.l.b16 %v338
        %v568 = vunpack.c.l.b16 %v339
        %v569 = vunpack.c.l.b16 %v340
        %v570 = vunpack.c.l.b16 %v341
        %v571 = vunpack.c.l.b16 %v342
        %v572 = vunpack.c.l.b16 %v343
        %v573 = vunpack.c.l.b16 %v344
        %v574 = vunpack.c.l.b16 %v345
        %v575 = vunpack.c.l.b16 %v346
        %v576 = vunpack.c.l.b16 %v347
        %v577 = vunpack.c.l.b16 %v348
        %v578 = vunpack.c.l.b16 %v349
        %v579 = vunpack.c.l.b16 %v350
        %v580 = vunpack.c.l.b16 %v351
        %v581 = vunpack.c.l.b16 %v352
        %v582 = vunpack.c.l.b16 %v353
        %v583 = vunpack.c.l.b16 %v354
        %v584 = vunpack.c.l.b16 %v355
        %v585 = vunpack.c.l.b16 %v356
        %v586 = vunpack.c.l.b16 %v357
        %v587 = vunpack.c.l.b16 %v358
        %v588 = vunpack.c.l.b16 %v359
        %v589 = vunpack.c.l.b16 %v360
        %v590 = vunpack.c.l.b16 %v361
        %v591 = vunpack.c.l.b16 %v362
        %v592 = vunpack.c.l.b16 %v363
        %v593 = vunpack.c.l.b16 %v364
        %v594 = vunpack.c.l.b16 %v365
        %v595 = vunpack.c.l.b16 %v366
        %v596 = vunpack.c.l.b16 %v367
        %v597 = vunpack.c.l.b16 %v368
        %v598 = vunpack.c.l.b16 %v369
        %v599 = vunpack.c.l.b16 %v370
        %v600 = vunpack.c.l.b16 %v371
        %v601 = vunpack.c.l.b16 %v372
        %v602 = vunpack.c.l.b16 %v373
        %v603 = vunpack.c.l.b16 %v374
        %v604 = vunpack.c.l.b16 %v375
        %v605 = vunpack.c.l.b16 %v376
        %v606 = vunpack.c.l.b16 %v377
        %v607 = vunpack.c.l.b16 %v378
        %v608 = vunpack.c.l.b16 %v379
        %v609 = vunpack.c.l.b16 %v380
        %v610 = vunpack.c.l.b16 %v381
        %v611 = vunpack.c.l.b16 %v382
        %v612 = vunpack.c.l.b16 %v383
        %v613 = vunpack.c.l.b16 %v384
        %v614 = vunpack.c.l.b16 %v385
        %v615 = vunpack.c.l.b16 %v386
        %v616 = vunpack.c.l.b16 %v387
        %v617 = vunpack.c.l.b16 %v388
        %v618 = vunpack.c.l.b16 %v389
        %v619 = vunpack.c.l.b16 %v390
        %v620 = vunpack.c.l.b16 %v391
        %v621 = vunpack.c.l.b16 %v392
        %v622 = vunpack.c.l.b16 %v393
        %v623 = vunpack.c.l.b16 %v394
        %v624 = vpack.c.b16 %v513, %v512
        %v625 = vpack.c.b16 %v515, %v514
        %v626 = vpack.c.b16 %v517, %v516
        %v627 = vpack.c.b16 %v519, %v518
        %v628 = vpack.c.b16 %v521, %v520
        %v629 = vpack.c.b16 %v523, %v522
        %v630 = vpack.c.b16 %v525, %v524
        %v631 = vpack.c.b16 %v527, %v526
        %v632 = vpack.c.b16 %v529, %v528
        %v633 = vpack.c.b16 %v531, %v530
        %v634 = vpack.c.b16 %v533, %v532
        %v635 = vpack.c.b16 %v535, %v534
        %v636 = vpack.c.b16 %v537, %v536
        %v637 = vpack.c.b16 %v539, %v538
        %v638 = vpack.c.b16 %v541, %v540
        %v639 = vpack.c.b16 %v543, %v542
        %v640 = vpack.c.b16 %v545, %v544
        %v641 = vpack.c.b16 %v547, %v546
        %v642 = vpack.c.b16 %v549, %v548
        %v643 = vpack.c.b16 %v551, %v550
        %v644 = vpack.c.b16 %v553, %v552
        %v645 = vpack.c.b16 %v555, %v554
        %v646 = vpack.c.b16 %v557, %v556
        %v647 = vpack.c.b16 %v559, %v558
        %v648 = vpack.c.b16 %v561, %v560
        %v649 = vpack.c.b16 %v563, %v562
        %v650 = vpack.c.b16 %v565, %v564
        %v651 = vpack.c.b16 %v567, %v566
        %v652 = vpack.c.b16 %v569, %v568
        %v653 = vpack.c.b16 %v571, %v570
        %v654 = vpack.c.b16 %v573, %v572
        %v655 = vpack.c.b16 %v575, %v574
        %v656 = vpack.c.b16 %v577, %v576
        %v657 = vpack.c.b16 %v579, %v578
        %v658 = vpack.c.b16 %v581, %v580
        %v659 = vpack.c.b16 %v583, %v582
        %v660 = vpack.c.b16 %v585, %v584
        %v661 = vpack.c.b16 %v587, %v586
        %v662 = vpack.c.b16 %v589, %v588
        %v663 = vpack.c.b16 %v591, %v590
        %v664 = vpack.c.b16 %v593, %v592
        %v665 = vpack.c.b16 %v595, %v594
        %v666 = vpack.c.b16 %v597, %v596
        %v667 = vpack.c.b16 %v599, %v598
        %v668 = vpack.c.b16 %v601, %v600
        %v669 = vpack.c.b16 %v603, %v602
        %v670 = vpack.c.b16 %v605, %v604
        %v671 = vpack.c.b16 %v607, %v606
        %v672 = vpack.c.b16 %v609, %v608
        %v673 = vpack.c.b16 %v611, %v610
        %v674 = vpack.c.b16 %v613, %v612
        %v675 = vpack.c.b16 %v615, %v614
        %v676 = vpack.c.b16 %v617, %v616
        %v677 = vpack.c.b16 %v619, %v618
        %v678 = vpack.c.b16 %v621, %v620
        %v679 = vpack.c.b16 %v623, %v622
        %v685 = vunpack.c.l.b16 %v395
        %v686 = vunpack.c.l.b16 %v396
        %v687 = vunpack.c.l.b16 %v397
        %v688 = vunpack.c.l.b16 %v398
        %v689 = vunpack.c.l.b16 %v399
        %v690 = vpack.c.b16 %v686, %v685
        %v691 = vpack.c.b16 %v688, %v687
        %v692 = vpack.c.b16 %v689, %v689
        %vm695 = vcmask 293888
        %v697 = vsel %vm695, %v624, 0
        %v700 = vsel %vm695, %v625, 0
        %v703 = vsel %vm695, %v626, 0
        %v706 = vsel %vm695, %v627, 0
        %v709 = vsel %vm695, %v628, 0
        %v712 = vsel %vm695, %v629, 0
        %v715 = vsel %vm695, %v630, 0
        %v718 = vsel %vm695, %v631, 0
        %v721 = vsel %vm695, %v632, 0
        %v724 = vsel %vm695, %v633, 0
        %v727 = vsel %vm695, %v634, 0
        %v730 = vsel %vm695, %v635, 0
        %v733 = vsel %vm695, %v636, 0
        %v736 = vsel %vm695, %v637, 0
        %v739 = vsel %vm695, %v638, 0
        %v742 = vsel %vm695, %v639, 0
        %v745 = vsel %vm695, %v640, 0
        %v748 = vsel %vm695, %v641, 0
        %v751 = vsel %vm695, %v642, 0
        %v754 = vsel %vm695, %v643, 0
        %v757 = vsel %vm695, %v644, 0
        %v760 = vsel %vm695, %v645, 0
        %v763 = vsel %vm695, %v646, 0
        %v766 = vsel %vm695, %v647, 0
        %v769 = vsel %vm695, %v648, 0
        %v772 = vsel %vm695, %v649, 0
        %v775 = vsel %vm695, %v650, 0
        %v778 = vsel %vm695, %v651, 0
        %v781 = vsel %vm695, %v652, 0
        %v784 = vsel %vm695, %v653, 0
        %v787 = vsel %vm695, %v654, 0
        %v790 = vsel %vm695, %v655, 0
        %v793 = vsel %vm695, %v656, 0
        %v796 = vsel %vm695, %v657, 0
        %v799 = vsel %vm695, %v658, 0
        %v802 = vsel %vm695, %v659, 0
        %v805 = vsel %vm695, %v660, 0
        %v808 = vsel %vm695, %v661, 0
        %v811 = vsel %vm695, %v662, 0
        %v814 = vsel %vm695, %v663, 0
        %v817 = vsel %vm695, %v664, 0
        %v820 = vsel %vm695, %v665, 0
        %v823 = vsel %vm695, %v666, 0
        %v826 = vsel %vm695, %v667, 0
        %v829 = vsel %vm695, %v668, 0
        %v832 = vsel %vm695, %v669, 0
        %v835 = vsel %vm695, %v670, 0
        %v838 = vsel %vm695, %v671, 0
        %v841 = vsel %vm695, %v672, 0
        %v844 = vsel %vm695, %v673, 0
        %v847 = vsel %vm695, %v674, 0
        %v850 = vsel %vm695, %v675, 0
        %v853 = vsel %vm695, %v676, 0
        %v856 = vsel %vm695, %v677, 0
        %v859 = vsel %vm695, %v678, 0
        %v862 = vsel %vm695, %v679, 0
        %vm864 = vcmask 1041408
        %v866 = vsel %vm864, %v692, 0
        %868 = vmatpush.bf16.msra.mxu0 0
        %869 = vmatpush.bf16.msra.mxu0 0
        %870 = vmatpush.bf16.msra.mxu0 0
        %871 = vmatpush.bf16.msra.mxu0 0
        %872 = vmatpush.bf16.msra.mxu0 0
        %873 = vmatpush.bf16.msra.mxu0 %v866
        %874 = vmatpush.bf16.msra.mxu0 %v691
        %875 = vmatpush.bf16.msra.mxu0 %v690
        %876 = vmatmul.bf16.gmra.mxu0 %v697
        %v877 = vpop.f32.mrf.mxu0
        %v878 = vadd.f32 0.0, %v877
        %v879 = vpop.f32.mrf.mxu0
        %v880 = vadd.f32 0.0, %v879
        %881 = vmatmul.bf16.gmra.mxu0 %v700
        %v882 = vpop.f32.mrf.mxu0
        %v883 = vadd.f32 0.0, %v882
        %v884 = vpop.f32.mrf.mxu0
        %v885 = vadd.f32 0.0, %v884
        %886 = vmatmul.bf16.gmra.mxu0 %v703
        %v887 = vpop.f32.mrf.mxu0
        %v888 = vadd.f32 0.0, %v887
        %v889 = vpop.f32.mrf.mxu0
        %v890 = vadd.f32 0.0, %v889
        %891 = vmatmul.bf16.gmra.mxu0 %v706
        %v892 = vpop.f32.mrf.mxu0
        %v893 = vadd.f32 0.0, %v892
        %v894 = vpop.f32.mrf.mxu0
        %v895 = vadd.f32 0.0, %v894
        %896 = vmatmul.bf16.gmra.mxu0 %v709
        %v897 = vpop.f32.mrf.mxu0
        %v898 = vadd.f32 0.0, %v897
        %v899 = vpop.f32.mrf.mxu0
        %v900 = vadd.f32 0.0, %v899
        %901 = vmatmul.bf16.gmra.mxu0 %v712
        %v902 = vpop.f32.mrf.mxu0
        %v903 = vadd.f32 0.0, %v902
        %v904 = vpop.f32.mrf.mxu0
        %v905 = vadd.f32 0.0, %v904
        %906 = vmatmul.bf16.gmra.mxu0 %v715
        %v907 = vpop.f32.mrf.mxu0
        %v908 = vadd.f32 0.0, %v907
        %v909 = vpop.f32.mrf.mxu0
        %v910 = vadd.f32 0.0, %v909
        %911 = vmatmul.bf16.gmra.mxu0 %v718
        %v912 = vpop.f32.mrf.mxu0
        %v913 = vadd.f32 0.0, %v912
        %v914 = vpop.f32.mrf.mxu0
        %v915 = vadd.f32 0.0, %v914
        %916 = vmatmul.bf16.gmra.mxu0 %v721
        %v917 = vpop.f32.mrf.mxu0
        %v918 = vadd.f32 0.0, %v917
        %v919 = vpop.f32.mrf.mxu0
        %v920 = vadd.f32 0.0, %v919
        %921 = vmatmul.bf16.gmra.mxu0 %v724
        %v922 = vpop.f32.mrf.mxu0
        %v923 = vadd.f32 0.0, %v922
        %v924 = vpop.f32.mrf.mxu0
        %v925 = vadd.f32 0.0, %v924
        %926 = vmatmul.bf16.gmra.mxu0 %v727
        %v927 = vpop.f32.mrf.mxu0
        %v928 = vadd.f32 0.0, %v927
        %v929 = vpop.f32.mrf.mxu0
        %v930 = vadd.f32 0.0, %v929
        %931 = vmatmul.bf16.gmra.mxu0 %v730
        %v932 = vpop.f32.mrf.mxu0
        %v933 = vadd.f32 0.0, %v932
        %v934 = vpop.f32.mrf.mxu0
        %v935 = vadd.f32 0.0, %v934
        %936 = vmatmul.bf16.gmra.mxu0 %v733
        %v937 = vpop.f32.mrf.mxu0
        %v938 = vadd.f32 0.0, %v937
        %v939 = vpop.f32.mrf.mxu0
        %v940 = vadd.f32 0.0, %v939
        %941 = vmatmul.bf16.gmra.mxu0 %v736
        %v942 = vpop.f32.mrf.mxu0
        %v943 = vadd.f32 0.0, %v942
        %v944 = vpop.f32.mrf.mxu0
        %v945 = vadd.f32 0.0, %v944
        %946 = vmatmul.bf16.gmra.mxu0 %v739
        %v947 = vpop.f32.mrf.mxu0
        %v948 = vadd.f32 0.0, %v947
        %v949 = vpop.f32.mrf.mxu0
        %v950 = vadd.f32 0.0, %v949
        %951 = vmatmul.bf16.gmra.mxu0 %v742
        %v952 = vpop.f32.mrf.mxu0
        %v953 = vadd.f32 0.0, %v952
        %v954 = vpop.f32.mrf.mxu0
        %v955 = vadd.f32 0.0, %v954
        %956 = vmatmul.bf16.gmra.mxu0 %v745
        %v957 = vpop.f32.mrf.mxu0
        %v958 = vadd.f32 0.0, %v957
        %v959 = vpop.f32.mrf.mxu0
        %v960 = vadd.f32 0.0, %v959
        %961 = vmatmul.bf16.gmra.mxu0 %v748
        %v962 = vpop.f32.mrf.mxu0
        %v963 = vadd.f32 0.0, %v962
        %v964 = vpop.f32.mrf.mxu0
        %v965 = vadd.f32 0.0, %v964
        %966 = vmatmul.bf16.gmra.mxu0 %v751
        %v967 = vpop.f32.mrf.mxu0
        %v968 = vadd.f32 0.0, %v967
        %v969 = vpop.f32.mrf.mxu0
        %v970 = vadd.f32 0.0, %v969
        %971 = vmatmul.bf16.gmra.mxu0 %v754
        %v972 = vpop.f32.mrf.mxu0
        %v973 = vadd.f32 0.0, %v972
        %v974 = vpop.f32.mrf.mxu0
        %v975 = vadd.f32 0.0, %v974
        %976 = vmatmul.bf16.gmra.mxu0 %v757
        %v977 = vpop.f32.mrf.mxu0
        %v978 = vadd.f32 0.0, %v977
        %v979 = vpop.f32.mrf.mxu0
        %v980 = vadd.f32 0.0, %v979
        %981 = vmatmul.bf16.gmra.mxu0 %v760
        %v982 = vpop.f32.mrf.mxu0
        %v983 = vadd.f32 0.0, %v982
        %v984 = vpop.f32.mrf.mxu0
        %v985 = vadd.f32 0.0, %v984
        %986 = vmatmul.bf16.gmra.mxu0 %v763
        %v987 = vpop.f32.mrf.mxu0
        %v988 = vadd.f32 0.0, %v987
        %v989 = vpop.f32.mrf.mxu0
        %v990 = vadd.f32 0.0, %v989
        %991 = vmatmul.bf16.gmra.mxu0 %v766
        %v992 = vpop.f32.mrf.mxu0
        %v993 = vadd.f32 0.0, %v992
        %v994 = vpop.f32.mrf.mxu0
        %v995 = vadd.f32 0.0, %v994
        %996 = vmatmul.bf16.gmra.mxu0 %v769
        %v997 = vpop.f32.mrf.mxu0
        %v998 = vadd.f32 0.0, %v997
        %v999 = vpop.f32.mrf.mxu0
        %v1000 = vadd.f32 0.0, %v999
        %1001 = vmatmul.bf16.gmra.mxu0 %v772
        %v1002 = vpop.f32.mrf.mxu0
        %v1003 = vadd.f32 0.0, %v1002
        %v1004 = vpop.f32.mrf.mxu0
        %v1005 = vadd.f32 0.0, %v1004
        %1006 = vmatmul.bf16.gmra.mxu0 %v775
        %v1007 = vpop.f32.mrf.mxu0
        %v1008 = vadd.f32 0.0, %v1007
        %v1009 = vpop.f32.mrf.mxu0
        %v1010 = vadd.f32 0.0, %v1009
        %1011 = vmatmul.bf16.gmra.mxu0 %v778
        %v1012 = vpop.f32.mrf.mxu0
        %v1013 = vadd.f32 0.0, %v1012
        %v1014 = vpop.f32.mrf.mxu0
        %v1015 = vadd.f32 0.0, %v1014
        %1016 = vmatmul.bf16.gmra.mxu0 %v781
        %v1017 = vpop.f32.mrf.mxu0
        %v1018 = vadd.f32 0.0, %v1017
        %v1019 = vpop.f32.mrf.mxu0
        %v1020 = vadd.f32 0.0, %v1019
        %1021 = vmatmul.bf16.gmra.mxu0 %v784
        %v1022 = vpop.f32.mrf.mxu0
        %v1023 = vadd.f32 0.0, %v1022
        %v1024 = vpop.f32.mrf.mxu0
        %v1025 = vadd.f32 0.0, %v1024
        %1026 = vmatmul.bf16.gmra.mxu0 %v787
        %v1027 = vpop.f32.mrf.mxu0
        %v1028 = vadd.f32 0.0, %v1027
        %v1029 = vpop.f32.mrf.mxu0
        %v1030 = vadd.f32 0.0, %v1029
        %1031 = vmatmul.bf16.gmra.mxu0 %v790
        %v1032 = vpop.f32.mrf.mxu0
        %v1033 = vadd.f32 0.0, %v1032
        %v1034 = vpop.f32.mrf.mxu0
        %v1035 = vadd.f32 0.0, %v1034
        %1036 = vmatmul.bf16.gmra.mxu0 %v793
        %v1037 = vpop.f32.mrf.mxu0
        %v1038 = vadd.f32 0.0, %v1037
        %v1039 = vpop.f32.mrf.mxu0
        %v1040 = vadd.f32 0.0, %v1039
        %1041 = vmatmul.bf16.gmra.mxu0 %v796
        %v1042 = vpop.f32.mrf.mxu0
        %v1043 = vadd.f32 0.0, %v1042
        %v1044 = vpop.f32.mrf.mxu0
        %v1045 = vadd.f32 0.0, %v1044
        %1046 = vmatmul.bf16.gmra.mxu0 %v799
        %v1047 = vpop.f32.mrf.mxu0
        %v1048 = vadd.f32 0.0, %v1047
        %v1049 = vpop.f32.mrf.mxu0
        %v1050 = vadd.f32 0.0, %v1049
        %1051 = vmatmul.bf16.gmra.mxu0 %v802
        %v1052 = vpop.f32.mrf.mxu0
        %v1053 = vadd.f32 0.0, %v1052
        %v1054 = vpop.f32.mrf.mxu0
        %v1055 = vadd.f32 0.0, %v1054
        %1056 = vmatmul.bf16.gmra.mxu0 %v805
        %v1057 = vpop.f32.mrf.mxu0
        %v1058 = vadd.f32 0.0, %v1057
        %v1059 = vpop.f32.mrf.mxu0
        %v1060 = vadd.f32 0.0, %v1059
        %1061 = vmatmul.bf16.gmra.mxu0 %v808
        %v1062 = vpop.f32.mrf.mxu0
        %v1063 = vadd.f32 0.0, %v1062
        %v1064 = vpop.f32.mrf.mxu0
        %v1065 = vadd.f32 0.0, %v1064
        %1066 = vmatmul.bf16.gmra.mxu0 %v811
        %v1067 = vpop.f32.mrf.mxu0
        %v1068 = vadd.f32 0.0, %v1067
        %v1069 = vpop.f32.mrf.mxu0
        %v1070 = vadd.f32 0.0, %v1069
        %1071 = vmatmul.bf16.gmra.mxu0 %v814
        %v1072 = vpop.f32.mrf.mxu0
        %v1073 = vadd.f32 0.0, %v1072
        %v1074 = vpop.f32.mrf.mxu0
        %v1075 = vadd.f32 0.0, %v1074
        %1076 = vmatmul.bf16.gmra.mxu0 %v817
        %v1077 = vpop.f32.mrf.mxu0
        %v1078 = vadd.f32 0.0, %v1077
        %v1079 = vpop.f32.mrf.mxu0
        %v1080 = vadd.f32 0.0, %v1079
        %1081 = vmatmul.bf16.gmra.mxu0 %v820
        %v1082 = vpop.f32.mrf.mxu0
        %v1083 = vadd.f32 0.0, %v1082
        %v1084 = vpop.f32.mrf.mxu0
        %v1085 = vadd.f32 0.0, %v1084
        %1086 = vmatmul.bf16.gmra.mxu0 %v823
        %v1087 = vpop.f32.mrf.mxu0
        %v1088 = vadd.f32 0.0, %v1087
        %v1089 = vpop.f32.mrf.mxu0
        %v1090 = vadd.f32 0.0, %v1089
        %1091 = vmatmul.bf16.gmra.mxu0 %v826
        %v1092 = vpop.f32.mrf.mxu0
        %v1093 = vadd.f32 0.0, %v1092
        %v1094 = vpop.f32.mrf.mxu0
        %v1095 = vadd.f32 0.0, %v1094
        %1096 = vmatmul.bf16.gmra.mxu0 %v829
        %v1097 = vpop.f32.mrf.mxu0
        %v1098 = vadd.f32 0.0, %v1097
        %v1099 = vpop.f32.mrf.mxu0
        %v1100 = vadd.f32 0.0, %v1099
        %1101 = vmatmul.bf16.gmra.mxu0 %v832
        %v1102 = vpop.f32.mrf.mxu0
        %v1103 = vadd.f32 0.0, %v1102
        %v1104 = vpop.f32.mrf.mxu0
        %v1105 = vadd.f32 0.0, %v1104
        %1106 = vmatmul.bf16.gmra.mxu0 %v835
        %v1107 = vpop.f32.mrf.mxu0
        %v1108 = vadd.f32 0.0, %v1107
        %v1109 = vpop.f32.mrf.mxu0
        %v1110 = vadd.f32 0.0, %v1109
        %1111 = vmatmul.bf16.gmra.mxu0 %v838
        %v1112 = vpop.f32.mrf.mxu0
        %v1113 = vadd.f32 0.0, %v1112
        %v1114 = vpop.f32.mrf.mxu0
        %v1115 = vadd.f32 0.0, %v1114
        %1116 = vmatmul.bf16.gmra.mxu0 %v841
        %v1117 = vpop.f32.mrf.mxu0
        %v1118 = vadd.f32 0.0, %v1117
        %v1119 = vpop.f32.mrf.mxu0
        %v1120 = vadd.f32 0.0, %v1119
        %1121 = vmatmul.bf16.gmra.mxu0 %v844
        %v1122 = vpop.f32.mrf.mxu0
        %v1123 = vadd.f32 0.0, %v1122
        %v1124 = vpop.f32.mrf.mxu0
        %v1125 = vadd.f32 0.0, %v1124
        %1126 = vmatmul.bf16.gmra.mxu0 %v847
        %v1127 = vpop.f32.mrf.mxu0
        %v1128 = vadd.f32 0.0, %v1127
        %v1129 = vpop.f32.mrf.mxu0
        %v1130 = vadd.f32 0.0, %v1129
        %1131 = vmatmul.bf16.gmra.mxu0 %v850
        %v1132 = vpop.f32.mrf.mxu0
        %v1133 = vadd.f32 0.0, %v1132
        %v1134 = vpop.f32.mrf.mxu0
        %v1135 = vadd.f32 0.0, %v1134
        %1136 = vmatmul.bf16.gmra.mxu0 %v853
        %v1137 = vpop.f32.mrf.mxu0
        %v1138 = vadd.f32 0.0, %v1137
        %v1139 = vpop.f32.mrf.mxu0
        %v1140 = vadd.f32 0.0, %v1139
        %1141 = vmatmul.bf16.gmra.mxu0 %v856
        %v1142 = vpop.f32.mrf.mxu0
        %v1143 = vadd.f32 0.0, %v1142
        %v1144 = vpop.f32.mrf.mxu0
        %v1145 = vadd.f32 0.0, %v1144
        %1146 = vmatmul.bf16.gmra.mxu0 %v859
        %v1147 = vpop.f32.mrf.mxu0
        %v1148 = vadd.f32 0.0, %v1147
        %v1149 = vpop.f32.mrf.mxu0
        %v1150 = vadd.f32 0.0, %v1149
        %1151 = vmatmul.bf16.gmra.mxu0 %v862
        %v1152 = vpop.f32.mrf.mxu0
        %v1153 = vadd.f32 0.0, %v1152
        %v1154 = vpop.f32.mrf.mxu0
        %v1155 = vadd.f32 0.0, %v1154
        %1156 = vdwg.mxu0
        %1269 = vrot.lane.b32.xlu0 %v878, 112
        %v1270 = vpop.permute.xlu0 %1269
        %1271 = vrot.lane.b32.xlu0 %v880, 112
        %v1272 = vpop.permute.xlu0 %1271
        %1273 = vrot.lane.b32.xlu0 %v883, 112
        %v1274 = vpop.permute.xlu0 %1273
        %1275 = vrot.lane.b32.xlu0 %v885, 112
        %v1276 = vpop.permute.xlu0 %1275
        %1277 = vrot.lane.b32.xlu0 %v888, 112
        %v1278 = vpop.permute.xlu0 %1277
        %1279 = vrot.lane.b32.xlu0 %v890, 112
        %v1280 = vpop.permute.xlu0 %1279
        %1281 = vrot.lane.b32.xlu0 %v893, 112
        %v1282 = vpop.permute.xlu0 %1281
        %1283 = vrot.lane.b32.xlu0 %v895, 112
        %v1284 = vpop.permute.xlu0 %1283
        %1285 = vrot.lane.b32.xlu0 %v898, 112
        %v1286 = vpop.permute.xlu0 %1285
        %1287 = vrot.lane.b32.xlu0 %v900, 112
        %v1288 = vpop.permute.xlu0 %1287
        %1289 = vrot.lane.b32.xlu0 %v903, 112
        %v1290 = vpop.permute.xlu0 %1289
        %1291 = vrot.lane.b32.xlu0 %v905, 112
        %v1292 = vpop.permute.xlu0 %1291
        %1293 = vrot.lane.b32.xlu0 %v908, 112
        %v1294 = vpop.permute.xlu0 %1293
        %1295 = vrot.lane.b32.xlu0 %v910, 112
        %v1296 = vpop.permute.xlu0 %1295
        %1297 = vrot.lane.b32.xlu0 %v913, 112
        %v1298 = vpop.permute.xlu0 %1297
        %1299 = vrot.lane.b32.xlu0 %v915, 112
        %v1300 = vpop.permute.xlu0 %1299
        %1301 = vrot.lane.b32.xlu0 %v918, 112
        %v1302 = vpop.permute.xlu0 %1301
        %1303 = vrot.lane.b32.xlu0 %v920, 112
        %v1304 = vpop.permute.xlu0 %1303
        %1305 = vrot.lane.b32.xlu0 %v923, 112
        %v1306 = vpop.permute.xlu0 %1305
        %1307 = vrot.lane.b32.xlu0 %v925, 112
        %v1308 = vpop.permute.xlu0 %1307
        %1309 = vrot.lane.b32.xlu0 %v928, 112
        %v1310 = vpop.permute.xlu0 %1309
        %1311 = vrot.lane.b32.xlu0 %v930, 112
        %v1312 = vpop.permute.xlu0 %1311
        %1313 = vrot.lane.b32.xlu0 %v933, 112
        %v1314 = vpop.permute.xlu0 %1313
        %1315 = vrot.lane.b32.xlu0 %v935, 112
        %v1316 = vpop.permute.xlu0 %1315
        %1317 = vrot.lane.b32.xlu0 %v938, 112
        %v1318 = vpop.permute.xlu0 %1317
        %1319 = vrot.lane.b32.xlu0 %v940, 112
        %v1320 = vpop.permute.xlu0 %1319
        %1321 = vrot.lane.b32.xlu0 %v943, 112
        %v1322 = vpop.permute.xlu0 %1321
        %1323 = vrot.lane.b32.xlu0 %v945, 112
        %v1324 = vpop.permute.xlu0 %1323
        %1325 = vrot.lane.b32.xlu0 %v948, 112
        %v1326 = vpop.permute.xlu0 %1325
        %1327 = vrot.lane.b32.xlu0 %v950, 112
        %v1328 = vpop.permute.xlu0 %1327
        %1329 = vrot.lane.b32.xlu0 %v953, 112
        %v1330 = vpop.permute.xlu0 %1329
        %1331 = vrot.lane.b32.xlu0 %v955, 112
        %v1332 = vpop.permute.xlu0 %1331
        %1333 = vrot.lane.b32.xlu0 %v958, 112
        %v1334 = vpop.permute.xlu0 %1333
        %1335 = vrot.lane.b32.xlu0 %v960, 112
        %v1336 = vpop.permute.xlu0 %1335
        %1337 = vrot.lane.b32.xlu0 %v963, 112
        %v1338 = vpop.permute.xlu0 %1337
        %1339 = vrot.lane.b32.xlu0 %v965, 112
        %v1340 = vpop.permute.xlu0 %1339
        %1341 = vrot.lane.b32.xlu0 %v968, 112
        %v1342 = vpop.permute.xlu0 %1341
        %1343 = vrot.lane.b32.xlu0 %v970, 112
        %v1344 = vpop.permute.xlu0 %1343
        %1345 = vrot.lane.b32.xlu0 %v973, 112
        %v1346 = vpop.permute.xlu0 %1345
        %1347 = vrot.lane.b32.xlu0 %v975, 112
        %v1348 = vpop.permute.xlu0 %1347
        %1349 = vrot.lane.b32.xlu0 %v978, 112
        %v1350 = vpop.permute.xlu0 %1349
        %1351 = vrot.lane.b32.xlu0 %v980, 112
        %v1352 = vpop.permute.xlu0 %1351
        %1353 = vrot.lane.b32.xlu0 %v983, 112
        %v1354 = vpop.permute.xlu0 %1353
        %1355 = vrot.lane.b32.xlu0 %v985, 112
        %v1356 = vpop.permute.xlu0 %1355
        %1357 = vrot.lane.b32.xlu0 %v988, 112
        %v1358 = vpop.permute.xlu0 %1357
        %1359 = vrot.lane.b32.xlu0 %v990, 112
        %v1360 = vpop.permute.xlu0 %1359
        %1361 = vrot.lane.b32.xlu0 %v993, 112
        %v1362 = vpop.permute.xlu0 %1361
        %1363 = vrot.lane.b32.xlu0 %v995, 112
        %v1364 = vpop.permute.xlu0 %1363
        %1365 = vrot.lane.b32.xlu0 %v998, 112
        %v1366 = vpop.permute.xlu0 %1365
        %1367 = vrot.lane.b32.xlu0 %v1000, 112
        %v1368 = vpop.permute.xlu0 %1367
        %1369 = vrot.lane.b32.xlu0 %v1003, 112
        %v1370 = vpop.permute.xlu0 %1369
        %1371 = vrot.lane.b32.xlu0 %v1005, 112
        %v1372 = vpop.permute.xlu0 %1371
        %1373 = vrot.lane.b32.xlu0 %v1008, 112
        %v1374 = vpop.permute.xlu0 %1373
        %1375 = vrot.lane.b32.xlu0 %v1010, 112
        %v1376 = vpop.permute.xlu0 %1375
        %1377 = vrot.lane.b32.xlu0 %v1013, 112
        %v1378 = vpop.permute.xlu0 %1377
        %1379 = vrot.lane.b32.xlu0 %v1015, 112
        %v1380 = vpop.permute.xlu0 %1379
        %1381 = vrot.lane.b32.xlu0 %v1018, 112
        %v1382 = vpop.permute.xlu0 %1381
        %1383 = vrot.lane.b32.xlu0 %v1020, 112
        %v1384 = vpop.permute.xlu0 %1383
        %1385 = vrot.lane.b32.xlu0 %v1023, 112
        %v1386 = vpop.permute.xlu0 %1385
        %1387 = vrot.lane.b32.xlu0 %v1025, 112
        %v1388 = vpop.permute.xlu0 %1387
        %1389 = vrot.lane.b32.xlu0 %v1028, 112
        %v1390 = vpop.permute.xlu0 %1389
        %1391 = vrot.lane.b32.xlu0 %v1030, 112
        %v1392 = vpop.permute.xlu0 %1391
        %1393 = vrot.lane.b32.xlu0 %v1033, 112
        %v1394 = vpop.permute.xlu0 %1393
        %1395 = vrot.lane.b32.xlu0 %v1035, 112
        %v1396 = vpop.permute.xlu0 %1395
        %1397 = vrot.lane.b32.xlu0 %v1038, 112
        %v1398 = vpop.permute.xlu0 %1397
        %1399 = vrot.lane.b32.xlu0 %v1040, 112
        %v1400 = vpop.permute.xlu0 %1399
        %1401 = vrot.lane.b32.xlu0 %v1043, 112
        %v1402 = vpop.permute.xlu0 %1401
        %1403 = vrot.lane.b32.xlu0 %v1045, 112
        %v1404 = vpop.permute.xlu0 %1403
        %1405 = vrot.lane.b32.xlu0 %v1048, 112
        %v1406 = vpop.permute.xlu0 %1405
        %1407 = vrot.lane.b32.xlu0 %v1050, 112
        %v1408 = vpop.permute.xlu0 %1407
        %1409 = vrot.lane.b32.xlu0 %v1053, 112
        %v1410 = vpop.permute.xlu0 %1409
        %1411 = vrot.lane.b32.xlu0 %v1055, 112
        %v1412 = vpop.permute.xlu0 %1411
        %1413 = vrot.lane.b32.xlu0 %v1058, 112
        %v1414 = vpop.permute.xlu0 %1413
        %1415 = vrot.lane.b32.xlu0 %v1060, 112
        %v1416 = vpop.permute.xlu0 %1415
        %1417 = vrot.lane.b32.xlu0 %v1063, 112
        %v1418 = vpop.permute.xlu0 %1417
        %1419 = vrot.lane.b32.xlu0 %v1065, 112
        %v1420 = vpop.permute.xlu0 %1419
        %1421 = vrot.lane.b32.xlu0 %v1068, 112
        %v1422 = vpop.permute.xlu0 %1421
        %1423 = vrot.lane.b32.xlu0 %v1070, 112
        %v1424 = vpop.permute.xlu0 %1423
        %1425 = vrot.lane.b32.xlu0 %v1073, 112
        %v1426 = vpop.permute.xlu0 %1425
        %1427 = vrot.lane.b32.xlu0 %v1075, 112
        %v1428 = vpop.permute.xlu0 %1427
        %1429 = vrot.lane.b32.xlu0 %v1078, 112
        %v1430 = vpop.permute.xlu0 %1429
        %1431 = vrot.lane.b32.xlu0 %v1080, 112
        %v1432 = vpop.permute.xlu0 %1431
        %1433 = vrot.lane.b32.xlu0 %v1083, 112
        %v1434 = vpop.permute.xlu0 %1433
        %1435 = vrot.lane.b32.xlu0 %v1085, 112
        %v1436 = vpop.permute.xlu0 %1435
        %1437 = vrot.lane.b32.xlu0 %v1088, 112
        %v1438 = vpop.permute.xlu0 %1437
        %1439 = vrot.lane.b32.xlu0 %v1090, 112
        %v1440 = vpop.permute.xlu0 %1439
        %1441 = vrot.lane.b32.xlu0 %v1093, 112
        %v1442 = vpop.permute.xlu0 %1441
        %1443 = vrot.lane.b32.xlu0 %v1095, 112
        %v1444 = vpop.permute.xlu0 %1443
        %1445 = vrot.lane.b32.xlu0 %v1098, 112
        %v1446 = vpop.permute.xlu0 %1445
        %1447 = vrot.lane.b32.xlu0 %v1100, 112
        %v1448 = vpop.permute.xlu0 %1447
        %1449 = vrot.lane.b32.xlu0 %v1103, 112
        %v1450 = vpop.permute.xlu0 %1449
        %1451 = vrot.lane.b32.xlu0 %v1105, 112
        %v1452 = vpop.permute.xlu0 %1451
        %1453 = vrot.lane.b32.xlu0 %v1108, 112
        %v1454 = vpop.permute.xlu0 %1453
        %1455 = vrot.lane.b32.xlu0 %v1110, 112
        %v1456 = vpop.permute.xlu0 %1455
        %1457 = vrot.lane.b32.xlu0 %v1113, 112
        %v1458 = vpop.permute.xlu0 %1457
        %1459 = vrot.lane.b32.xlu0 %v1115, 112
        %v1460 = vpop.permute.xlu0 %1459
        %1461 = vrot.lane.b32.xlu0 %v1118, 112
        %v1462 = vpop.permute.xlu0 %1461
        %1463 = vrot.lane.b32.xlu0 %v1120, 112
        %v1464 = vpop.permute.xlu0 %1463
        %1465 = vrot.lane.b32.xlu0 %v1123, 112
        %v1466 = vpop.permute.xlu0 %1465
        %1467 = vrot.lane.b32.xlu0 %v1125, 112
        %v1468 = vpop.permute.xlu0 %1467
        %1469 = vrot.lane.b32.xlu0 %v1128, 112
        %v1470 = vpop.permute.xlu0 %1469
        %1471 = vrot.lane.b32.xlu0 %v1130, 112
        %v1472 = vpop.permute.xlu0 %1471
        %1473 = vrot.lane.b32.xlu0 %v1133, 112
        %v1474 = vpop.permute.xlu0 %1473
        %1475 = vrot.lane.b32.xlu0 %v1135, 112
        %v1476 = vpop.permute.xlu0 %1475
        %1477 = vrot.lane.b32.xlu0 %v1138, 112
        %v1478 = vpop.permute.xlu0 %1477
        %1479 = vrot.lane.b32.xlu0 %v1140, 112
        %v1480 = vpop.permute.xlu0 %1479
        %1481 = vrot.lane.b32.xlu0 %v1143, 112
        %v1482 = vpop.permute.xlu0 %1481
        %1483 = vrot.lane.b32.xlu0 %v1145, 112
        %v1484 = vpop.permute.xlu0 %1483
        %1485 = vrot.lane.b32.xlu0 %v1148, 112
        %v1486 = vpop.permute.xlu0 %1485
        %1487 = vrot.lane.b32.xlu0 %v1150, 112
        %v1488 = vpop.permute.xlu0 %1487
        %1489 = vrot.lane.b32.xlu0 %v1153, 112
        %v1490 = vpop.permute.xlu0 %1489
        %1491 = vrot.lane.b32.xlu0 %v1155, 112
        %v1492 = vpop.permute.xlu0 %1491
        %v1605 = vmax.f32 %v878, %v1270
        %v1606 = vmax.f32 %v880, %v1272
        %v1607 = vmax.f32 %v883, %v1274
        %v1608 = vmax.f32 %v885, %v1276
        %v1609 = vmax.f32 %v888, %v1278
        %v1610 = vmax.f32 %v890, %v1280
        %v1611 = vmax.f32 %v893, %v1282
        %v1612 = vmax.f32 %v895, %v1284
        %v1613 = vmax.f32 %v898, %v1286
        %v1614 = vmax.f32 %v900, %v1288
        %v1615 = vmax.f32 %v903, %v1290
        %v1616 = vmax.f32 %v905, %v1292
        %v1617 = vmax.f32 %v908, %v1294
        %v1618 = vmax.f32 %v910, %v1296
        %v1619 = vmax.f32 %v913, %v1298
        %v1620 = vmax.f32 %v915, %v1300
        %v1621 = vmax.f32 %v918, %v1302
        %v1622 = vmax.f32 %v920, %v1304
        %v1623 = vmax.f32 %v923, %v1306
        %v1624 = vmax.f32 %v925, %v1308
        %v1625 = vmax.f32 %v928, %v1310
        %v1626 = vmax.f32 %v930, %v1312
        %v1627 = vmax.f32 %v933, %v1314
        %v1628 = vmax.f32 %v935, %v1316
        %v1629 = vmax.f32 %v938, %v1318
        %v1630 = vmax.f32 %v940, %v1320
        %v1631 = vmax.f32 %v943, %v1322
        %v1632 = vmax.f32 %v945, %v1324
        %v1633 = vmax.f32 %v948, %v1326
        %v1634 = vmax.f32 %v950, %v1328
        %v1635 = vmax.f32 %v953, %v1330
        %v1636 = vmax.f32 %v955, %v1332
        %v1637 = vmax.f32 %v958, %v1334
        %v1638 = vmax.f32 %v960, %v1336
        %v1639 = vmax.f32 %v963, %v1338
        %v1640 = vmax.f32 %v965, %v1340
        %v1641 = vmax.f32 %v968, %v1342
        %v1642 = vmax.f32 %v970, %v1344
        %v1643 = vmax.f32 %v973, %v1346
        %v1644 = vmax.f32 %v975, %v1348
        %v1645 = vmax.f32 %v978, %v1350
        %v1646 = vmax.f32 %v980, %v1352
        %v1647 = vmax.f32 %v983, %v1354
        %v1648 = vmax.f32 %v985, %v1356
        %v1649 = vmax.f32 %v988, %v1358
        %v1650 = vmax.f32 %v990, %v1360
        %v1651 = vmax.f32 %v993, %v1362
        %v1652 = vmax.f32 %v995, %v1364
        %v1653 = vmax.f32 %v998, %v1366
        %v1654 = vmax.f32 %v1000, %v1368
        %v1655 = vmax.f32 %v1003, %v1370
        %v1656 = vmax.f32 %v1005, %v1372
        %v1657 = vmax.f32 %v1008, %v1374
        %v1658 = vmax.f32 %v1010, %v1376
        %v1659 = vmax.f32 %v1013, %v1378
        %v1660 = vmax.f32 %v1015, %v1380
        %v1661 = vmax.f32 %v1018, %v1382
        %v1662 = vmax.f32 %v1020, %v1384
        %v1663 = vmax.f32 %v1023, %v1386
        %v1664 = vmax.f32 %v1025, %v1388
        %v1665 = vmax.f32 %v1028, %v1390
        %v1666 = vmax.f32 %v1030, %v1392
        %v1667 = vmax.f32 %v1033, %v1394
        %v1668 = vmax.f32 %v1035, %v1396
        %v1669 = vmax.f32 %v1038, %v1398
        %v1670 = vmax.f32 %v1040, %v1400
        %v1671 = vmax.f32 %v1043, %v1402
        %v1672 = vmax.f32 %v1045, %v1404
        %v1673 = vmax.f32 %v1048, %v1406
        %v1674 = vmax.f32 %v1050, %v1408
        %v1675 = vmax.f32 %v1053, %v1410
        %v1676 = vmax.f32 %v1055, %v1412
        %v1677 = vmax.f32 %v1058, %v1414
        %v1678 = vmax.f32 %v1060, %v1416
        %v1679 = vmax.f32 %v1063, %v1418
        %v1680 = vmax.f32 %v1065, %v1420
        %v1681 = vmax.f32 %v1068, %v1422
        %v1682 = vmax.f32 %v1070, %v1424
        %v1683 = vmax.f32 %v1073, %v1426
        %v1684 = vmax.f32 %v1075, %v1428
        %v1685 = vmax.f32 %v1078, %v1430
        %v1686 = vmax.f32 %v1080, %v1432
        %v1687 = vmax.f32 %v1083, %v1434
        %v1688 = vmax.f32 %v1085, %v1436
        %v1689 = vmax.f32 %v1088, %v1438
        %v1690 = vmax.f32 %v1090, %v1440
        %v1691 = vmax.f32 %v1093, %v1442
        %v1692 = vmax.f32 %v1095, %v1444
        %v1693 = vmax.f32 %v1098, %v1446
        %v1694 = vmax.f32 %v1100, %v1448
        %v1695 = vmax.f32 %v1103, %v1450
        %v1696 = vmax.f32 %v1105, %v1452
        %v1697 = vmax.f32 %v1108, %v1454
        %v1698 = vmax.f32 %v1110, %v1456
        %v1699 = vmax.f32 %v1113, %v1458
        %v1700 = vmax.f32 %v1115, %v1460
        %v1701 = vmax.f32 %v1118, %v1462
        %v1702 = vmax.f32 %v1120, %v1464
        %v1703 = vmax.f32 %v1123, %v1466
        %v1704 = vmax.f32 %v1125, %v1468
        %v1705 = vmax.f32 %v1128, %v1470
        %v1706 = vmax.f32 %v1130, %v1472
        %v1707 = vmax.f32 %v1133, %v1474
        %v1708 = vmax.f32 %v1135, %v1476
        %v1709 = vmax.f32 %v1138, %v1478
        %v1710 = vmax.f32 %v1140, %v1480
        %v1711 = vmax.f32 %v1143, %v1482
        %v1712 = vmax.f32 %v1145, %v1484
        %v1713 = vmax.f32 %v1148, %v1486
        %v1714 = vmax.f32 %v1150, %v1488
        %v1715 = vmax.f32 %v1153, %v1490
        %v1716 = vmax.f32 %v1155, %v1492
        %1829 = vrot.lane.b32.xlu0 %v1605, 96
        %v1830 = vpop.permute.xlu0 %1829
        %1831 = vrot.lane.b32.xlu0 %v1606, 96
        %v1832 = vpop.permute.xlu0 %1831
        %1833 = vrot.lane.b32.xlu0 %v1607, 96
        %v1834 = vpop.permute.xlu0 %1833
        %1835 = vrot.lane.b32.xlu0 %v1608, 96
        %v1836 = vpop.permute.xlu0 %1835
        %1837 = vrot.lane.b32.xlu0 %v1609, 96
        %v1838 = vpop.permute.xlu0 %1837
        %1839 = vrot.lane.b32.xlu0 %v1610, 96
        %v1840 = vpop.permute.xlu0 %1839
        %1841 = vrot.lane.b32.xlu0 %v1611, 96
        %v1842 = vpop.permute.xlu0 %1841
        %1843 = vrot.lane.b32.xlu0 %v1612, 96
        %v1844 = vpop.permute.xlu0 %1843
        %1845 = vrot.lane.b32.xlu0 %v1613, 96
        %v1846 = vpop.permute.xlu0 %1845
        %1847 = vrot.lane.b32.xlu0 %v1614, 96
        %v1848 = vpop.permute.xlu0 %1847
        %1849 = vrot.lane.b32.xlu0 %v1615, 96
        %v1850 = vpop.permute.xlu0 %1849
        %1851 = vrot.lane.b32.xlu0 %v1616, 96
        %v1852 = vpop.permute.xlu0 %1851
        %1853 = vrot.lane.b32.xlu0 %v1617, 96
        %v1854 = vpop.permute.xlu0 %1853
        %1855 = vrot.lane.b32.xlu0 %v1618, 96
        %v1856 = vpop.permute.xlu0 %1855
        %1857 = vrot.lane.b32.xlu0 %v1619, 96
        %v1858 = vpop.permute.xlu0 %1857
        %1859 = vrot.lane.b32.xlu0 %v1620, 96
        %v1860 = vpop.permute.xlu0 %1859
        %1861 = vrot.lane.b32.xlu0 %v1621, 96
        %v1862 = vpop.permute.xlu0 %1861
        %1863 = vrot.lane.b32.xlu0 %v1622, 96
        %v1864 = vpop.permute.xlu0 %1863
        %1865 = vrot.lane.b32.xlu0 %v1623, 96
        %v1866 = vpop.permute.xlu0 %1865
        %1867 = vrot.lane.b32.xlu0 %v1624, 96
        %v1868 = vpop.permute.xlu0 %1867
        %1869 = vrot.lane.b32.xlu0 %v1625, 96
        %v1870 = vpop.permute.xlu0 %1869
        %1871 = vrot.lane.b32.xlu0 %v1626, 96
        %v1872 = vpop.permute.xlu0 %1871
        %1873 = vrot.lane.b32.xlu0 %v1627, 96
        %v1874 = vpop.permute.xlu0 %1873
        %1875 = vrot.lane.b32.xlu0 %v1628, 96
        %v1876 = vpop.permute.xlu0 %1875
        %1877 = vrot.lane.b32.xlu0 %v1629, 96
        %v1878 = vpop.permute.xlu0 %1877
        %1879 = vrot.lane.b32.xlu0 %v1630, 96
        %v1880 = vpop.permute.xlu0 %1879
        %1881 = vrot.lane.b32.xlu0 %v1631, 96
        %v1882 = vpop.permute.xlu0 %1881
        %1883 = vrot.lane.b32.xlu0 %v1632, 96
        %v1884 = vpop.permute.xlu0 %1883
        %1885 = vrot.lane.b32.xlu0 %v1633, 96
        %v1886 = vpop.permute.xlu0 %1885
        %1887 = vrot.lane.b32.xlu0 %v1634, 96
        %v1888 = vpop.permute.xlu0 %1887
        %1889 = vrot.lane.b32.xlu0 %v1635, 96
        %v1890 = vpop.permute.xlu0 %1889
        %1891 = vrot.lane.b32.xlu0 %v1636, 96
        %v1892 = vpop.permute.xlu0 %1891
        %1893 = vrot.lane.b32.xlu0 %v1637, 96
        %v1894 = vpop.permute.xlu0 %1893
        %1895 = vrot.lane.b32.xlu0 %v1638, 96
        %v1896 = vpop.permute.xlu0 %1895
        %1897 = vrot.lane.b32.xlu0 %v1639, 96
        %v1898 = vpop.permute.xlu0 %1897
        %1899 = vrot.lane.b32.xlu0 %v1640, 96
        %v1900 = vpop.permute.xlu0 %1899
        %1901 = vrot.lane.b32.xlu0 %v1641, 96
        %v1902 = vpop.permute.xlu0 %1901
        %1903 = vrot.lane.b32.xlu0 %v1642, 96
        %v1904 = vpop.permute.xlu0 %1903
        %1905 = vrot.lane.b32.xlu0 %v1643, 96
        %v1906 = vpop.permute.xlu0 %1905
        %1907 = vrot.lane.b32.xlu0 %v1644, 96
        %v1908 = vpop.permute.xlu0 %1907
        %1909 = vrot.lane.b32.xlu0 %v1645, 96
        %v1910 = vpop.permute.xlu0 %1909
        %1911 = vrot.lane.b32.xlu0 %v1646, 96
        %v1912 = vpop.permute.xlu0 %1911
        %1913 = vrot.lane.b32.xlu0 %v1647, 96
        %v1914 = vpop.permute.xlu0 %1913
        %1915 = vrot.lane.b32.xlu0 %v1648, 96
        %v1916 = vpop.permute.xlu0 %1915
        %1917 = vrot.lane.b32.xlu0 %v1649, 96
        %v1918 = vpop.permute.xlu0 %1917
        %1919 = vrot.lane.b32.xlu0 %v1650, 96
        %v1920 = vpop.permute.xlu0 %1919
        %1921 = vrot.lane.b32.xlu0 %v1651, 96
        %v1922 = vpop.permute.xlu0 %1921
        %1923 = vrot.lane.b32.xlu0 %v1652, 96
        %v1924 = vpop.permute.xlu0 %1923
        %1925 = vrot.lane.b32.xlu0 %v1653, 96
        %v1926 = vpop.permute.xlu0 %1925
        %1927 = vrot.lane.b32.xlu0 %v1654, 96
        %v1928 = vpop.permute.xlu0 %1927
        %1929 = vrot.lane.b32.xlu0 %v1655, 96
        %v1930 = vpop.permute.xlu0 %1929
        %1931 = vrot.lane.b32.xlu0 %v1656, 96
        %v1932 = vpop.permute.xlu0 %1931
        %1933 = vrot.lane.b32.xlu0 %v1657, 96
        %v1934 = vpop.permute.xlu0 %1933
        %1935 = vrot.lane.b32.xlu0 %v1658, 96
        %v1936 = vpop.permute.xlu0 %1935
        %1937 = vrot.lane.b32.xlu0 %v1659, 96
        %v1938 = vpop.permute.xlu0 %1937
        %1939 = vrot.lane.b32.xlu0 %v1660, 96
        %v1940 = vpop.permute.xlu0 %1939
        %1941 = vrot.lane.b32.xlu0 %v1661, 96
        %v1942 = vpop.permute.xlu0 %1941
        %1943 = vrot.lane.b32.xlu0 %v1662, 96
        %v1944 = vpop.permute.xlu0 %1943
        %1945 = vrot.lane.b32.xlu0 %v1663, 96
        %v1946 = vpop.permute.xlu0 %1945
        %1947 = vrot.lane.b32.xlu0 %v1664, 96
        %v1948 = vpop.permute.xlu0 %1947
        %1949 = vrot.lane.b32.xlu0 %v1665, 96
        %v1950 = vpop.permute.xlu0 %1949
        %1951 = vrot.lane.b32.xlu0 %v1666, 96
        %v1952 = vpop.permute.xlu0 %1951
        %1953 = vrot.lane.b32.xlu0 %v1667, 96
        %v1954 = vpop.permute.xlu0 %1953
        %1955 = vrot.lane.b32.xlu0 %v1668, 96
        %v1956 = vpop.permute.xlu0 %1955
        %1957 = vrot.lane.b32.xlu0 %v1669, 96
        %v1958 = vpop.permute.xlu0 %1957
        %1959 = vrot.lane.b32.xlu0 %v1670, 96
        %v1960 = vpop.permute.xlu0 %1959
        %1961 = vrot.lane.b32.xlu0 %v1671, 96
        %v1962 = vpop.permute.xlu0 %1961
        %1963 = vrot.lane.b32.xlu0 %v1672, 96
        %v1964 = vpop.permute.xlu0 %1963
        %1965 = vrot.lane.b32.xlu0 %v1673, 96
        %v1966 = vpop.permute.xlu0 %1965
        %1967 = vrot.lane.b32.xlu0 %v1674, 96
        %v1968 = vpop.permute.xlu0 %1967
        %1969 = vrot.lane.b32.xlu0 %v1675, 96
        %v1970 = vpop.permute.xlu0 %1969
        %1971 = vrot.lane.b32.xlu0 %v1676, 96
        %v1972 = vpop.permute.xlu0 %1971
        %1973 = vrot.lane.b32.xlu0 %v1677, 96
        %v1974 = vpop.permute.xlu0 %1973
        %1975 = vrot.lane.b32.xlu0 %v1678, 96
        %v1976 = vpop.permute.xlu0 %1975
        %1977 = vrot.lane.b32.xlu0 %v1679, 96
        %v1978 = vpop.permute.xlu0 %1977
        %1979 = vrot.lane.b32.xlu0 %v1680, 96
        %v1980 = vpop.permute.xlu0 %1979
        %1981 = vrot.lane.b32.xlu0 %v1681, 96
        %v1982 = vpop.permute.xlu0 %1981
        %1983 = vrot.lane.b32.xlu0 %v1682, 96
        %v1984 = vpop.permute.xlu0 %1983
        %1985 = vrot.lane.b32.xlu0 %v1683, 96
        %v1986 = vpop.permute.xlu0 %1985
        %1987 = vrot.lane.b32.xlu0 %v1684, 96
        %v1988 = vpop.permute.xlu0 %1987
        %1989 = vrot.lane.b32.xlu0 %v1685, 96
        %v1990 = vpop.permute.xlu0 %1989
        %1991 = vrot.lane.b32.xlu0 %v1686, 96
        %v1992 = vpop.permute.xlu0 %1991
        %1993 = vrot.lane.b32.xlu0 %v1687, 96
        %v1994 = vpop.permute.xlu0 %1993
        %1995 = vrot.lane.b32.xlu0 %v1688, 96
        %v1996 = vpop.permute.xlu0 %1995
        %1997 = vrot.lane.b32.xlu0 %v1689, 96
        %v1998 = vpop.permute.xlu0 %1997
        %1999 = vrot.lane.b32.xlu0 %v1690, 96
        %v2000 = vpop.permute.xlu0 %1999
        %2001 = vrot.lane.b32.xlu0 %v1691, 96
        %v2002 = vpop.permute.xlu0 %2001
        %2003 = vrot.lane.b32.xlu0 %v1692, 96
        %v2004 = vpop.permute.xlu0 %2003
        %2005 = vrot.lane.b32.xlu0 %v1693, 96
        %v2006 = vpop.permute.xlu0 %2005
        %2007 = vrot.lane.b32.xlu0 %v1694, 96
        %v2008 = vpop.permute.xlu0 %2007
        %2009 = vrot.lane.b32.xlu0 %v1695, 96
        %v2010 = vpop.permute.xlu0 %2009
        %2011 = vrot.lane.b32.xlu0 %v1696, 96
        %v2012 = vpop.permute.xlu0 %2011
        %2013 = vrot.lane.b32.xlu0 %v1697, 96
        %v2014 = vpop.permute.xlu0 %2013
        %2015 = vrot.lane.b32.xlu0 %v1698, 96
        %v2016 = vpop.permute.xlu0 %2015
        %2017 = vrot.lane.b32.xlu0 %v1699, 96
        %v2018 = vpop.permute.xlu0 %2017
        %2019 = vrot.lane.b32.xlu0 %v1700, 96
        %v2020 = vpop.permute.xlu0 %2019
        %2021 = vrot.lane.b32.xlu0 %v1701, 96
        %v2022 = vpop.permute.xlu0 %2021
        %2023 = vrot.lane.b32.xlu0 %v1702, 96
        %v2024 = vpop.permute.xlu0 %2023
        %2025 = vrot.lane.b32.xlu0 %v1703, 96
        %v2026 = vpop.permute.xlu0 %2025
        %2027 = vrot.lane.b32.xlu0 %v1704, 96
        %v2028 = vpop.permute.xlu0 %2027
        %2029 = vrot.lane.b32.xlu0 %v1705, 96
        %v2030 = vpop.permute.xlu0 %2029
        %2031 = vrot.lane.b32.xlu0 %v1706, 96
        %v2032 = vpop.permute.xlu0 %2031
        %2033 = vrot.lane.b32.xlu0 %v1707, 96
        %v2034 = vpop.permute.xlu0 %2033
        %2035 = vrot.lane.b32.xlu0 %v1708, 96
        %v2036 = vpop.permute.xlu0 %2035
        %2037 = vrot.lane.b32.xlu0 %v1709, 96
        %v2038 = vpop.permute.xlu0 %2037
        %2039 = vrot.lane.b32.xlu0 %v1710, 96
        %v2040 = vpop.permute.xlu0 %2039
        %2041 = vrot.lane.b32.xlu0 %v1711, 96
        %v2042 = vpop.permute.xlu0 %2041
        %2043 = vrot.lane.b32.xlu0 %v1712, 96
        %v2044 = vpop.permute.xlu0 %2043
        %2045 = vrot.lane.b32.xlu0 %v1713, 96
        %v2046 = vpop.permute.xlu0 %2045
        %2047 = vrot.lane.b32.xlu0 %v1714, 96
        %v2048 = vpop.permute.xlu0 %2047
        %2049 = vrot.lane.b32.xlu0 %v1715, 96
        %v2050 = vpop.permute.xlu0 %2049
        %2051 = vrot.lane.b32.xlu0 %v1716, 96
        %v2052 = vpop.permute.xlu0 %2051
        %v2165 = vmax.f32 %v1605, %v1830
        %v2166 = vmax.f32 %v1606, %v1832
        %v2167 = vmax.f32 %v1607, %v1834
        %v2168 = vmax.f32 %v1608, %v1836
        %v2169 = vmax.f32 %v1609, %v1838
        %v2170 = vmax.f32 %v1610, %v1840
        %v2171 = vmax.f32 %v1611, %v1842
        %v2172 = vmax.f32 %v1612, %v1844
        %v2173 = vmax.f32 %v1613, %v1846
        %v2174 = vmax.f32 %v1614, %v1848
        %v2175 = vmax.f32 %v1615, %v1850
        %v2176 = vmax.f32 %v1616, %v1852
        %v2177 = vmax.f32 %v1617, %v1854
        %v2178 = vmax.f32 %v1618, %v1856
        %v2179 = vmax.f32 %v1619, %v1858
        %v2180 = vmax.f32 %v1620, %v1860
        %v2181 = vmax.f32 %v1621, %v1862
        %v2182 = vmax.f32 %v1622, %v1864
        %v2183 = vmax.f32 %v1623, %v1866
        %v2184 = vmax.f32 %v1624, %v1868
        %v2185 = vmax.f32 %v1625, %v1870
        %v2186 = vmax.f32 %v1626, %v1872
        %v2187 = vmax.f32 %v1627, %v1874
        %v2188 = vmax.f32 %v1628, %v1876
        %v2189 = vmax.f32 %v1629, %v1878
        %v2190 = vmax.f32 %v1630, %v1880
        %v2191 = vmax.f32 %v1631, %v1882
        %v2192 = vmax.f32 %v1632, %v1884
        %v2193 = vmax.f32 %v1633, %v1886
        %v2194 = vmax.f32 %v1634, %v1888
        %v2195 = vmax.f32 %v1635, %v1890
        %v2196 = vmax.f32 %v1636, %v1892
        %v2197 = vmax.f32 %v1637, %v1894
        %v2198 = vmax.f32 %v1638, %v1896
        %v2199 = vmax.f32 %v1639, %v1898
        %v2200 = vmax.f32 %v1640, %v1900
        %v2201 = vmax.f32 %v1641, %v1902
        %v2202 = vmax.f32 %v1642, %v1904
        %v2203 = vmax.f32 %v1643, %v1906
        %v2204 = vmax.f32 %v1644, %v1908
        %v2205 = vmax.f32 %v1645, %v1910
        %v2206 = vmax.f32 %v1646, %v1912
        %v2207 = vmax.f32 %v1647, %v1914
        %v2208 = vmax.f32 %v1648, %v1916
        %v2209 = vmax.f32 %v1649, %v1918
        %v2210 = vmax.f32 %v1650, %v1920
        %v2211 = vmax.f32 %v1651, %v1922
        %v2212 = vmax.f32 %v1652, %v1924
        %v2213 = vmax.f32 %v1653, %v1926
        %v2214 = vmax.f32 %v1654, %v1928
        %v2215 = vmax.f32 %v1655, %v1930
        %v2216 = vmax.f32 %v1656, %v1932
        %v2217 = vmax.f32 %v1657, %v1934
        %v2218 = vmax.f32 %v1658, %v1936
        %v2219 = vmax.f32 %v1659, %v1938
        %v2220 = vmax.f32 %v1660, %v1940
        %v2221 = vmax.f32 %v1661, %v1942
        %v2222 = vmax.f32 %v1662, %v1944
        %v2223 = vmax.f32 %v1663, %v1946
        %v2224 = vmax.f32 %v1664, %v1948
        %v2225 = vmax.f32 %v1665, %v1950
        %v2226 = vmax.f32 %v1666, %v1952
        %v2227 = vmax.f32 %v1667, %v1954
        %v2228 = vmax.f32 %v1668, %v1956
        %v2229 = vmax.f32 %v1669, %v1958
        %v2230 = vmax.f32 %v1670, %v1960
        %v2231 = vmax.f32 %v1671, %v1962
        %v2232 = vmax.f32 %v1672, %v1964
        %v2233 = vmax.f32 %v1673, %v1966
        %v2234 = vmax.f32 %v1674, %v1968
        %v2235 = vmax.f32 %v1675, %v1970
        %v2236 = vmax.f32 %v1676, %v1972
        %v2237 = vmax.f32 %v1677, %v1974
        %v2238 = vmax.f32 %v1678, %v1976
        %v2239 = vmax.f32 %v1679, %v1978
        %v2240 = vmax.f32 %v1680, %v1980
        %v2241 = vmax.f32 %v1681, %v1982
        %v2242 = vmax.f32 %v1682, %v1984
        %v2243 = vmax.f32 %v1683, %v1986
        %v2244 = vmax.f32 %v1684, %v1988
        %v2245 = vmax.f32 %v1685, %v1990
        %v2246 = vmax.f32 %v1686, %v1992
        %v2247 = vmax.f32 %v1687, %v1994
        %v2248 = vmax.f32 %v1688, %v1996
        %v2249 = vmax.f32 %v1689, %v1998
        %v2250 = vmax.f32 %v1690, %v2000
        %v2251 = vmax.f32 %v1691, %v2002
        %v2252 = vmax.f32 %v1692, %v2004
        %v2253 = vmax.f32 %v1693, %v2006
        %v2254 = vmax.f32 %v1694, %v2008
        %v2255 = vmax.f32 %v1695, %v2010
        %v2256 = vmax.f32 %v1696, %v2012
        %v2257 = vmax.f32 %v1697, %v2014
        %v2258 = vmax.f32 %v1698, %v2016
        %v2259 = vmax.f32 %v1699, %v2018
        %v2260 = vmax.f32 %v1700, %v2020
        %v2261 = vmax.f32 %v1701, %v2022
        %v2262 = vmax.f32 %v1702, %v2024
        %v2263 = vmax.f32 %v1703, %v2026
        %v2264 = vmax.f32 %v1704, %v2028
        %v2265 = vmax.f32 %v1705, %v2030
        %v2266 = vmax.f32 %v1706, %v2032
        %v2267 = vmax.f32 %v1707, %v2034
        %v2268 = vmax.f32 %v1708, %v2036
        %v2269 = vmax.f32 %v1709, %v2038
        %v2270 = vmax.f32 %v1710, %v2040
        %v2271 = vmax.f32 %v1711, %v2042
        %v2272 = vmax.f32 %v1712, %v2044
        %v2273 = vmax.f32 %v1713, %v2046
        %v2274 = vmax.f32 %v1714, %v2048
        %v2275 = vmax.f32 %v1715, %v2050
        %v2276 = vmax.f32 %v1716, %v2052
        %v2277 = vld [vmem:[%s2] sm:$0x1]
        %v2279 = vperm.slane %v2277, 0
        %v2281 = vadd.f32 %v2165, %v2279
        %v2282 = vadd.f32 %v2166, %v2279
        %v2283 = vadd.f32 %v2167, %v2279
        %v2284 = vadd.f32 %v2168, %v2279
        %v2285 = vadd.f32 %v2169, %v2279
        %v2286 = vadd.f32 %v2170, %v2279
        %v2287 = vadd.f32 %v2171, %v2279
        %v2288 = vadd.f32 %v2172, %v2279
        %v2289 = vadd.f32 %v2173, %v2279
        %v2290 = vadd.f32 %v2174, %v2279
        %v2291 = vadd.f32 %v2175, %v2279
        %v2292 = vadd.f32 %v2176, %v2279
        %v2293 = vadd.f32 %v2177, %v2279
        %v2294 = vadd.f32 %v2178, %v2279
        %v2295 = vadd.f32 %v2179, %v2279
        %v2296 = vadd.f32 %v2180, %v2279
        %v2297 = vadd.f32 %v2181, %v2279
        %v2298 = vadd.f32 %v2182, %v2279
        %v2299 = vadd.f32 %v2183, %v2279
        %v2300 = vadd.f32 %v2184, %v2279
        %v2301 = vadd.f32 %v2185, %v2279
        %v2302 = vadd.f32 %v2186, %v2279
        %v2303 = vadd.f32 %v2187, %v2279
        %v2304 = vadd.f32 %v2188, %v2279
        %v2305 = vadd.f32 %v2189, %v2279
        %v2306 = vadd.f32 %v2190, %v2279
        %v2307 = vadd.f32 %v2191, %v2279
        %v2308 = vadd.f32 %v2192, %v2279
        %v2309 = vadd.f32 %v2193, %v2279
        %v2310 = vadd.f32 %v2194, %v2279
        %v2311 = vadd.f32 %v2195, %v2279
        %v2312 = vadd.f32 %v2196, %v2279
        %v2313 = vadd.f32 %v2197, %v2279
        %v2314 = vadd.f32 %v2198, %v2279
        %v2315 = vadd.f32 %v2199, %v2279
        %v2316 = vadd.f32 %v2200, %v2279
        %v2317 = vadd.f32 %v2201, %v2279
        %v2318 = vadd.f32 %v2202, %v2279
        %v2319 = vadd.f32 %v2203, %v2279
        %v2320 = vadd.f32 %v2204, %v2279
        %v2321 = vadd.f32 %v2205, %v2279
        %v2322 = vadd.f32 %v2206, %v2279
        %v2323 = vadd.f32 %v2207, %v2279
        %v2324 = vadd.f32 %v2208, %v2279
        %v2325 = vadd.f32 %v2209, %v2279
        %v2326 = vadd.f32 %v2210, %v2279
        %v2327 = vadd.f32 %v2211, %v2279
        %v2328 = vadd.f32 %v2212, %v2279
        %v2329 = vadd.f32 %v2213, %v2279
        %v2330 = vadd.f32 %v2214, %v2279
        %v2331 = vadd.f32 %v2215, %v2279
        %v2332 = vadd.f32 %v2216, %v2279
        %v2333 = vadd.f32 %v2217, %v2279
        %v2334 = vadd.f32 %v2218, %v2279
        %v2335 = vadd.f32 %v2219, %v2279
        %v2336 = vadd.f32 %v2220, %v2279
        %v2337 = vadd.f32 %v2221, %v2279
        %v2338 = vadd.f32 %v2222, %v2279
        %v2339 = vadd.f32 %v2223, %v2279
        %v2340 = vadd.f32 %v2224, %v2279
        %v2341 = vadd.f32 %v2225, %v2279
        %v2342 = vadd.f32 %v2226, %v2279
        %v2343 = vadd.f32 %v2227, %v2279
        %v2344 = vadd.f32 %v2228, %v2279
        %v2345 = vadd.f32 %v2229, %v2279
        %v2346 = vadd.f32 %v2230, %v2279
        %v2347 = vadd.f32 %v2231, %v2279
        %v2348 = vadd.f32 %v2232, %v2279
        %v2349 = vadd.f32 %v2233, %v2279
        %v2350 = vadd.f32 %v2234, %v2279
        %v2351 = vadd.f32 %v2235, %v2279
        %v2352 = vadd.f32 %v2236, %v2279
        %v2353 = vadd.f32 %v2237, %v2279
        %v2354 = vadd.f32 %v2238, %v2279
        %v2355 = vadd.f32 %v2239, %v2279
        %v2356 = vadd.f32 %v2240, %v2279
        %v2357 = vadd.f32 %v2241, %v2279
        %v2358 = vadd.f32 %v2242, %v2279
        %v2359 = vadd.f32 %v2243, %v2279
        %v2360 = vadd.f32 %v2244, %v2279
        %v2361 = vadd.f32 %v2245, %v2279
        %v2362 = vadd.f32 %v2246, %v2279
        %v2363 = vadd.f32 %v2247, %v2279
        %v2364 = vadd.f32 %v2248, %v2279
        %v2365 = vadd.f32 %v2249, %v2279
        %v2366 = vadd.f32 %v2250, %v2279
        %v2367 = vadd.f32 %v2251, %v2279
        %v2368 = vadd.f32 %v2252, %v2279
        %v2369 = vadd.f32 %v2253, %v2279
        %v2370 = vadd.f32 %v2254, %v2279
        %v2371 = vadd.f32 %v2255, %v2279
        %v2372 = vadd.f32 %v2256, %v2279
        %v2373 = vadd.f32 %v2257, %v2279
        %v2374 = vadd.f32 %v2258, %v2279
        %v2375 = vadd.f32 %v2259, %v2279
        %v2376 = vadd.f32 %v2260, %v2279
        %v2377 = vadd.f32 %v2261, %v2279
        %v2378 = vadd.f32 %v2262, %v2279
        %v2379 = vadd.f32 %v2263, %v2279
        %v2380 = vadd.f32 %v2264, %v2279
        %v2381 = vadd.f32 %v2265, %v2279
        %v2382 = vadd.f32 %v2266, %v2279
        %v2383 = vadd.f32 %v2267, %v2279
        %v2384 = vadd.f32 %v2268, %v2279
        %v2385 = vadd.f32 %v2269, %v2279
        %v2386 = vadd.f32 %v2270, %v2279
        %v2387 = vadd.f32 %v2271, %v2279
        %v2388 = vadd.f32 %v2272, %v2279
        %v2389 = vadd.f32 %v2273, %v2279
        %v2390 = vadd.f32 %v2274, %v2279
        %v2391 = vadd.f32 %v2275, %v2279
        %v2392 = vadd.f32 %v2276, %v2279
        %v2393 = vmax.f32 %v2281, 0.0
        %v2394 = vmax.f32 %v2282, 0.0
        %v2395 = vmax.f32 %v2283, 0.0
        %v2396 = vmax.f32 %v2284, 0.0
        %v2397 = vmax.f32 %v2285, 0.0
        %v2398 = vmax.f32 %v2286, 0.0
        %v2399 = vmax.f32 %v2287, 0.0
        %v2400 = vmax.f32 %v2288, 0.0
        %v2401 = vmax.f32 %v2289, 0.0
        %v2402 = vmax.f32 %v2290, 0.0
        %v2403 = vmax.f32 %v2291, 0.0
        %v2404 = vmax.f32 %v2292, 0.0
        %v2405 = vmax.f32 %v2293, 0.0
        %v2406 = vmax.f32 %v2294, 0.0
        %v2407 = vmax.f32 %v2295, 0.0
        %v2408 = vmax.f32 %v2296, 0.0
        %v2409 = vmax.f32 %v2297, 0.0
        %v2410 = vmax.f32 %v2298, 0.0
        %v2411 = vmax.f32 %v2299, 0.0
        %v2412 = vmax.f32 %v2300, 0.0
        %v2413 = vmax.f32 %v2301, 0.0
        %v2414 = vmax.f32 %v2302, 0.0
        %v2415 = vmax.f32 %v2303, 0.0
        %v2416 = vmax.f32 %v2304, 0.0
        %v2417 = vmax.f32 %v2305, 0.0
        %v2418 = vmax.f32 %v2306, 0.0
        %v2419 = vmax.f32 %v2307, 0.0
        %v2420 = vmax.f32 %v2308, 0.0
        %v2421 = vmax.f32 %v2309, 0.0
        %v2422 = vmax.f32 %v2310, 0.0
        %v2423 = vmax.f32 %v2311, 0.0
        %v2424 = vmax.f32 %v2312, 0.0
        %v2425 = vmax.f32 %v2313, 0.0
        %v2426 = vmax.f32 %v2314, 0.0
        %v2427 = vmax.f32 %v2315, 0.0
        %v2428 = vmax.f32 %v2316, 0.0
        %v2429 = vmax.f32 %v2317, 0.0
        %v2430 = vmax.f32 %v2318, 0.0
        %v2431 = vmax.f32 %v2319, 0.0
        %v2432 = vmax.f32 %v2320, 0.0
        %v2433 = vmax.f32 %v2321, 0.0
        %v2434 = vmax.f32 %v2322, 0.0
        %v2435 = vmax.f32 %v2323, 0.0
        %v2436 = vmax.f32 %v2324, 0.0
        %v2437 = vmax.f32 %v2325, 0.0
        %v2438 = vmax.f32 %v2326, 0.0
        %v2439 = vmax.f32 %v2327, 0.0
        %v2440 = vmax.f32 %v2328, 0.0
        %v2441 = vmax.f32 %v2329, 0.0
        %v2442 = vmax.f32 %v2330, 0.0
        %v2443 = vmax.f32 %v2331, 0.0
        %v2444 = vmax.f32 %v2332, 0.0
        %v2445 = vmax.f32 %v2333, 0.0
        %v2446 = vmax.f32 %v2334, 0.0
        %v2447 = vmax.f32 %v2335, 0.0
        %v2448 = vmax.f32 %v2336, 0.0
        %v2449 = vmax.f32 %v2337, 0.0
        %v2450 = vmax.f32 %v2338, 0.0
        %v2451 = vmax.f32 %v2339, 0.0
        %v2452 = vmax.f32 %v2340, 0.0
        %v2453 = vmax.f32 %v2341, 0.0
        %v2454 = vmax.f32 %v2342, 0.0
        %v2455 = vmax.f32 %v2343, 0.0
        %v2456 = vmax.f32 %v2344, 0.0
        %v2457 = vmax.f32 %v2345, 0.0
        %v2458 = vmax.f32 %v2346, 0.0
        %v2459 = vmax.f32 %v2347, 0.0
        %v2460 = vmax.f32 %v2348, 0.0
        %v2461 = vmax.f32 %v2349, 0.0
        %v2462 = vmax.f32 %v2350, 0.0
        %v2463 = vmax.f32 %v2351, 0.0
        %v2464 = vmax.f32 %v2352, 0.0
        %v2465 = vmax.f32 %v2353, 0.0
        %v2466 = vmax.f32 %v2354, 0.0
        %v2467 = vmax.f32 %v2355, 0.0
        %v2468 = vmax.f32 %v2356, 0.0
        %v2469 = vmax.f32 %v2357, 0.0
        %v2470 = vmax.f32 %v2358, 0.0
        %v2471 = vmax.f32 %v2359, 0.0
        %v2472 = vmax.f32 %v2360, 0.0
        %v2473 = vmax.f32 %v2361, 0.0
        %v2474 = vmax.f32 %v2362, 0.0
        %v2475 = vmax.f32 %v2363, 0.0
        %v2476 = vmax.f32 %v2364, 0.0
        %v2477 = vmax.f32 %v2365, 0.0
        %v2478 = vmax.f32 %v2366, 0.0
        %v2479 = vmax.f32 %v2367, 0.0
        %v2480 = vmax.f32 %v2368, 0.0
        %v2481 = vmax.f32 %v2369, 0.0
        %v2482 = vmax.f32 %v2370, 0.0
        %v2483 = vmax.f32 %v2371, 0.0
        %v2484 = vmax.f32 %v2372, 0.0
        %v2485 = vmax.f32 %v2373, 0.0
        %v2486 = vmax.f32 %v2374, 0.0
        %v2487 = vmax.f32 %v2375, 0.0
        %v2488 = vmax.f32 %v2376, 0.0
        %v2489 = vmax.f32 %v2377, 0.0
        %v2490 = vmax.f32 %v2378, 0.0
        %v2491 = vmax.f32 %v2379, 0.0
        %v2492 = vmax.f32 %v2380, 0.0
        %v2493 = vmax.f32 %v2381, 0.0
        %v2494 = vmax.f32 %v2382, 0.0
        %v2495 = vmax.f32 %v2383, 0.0
        %v2496 = vmax.f32 %v2384, 0.0
        %v2497 = vmax.f32 %v2385, 0.0
        %v2498 = vmax.f32 %v2386, 0.0
        %v2499 = vmax.f32 %v2387, 0.0
        %v2500 = vmax.f32 %v2388, 0.0
        %v2501 = vmax.f32 %v2389, 0.0
        %v2502 = vmax.f32 %v2390, 0.0
        %v2503 = vmax.f32 %v2391, 0.0
        %v2504 = vmax.f32 %v2392, 0.0
        %v2505 = vpack.c.bf16 %v2393, %v2393
        %v2506 = vpack.c.bf16 %v2394, %v2394
        %v2507 = vpack.c.bf16 %v2395, %v2395
        %v2508 = vpack.c.bf16 %v2396, %v2396
        %v2509 = vpack.c.bf16 %v2397, %v2397
        %v2510 = vpack.c.bf16 %v2398, %v2398
        %v2511 = vpack.c.bf16 %v2399, %v2399
        %v2512 = vpack.c.bf16 %v2400, %v2400
        %v2513 = vpack.c.bf16 %v2401, %v2401
        %v2514 = vpack.c.bf16 %v2402, %v2402
        %v2515 = vpack.c.bf16 %v2403, %v2403
        %v2516 = vpack.c.bf16 %v2404, %v2404
        %v2517 = vpack.c.bf16 %v2405, %v2405
        %v2518 = vpack.c.bf16 %v2406, %v2406
        %v2519 = vpack.c.bf16 %v2407, %v2407
        %v2520 = vpack.c.bf16 %v2408, %v2408
        %v2521 = vpack.c.bf16 %v2409, %v2409
        %v2522 = vpack.c.bf16 %v2410, %v2410
        %v2523 = vpack.c.bf16 %v2411, %v2411
        %v2524 = vpack.c.bf16 %v2412, %v2412
        %v2525 = vpack.c.bf16 %v2413, %v2413
        %v2526 = vpack.c.bf16 %v2414, %v2414
        %v2527 = vpack.c.bf16 %v2415, %v2415
        %v2528 = vpack.c.bf16 %v2416, %v2416
        %v2529 = vpack.c.bf16 %v2417, %v2417
        %v2530 = vpack.c.bf16 %v2418, %v2418
        %v2531 = vpack.c.bf16 %v2419, %v2419
        %v2532 = vpack.c.bf16 %v2420, %v2420
        %v2533 = vpack.c.bf16 %v2421, %v2421
        %v2534 = vpack.c.bf16 %v2422, %v2422
        %v2535 = vpack.c.bf16 %v2423, %v2423
        %v2536 = vpack.c.bf16 %v2424, %v2424
        %v2537 = vpack.c.bf16 %v2425, %v2425
        %v2538 = vpack.c.bf16 %v2426, %v2426
        %v2539 = vpack.c.bf16 %v2427, %v2427
        %v2540 = vpack.c.bf16 %v2428, %v2428
        %v2541 = vpack.c.bf16 %v2429, %v2429
        %v2542 = vpack.c.bf16 %v2430, %v2430
        %v2543 = vpack.c.bf16 %v2431, %v2431
        %v2544 = vpack.c.bf16 %v2432, %v2432
        %v2545 = vpack.c.bf16 %v2433, %v2433
        %v2546 = vpack.c.bf16 %v2434, %v2434
        %v2547 = vpack.c.bf16 %v2435, %v2435
        %v2548 = vpack.c.bf16 %v2436, %v2436
        %v2549 = vpack.c.bf16 %v2437, %v2437
        %v2550 = vpack.c.bf16 %v2438, %v2438
        %v2551 = vpack.c.bf16 %v2439, %v2439
        %v2552 = vpack.c.bf16 %v2440, %v2440
        %v2553 = vpack.c.bf16 %v2441, %v2441
        %v2554 = vpack.c.bf16 %v2442, %v2442
        %v2555 = vpack.c.bf16 %v2443, %v2443
        %v2556 = vpack.c.bf16 %v2444, %v2444
        %v2557 = vpack.c.bf16 %v2445, %v2445
        %v2558 = vpack.c.bf16 %v2446, %v2446
        %v2559 = vpack.c.bf16 %v2447, %v2447
        %v2560 = vpack.c.bf16 %v2448, %v2448
        %v2561 = vpack.c.bf16 %v2449, %v2449
        %v2562 = vpack.c.bf16 %v2450, %v2450
        %v2563 = vpack.c.bf16 %v2451, %v2451
        %v2564 = vpack.c.bf16 %v2452, %v2452
        %v2565 = vpack.c.bf16 %v2453, %v2453
        %v2566 = vpack.c.bf16 %v2454, %v2454
        %v2567 = vpack.c.bf16 %v2455, %v2455
        %v2568 = vpack.c.bf16 %v2456, %v2456
        %v2569 = vpack.c.bf16 %v2457, %v2457
        %v2570 = vpack.c.bf16 %v2458, %v2458
        %v2571 = vpack.c.bf16 %v2459, %v2459
        %v2572 = vpack.c.bf16 %v2460, %v2460
        %v2573 = vpack.c.bf16 %v2461, %v2461
        %v2574 = vpack.c.bf16 %v2462, %v2462
        %v2575 = vpack.c.bf16 %v2463, %v2463
        %v2576 = vpack.c.bf16 %v2464, %v2464
        %v2577 = vpack.c.bf16 %v2465, %v2465
        %v2578 = vpack.c.bf16 %v2466, %v2466
        %v2579 = vpack.c.bf16 %v2467, %v2467
        %v2580 = vpack.c.bf16 %v2468, %v2468
        %v2581 = vpack.c.bf16 %v2469, %v2469
        %v2582 = vpack.c.bf16 %v2470, %v2470
        %v2583 = vpack.c.bf16 %v2471, %v2471
        %v2584 = vpack.c.bf16 %v2472, %v2472
        %v2585 = vpack.c.bf16 %v2473, %v2473
        %v2586 = vpack.c.bf16 %v2474, %v2474
        %v2587 = vpack.c.bf16 %v2475, %v2475
        %v2588 = vpack.c.bf16 %v2476, %v2476
        %v2589 = vpack.c.bf16 %v2477, %v2477
        %v2590 = vpack.c.bf16 %v2478, %v2478
        %v2591 = vpack.c.bf16 %v2479, %v2479
        %v2592 = vpack.c.bf16 %v2480, %v2480
        %v2593 = vpack.c.bf16 %v2481, %v2481
        %v2594 = vpack.c.bf16 %v2482, %v2482
        %v2595 = vpack.c.bf16 %v2483, %v2483
        %v2596 = vpack.c.bf16 %v2484, %v2484
        %v2597 = vpack.c.bf16 %v2485, %v2485
        %v2598 = vpack.c.bf16 %v2486, %v2486
        %v2599 = vpack.c.bf16 %v2487, %v2487
        %v2600 = vpack.c.bf16 %v2488, %v2488
        %v2601 = vpack.c.bf16 %v2489, %v2489
        %v2602 = vpack.c.bf16 %v2490, %v2490
        %v2603 = vpack.c.bf16 %v2491, %v2491
        %v2604 = vpack.c.bf16 %v2492, %v2492
        %v2605 = vpack.c.bf16 %v2493, %v2493
        %v2606 = vpack.c.bf16 %v2494, %v2494
        %v2607 = vpack.c.bf16 %v2495, %v2495
        %v2608 = vpack.c.bf16 %v2496, %v2496
        %v2609 = vpack.c.bf16 %v2497, %v2497
        %v2610 = vpack.c.bf16 %v2498, %v2498
        %v2611 = vpack.c.bf16 %v2499, %v2499
        %v2612 = vpack.c.bf16 %v2500, %v2500
        %v2613 = vpack.c.bf16 %v2501, %v2501
        %v2614 = vpack.c.bf16 %v2502, %v2502
        %v2615 = vpack.c.bf16 %v2503, %v2503
        %v2616 = vpack.c.bf16 %v2504, %v2504
        %vm2617 = vcmask 519168
        %2618 = vst.msk [vmem:[#allocation2] sm:$0xf] %vm2617, 0
        %2619 = vst.msk [vmem:[#allocation2 + $0x4] sm:$0xf] %vm2617, 0
        %2620 = vst.msk [vmem:[#allocation2 + $0x8] sm:$0xf] %vm2617, 0
        %2621 = vst.msk [vmem:[#allocation2 + $0xc] sm:$0xf] %vm2617, 0
        %2622 = vst.msk [vmem:[#allocation2 + $0x10] sm:$0xf] %vm2617, 0
        %2623 = vst.msk [vmem:[#allocation2 + $0x14] sm:$0xf] %vm2617, 0
        %2624 = vst.msk [vmem:[#allocation2 + $0x18] sm:$0xf] %vm2617, 0
        %2625 = vst.msk [vmem:[#allocation2 + $0x1c] sm:$0xf] %vm2617, 0
        %2626 = vst.msk [vmem:[#allocation2 + $0x20] sm:$0xf] %vm2617, 0
        %2627 = vst.msk [vmem:[#allocation2 + $0x24] sm:$0xf] %vm2617, 0
        %2628 = vst.msk [vmem:[#allocation2 + $0x28] sm:$0xf] %vm2617, 0
        %2629 = vst.msk [vmem:[#allocation2 + $0x2c] sm:$0xf] %vm2617, 0
        %2630 = vst.msk [vmem:[#allocation2 + $0x30] sm:$0xf] %vm2617, 0
        %2631 = vst.msk [vmem:[#allocation2 + $0x34] sm:$0xf] %vm2617, 0
        %2632 = vst.msk [vmem:[#allocation2 + $0x38] sm:$0xf] %vm2617, 0
        %2633 = vst.msk [vmem:[#allocation2 + $0x3c] sm:$0xf] %vm2617, 0
        %2634 = vst.msk [vmem:[#allocation2 + $0x40] sm:$0xf] %vm2617, 0
        %2635 = vst.msk [vmem:[#allocation2 + $0x44] sm:$0xf] %vm2617, 0
        %2636 = vst.msk [vmem:[#allocation2 + $0x48] sm:$0xf] %vm2617, 0
        %2637 = vst.msk [vmem:[#allocation2 + $0x4c] sm:$0xf] %vm2617, 0
        %2638 = vst.msk [vmem:[#allocation2 + $0x50] sm:$0xf] %vm2617, 0
        %2639 = vst.msk [vmem:[#allocation2 + $0x54] sm:$0xf] %vm2617, 0
        %2640 = vst.msk [vmem:[#allocation2 + $0x58] sm:$0xf] %vm2617, 0
        %2641 = vst.msk [vmem:[#allocation2 + $0x5c] sm:$0xf] %vm2617, 0
        %2642 = vst.msk [vmem:[#allocation2 + $0x60] sm:$0xf] %vm2617, 0
        %2643 = vst.msk [vmem:[#allocation2 + $0x64] sm:$0xf] %vm2617, 0
        %2644 = vst.msk [vmem:[#allocation2 + $0x68] sm:$0xf] %vm2617, 0
        %2645 = vst.msk [vmem:[#allocation2 + $0x6c] sm:$0xf] %vm2617, 0
        %2646 = vst.msk [vmem:[#allocation2 + $0x70] sm:$0xf] %vm2617, 0
        %2647 = vst.msk [vmem:[#allocation2 + $0x74] sm:$0xf] %vm2617, 0
        %2648 = vst.msk [vmem:[#allocation2 + $0x78] sm:$0xf] %vm2617, 0
        %2649 = vst.msk [vmem:[#allocation2 + $0x7c] sm:$0xf] %vm2617, 0
        %2650 = vst.msk [vmem:[#allocation2 + $0x80] sm:$0xf] %vm2617, 0
        %2651 = vst.msk [vmem:[#allocation2 + $0x84] sm:$0xf] %vm2617, 0
        %2652 = vst.msk [vmem:[#allocation2 + $0x88] sm:$0xf] %vm2617, 0
        %2653 = vst.msk [vmem:[#allocation2 + $0x8c] sm:$0xf] %vm2617, 0
        %2654 = vst.msk [vmem:[#allocation2 + $0x90] sm:$0xf] %vm2617, 0
        %2655 = vst.msk [vmem:[#allocation2 + $0x94] sm:$0xf] %vm2617, 0
        %2656 = vst.msk [vmem:[#allocation2 + $0x98] sm:$0xf] %vm2617, 0
        %2657 = vst.msk [vmem:[#allocation2 + $0x9c] sm:$0xf] %vm2617, 0
        %2658 = vst.msk [vmem:[#allocation2 + $0xa0] sm:$0xf] %vm2617, 0
        %2659 = vst.msk [vmem:[#allocation2 + $0xa4] sm:$0xf] %vm2617, 0
        %2660 = vst.msk [vmem:[#allocation2 + $0xa8] sm:$0xf] %vm2617, 0
        %2661 = vst.msk [vmem:[#allocation2 + $0xac] sm:$0xf] %vm2617, 0
        %2662 = vst.msk [vmem:[#allocation2 + $0xb0] sm:$0xf] %vm2617, 0
        %2663 = vst.msk [vmem:[#allocation2 + $0xb4] sm:$0xf] %vm2617, 0
        %2664 = vst.msk [vmem:[#allocation2 + $0xb8] sm:$0xf] %vm2617, 0
        %2665 = vst.msk [vmem:[#allocation2 + $0xbc] sm:$0xf] %vm2617, 0
        %2666 = vst.msk [vmem:[#allocation2 + $0xc0] sm:$0xf] %vm2617, 0
        %2667 = vst.msk [vmem:[#allocation2 + $0xc4] sm:$0xf] %vm2617, 0
        %2668 = vst.msk [vmem:[#allocation2 + $0xc8] sm:$0xf] %vm2617, 0
        %2669 = vst.msk [vmem:[#allocation2 + $0xcc] sm:$0xf] %vm2617, 0
        %2670 = vst.msk [vmem:[#allocation2 + $0xd0] sm:$0xf] %vm2617, 0
        %2671 = vst.msk [vmem:[#allocation2 + $0xd4] sm:$0xf] %vm2617, 0
        %2672 = vst.msk [vmem:[#allocation2 + $0xd8] sm:$0xf] %vm2617, 0
        %2673 = vst.msk [vmem:[#allocation2 + $0xdc] sm:$0xf] %vm2617, 0
        %2674 = vst.msk [vmem:[#allocation2 + $0xe0] sm:$0xf] %vm2617, 0
        %2675 = vst.msk [vmem:[#allocation2 + $0xe4] sm:$0xf] %vm2617, 0
        %2676 = vst.msk [vmem:[#allocation2 + $0xe8] sm:$0xf] %vm2617, 0
        %2677 = vst.msk [vmem:[#allocation2 + $0xec] sm:$0xf] %vm2617, 0
        %2678 = vst.msk [vmem:[#allocation2 + $0xf0] sm:$0xf] %vm2617, 0
        %2679 = vst.msk [vmem:[#allocation2 + $0xf4] sm:$0xf] %vm2617, 0
        %2680 = vst.msk [vmem:[#allocation2 + $0xf8] sm:$0xf] %vm2617, 0
        %2681 = vst.msk [vmem:[#allocation2 + $0xfc] sm:$0xf] %vm2617, 0
        %2682 = vst.msk [vmem:[#allocation2 + $0x100] sm:$0xf] %vm2617, 0
        %2683 = vst.msk [vmem:[#allocation2 + $0x104] sm:$0xf] %vm2617, 0
        %2684 = vst.msk [vmem:[#allocation2 + $0x108] sm:$0xf] %vm2617, 0
        %2685 = vst.msk [vmem:[#allocation2 + $0x10c] sm:$0xf] %vm2617, 0
        %2686 = vst.msk [vmem:[#allocation2 + $0x110] sm:$0xf] %vm2617, 0
        %2687 = vst.msk [vmem:[#allocation2 + $0x114] sm:$0xf] %vm2617, 0
        %2688 = vst.msk [vmem:[#allocation2 + $0x118] sm:$0xf] %vm2617, 0
        %2689 = vst.msk [vmem:[#allocation2 + $0x11c] sm:$0xf] %vm2617, 0
        %v2691 = vshrl.u32 %v2505, 16
        %v2693 = vrot.slane %v2691, 7
        %v2694 = vshll.u32 %v2505, 16
        %v2696 = vor.u32 %v2693, %v2694
        %v2698 = vshrl.u32 %v2506, 16
        %v2700 = vrot.slane %v2698, 7
        %v2701 = vshll.u32 %v2506, 16
        %v2703 = vor.u32 %v2700, %v2701
        %v2705 = vshrl.u32 %v2507, 16
        %v2707 = vrot.slane %v2705, 7
        %v2708 = vshll.u32 %v2507, 16
        %v2710 = vor.u32 %v2707, %v2708
        %v2712 = vshrl.u32 %v2508, 16
        %v2714 = vrot.slane %v2712, 7
        %v2715 = vshll.u32 %v2508, 16
        %v2717 = vor.u32 %v2714, %v2715
        %v2719 = vshrl.u32 %v2509, 16
        %v2721 = vrot.slane %v2719, 7
        %v2722 = vshll.u32 %v2509, 16
        %v2724 = vor.u32 %v2721, %v2722
        %v2726 = vshrl.u32 %v2510, 16
        %v2728 = vrot.slane %v2726, 7
        %v2729 = vshll.u32 %v2510, 16
        %v2731 = vor.u32 %v2728, %v2729
        %v2733 = vshrl.u32 %v2511, 16
        %v2735 = vrot.slane %v2733, 7
        %v2736 = vshll.u32 %v2511, 16
        %v2738 = vor.u32 %v2735, %v2736
        %v2740 = vshrl.u32 %v2533, 16
        %v2742 = vrot.slane %v2740, 7
        %v2743 = vshll.u32 %v2533, 16
        %v2745 = vor.u32 %v2742, %v2743
        %v2747 = vshrl.u32 %v2534, 16
        %v2749 = vrot.slane %v2747, 7
        %v2750 = vshll.u32 %v2534, 16
        %v2752 = vor.u32 %v2749, %v2750
        %v2754 = vshrl.u32 %v2535, 16
        %v2756 = vrot.slane %v2754, 7
        %v2757 = vshll.u32 %v2535, 16
        %v2759 = vor.u32 %v2756, %v2757
        %v2761 = vshrl.u32 %v2536, 16
        %v2763 = vrot.slane %v2761, 7
        %v2764 = vshll.u32 %v2536, 16
        %v2766 = vor.u32 %v2763, %v2764
        %v2768 = vshrl.u32 %v2537, 16
        %v2770 = vrot.slane %v2768, 7
        %v2771 = vshll.u32 %v2537, 16
        %v2773 = vor.u32 %v2770, %v2771
        %v2775 = vshrl.u32 %v2538, 16
        %v2777 = vrot.slane %v2775, 7
        %v2778 = vshll.u32 %v2538, 16
        %v2780 = vor.u32 %v2777, %v2778
        %v2782 = vshrl.u32 %v2539, 16
        %v2784 = vrot.slane %v2782, 7
        %v2785 = vshll.u32 %v2539, 16
        %v2787 = vor.u32 %v2784, %v2785
        %v2789 = vshrl.u32 %v2561, 16
        %v2791 = vrot.slane %v2789, 7
        %v2792 = vshll.u32 %v2561, 16
        %v2794 = vor.u32 %v2791, %v2792
        %v2796 = vshrl.u32 %v2562, 16
        %v2798 = vrot.slane %v2796, 7
        %v2799 = vshll.u32 %v2562, 16
        %v2801 = vor.u32 %v2798, %v2799
        %v2803 = vshrl.u32 %v2563, 16
        %v2805 = vrot.slane %v2803, 7
        %v2806 = vshll.u32 %v2563, 16
        %v2808 = vor.u32 %v2805, %v2806
        %v2810 = vshrl.u32 %v2564, 16
        %v2812 = vrot.slane %v2810, 7
        %v2813 = vshll.u32 %v2564, 16
        %v2815 = vor.u32 %v2812, %v2813
        %v2817 = vshrl.u32 %v2565, 16
        %v2819 = vrot.slane %v2817, 7
        %v2820 = vshll.u32 %v2565, 16
        %v2822 = vor.u32 %v2819, %v2820
        %v2824 = vshrl.u32 %v2566, 16
        %v2826 = vrot.slane %v2824, 7
        %v2827 = vshll.u32 %v2566, 16
        %v2829 = vor.u32 %v2826, %v2827
        %v2831 = vshrl.u32 %v2567, 16
        %v2833 = vrot.slane %v2831, 7
        %v2834 = vshll.u32 %v2567, 16
        %v2836 = vor.u32 %v2833, %v2834
        %v2838 = vshrl.u32 %v2589, 16
        %v2840 = vrot.slane %v2838, 7
        %v2841 = vshll.u32 %v2589, 16
        %v2843 = vor.u32 %v2840, %v2841
        %v2845 = vshrl.u32 %v2590, 16
        %v2847 = vrot.slane %v2845, 7
        %v2848 = vshll.u32 %v2590, 16
        %v2850 = vor.u32 %v2847, %v2848
        %v2852 = vshrl.u32 %v2591, 16
        %v2854 = vrot.slane %v2852, 7
        %v2855 = vshll.u32 %v2591, 16
        %v2857 = vor.u32 %v2854, %v2855
        %v2859 = vshrl.u32 %v2592, 16
        %v2861 = vrot.slane %v2859, 7
        %v2862 = vshll.u32 %v2592, 16
        %v2864 = vor.u32 %v2861, %v2862
        %v2866 = vshrl.u32 %v2593, 16
        %v2868 = vrot.slane %v2866, 7
        %v2869 = vshll.u32 %v2593, 16
        %v2871 = vor.u32 %v2868, %v2869
        %v2873 = vshrl.u32 %v2594, 16
        %v2875 = vrot.slane %v2873, 7
        %v2876 = vshll.u32 %v2594, 16
        %v2878 = vor.u32 %v2875, %v2876
        %v2880 = vshrl.u32 %v2595, 16
        %v2882 = vrot.slane %v2880, 7
        %v2883 = vshll.u32 %v2595, 16
        %v2885 = vor.u32 %v2882, %v2883
        %s2914 = scalar_lea.vmem [#allocation2], 8
        %vm2915 = vcmask 125952
        %vm2916 = vsmask.f32 7938
        %vm2917 = vmand %vm2915, %vm2916
        %v2918 = vld [vmem:[%s2914] sm:$0xf]
        %v2919 = vsel %vm2917, %v2696, %v2918
        %2920 = vst [vmem:[%s2914] sm:$0xf] %v2919
        %v2921 = vld [vmem:[%s2914 + $0x8] sm:$0xf]
        %v2922 = vsel %vm2917, %v2703, %v2921
        %2923 = vst [vmem:[%s2914 + $0x8] sm:$0xf] %v2922
        %v2924 = vld [vmem:[%s2914 + $0x10] sm:$0xf]
        %v2925 = vsel %vm2917, %v2710, %v2924
        %2926 = vst [vmem:[%s2914 + $0x10] sm:$0xf] %v2925
        %v2927 = vld [vmem:[%s2914 + $0x18] sm:$0xf]
        %v2928 = vsel %vm2917, %v2717, %v2927
        %2929 = vst [vmem:[%s2914 + $0x18] sm:$0xf] %v2928
        %v2930 = vld [vmem:[%s2914 + $0x20] sm:$0xf]
        %v2931 = vsel %vm2917, %v2724, %v2930
        %2932 = vst [vmem:[%s2914 + $0x20] sm:$0xf] %v2931
        %v2933 = vld [vmem:[%s2914 + $0x28] sm:$0xf]
        %v2934 = vsel %vm2917, %v2731, %v2933
        %2935 = vst [vmem:[%s2914 + $0x28] sm:$0xf] %v2934
        %v2936 = vld [vmem:[%s2914 + $0x30] sm:$0xf]
        %v2937 = vsel %vm2917, %v2738, %v2936
        %2938 = vst [vmem:[%s2914 + $0x30] sm:$0xf] %v2937
        %v2939 = vld [vmem:[%s2914 + $0x48] sm:$0xf]
        %v2940 = vsel %vm2917, %v2745, %v2939
        %2941 = vst [vmem:[%s2914 + $0x48] sm:$0xf] %v2940
        %v2942 = vld [vmem:[%s2914 + $0x50] sm:$0xf]
        %v2943 = vsel %vm2917, %v2752, %v2942
        %2944 = vst [vmem:[%s2914 + $0x50] sm:$0xf] %v2943
        %v2945 = vld [vmem:[%s2914 + $0x58] sm:$0xf]
        %v2946 = vsel %vm2917, %v2759, %v2945
        %2947 = vst [vmem:[%s2914 + $0x58] sm:$0xf] %v2946
        %v2948 = vld [vmem:[%s2914 + $0x60] sm:$0xf]
        %v2949 = vsel %vm2917, %v2766, %v2948
        %2950 = vst [vmem:[%s2914 + $0x60] sm:$0xf] %v2949
        %v2951 = vld [vmem:[%s2914 + $0x68] sm:$0xf]
        %v2952 = vsel %vm2917, %v2773, %v2951
        %2953 = vst [vmem:[%s2914 + $0x68] sm:$0xf] %v2952
        %v2954 = vld [vmem:[%s2914 + $0x70] sm:$0xf]
        %v2955 = vsel %vm2917, %v2780, %v2954
        %2956 = vst [vmem:[%s2914 + $0x70] sm:$0xf] %v2955
        %v2957 = vld [vmem:[%s2914 + $0x78] sm:$0xf]
        %v2958 = vsel %vm2917, %v2787, %v2957
        %2959 = vst [vmem:[%s2914 + $0x78] sm:$0xf] %v2958
        %v2960 = vld [vmem:[%s2914 + $0x90] sm:$0xf]
        %v2961 = vsel %vm2917, %v2794, %v2960
        %2962 = vst [vmem:[%s2914 + $0x90] sm:$0xf] %v2961
        %v2963 = vld [vmem:[%s2914 + $0x98] sm:$0xf]
        %v2964 = vsel %vm2917, %v2801, %v2963
        %2965 = vst [vmem:[%s2914 + $0x98] sm:$0xf] %v2964
        %v2966 = vld [vmem:[%s2914 + $0xa0] sm:$0xf]
        %v2967 = vsel %vm2917, %v2808, %v2966
        %2968 = vst [vmem:[%s2914 + $0xa0] sm:$0xf] %v2967
        %v2969 = vld [vmem:[%s2914 + $0xa8] sm:$0xf]
        %v2970 = vsel %vm2917, %v2815, %v2969
        %2971 = vst [vmem:[%s2914 + $0xa8] sm:$0xf] %v2970
        %v2972 = vld [vmem:[%s2914 + $0xb0] sm:$0xf]
        %v2973 = vsel %vm2917, %v2822, %v2972
        %2974 = vst [vmem:[%s2914 + $0xb0] sm:$0xf] %v2973
        %v2975 = vld [vmem:[%s2914 + $0xb8] sm:$0xf]
        %v2976 = vsel %vm2917, %v2829, %v2975
        %2977 = vst [vmem:[%s2914 + $0xb8] sm:$0xf] %v2976
        %v2978 = vld [vmem:[%s2914 + $0xc0] sm:$0xf]
        %v2979 = vsel %vm2917, %v2836, %v2978
        %2980 = vst [vmem:[%s2914 + $0xc0] sm:$0xf] %v2979
        %v2981 = vld [vmem:[%s2914 + $0xd8] sm:$0xf]
        %v2982 = vsel %vm2917, %v2843, %v2981
        %2983 = vst [vmem:[%s2914 + $0xd8] sm:$0xf] %v2982
        %v2984 = vld [vmem:[%s2914 + $0xe0] sm:$0xf]
        %v2985 = vsel %vm2917, %v2850, %v2984
        %2986 = vst [vmem:[%s2914 + $0xe0] sm:$0xf] %v2985
        %v2987 = vld [vmem:[%s2914 + $0xe8] sm:$0xf]
        %v2988 = vsel %vm2917, %v2857, %v2987
        %2989 = vst [vmem:[%s2914 + $0xe8] sm:$0xf] %v2988
        %v2990 = vld [vmem:[%s2914 + $0xf0] sm:$0xf]
        %v2991 = vsel %vm2917, %v2864, %v2990
        %2992 = vst [vmem:[%s2914 + $0xf0] sm:$0xf] %v2991
        %v2993 = vld [vmem:[%s2914 + $0xf8] sm:$0xf]
        %v2994 = vsel %vm2917, %v2871, %v2993
        %2995 = vst [vmem:[%s2914 + $0xf8] sm:$0xf] %v2994
        %v2996 = vld [vmem:[%s2914 + $0x100] sm:$0xf]
        %v2997 = vsel %vm2917, %v2878, %v2996
        %2998 = vst [vmem:[%s2914 + $0x100] sm:$0xf] %v2997
        %v2999 = vld [vmem:[%s2914 + $0x108] sm:$0xf]
        %v3000 = vsel %vm2917, %v2885, %v2999
        %3001 = vst [vmem:[%s2914 + $0x108] sm:$0xf] %v3000
        %v3003 = vshrl.u32 %v2512, 16
        %v3005 = vrot.slane %v3003, 7
        %v3006 = vshll.u32 %v2512, 16
        %v3008 = vor.u32 %v3005, %v3006
        %v3010 = vshrl.u32 %v2513, 16
        %v3012 = vrot.slane %v3010, 7
        %v3013 = vshll.u32 %v2513, 16
        %v3015 = vor.u32 %v3012, %v3013
        %v3017 = vshrl.u32 %v2514, 16
        %v3019 = vrot.slane %v3017, 7
        %v3020 = vshll.u32 %v2514, 16
        %v3022 = vor.u32 %v3019, %v3020
        %v3024 = vshrl.u32 %v2515, 16
        %v3026 = vrot.slane %v3024, 7
        %v3027 = vshll.u32 %v2515, 16
        %v3029 = vor.u32 %v3026, %v3027
        %v3031 = vshrl.u32 %v2516, 16
        %v3033 = vrot.slane %v3031, 7
        %v3034 = vshll.u32 %v2516, 16
        %v3036 = vor.u32 %v3033, %v3034
        %v3038 = vshrl.u32 %v2517, 16
        %v3040 = vrot.slane %v3038, 7
        %v3041 = vshll.u32 %v2517, 16
        %v3043 = vor.u32 %v3040, %v3041
        %v3045 = vshrl.u32 %v2518, 16
        %v3047 = vrot.slane %v3045, 7
        %v3048 = vshll.u32 %v2518, 16
        %v3050 = vor.u32 %v3047, %v3048
        %v3052 = vshrl.u32 %v2540, 16
        %v3054 = vrot.slane %v3052, 7
        %v3055 = vshll.u32 %v2540, 16
        %v3057 = vor.u32 %v3054, %v3055
        %v3059 = vshrl.u32 %v2541, 16
        %v3061 = vrot.slane %v3059, 7
        %v3062 = vshll.u32 %v2541, 16
        %v3064 = vor.u32 %v3061, %v3062
        %v3066 = vshrl.u32 %v2542, 16
        %v3068 = vrot.slane %v3066, 7
        %v3069 = vshll.u32 %v2542, 16
        %v3071 = vor.u32 %v3068, %v3069
        %v3073 = vshrl.u32 %v2543, 16
        %v3075 = vrot.slane %v3073, 7
        %v3076 = vshll.u32 %v2543, 16
        %v3078 = vor.u32 %v3075, %v3076
        %v3080 = vshrl.u32 %v2544, 16
        %v3082 = vrot.slane %v3080, 7
        %v3083 = vshll.u32 %v2544, 16
        %v3085 = vor.u32 %v3082, %v3083
        %v3087 = vshrl.u32 %v2545, 16
        %v3089 = vrot.slane %v3087, 7
        %v3090 = vshll.u32 %v2545, 16
        %v3092 = vor.u32 %v3089, %v3090
        %v3094 = vshrl.u32 %v2546, 16
        %v3096 = vrot.slane %v3094, 7
        %v3097 = vshll.u32 %v2546, 16
        %v3099 = vor.u32 %v3096, %v3097
        %v3101 = vshrl.u32 %v2568, 16
        %v3103 = vrot.slane %v3101, 7
        %v3104 = vshll.u32 %v2568, 16
        %v3106 = vor.u32 %v3103, %v3104
        %v3108 = vshrl.u32 %v2569, 16
        %v3110 = vrot.slane %v3108, 7
        %v3111 = vshll.u32 %v2569, 16
        %v3113 = vor.u32 %v3110, %v3111
        %v3115 = vshrl.u32 %v2570, 16
        %v3117 = vrot.slane %v3115, 7
        %v3118 = vshll.u32 %v2570, 16
        %v3120 = vor.u32 %v3117, %v3118
        %v3122 = vshrl.u32 %v2571, 16
        %v3124 = vrot.slane %v3122, 7
        %v3125 = vshll.u32 %v2571, 16
        %v3127 = vor.u32 %v3124, %v3125
        %v3129 = vshrl.u32 %v2572, 16
        %v3131 = vrot.slane %v3129, 7
        %v3132 = vshll.u32 %v2572, 16
        %v3134 = vor.u32 %v3131, %v3132
        %v3136 = vshrl.u32 %v2573, 16
        %v3138 = vrot.slane %v3136, 7
        %v3139 = vshll.u32 %v2573, 16
        %v3141 = vor.u32 %v3138, %v3139
        %v3143 = vshrl.u32 %v2574, 16
        %v3145 = vrot.slane %v3143, 7
        %v3146 = vshll.u32 %v2574, 16
        %v3148 = vor.u32 %v3145, %v3146
        %v3150 = vshrl.u32 %v2596, 16
        %v3152 = vrot.slane %v3150, 7
        %v3153 = vshll.u32 %v2596, 16
        %v3155 = vor.u32 %v3152, %v3153
        %v3157 = vshrl.u32 %v2597, 16
        %v3159 = vrot.slane %v3157, 7
        %v3160 = vshll.u32 %v2597, 16
        %v3162 = vor.u32 %v3159, %v3160
        %v3164 = vshrl.u32 %v2598, 16
        %v3166 = vrot.slane %v3164, 7
        %v3167 = vshll.u32 %v2598, 16
        %v3169 = vor.u32 %v3166, %v3167
        %v3171 = vshrl.u32 %v2599, 16
        %v3173 = vrot.slane %v3171, 7
        %v3174 = vshll.u32 %v2599, 16
        %v3176 = vor.u32 %v3173, %v3174
        %v3178 = vshrl.u32 %v2600, 16
        %v3180 = vrot.slane %v3178, 7
        %v3181 = vshll.u32 %v2600, 16
        %v3183 = vor.u32 %v3180, %v3181
        %v3185 = vshrl.u32 %v2601, 16
        %v3187 = vrot.slane %v3185, 7
        %v3188 = vshll.u32 %v2601, 16
        %v3190 = vor.u32 %v3187, %v3188
        %v3192 = vshrl.u32 %v2602, 16
        %v3194 = vrot.slane %v3192, 7
        %v3195 = vshll.u32 %v2602, 16
        %v3197 = vor.u32 %v3194, %v3195
        %3198 = vrot.lane.b32.xlu0 %v3008, 16
        %v3199 = vpop.permute.xlu0 %3198
        %3200 = vrot.lane.b32.xlu0 %v3015, 16
        %v3201 = vpop.permute.xlu0 %3200
        %3202 = vrot.lane.b32.xlu0 %v3022, 16
        %v3203 = vpop.permute.xlu0 %3202
        %3204 = vrot.lane.b32.xlu0 %v3029, 16
        %v3205 = vpop.permute.xlu0 %3204
        %3206 = vrot.lane.b32.xlu0 %v3036, 16
        %v3207 = vpop.permute.xlu0 %3206
        %3208 = vrot.lane.b32.xlu0 %v3043, 16
        %v3209 = vpop.permute.xlu0 %3208
        %3210 = vrot.lane.b32.xlu0 %v3050, 16
        %v3211 = vpop.permute.xlu0 %3210
        %3212 = vrot.lane.b32.xlu0 %v3057, 16
        %v3213 = vpop.permute.xlu0 %3212
        %3214 = vrot.lane.b32.xlu0 %v3064, 16
        %v3215 = vpop.permute.xlu0 %3214
        %3216 = vrot.lane.b32.xlu0 %v3071, 16
        %v3217 = vpop.permute.xlu0 %3216
        %3218 = vrot.lane.b32.xlu0 %v3078, 16
        %v3219 = vpop.permute.xlu0 %3218
        %3220 = vrot.lane.b32.xlu0 %v3085, 16
        %v3221 = vpop.permute.xlu0 %3220
        %3222 = vrot.lane.b32.xlu0 %v3092, 16
        %v3223 = vpop.permute.xlu0 %3222
        %3224 = vrot.lane.b32.xlu0 %v3099, 16
        %v3225 = vpop.permute.xlu0 %3224
        %3226 = vrot.lane.b32.xlu0 %v3106, 16
        %v3227 = vpop.permute.xlu0 %3226
        %3228 = vrot.lane.b32.xlu0 %v3113, 16
        %v3229 = vpop.permute.xlu0 %3228
        %3230 = vrot.lane.b32.xlu0 %v3120, 16
        %v3231 = vpop.permute.xlu0 %3230
        %3232 = vrot.lane.b32.xlu0 %v3127, 16
        %v3233 = vpop.permute.xlu0 %3232
        %3234 = vrot.lane.b32.xlu0 %v3134, 16
        %v3235 = vpop.permute.xlu0 %3234
        %3236 = vrot.lane.b32.xlu0 %v3141, 16
        %v3237 = vpop.permute.xlu0 %3236
        %3238 = vrot.lane.b32.xlu0 %v3148, 16
        %v3239 = vpop.permute.xlu0 %3238
        %3240 = vrot.lane.b32.xlu0 %v3155, 16
        %v3241 = vpop.permute.xlu0 %3240
        %3242 = vrot.lane.b32.xlu0 %v3162, 16
        %v3243 = vpop.permute.xlu0 %3242
        %3244 = vrot.lane.b32.xlu0 %v3169, 16
        %v3245 = vpop.permute.xlu0 %3244
        %3246 = vrot.lane.b32.xlu0 %v3176, 16
        %v3247 = vpop.permute.xlu0 %3246
        %3248 = vrot.lane.b32.xlu0 %v3183, 16
        %v3249 = vpop.permute.xlu0 %3248
        %3250 = vrot.lane.b32.xlu0 %v3190, 16
        %v3251 = vpop.permute.xlu0 %3250
        %3252 = vrot.lane.b32.xlu0 %v3197, 16
        %v3253 = vpop.permute.xlu0 %3252
        %vm3282 = vcmask 257152
        %vm3283 = vmand %vm3282, %vm2916
        %v3284 = vld [vmem:[%s2914] sm:$0xf]
        %v3285 = vsel %vm3283, %v3199, %v3284
        %3286 = vst [vmem:[%s2914] sm:$0xf] %v3285
        %v3287 = vld [vmem:[%s2914 + $0x8] sm:$0xf]
        %v3288 = vsel %vm3283, %v3201, %v3287
        %3289 = vst [vmem:[%s2914 + $0x8] sm:$0xf] %v3288
        %v3290 = vld [vmem:[%s2914 + $0x10] sm:$0xf]
        %v3291 = vsel %vm3283, %v3203, %v3290
        %3292 = vst [vmem:[%s2914 + $0x10] sm:$0xf] %v3291
        %v3293 = vld [vmem:[%s2914 + $0x18] sm:$0xf]
        %v3294 = vsel %vm3283, %v3205, %v3293
        %3295 = vst [vmem:[%s2914 + $0x18] sm:$0xf] %v3294
        %v3296 = vld [vmem:[%s2914 + $0x20] sm:$0xf]
        %v3297 = vsel %vm3283, %v3207, %v3296
        %3298 = vst [vmem:[%s2914 + $0x20] sm:$0xf] %v3297
        %v3299 = vld [vmem:[%s2914 + $0x28] sm:$0xf]
        %v3300 = vsel %vm3283, %v3209, %v3299
        %3301 = vst [vmem:[%s2914 + $0x28] sm:$0xf] %v3300
        %v3302 = vld [vmem:[%s2914 + $0x30] sm:$0xf]
        %v3303 = vsel %vm3283, %v3211, %v3302
        %3304 = vst [vmem:[%s2914 + $0x30] sm:$0xf] %v3303
        %v3305 = vld [vmem:[%s2914 + $0x48] sm:$0xf]
        %v3306 = vsel %vm3283, %v3213, %v3305
        %3307 = vst [vmem:[%s2914 + $0x48] sm:$0xf] %v3306
        %v3308 = vld [vmem:[%s2914 + $0x50] sm:$0xf]
        %v3309 = vsel %vm3283, %v3215, %v3308
        %3310 = vst [vmem:[%s2914 + $0x50] sm:$0xf] %v3309
        %v3311 = vld [vmem:[%s2914 + $0x58] sm:$0xf]
        %v3312 = vsel %vm3283, %v3217, %v3311
        %3313 = vst [vmem:[%s2914 + $0x58] sm:$0xf] %v3312
        %v3314 = vld [vmem:[%s2914 + $0x60] sm:$0xf]
        %v3315 = vsel %vm3283, %v3219, %v3314
        %3316 = vst [vmem:[%s2914 + $0x60] sm:$0xf] %v3315
        %v3317 = vld [vmem:[%s2914 + $0x68] sm:$0xf]
        %v3318 = vsel %vm3283, %v3221, %v3317
        %3319 = vst [vmem:[%s2914 + $0x68] sm:$0xf] %v3318
        %v3320 = vld [vmem:[%s2914 + $0x70] sm:$0xf]
        %v3321 = vsel %vm3283, %v3223, %v3320
        %3322 = vst [vmem:[%s2914 + $0x70] sm:$0xf] %v3321
        %v3323 = vld [vmem:[%s2914 + $0x78] sm:$0xf]
        %v3324 = vsel %vm3283, %v3225, %v3323
        %3325 = vst [vmem:[%s2914 + $0x78] sm:$0xf] %v3324
        %v3326 = vld [vmem:[%s2914 + $0x90] sm:$0xf]
        %v3327 = vsel %vm3283, %v3227, %v3326
        %3328 = vst [vmem:[%s2914 + $0x90] sm:$0xf] %v3327
        %v3329 = vld [vmem:[%s2914 + $0x98] sm:$0xf]
        %v3330 = vsel %vm3283, %v3229, %v3329
        %3331 = vst [vmem:[%s2914 + $0x98] sm:$0xf] %v3330
        %v3332 = vld [vmem:[%s2914 + $0xa0] sm:$0xf]
        %v3333 = vsel %vm3283, %v3231, %v3332
        %3334 = vst [vmem:[%s2914 + $0xa0] sm:$0xf] %v3333
        %v3335 = vld [vmem:[%s2914 + $0xa8] sm:$0xf]
        %v3336 = vsel %vm3283, %v3233, %v3335
        %3337 = vst [vmem:[%s2914 + $0xa8] sm:$0xf] %v3336
        %v3338 = vld [vmem:[%s2914 + $0xb0] sm:$0xf]
        %v3339 = vsel %vm3283, %v3235, %v3338
        %3340 = vst [vmem:[%s2914 + $0xb0] sm:$0xf] %v3339
        %v3341 = vld [vmem:[%s2914 + $0xb8] sm:$0xf]
        %v3342 = vsel %vm3283, %v3237, %v3341
        %3343 = vst [vmem:[%s2914 + $0xb8] sm:$0xf] %v3342
        %v3344 = vld [vmem:[%s2914 + $0xc0] sm:$0xf]
        %v3345 = vsel %vm3283, %v3239, %v3344
        %3346 = vst [vmem:[%s2914 + $0xc0] sm:$0xf] %v3345
        %v3347 = vld [vmem:[%s2914 + $0xd8] sm:$0xf]
        %v3348 = vsel %vm3283, %v3241, %v3347
        %3349 = vst [vmem:[%s2914 + $0xd8] sm:$0xf] %v3348
        %v3350 = vld [vmem:[%s2914 + $0xe0] sm:$0xf]
        %v3351 = vsel %vm3283, %v3243, %v3350
        %3352 = vst [vmem:[%s2914 + $0xe0] sm:$0xf] %v3351
        %v3353 = vld [vmem:[%s2914 + $0xe8] sm:$0xf]
        %v3354 = vsel %vm3283, %v3245, %v3353
        %3355 = vst [vmem:[%s2914 + $0xe8] sm:$0xf] %v3354
        %v3356 = vld [vmem:[%s2914 + $0xf0] sm:$0xf]
        %v3357 = vsel %vm3283, %v3247, %v3356
        %3358 = vst [vmem:[%s2914 + $0xf0] sm:$0xf] %v3357
        %v3359 = vld [vmem:[%s2914 + $0xf8] sm:$0xf]
        %v3360 = vsel %vm3283, %v3249, %v3359
        %3361 = vst [vmem:[%s2914 + $0xf8] sm:$0xf] %v3360
        %v3362 = vld [vmem:[%s2914 + $0x100] sm:$0xf]
        %v3363 = vsel %vm3283, %v3251, %v3362
        %3364 = vst [vmem:[%s2914 + $0x100] sm:$0xf] %v3363
        %v3365 = vld [vmem:[%s2914 + $0x108] sm:$0xf]
        %v3366 = vsel %vm3283, %v3253, %v3365
        %3367 = vst [vmem:[%s2914 + $0x108] sm:$0xf] %v3366
        %v3369 = vshrl.u32 %v2519, 16
        %v3371 = vrot.slane %v3369, 7
        %v3372 = vshll.u32 %v2519, 16
        %v3374 = vor.u32 %v3371, %v3372
        %v3376 = vshrl.u32 %v2520, 16
        %v3378 = vrot.slane %v3376, 7
        %v3379 = vshll.u32 %v2520, 16
        %v3381 = vor.u32 %v3378, %v3379
        %v3383 = vshrl.u32 %v2521, 16
        %v3385 = vrot.slane %v3383, 7
        %v3386 = vshll.u32 %v2521, 16
        %v3388 = vor.u32 %v3385, %v3386
        %v3390 = vshrl.u32 %v2522, 16
        %v3392 = vrot.slane %v3390, 7
        %v3393 = vshll.u32 %v2522, 16
        %v3395 = vor.u32 %v3392, %v3393
        %v3397 = vshrl.u32 %v2523, 16
        %v3399 = vrot.slane %v3397, 7
        %v3400 = vshll.u32 %v2523, 16
        %v3402 = vor.u32 %v3399, %v3400
        %v3404 = vshrl.u32 %v2524, 16
        %v3406 = vrot.slane %v3404, 7
        %v3407 = vshll.u32 %v2524, 16
        %v3409 = vor.u32 %v3406, %v3407
        %v3411 = vshrl.u32 %v2525, 16
        %v3413 = vrot.slane %v3411, 7
        %v3414 = vshll.u32 %v2525, 16
        %v3416 = vor.u32 %v3413, %v3414
        %v3418 = vshrl.u32 %v2547, 16
        %v3420 = vrot.slane %v3418, 7
        %v3421 = vshll.u32 %v2547, 16
        %v3423 = vor.u32 %v3420, %v3421
        %v3425 = vshrl.u32 %v2548, 16
        %v3427 = vrot.slane %v3425, 7
        %v3428 = vshll.u32 %v2548, 16
        %v3430 = vor.u32 %v3427, %v3428
        %v3432 = vshrl.u32 %v2549, 16
        %v3434 = vrot.slane %v3432, 7
        %v3435 = vshll.u32 %v2549, 16
        %v3437 = vor.u32 %v3434, %v3435
        %v3439 = vshrl.u32 %v2550, 16
        %v3441 = vrot.slane %v3439, 7
        %v3442 = vshll.u32 %v2550, 16
        %v3444 = vor.u32 %v3441, %v3442
        %v3446 = vshrl.u32 %v2551, 16
        %v3448 = vrot.slane %v3446, 7
        %v3449 = vshll.u32 %v2551, 16
        %v3451 = vor.u32 %v3448, %v3449
        %v3453 = vshrl.u32 %v2552, 16
        %v3455 = vrot.slane %v3453, 7
        %v3456 = vshll.u32 %v2552, 16
        %v3458 = vor.u32 %v3455, %v3456
        %v3460 = vshrl.u32 %v2553, 16
        %v3462 = vrot.slane %v3460, 7
        %v3463 = vshll.u32 %v2553, 16
        %v3465 = vor.u32 %v3462, %v3463
        %v3467 = vshrl.u32 %v2575, 16
        %v3469 = vrot.slane %v3467, 7
        %v3470 = vshll.u32 %v2575, 16
        %v3472 = vor.u32 %v3469, %v3470
        %v3474 = vshrl.u32 %v2576, 16
        %v3476 = vrot.slane %v3474, 7
        %v3477 = vshll.u32 %v2576, 16
        %v3479 = vor.u32 %v3476, %v3477
        %v3481 = vshrl.u32 %v2577, 16
        %v3483 = vrot.slane %v3481, 7
        %v3484 = vshll.u32 %v2577, 16
        %v3486 = vor.u32 %v3483, %v3484
        %v3488 = vshrl.u32 %v2578, 16
        %v3490 = vrot.slane %v3488, 7
        %v3491 = vshll.u32 %v2578, 16
        %v3493 = vor.u32 %v3490, %v3491
        %v3495 = vshrl.u32 %v2579, 16
        %v3497 = vrot.slane %v3495, 7
        %v3498 = vshll.u32 %v2579, 16
        %v3500 = vor.u32 %v3497, %v3498
        %v3502 = vshrl.u32 %v2580, 16
        %v3504 = vrot.slane %v3502, 7
        %v3505 = vshll.u32 %v2580, 16
        %v3507 = vor.u32 %v3504, %v3505
        %v3509 = vshrl.u32 %v2581, 16
        %v3511 = vrot.slane %v3509, 7
        %v3512 = vshll.u32 %v2581, 16
        %v3514 = vor.u32 %v3511, %v3512
        %v3516 = vshrl.u32 %v2603, 16
        %v3518 = vrot.slane %v3516, 7
        %v3519 = vshll.u32 %v2603, 16
        %v3521 = vor.u32 %v3518, %v3519
        %v3523 = vshrl.u32 %v2604, 16
        %v3525 = vrot.slane %v3523, 7
        %v3526 = vshll.u32 %v2604, 16
        %v3528 = vor.u32 %v3525, %v3526
        %v3530 = vshrl.u32 %v2605, 16
        %v3532 = vrot.slane %v3530, 7
        %v3533 = vshll.u32 %v2605, 16
        %v3535 = vor.u32 %v3532, %v3533
        %v3537 = vshrl.u32 %v2606, 16
        %v3539 = vrot.slane %v3537, 7
        %v3540 = vshll.u32 %v2606, 16
        %v3542 = vor.u32 %v3539, %v3540
        %v3544 = vshrl.u32 %v2607, 16
        %v3546 = vrot.slane %v3544, 7
        %v3547 = vshll.u32 %v2607, 16
        %v3549 = vor.u32 %v3546, %v3547
        %v3551 = vshrl.u32 %v2608, 16
        %v3553 = vrot.slane %v3551, 7
        %v3554 = vshll.u32 %v2608, 16
        %v3556 = vor.u32 %v3553, %v3554
        %v3558 = vshrl.u32 %v2609, 16
        %v3560 = vrot.slane %v3558, 7
        %v3561 = vshll.u32 %v2609, 16
        %v3563 = vor.u32 %v3560, %v3561
        %3564 = vrot.lane.b32.xlu0 %v3374, 32
        %v3565 = vpop.permute.xlu0 %3564
        %3566 = vrot.lane.b32.xlu0 %v3381, 32
        %v3567 = vpop.permute.xlu0 %3566
        %3568 = vrot.lane.b32.xlu0 %v3388, 32
        %v3569 = vpop.permute.xlu0 %3568
        %3570 = vrot.lane.b32.xlu0 %v3395, 32
        %v3571 = vpop.permute.xlu0 %3570
        %3572 = vrot.lane.b32.xlu0 %v3402, 32
        %v3573 = vpop.permute.xlu0 %3572
        %3574 = vrot.lane.b32.xlu0 %v3409, 32
        %v3575 = vpop.permute.xlu0 %3574
        %3576 = vrot.lane.b32.xlu0 %v3416, 32
        %v3577 = vpop.permute.xlu0 %3576
        %3578 = vrot.lane.b32.xlu0 %v3423, 32
        %v3579 = vpop.permute.xlu0 %3578
        %3580 = vrot.lane.b32.xlu0 %v3430, 32
        %v3581 = vpop.permute.xlu0 %3580
        %3582 = vrot.lane.b32.xlu0 %v3437, 32
        %v3583 = vpop.permute.xlu0 %3582
        %3584 = vrot.lane.b32.xlu0 %v3444, 32
        %v3585 = vpop.permute.xlu0 %3584
        %3586 = vrot.lane.b32.xlu0 %v3451, 32
        %v3587 = vpop.permute.xlu0 %3586
        %3588 = vrot.lane.b32.xlu0 %v3458, 32
        %v3589 = vpop.permute.xlu0 %3588
        %3590 = vrot.lane.b32.xlu0 %v3465, 32
        %v3591 = vpop.permute.xlu0 %3590
        %3592 = vrot.lane.b32.xlu0 %v3472, 32
        %v3593 = vpop.permute.xlu0 %3592
        %3594 = vrot.lane.b32.xlu0 %v3479, 32
        %v3595 = vpop.permute.xlu0 %3594
        %3596 = vrot.lane.b32.xlu0 %v3486, 32
        %v3597 = vpop.permute.xlu0 %3596
        %3598 = vrot.lane.b32.xlu0 %v3493, 32
        %v3599 = vpop.permute.xlu0 %3598
        %3600 = vrot.lane.b32.xlu0 %v3500, 32
        %v3601 = vpop.permute.xlu0 %3600
        %3602 = vrot.lane.b32.xlu0 %v3507, 32
        %v3603 = vpop.permute.xlu0 %3602
        %3604 = vrot.lane.b32.xlu0 %v3514, 32
        %v3605 = vpop.permute.xlu0 %3604
        %3606 = vrot.lane.b32.xlu0 %v3521, 32
        %v3607 = vpop.permute.xlu0 %3606
        %3608 = vrot.lane.b32.xlu0 %v3528, 32
        %v3609 = vpop.permute.xlu0 %3608
        %3610 = vrot.lane.b32.xlu0 %v3535, 32
        %v3611 = vpop.permute.xlu0 %3610
        %3612 = vrot.lane.b32.xlu0 %v3542, 32
        %v3613 = vpop.permute.xlu0 %3612
        %3614 = vrot.lane.b32.xlu0 %v3549, 32
        %v3615 = vpop.permute.xlu0 %3614
        %3616 = vrot.lane.b32.xlu0 %v3556, 32
        %v3617 = vpop.permute.xlu0 %3616
        %3618 = vrot.lane.b32.xlu0 %v3563, 32
        %v3619 = vpop.permute.xlu0 %3618
        %vm3648 = vcmask 388352
        %vm3649 = vmand %vm3648, %vm2916
        %v3650 = vld [vmem:[%s2914] sm:$0xf]
        %v3651 = vsel %vm3649, %v3565, %v3650
        %3652 = vst [vmem:[%s2914] sm:$0xf] %v3651
        %v3653 = vld [vmem:[%s2914 + $0x8] sm:$0xf]
        %v3654 = vsel %vm3649, %v3567, %v3653
        %3655 = vst [vmem:[%s2914 + $0x8] sm:$0xf] %v3654
        %v3656 = vld [vmem:[%s2914 + $0x10] sm:$0xf]
        %v3657 = vsel %vm3649, %v3569, %v3656
        %3658 = vst [vmem:[%s2914 + $0x10] sm:$0xf] %v3657
        %v3659 = vld [vmem:[%s2914 + $0x18] sm:$0xf]
        %v3660 = vsel %vm3649, %v3571, %v3659
        %3661 = vst [vmem:[%s2914 + $0x18] sm:$0xf] %v3660
        %v3662 = vld [vmem:[%s2914 + $0x20] sm:$0xf]
        %v3663 = vsel %vm3649, %v3573, %v3662
        %3664 = vst [vmem:[%s2914 + $0x20] sm:$0xf] %v3663
        %v3665 = vld [vmem:[%s2914 + $0x28] sm:$0xf]
        %v3666 = vsel %vm3649, %v3575, %v3665
        %3667 = vst [vmem:[%s2914 + $0x28] sm:$0xf] %v3666
        %v3668 = vld [vmem:[%s2914 + $0x30] sm:$0xf]
        %v3669 = vsel %vm3649, %v3577, %v3668
        %3670 = vst [vmem:[%s2914 + $0x30] sm:$0xf] %v3669
        %v3671 = vld [vmem:[%s2914 + $0x48] sm:$0xf]
        %v3672 = vsel %vm3649, %v3579, %v3671
        %3673 = vst [vmem:[%s2914 + $0x48] sm:$0xf] %v3672
        %v3674 = vld [vmem:[%s2914 + $0x50] sm:$0xf]
        %v3675 = vsel %vm3649, %v3581, %v3674
        %3676 = vst [vmem:[%s2914 + $0x50] sm:$0xf] %v3675
        %v3677 = vld [vmem:[%s2914 + $0x58] sm:$0xf]
        %v3678 = vsel %vm3649, %v3583, %v3677
        %3679 = vst [vmem:[%s2914 + $0x58] sm:$0xf] %v3678
        %v3680 = vld [vmem:[%s2914 + $0x60] sm:$0xf]
        %v3681 = vsel %vm3649, %v3585, %v3680
        %3682 = vst [vmem:[%s2914 + $0x60] sm:$0xf] %v3681
        %v3683 = vld [vmem:[%s2914 + $0x68] sm:$0xf]
        %v3684 = vsel %vm3649, %v3587, %v3683
        %3685 = vst [vmem:[%s2914 + $0x68] sm:$0xf] %v3684
        %v3686 = vld [vmem:[%s2914 + $0x70] sm:$0xf]
        %v3687 = vsel %vm3649, %v3589, %v3686
        %3688 = vst [vmem:[%s2914 + $0x70] sm:$0xf] %v3687
        %v3689 = vld [vmem:[%s2914 + $0x78] sm:$0xf]
        %v3690 = vsel %vm3649, %v3591, %v3689
        %3691 = vst [vmem:[%s2914 + $0x78] sm:$0xf] %v3690
        %v3692 = vld [vmem:[%s2914 + $0x90] sm:$0xf]
        %v3693 = vsel %vm3649, %v3593, %v3692
        %3694 = vst [vmem:[%s2914 + $0x90] sm:$0xf] %v3693
        %v3695 = vld [vmem:[%s2914 + $0x98] sm:$0xf]
        %v3696 = vsel %vm3649, %v3595, %v3695
        %3697 = vst [vmem:[%s2914 + $0x98] sm:$0xf] %v3696
        %v3698 = vld [vmem:[%s2914 + $0xa0] sm:$0xf]
        %v3699 = vsel %vm3649, %v3597, %v3698
        %3700 = vst [vmem:[%s2914 + $0xa0] sm:$0xf] %v3699
        %v3701 = vld [vmem:[%s2914 + $0xa8] sm:$0xf]
        %v3702 = vsel %vm3649, %v3599, %v3701
        %3703 = vst [vmem:[%s2914 + $0xa8] sm:$0xf] %v3702
        %v3704 = vld [vmem:[%s2914 + $0xb0] sm:$0xf]
        %v3705 = vsel %vm3649, %v3601, %v3704
        %3706 = vst [vmem:[%s2914 + $0xb0] sm:$0xf] %v3705
        %v3707 = vld [vmem:[%s2914 + $0xb8] sm:$0xf]
        %v3708 = vsel %vm3649, %v3603, %v3707
        %3709 = vst [vmem:[%s2914 + $0xb8] sm:$0xf] %v3708
        %v3710 = vld [vmem:[%s2914 + $0xc0] sm:$0xf]
        %v3711 = vsel %vm3649, %v3605, %v3710
        %3712 = vst [vmem:[%s2914 + $0xc0] sm:$0xf] %v3711
        %v3713 = vld [vmem:[%s2914 + $0xd8] sm:$0xf]
        %v3714 = vsel %vm3649, %v3607, %v3713
        %3715 = vst [vmem:[%s2914 + $0xd8] sm:$0xf] %v3714
        %v3716 = vld [vmem:[%s2914 + $0xe0] sm:$0xf]
        %v3717 = vsel %vm3649, %v3609, %v3716
        %3718 = vst [vmem:[%s2914 + $0xe0] sm:$0xf] %v3717
        %v3719 = vld [vmem:[%s2914 + $0xe8] sm:$0xf]
        %v3720 = vsel %vm3649, %v3611, %v3719
        %3721 = vst [vmem:[%s2914 + $0xe8] sm:$0xf] %v3720
        %v3722 = vld [vmem:[%s2914 + $0xf0] sm:$0xf]
        %v3723 = vsel %vm3649, %v3613, %v3722
        %3724 = vst [vmem:[%s2914 + $0xf0] sm:$0xf] %v3723
        %v3725 = vld [vmem:[%s2914 + $0xf8] sm:$0xf]
        %v3726 = vsel %vm3649, %v3615, %v3725
        %3727 = vst [vmem:[%s2914 + $0xf8] sm:$0xf] %v3726
        %v3728 = vld [vmem:[%s2914 + $0x100] sm:$0xf]
        %v3729 = vsel %vm3649, %v3617, %v3728
        %3730 = vst [vmem:[%s2914 + $0x100] sm:$0xf] %v3729
        %v3731 = vld [vmem:[%s2914 + $0x108] sm:$0xf]
        %v3732 = vsel %vm3649, %v3619, %v3731
        %3733 = vst [vmem:[%s2914 + $0x108] sm:$0xf] %v3732
        %v3735 = vshrl.u32 %v2526, 16
        %v3737 = vrot.slane %v3735, 7
        %v3738 = vshll.u32 %v2526, 16
        %v3740 = vor.u32 %v3737, %v3738
        %v3742 = vshrl.u32 %v2527, 16
        %v3744 = vrot.slane %v3742, 7
        %v3745 = vshll.u32 %v2527, 16
        %v3747 = vor.u32 %v3744, %v3745
        %v3749 = vshrl.u32 %v2528, 16
        %v3751 = vrot.slane %v3749, 7
        %v3752 = vshll.u32 %v2528, 16
        %v3754 = vor.u32 %v3751, %v3752
        %v3756 = vshrl.u32 %v2529, 16
        %v3758 = vrot.slane %v3756, 7
        %v3759 = vshll.u32 %v2529, 16
        %v3761 = vor.u32 %v3758, %v3759
        %v3763 = vshrl.u32 %v2530, 16
        %v3765 = vrot.slane %v3763, 7
        %v3766 = vshll.u32 %v2530, 16
        %v3768 = vor.u32 %v3765, %v3766
        %v3770 = vshrl.u32 %v2531, 16
        %v3772 = vrot.slane %v3770, 7
        %v3773 = vshll.u32 %v2531, 16
        %v3775 = vor.u32 %v3772, %v3773
        %v3777 = vshrl.u32 %v2532, 16
        %v3779 = vrot.slane %v3777, 7
        %v3780 = vshll.u32 %v2532, 16
        %v3782 = vor.u32 %v3779, %v3780
        %v3784 = vshrl.u32 %v2554, 16
        %v3786 = vrot.slane %v3784, 7
        %v3787 = vshll.u32 %v2554, 16
        %v3789 = vor.u32 %v3786, %v3787
        %v3791 = vshrl.u32 %v2555, 16
        %v3793 = vrot.slane %v3791, 7
        %v3794 = vshll.u32 %v2555, 16
        %v3796 = vor.u32 %v3793, %v3794
        %v3798 = vshrl.u32 %v2556, 16
        %v3800 = vrot.slane %v3798, 7
        %v3801 = vshll.u32 %v2556, 16
        %v3803 = vor.u32 %v3800, %v3801
        %v3805 = vshrl.u32 %v2557, 16
        %v3807 = vrot.slane %v3805, 7
        %v3808 = vshll.u32 %v2557, 16
        %v3810 = vor.u32 %v3807, %v3808
        %v3812 = vshrl.u32 %v2558, 16
        %v3814 = vrot.slane %v3812, 7
        %v3815 = vshll.u32 %v2558, 16
        %v3817 = vor.u32 %v3814, %v3815
        %v3819 = vshrl.u32 %v2559, 16
        %v3821 = vrot.slane %v3819, 7
        %v3822 = vshll.u32 %v2559, 16
        %v3824 = vor.u32 %v3821, %v3822
        %v3826 = vshrl.u32 %v2560, 16
        %v3828 = vrot.slane %v3826, 7
        %v3829 = vshll.u32 %v2560, 16
        %v3831 = vor.u32 %v3828, %v3829
        %v3833 = vshrl.u32 %v2582, 16
        %v3835 = vrot.slane %v3833, 7
        %v3836 = vshll.u32 %v2582, 16
        %v3838 = vor.u32 %v3835, %v3836
        %v3840 = vshrl.u32 %v2583, 16
        %v3842 = vrot.slane %v3840, 7
        %v3843 = vshll.u32 %v2583, 16
        %v3845 = vor.u32 %v3842, %v3843
        %v3847 = vshrl.u32 %v2584, 16
        %v3849 = vrot.slane %v3847, 7
        %v3850 = vshll.u32 %v2584, 16
        %v3852 = vor.u32 %v3849, %v3850
        %v3854 = vshrl.u32 %v2585, 16
        %v3856 = vrot.slane %v3854, 7
        %v3857 = vshll.u32 %v2585, 16
        %v3859 = vor.u32 %v3856, %v3857
        %v3861 = vshrl.u32 %v2586, 16
        %v3863 = vrot.slane %v3861, 7
        %v3864 = vshll.u32 %v2586, 16
        %v3866 = vor.u32 %v3863, %v3864
        %v3868 = vshrl.u32 %v2587, 16
        %v3870 = vrot.slane %v3868, 7
        %v3871 = vshll.u32 %v2587, 16
        %v3873 = vor.u32 %v3870, %v3871
        %v3875 = vshrl.u32 %v2588, 16
        %v3877 = vrot.slane %v3875, 7
        %v3878 = vshll.u32 %v2588, 16
        %v3880 = vor.u32 %v3877, %v3878
        %v3882 = vshrl.u32 %v2610, 16
        %v3884 = vrot.slane %v3882, 7
        %v3885 = vshll.u32 %v2610, 16
        %v3887 = vor.u32 %v3884, %v3885
        %v3889 = vshrl.u32 %v2611, 16
        %v3891 = vrot.slane %v3889, 7
        %v3892 = vshll.u32 %v2611, 16
        %v3894 = vor.u32 %v3891, %v3892
        %v3896 = vshrl.u32 %v2612, 16
        %v3898 = vrot.slane %v3896, 7
        %v3899 = vshll.u32 %v2612, 16
        %v3901 = vor.u32 %v3898, %v3899
        %v3903 = vshrl.u32 %v2613, 16
        %v3905 = vrot.slane %v3903, 7
        %v3906 = vshll.u32 %v2613, 16
        %v3908 = vor.u32 %v3905, %v3906
        %v3910 = vshrl.u32 %v2614, 16
        %v3912 = vrot.slane %v3910, 7
        %v3913 = vshll.u32 %v2614, 16
        %v3915 = vor.u32 %v3912, %v3913
        %v3917 = vshrl.u32 %v2615, 16
        %v3919 = vrot.slane %v3917, 7
        %v3920 = vshll.u32 %v2615, 16
        %v3922 = vor.u32 %v3919, %v3920
        %v3924 = vshrl.u32 %v2616, 16
        %v3926 = vrot.slane %v3924, 7
        %v3927 = vshll.u32 %v2616, 16
        %v3929 = vor.u32 %v3926, %v3927
        %3930 = vrot.lane.b32.xlu0 %v3740, 48
        %v3931 = vpop.permute.xlu0 %3930
        %3932 = vrot.lane.b32.xlu0 %v3747, 48
        %v3933 = vpop.permute.xlu0 %3932
        %3934 = vrot.lane.b32.xlu0 %v3754, 48
        %v3935 = vpop.permute.xlu0 %3934
        %3936 = vrot.lane.b32.xlu0 %v3761, 48
        %v3937 = vpop.permute.xlu0 %3936
        %3938 = vrot.lane.b32.xlu0 %v3768, 48
        %v3939 = vpop.permute.xlu0 %3938
        %3940 = vrot.lane.b32.xlu0 %v3775, 48
        %v3941 = vpop.permute.xlu0 %3940
        %3942 = vrot.lane.b32.xlu0 %v3782, 48
        %v3943 = vpop.permute.xlu0 %3942
        %3944 = vrot.lane.b32.xlu0 %v3789, 48
        %v3945 = vpop.permute.xlu0 %3944
        %3946 = vrot.lane.b32.xlu0 %v3796, 48
        %v3947 = vpop.permute.xlu0 %3946
        %3948 = vrot.lane.b32.xlu0 %v3803, 48
        %v3949 = vpop.permute.xlu0 %3948
        %3950 = vrot.lane.b32.xlu0 %v3810, 48
        %v3951 = vpop.permute.xlu0 %3950
        %3952 = vrot.lane.b32.xlu0 %v3817, 48
        %v3953 = vpop.permute.xlu0 %3952
        %3954 = vrot.lane.b32.xlu0 %v3824, 48
        %v3955 = vpop.permute.xlu0 %3954
        %3956 = vrot.lane.b32.xlu0 %v3831, 48
        %v3957 = vpop.permute.xlu0 %3956
        %3958 = vrot.lane.b32.xlu0 %v3838, 48
        %v3959 = vpop.permute.xlu0 %3958
        %3960 = vrot.lane.b32.xlu0 %v3845, 48
        %v3961 = vpop.permute.xlu0 %3960
        %3962 = vrot.lane.b32.xlu0 %v3852, 48
        %v3963 = vpop.permute.xlu0 %3962
        %3964 = vrot.lane.b32.xlu0 %v3859, 48
        %v3965 = vpop.permute.xlu0 %3964
        %3966 = vrot.lane.b32.xlu0 %v3866, 48
        %v3967 = vpop.permute.xlu0 %3966
        %3968 = vrot.lane.b32.xlu0 %v3873, 48
        %v3969 = vpop.permute.xlu0 %3968
        %3970 = vrot.lane.b32.xlu0 %v3880, 48
        %v3971 = vpop.permute.xlu0 %3970
        %3972 = vrot.lane.b32.xlu0 %v3887, 48
        %v3973 = vpop.permute.xlu0 %3972
        %3974 = vrot.lane.b32.xlu0 %v3894, 48
        %v3975 = vpop.permute.xlu0 %3974
        %3976 = vrot.lane.b32.xlu0 %v3901, 48
        %v3977 = vpop.permute.xlu0 %3976
        %3978 = vrot.lane.b32.xlu0 %v3908, 48
        %v3979 = vpop.permute.xlu0 %3978
        %3980 = vrot.lane.b32.xlu0 %v3915, 48
        %v3981 = vpop.permute.xlu0 %3980
        %3982 = vrot.lane.b32.xlu0 %v3922, 48
        %v3983 = vpop.permute.xlu0 %3982
        %3984 = vrot.lane.b32.xlu0 %v3929, 48
        %v3985 = vpop.permute.xlu0 %3984
        %vm4014 = vcmask 519552
        %vm4015 = vmand %vm4014, %vm2916
        %v4016 = vld [vmem:[%s2914] sm:$0xf]
        %v4017 = vsel %vm4015, %v3931, %v4016
        %4018 = vst [vmem:[%s2914] sm:$0xf] %v4017
        %v4019 = vld [vmem:[%s2914 + $0x8] sm:$0xf]
        %v4020 = vsel %vm4015, %v3933, %v4019
        %4021 = vst [vmem:[%s2914 + $0x8] sm:$0xf] %v4020
        %v4022 = vld [vmem:[%s2914 + $0x10] sm:$0xf]
        %v4023 = vsel %vm4015, %v3935, %v4022
        %4024 = vst [vmem:[%s2914 + $0x10] sm:$0xf] %v4023
        %v4025 = vld [vmem:[%s2914 + $0x18] sm:$0xf]
        %v4026 = vsel %vm4015, %v3937, %v4025
        %4027 = vst [vmem:[%s2914 + $0x18] sm:$0xf] %v4026
        %v4028 = vld [vmem:[%s2914 + $0x20] sm:$0xf]
        %v4029 = vsel %vm4015, %v3939, %v4028
        %4030 = vst [vmem:[%s2914 + $0x20] sm:$0xf] %v4029
        %v4031 = vld [vmem:[%s2914 + $0x28] sm:$0xf]
        %v4032 = vsel %vm4015, %v3941, %v4031
        %4033 = vst [vmem:[%s2914 + $0x28] sm:$0xf] %v4032
        %v4034 = vld [vmem:[%s2914 + $0x30] sm:$0xf]
        %v4035 = vsel %vm4015, %v3943, %v4034
        %4036 = vst [vmem:[%s2914 + $0x30] sm:$0xf] %v4035
        %v4037 = vld [vmem:[%s2914 + $0x48] sm:$0xf]
        %v4038 = vsel %vm4015, %v3945, %v4037
        %4039 = vst [vmem:[%s2914 + $0x48] sm:$0xf] %v4038
        %v4040 = vld [vmem:[%s2914 + $0x50] sm:$0xf]
        %v4041 = vsel %vm4015, %v3947, %v4040
        %4042 = vst [vmem:[%s2914 + $0x50] sm:$0xf] %v4041
        %v4043 = vld [vmem:[%s2914 + $0x58] sm:$0xf]
        %v4044 = vsel %vm4015, %v3949, %v4043
        %4045 = vst [vmem:[%s2914 + $0x58] sm:$0xf] %v4044
        %v4046 = vld [vmem:[%s2914 + $0x60] sm:$0xf]
        %v4047 = vsel %vm4015, %v3951, %v4046
        %4048 = vst [vmem:[%s2914 + $0x60] sm:$0xf] %v4047
        %v4049 = vld [vmem:[%s2914 + $0x68] sm:$0xf]
        %v4050 = vsel %vm4015, %v3953, %v4049
        %4051 = vst [vmem:[%s2914 + $0x68] sm:$0xf] %v4050
        %v4052 = vld [vmem:[%s2914 + $0x70] sm:$0xf]
        %v4053 = vsel %vm4015, %v3955, %v4052
        %4054 = vst [vmem:[%s2914 + $0x70] sm:$0xf] %v4053
        %v4055 = vld [vmem:[%s2914 + $0x78] sm:$0xf]
        %v4056 = vsel %vm4015, %v3957, %v4055
        %4057 = vst [vmem:[%s2914 + $0x78] sm:$0xf] %v4056
        %v4058 = vld [vmem:[%s2914 + $0x90] sm:$0xf]
        %v4059 = vsel %vm4015, %v3959, %v4058
        %4060 = vst [vmem:[%s2914 + $0x90] sm:$0xf] %v4059
        %v4061 = vld [vmem:[%s2914 + $0x98] sm:$0xf]
        %v4062 = vsel %vm4015, %v3961, %v4061
        %4063 = vst [vmem:[%s2914 + $0x98] sm:$0xf] %v4062
        %v4064 = vld [vmem:[%s2914 + $0xa0] sm:$0xf]
        %v4065 = vsel %vm4015, %v3963, %v4064
        %4066 = vst [vmem:[%s2914 + $0xa0] sm:$0xf] %v4065
        %v4067 = vld [vmem:[%s2914 + $0xa8] sm:$0xf]
        %v4068 = vsel %vm4015, %v3965, %v4067
        %4069 = vst [vmem:[%s2914 + $0xa8] sm:$0xf] %v4068
        %v4070 = vld [vmem:[%s2914 + $0xb0] sm:$0xf]
        %v4071 = vsel %vm4015, %v3967, %v4070
        %4072 = vst [vmem:[%s2914 + $0xb0] sm:$0xf] %v4071
        %v4073 = vld [vmem:[%s2914 + $0xb8] sm:$0xf]
        %v4074 = vsel %vm4015, %v3969, %v4073
        %4075 = vst [vmem:[%s2914 + $0xb8] sm:$0xf] %v4074
        %v4076 = vld [vmem:[%s2914 + $0xc0] sm:$0xf]
        %v4077 = vsel %vm4015, %v3971, %v4076
        %4078 = vst [vmem:[%s2914 + $0xc0] sm:$0xf] %v4077
        %v4079 = vld [vmem:[%s2914 + $0xd8] sm:$0xf]
        %v4080 = vsel %vm4015, %v3973, %v4079
        %4081 = vst [vmem:[%s2914 + $0xd8] sm:$0xf] %v4080
        %v4082 = vld [vmem:[%s2914 + $0xe0] sm:$0xf]
        %v4083 = vsel %vm4015, %v3975, %v4082
        %4084 = vst [vmem:[%s2914 + $0xe0] sm:$0xf] %v4083
        %v4085 = vld [vmem:[%s2914 + $0xe8] sm:$0xf]
        %v4086 = vsel %vm4015, %v3977, %v4085
        %4087 = vst [vmem:[%s2914 + $0xe8] sm:$0xf] %v4086
        %v4088 = vld [vmem:[%s2914 + $0xf0] sm:$0xf]
        %v4089 = vsel %vm4015, %v3979, %v4088
        %4090 = vst [vmem:[%s2914 + $0xf0] sm:$0xf] %v4089
        %v4091 = vld [vmem:[%s2914 + $0xf8] sm:$0xf]
        %v4092 = vsel %vm4015, %v3981, %v4091
        %4093 = vst [vmem:[%s2914 + $0xf8] sm:$0xf] %v4092
        %v4094 = vld [vmem:[%s2914 + $0x100] sm:$0xf]
        %v4095 = vsel %vm4015, %v3983, %v4094
        %4096 = vst [vmem:[%s2914 + $0x100] sm:$0xf] %v4095
        %v4097 = vld [vmem:[%s2914 + $0x108] sm:$0xf]
        %v4098 = vsel %vm4015, %v3985, %v4097
        %4099 = vst [vmem:[%s2914 + $0x108] sm:$0xf] %v4098
        %v4100 = vld [vmem:[#allocation2] sm:$0xf]
        %v4101 = vld [vmem:[#allocation2 + $0x4] sm:$0xf]
        %v4102 = vld [vmem:[#allocation2 + $0x8] sm:$0xf]
        %v4103 = vld [vmem:[#allocation2 + $0xc] sm:$0xf]
        %v4104 = vld [vmem:[#allocation2 + $0x10] sm:$0xf]
        %v4105 = vld [vmem:[#allocation2 + $0x14] sm:$0xf]
        %v4106 = vld [vmem:[#allocation2 + $0x18] sm:$0xf]
        %v4107 = vld [vmem:[#allocation2 + $0x1c] sm:$0xf]
        %v4108 = vld [vmem:[#allocation2 + $0x20] sm:$0xf]
        %v4109 = vld [vmem:[#allocation2 + $0x24] sm:$0xf]
        %v4110 = vld [vmem:[#allocation2 + $0x28] sm:$0xf]
        %v4111 = vld [vmem:[#allocation2 + $0x2c] sm:$0xf]
        %v4112 = vld [vmem:[#allocation2 + $0x30] sm:$0xf]
        %v4113 = vld [vmem:[#allocation2 + $0x34] sm:$0xf]
        %v4114 = vld [vmem:[#allocation2 + $0x48] sm:$0xf]
        %v4115 = vld [vmem:[#allocation2 + $0x4c] sm:$0xf]
        %v4116 = vld [vmem:[#allocation2 + $0x50] sm:$0xf]
        %v4117 = vld [vmem:[#allocation2 + $0x54] sm:$0xf]
        %v4118 = vld [vmem:[#allocation2 + $0x58] sm:$0xf]
        %v4119 = vld [vmem:[#allocation2 + $0x5c] sm:$0xf]
        %v4120 = vld [vmem:[#allocation2 + $0x60] sm:$0xf]
        %v4121 = vld [vmem:[#allocation2 + $0x64] sm:$0xf]
        %v4122 = vld [vmem:[#allocation2 + $0x68] sm:$0xf]
        %v4123 = vld [vmem:[#allocation2 + $0x6c] sm:$0xf]
        %v4124 = vld [vmem:[#allocation2 + $0x70] sm:$0xf]
        %v4125 = vld [vmem:[#allocation2 + $0x74] sm:$0xf]
        %v4126 = vld [vmem:[#allocation2 + $0x78] sm:$0xf]
        %v4127 = vld [vmem:[#allocation2 + $0x7c] sm:$0xf]
        %v4128 = vld [vmem:[#allocation2 + $0x90] sm:$0xf]
        %v4129 = vld [vmem:[#allocation2 + $0x94] sm:$0xf]
        %v4130 = vld [vmem:[#allocation2 + $0x98] sm:$0xf]
        %v4131 = vld [vmem:[#allocation2 + $0x9c] sm:$0xf]
        %v4132 = vld [vmem:[#allocation2 + $0xa0] sm:$0xf]
        %v4133 = vld [vmem:[#allocation2 + $0xa4] sm:$0xf]
        %v4134 = vld [vmem:[#allocation2 + $0xa8] sm:$0xf]
        %v4135 = vld [vmem:[#allocation2 + $0xac] sm:$0xf]
        %v4136 = vld [vmem:[#allocation2 + $0xb0] sm:$0xf]
        %v4137 = vld [vmem:[#allocation2 + $0xb4] sm:$0xf]
        %v4138 = vld [vmem:[#allocation2 + $0xb8] sm:$0xf]
        %v4139 = vld [vmem:[#allocation2 + $0xbc] sm:$0xf]
        %v4140 = vld [vmem:[#allocation2 + $0xc0] sm:$0xf]
        %v4141 = vld [vmem:[#allocation2 + $0xc4] sm:$0xf]
        %v4142 = vld [vmem:[#allocation2 + $0xd8] sm:$0xf]
        %v4143 = vld [vmem:[#allocation2 + $0xdc] sm:$0xf]
        %v4144 = vld [vmem:[#allocation2 + $0xe0] sm:$0xf]
        %v4145 = vld [vmem:[#allocation2 + $0xe4] sm:$0xf]
        %v4146 = vld [vmem:[#allocation2 + $0xe8] sm:$0xf]
        %v4147 = vld [vmem:[#allocation2 + $0xec] sm:$0xf]
        %v4148 = vld [vmem:[#allocation2 + $0xf0] sm:$0xf]
        %v4149 = vld [vmem:[#allocation2 + $0xf4] sm:$0xf]
        %v4150 = vld [vmem:[#allocation2 + $0xf8] sm:$0xf]
        %v4151 = vld [vmem:[#allocation2 + $0xfc] sm:$0xf]
        %v4152 = vld [vmem:[#allocation2 + $0x100] sm:$0xf]
        %v4153 = vld [vmem:[#allocation2 + $0x104] sm:$0xf]
        %v4154 = vld [vmem:[#allocation2 + $0x108] sm:$0xf]
        %v4155 = vld [vmem:[#allocation2 + $0x10c] sm:$0xf]
        %v4156 = vld [vmem:[%s3] sm:$0xf]
        %v4157 = vld [vmem:[%s3 + $0x4] sm:$0xf]
        %v4158 = vld [vmem:[%s3 + $0x8] sm:$0xf]
        %v4159 = vld [vmem:[%s3 + $0xc] sm:$0xf]
        %v4160 = vld [vmem:[%s3 + $0x10] sm:$0xf]
        %v4161 = vld [vmem:[%s3 + $0x14] sm:$0xf]
        %v4162 = vld [vmem:[%s3 + $0x18] sm:$0xf]
        %v4163 = vld [vmem:[%s3 + $0x1c] sm:$0xf]
        %v4220 = vunpack.c.l.b16 %v4100
        %v4221 = vunpack.c.l.b16 %v4101
        %v4222 = vunpack.c.l.b16 %v4102
        %v4223 = vunpack.c.l.b16 %v4103
        %v4224 = vunpack.c.l.b16 %v4104
        %v4225 = vunpack.c.l.b16 %v4105
        %v4226 = vunpack.c.l.b16 %v4106
        %v4227 = vunpack.c.l.b16 %v4107
        %v4228 = vunpack.c.l.b16 %v4108
        %v4229 = vunpack.c.l.b16 %v4109
        %v4230 = vunpack.c.l.b16 %v4110
        %v4231 = vunpack.c.l.b16 %v4111
        %v4232 = vunpack.c.l.b16 %v4112
        %v4233 = vunpack.c.l.b16 %v4113
        %v4234 = vunpack.c.l.b16 %v4114
        %v4235 = vunpack.c.l.b16 %v4115
        %v4236 = vunpack.c.l.b16 %v4116
        %v4237 = vunpack.c.l.b16 %v4117
        %v4238 = vunpack.c.l.b16 %v4118
        %v4239 = vunpack.c.l.b16 %v4119
        %v4240 = vunpack.c.l.b16 %v4120
        %v4241 = vunpack.c.l.b16 %v4121
        %v4242 = vunpack.c.l.b16 %v4122
        %v4243 = vunpack.c.l.b16 %v4123
        %v4244 = vunpack.c.l.b16 %v4124
        %v4245 = vunpack.c.l.b16 %v4125
        %v4246 = vunpack.c.l.b16 %v4126
        %v4247 = vunpack.c.l.b16 %v4127
        %v4248 = vunpack.c.l.b16 %v4128
        %v4249 = vunpack.c.l.b16 %v4129
        %v4250 = vunpack.c.l.b16 %v4130
        %v4251 = vunpack.c.l.b16 %v4131
        %v4252 = vunpack.c.l.b16 %v4132
        %v4253 = vunpack.c.l.b16 %v4133
        %v4254 = vunpack.c.l.b16 %v4134
        %v4255 = vunpack.c.l.b16 %v4135
        %v4256 = vunpack.c.l.b16 %v4136
        %v4257 = vunpack.c.l.b16 %v4137
        %v4258 = vunpack.c.l.b16 %v4138
        %v4259 = vunpack.c.l.b16 %v4139
        %v4260 = vunpack.c.l.b16 %v4140
        %v4261 = vunpack.c.l.b16 %v4141
        %v4262 = vunpack.c.l.b16 %v4142
        %v4263 = vunpack.c.l.b16 %v4143
        %v4264 = vunpack.c.l.b16 %v4144
        %v4265 = vunpack.c.l.b16 %v4145
        %v4266 = vunpack.c.l.b16 %v4146
        %v4267 = vunpack.c.l.b16 %v4147
        %v4268 = vunpack.c.l.b16 %v4148
        %v4269 = vunpack.c.l.b16 %v4149
        %v4270 = vunpack.c.l.b16 %v4150
        %v4271 = vunpack.c.l.b16 %v4151
        %v4272 = vunpack.c.l.b16 %v4152
        %v4273 = vunpack.c.l.b16 %v4153
        %v4274 = vunpack.c.l.b16 %v4154
        %v4275 = vunpack.c.l.b16 %v4155
        %v4276 = vpack.c.b16 %v4221, %v4220
        %v4277 = vpack.c.b16 %v4223, %v4222
        %v4278 = vpack.c.b16 %v4225, %v4224
        %v4279 = vpack.c.b16 %v4227, %v4226
        %v4280 = vpack.c.b16 %v4229, %v4228
        %v4281 = vpack.c.b16 %v4231, %v4230
        %v4282 = vpack.c.b16 %v4233, %v4232
        %v4283 = vpack.c.b16 %v4235, %v4234
        %v4284 = vpack.c.b16 %v4237, %v4236
        %v4285 = vpack.c.b16 %v4239, %v4238
        %v4286 = vpack.c.b16 %v4241, %v4240
        %v4287 = vpack.c.b16 %v4243, %v4242
        %v4288 = vpack.c.b16 %v4245, %v4244
        %v4289 = vpack.c.b16 %v4247, %v4246
        %v4290 = vpack.c.b16 %v4249, %v4248
        %v4291 = vpack.c.b16 %v4251, %v4250
        %v4292 = vpack.c.b16 %v4253, %v4252
        %v4293 = vpack.c.b16 %v4255, %v4254
        %v4294 = vpack.c.b16 %v4257, %v4256
        %v4295 = vpack.c.b16 %v4259, %v4258
        %v4296 = vpack.c.b16 %v4261, %v4260
        %v4297 = vpack.c.b16 %v4263, %v4262
        %v4298 = vpack.c.b16 %v4265, %v4264
        %v4299 = vpack.c.b16 %v4267, %v4266
        %v4300 = vpack.c.b16 %v4269, %v4268
        %v4301 = vpack.c.b16 %v4271, %v4270
        %v4302 = vpack.c.b16 %v4273, %v4272
        %v4303 = vpack.c.b16 %v4275, %v4274
        %v4312 = vunpack.c.l.b16 %v4156
        %v4313 = vunpack.c.l.b16 %v4157
        %v4314 = vunpack.c.l.b16 %v4158
        %v4315 = vunpack.c.l.b16 %v4159
        %v4316 = vunpack.c.l.b16 %v4160
        %v4317 = vunpack.c.l.b16 %v4161
        %v4318 = vunpack.c.l.b16 %v4162
        %v4319 = vunpack.c.l.b16 %v4163
        %v4320 = vpack.c.b16 %v4313, %v4312
        %v4321 = vpack.c.b16 %v4315, %v4314
        %v4322 = vpack.c.b16 %v4317, %v4316
        %v4323 = vpack.c.b16 %v4319, %v4318
        %vm4328 = vcmask 523264
        %v4330 = vsel %vm4328, %v4276, 0
        %v4333 = vsel %vm4328, %v4277, 0
        %v4336 = vsel %vm4328, %v4278, 0
        %v4339 = vsel %vm4328, %v4279, 0
        %v4342 = vsel %vm4328, %v4280, 0
        %v4345 = vsel %vm4328, %v4281, 0
        %v4348 = vsel %vm4328, %v4282, 0
        %v4351 = vsel %vm4328, %v4283, 0
        %v4354 = vsel %vm4328, %v4284, 0
        %v4357 = vsel %vm4328, %v4285, 0
        %v4360 = vsel %vm4328, %v4286, 0
        %v4363 = vsel %vm4328, %v4287, 0
        %v4366 = vsel %vm4328, %v4288, 0
        %v4369 = vsel %vm4328, %v4289, 0
        %v4372 = vsel %vm4328, %v4290, 0
        %v4375 = vsel %vm4328, %v4291, 0
        %v4378 = vsel %vm4328, %v4292, 0
        %v4381 = vsel %vm4328, %v4293, 0
        %v4384 = vsel %vm4328, %v4294, 0
        %v4387 = vsel %vm4328, %v4295, 0
        %v4390 = vsel %vm4328, %v4296, 0
        %v4393 = vsel %vm4328, %v4297, 0
        %v4396 = vsel %vm4328, %v4298, 0
        %v4399 = vsel %vm4328, %v4299, 0
        %v4402 = vsel %vm4328, %v4300, 0
        %v4405 = vsel %vm4328, %v4301, 0
        %v4408 = vsel %vm4328, %v4302, 0
        %v4411 = vsel %vm4328, %v4303, 0
        %4413 = vmatpush.bf16.msra.mxu0 0
        %4414 = vmatpush.bf16.msra.mxu0 0
        %4415 = vmatpush.bf16.msra.mxu0 0
        %4416 = vmatpush.bf16.msra.mxu0 0
        %4417 = vmatpush.bf16.msra.mxu0 %v4323
        %4418 = vmatpush.bf16.msra.mxu0 %v4322
        %4419 = vmatpush.bf16.msra.mxu0 %v4321
        %4420 = vmatpush.bf16.msra.mxu0 %v4320
        %4421 = vmatmul.bf16.gmra.mxu0 %v4330
        %v4422 = vpop.f32.mrf.mxu0
        %v4423 = vadd.f32 0.0, %v4422
        %v4424 = vpop.f32.mrf.mxu0
        %4425 = vmatmul.bf16.gmra.mxu0 %v4333
        %v4426 = vpop.f32.mrf.mxu0
        %v4427 = vadd.f32 0.0, %v4426
        %v4428 = vpop.f32.mrf.mxu0
        %4429 = vmatmul.bf16.gmra.mxu0 %v4336
        %v4430 = vpop.f32.mrf.mxu0
        %v4431 = vadd.f32 0.0, %v4430
        %v4432 = vpop.f32.mrf.mxu0
        %4433 = vmatmul.bf16.gmra.mxu0 %v4339
        %v4434 = vpop.f32.mrf.mxu0
        %v4435 = vadd.f32 0.0, %v4434
        %v4436 = vpop.f32.mrf.mxu0
        %4437 = vmatmul.bf16.gmra.mxu0 %v4342
        %v4438 = vpop.f32.mrf.mxu0
        %v4439 = vadd.f32 0.0, %v4438
        %v4440 = vpop.f32.mrf.mxu0
        %4441 = vmatmul.bf16.gmra.mxu0 %v4345
        %v4442 = vpop.f32.mrf.mxu0
        %v4443 = vadd.f32 0.0, %v4442
        %v4444 = vpop.f32.mrf.mxu0
        %4445 = vmatmul.bf16.gmra.mxu0 %v4348
        %v4446 = vpop.f32.mrf.mxu0
        %v4447 = vadd.f32 0.0, %v4446
        %v4448 = vpop.f32.mrf.mxu0
        %4449 = vmatmul.bf16.gmra.mxu0 %v4351
        %v4450 = vpop.f32.mrf.mxu0
        %v4451 = vadd.f32 0.0, %v4450
        %v4452 = vpop.f32.mrf.mxu0
        %4453 = vmatmul.bf16.gmra.mxu0 %v4354
        %v4454 = vpop.f32.mrf.mxu0
        %v4455 = vadd.f32 0.0, %v4454
        %v4456 = vpop.f32.mrf.mxu0
        %4457 = vmatmul.bf16.gmra.mxu0 %v4357
        %v4458 = vpop.f32.mrf.mxu0
        %v4459 = vadd.f32 0.0, %v4458
        %v4460 = vpop.f32.mrf.mxu0
        %4461 = vmatmul.bf16.gmra.mxu0 %v4360
        %v4462 = vpop.f32.mrf.mxu0
        %v4463 = vadd.f32 0.0, %v4462
        %v4464 = vpop.f32.mrf.mxu0
        %4465 = vmatmul.bf16.gmra.mxu0 %v4363
        %v4466 = vpop.f32.mrf.mxu0
        %v4467 = vadd.f32 0.0, %v4466
        %v4468 = vpop.f32.mrf.mxu0
        %4469 = vmatmul.bf16.gmra.mxu0 %v4366
        %v4470 = vpop.f32.mrf.mxu0
        %v4471 = vadd.f32 0.0, %v4470
        %v4472 = vpop.f32.mrf.mxu0
        %4473 = vmatmul.bf16.gmra.mxu0 %v4369
        %v4474 = vpop.f32.mrf.mxu0
        %v4475 = vadd.f32 0.0, %v4474
        %v4476 = vpop.f32.mrf.mxu0
        %4477 = vmatmul.bf16.gmra.mxu0 %v4372
        %v4478 = vpop.f32.mrf.mxu0
        %v4479 = vadd.f32 0.0, %v4478
        %v4480 = vpop.f32.mrf.mxu0
        %4481 = vmatmul.bf16.gmra.mxu0 %v4375
        %v4482 = vpop.f32.mrf.mxu0
        %v4483 = vadd.f32 0.0, %v4482
        %v4484 = vpop.f32.mrf.mxu0
        %4485 = vmatmul.bf16.gmra.mxu0 %v4378
        %v4486 = vpop.f32.mrf.mxu0
        %v4487 = vadd.f32 0.0, %v4486
        %v4488 = vpop.f32.mrf.mxu0
        %4489 = vmatmul.bf16.gmra.mxu0 %v4381
        %v4490 = vpop.f32.mrf.mxu0
        %v4491 = vadd.f32 0.0, %v4490
        %v4492 = vpop.f32.mrf.mxu0
        %4493 = vmatmul.bf16.gmra.mxu0 %v4384
        %v4494 = vpop.f32.mrf.mxu0
        %v4495 = vadd.f32 0.0, %v4494
        %v4496 = vpop.f32.mrf.mxu0
        %4497 = vmatmul.bf16.gmra.mxu0 %v4387
        %v4498 = vpop.f32.mrf.mxu0
        %v4499 = vadd.f32 0.0, %v4498
        %v4500 = vpop.f32.mrf.mxu0
        %4501 = vmatmul.bf16.gmra.mxu0 %v4390
        %v4502 = vpop.f32.mrf.mxu0
        %v4503 = vadd.f32 0.0, %v4502
        %v4504 = vpop.f32.mrf.mxu0
        %4505 = vmatmul.bf16.gmra.mxu0 %v4393
        %v4506 = vpop.f32.mrf.mxu0
        %v4507 = vadd.f32 0.0, %v4506
        %v4508 = vpop.f32.mrf.mxu0
        %4509 = vmatmul.bf16.gmra.mxu0 %v4396
        %v4510 = vpop.f32.mrf.mxu0
        %v4511 = vadd.f32 0.0, %v4510
        %v4512 = vpop.f32.mrf.mxu0
        %4513 = vmatmul.bf16.gmra.mxu0 %v4399
        %v4514 = vpop.f32.mrf.mxu0
        %v4515 = vadd.f32 0.0, %v4514
        %v4516 = vpop.f32.mrf.mxu0
        %4517 = vmatmul.bf16.gmra.mxu0 %v4402
        %v4518 = vpop.f32.mrf.mxu0
        %v4519 = vadd.f32 0.0, %v4518
        %v4520 = vpop.f32.mrf.mxu0
        %4521 = vmatmul.bf16.gmra.mxu0 %v4405
        %v4522 = vpop.f32.mrf.mxu0
        %v4523 = vadd.f32 0.0, %v4522
        %v4524 = vpop.f32.mrf.mxu0
        %4525 = vmatmul.bf16.gmra.mxu0 %v4408
        %v4526 = vpop.f32.mrf.mxu0
        %v4527 = vadd.f32 0.0, %v4526
        %v4528 = vpop.f32.mrf.mxu0
        %4529 = vmatmul.bf16.gmra.mxu0 %v4411
        %v4530 = vpop.f32.mrf.mxu0
        %v4531 = vadd.f32 0.0, %v4530
        %v4532 = vpop.f32.mrf.mxu0
        %4533 = vdwg.mxu0
        %v4534 = vadd.f32 %v4423, 0.0
        %v4535 = vadd.f32 %v4427, 0.0
        %v4536 = vadd.f32 %v4431, 0.0
        %v4537 = vadd.f32 %v4435, 0.0
        %v4538 = vadd.f32 %v4439, 0.0
        %v4539 = vadd.f32 %v4443, 0.0
        %v4540 = vadd.f32 %v4447, 0.0
        %v4541 = vadd.f32 %v4451, 0.0
        %v4542 = vadd.f32 %v4455, 0.0
        %v4543 = vadd.f32 %v4459, 0.0
        %v4544 = vadd.f32 %v4463, 0.0
        %v4545 = vadd.f32 %v4467, 0.0
        %v4546 = vadd.f32 %v4471, 0.0
        %v4547 = vadd.f32 %v4475, 0.0
        %v4548 = vadd.f32 %v4479, 0.0
        %v4549 = vadd.f32 %v4483, 0.0
        %v4550 = vadd.f32 %v4487, 0.0
        %v4551 = vadd.f32 %v4491, 0.0
        %v4552 = vadd.f32 %v4495, 0.0
        %v4553 = vadd.f32 %v4499, 0.0
        %v4554 = vadd.f32 %v4503, 0.0
        %v4555 = vadd.f32 %v4507, 0.0
        %v4556 = vadd.f32 %v4511, 0.0
        %v4557 = vadd.f32 %v4515, 0.0
        %v4558 = vadd.f32 %v4519, 0.0
        %v4559 = vadd.f32 %v4523, 0.0
        %v4560 = vadd.f32 %v4527, 0.0
        %v4561 = vadd.f32 %v4531, 0.0
        %s4562 = scalar_lea.vmem %s3, 32
        %v4563 = vld [vmem:[%s4562] sm:$0xf]
        %v4564 = vld [vmem:[%s4562 + $0x4] sm:$0xf]
        %v4565 = vld [vmem:[%s4562 + $0x8] sm:$0xf]
        %v4566 = vld [vmem:[%s4562 + $0xc] sm:$0xf]
        %v4567 = vld [vmem:[%s4562 + $0x10] sm:$0xf]
        %v4568 = vld [vmem:[%s4562 + $0x14] sm:$0xf]
        %v4569 = vld [vmem:[%s4562 + $0x18] sm:$0xf]
        %v4570 = vld [vmem:[%s4562 + $0x1c] sm:$0xf]
        %v4579 = vunpack.c.l.b16 %v4563
        %v4580 = vunpack.c.l.b16 %v4564
        %v4581 = vunpack.c.l.b16 %v4565
        %v4582 = vunpack.c.l.b16 %v4566
        %v4583 = vunpack.c.l.b16 %v4567
        %v4584 = vunpack.c.l.b16 %v4568
        %v4585 = vunpack.c.l.b16 %v4569
        %v4586 = vunpack.c.l.b16 %v4570
        %v4587 = vpack.c.b16 %v4580, %v4579
        %v4588 = vpack.c.b16 %v4582, %v4581
        %v4589 = vpack.c.b16 %v4584, %v4583
        %v4590 = vpack.c.b16 %v4586, %v4585
        %4595 = vmatpush.bf16.msra.mxu0 0
        %4596 = vmatpush.bf16.msra.mxu0 0
        %4597 = vmatpush.bf16.msra.mxu0 0
        %4598 = vmatpush.bf16.msra.mxu0 0
        %4599 = vmatpush.bf16.msra.mxu0 %v4590
        %4600 = vmatpush.bf16.msra.mxu0 %v4589
        %4601 = vmatpush.bf16.msra.mxu0 %v4588
        %4602 = vmatpush.bf16.msra.mxu0 %v4587
        %4603 = vmatmul.bf16.gmra.mxu0 %v4330
        %v4604 = vpop.f32.mrf.mxu0
        %v4605 = vadd.f32 0.0, %v4604
        %v4606 = vpop.f32.mrf.mxu0
        %4607 = vmatmul.bf16.gmra.mxu0 %v4333
        %v4608 = vpop.f32.mrf.mxu0
        %v4609 = vadd.f32 0.0, %v4608
        %v4610 = vpop.f32.mrf.mxu0
        %4611 = vmatmul.bf16.gmra.mxu0 %v4336
        %v4612 = vpop.f32.mrf.mxu0
        %v4613 = vadd.f32 0.0, %v4612
        %v4614 = vpop.f32.mrf.mxu0
        %4615 = vmatmul.bf16.gmra.mxu0 %v4339
        %v4616 = vpop.f32.mrf.mxu0
        %v4617 = vadd.f32 0.0, %v4616
        %v4618 = vpop.f32.mrf.mxu0
        %4619 = vmatmul.bf16.gmra.mxu0 %v4342
        %v4620 = vpop.f32.mrf.mxu0
        %v4621 = vadd.f32 0.0, %v4620
        %v4622 = vpop.f32.mrf.mxu0
        %4623 = vmatmul.bf16.gmra.mxu0 %v4345
        %v4624 = vpop.f32.mrf.mxu0
        %v4625 = vadd.f32 0.0, %v4624
        %v4626 = vpop.f32.mrf.mxu0
        %4627 = vmatmul.bf16.gmra.mxu0 %v4348
        %v4628 = vpop.f32.mrf.mxu0
        %v4629 = vadd.f32 0.0, %v4628
        %v4630 = vpop.f32.mrf.mxu0
        %4631 = vmatmul.bf16.gmra.mxu0 %v4351
        %v4632 = vpop.f32.mrf.mxu0
        %v4633 = vadd.f32 0.0, %v4632
        %v4634 = vpop.f32.mrf.mxu0
        %4635 = vmatmul.bf16.gmra.mxu0 %v4354
        %v4636 = vpop.f32.mrf.mxu0
        %v4637 = vadd.f32 0.0, %v4636
        %v4638 = vpop.f32.mrf.mxu0
        %4639 = vmatmul.bf16.gmra.mxu0 %v4357
        %v4640 = vpop.f32.mrf.mxu0
        %v4641 = vadd.f32 0.0, %v4640
        %v4642 = vpop.f32.mrf.mxu0
        %4643 = vmatmul.bf16.gmra.mxu0 %v4360
        %v4644 = vpop.f32.mrf.mxu0
        %v4645 = vadd.f32 0.0, %v4644
        %v4646 = vpop.f32.mrf.mxu0
        %4647 = vmatmul.bf16.gmra.mxu0 %v4363
        %v4648 = vpop.f32.mrf.mxu0
        %v4649 = vadd.f32 0.0, %v4648
        %v4650 = vpop.f32.mrf.mxu0
        %4651 = vmatmul.bf16.gmra.mxu0 %v4366
        %v4652 = vpop.f32.mrf.mxu0
        %v4653 = vadd.f32 0.0, %v4652
        %v4654 = vpop.f32.mrf.mxu0
        %4655 = vmatmul.bf16.gmra.mxu0 %v4369
        %v4656 = vpop.f32.mrf.mxu0
        %v4657 = vadd.f32 0.0, %v4656
        %v4658 = vpop.f32.mrf.mxu0
        %4659 = vmatmul.bf16.gmra.mxu0 %v4372
        %v4660 = vpop.f32.mrf.mxu0
        %v4661 = vadd.f32 0.0, %v4660
        %v4662 = vpop.f32.mrf.mxu0
        %4663 = vmatmul.bf16.gmra.mxu0 %v4375
        %v4664 = vpop.f32.mrf.mxu0
        %v4665 = vadd.f32 0.0, %v4664
        %v4666 = vpop.f32.mrf.mxu0
        %4667 = vmatmul.bf16.gmra.mxu0 %v4378
        %v4668 = vpop.f32.mrf.mxu0
        %v4669 = vadd.f32 0.0, %v4668
        %v4670 = vpop.f32.mrf.mxu0
        %4671 = vmatmul.bf16.gmra.mxu0 %v4381
        %v4672 = vpop.f32.mrf.mxu0
        %v4673 = vadd.f32 0.0, %v4672
        %v4674 = vpop.f32.mrf.mxu0
        %4675 = vmatmul.bf16.gmra.mxu0 %v4384
        %v4676 = vpop.f32.mrf.mxu0
        %v4677 = vadd.f32 0.0, %v4676
        %v4678 = vpop.f32.mrf.mxu0
        %4679 = vmatmul.bf16.gmra.mxu0 %v4387
        %v4680 = vpop.f32.mrf.mxu0
        %v4681 = vadd.f32 0.0, %v4680
        %v4682 = vpop.f32.mrf.mxu0
        %4683 = vmatmul.bf16.gmra.mxu0 %v4390
        %v4684 = vpop.f32.mrf.mxu0
        %v4685 = vadd.f32 0.0, %v4684
        %v4686 = vpop.f32.mrf.mxu0
        %4687 = vmatmul.bf16.gmra.mxu0 %v4393
        %v4688 = vpop.f32.mrf.mxu0
        %v4689 = vadd.f32 0.0, %v4688
        %v4690 = vpop.f32.mrf.mxu0
        %4691 = vmatmul.bf16.gmra.mxu0 %v4396
        %v4692 = vpop.f32.mrf.mxu0
        %v4693 = vadd.f32 0.0, %v4692
        %v4694 = vpop.f32.mrf.mxu0
        %4695 = vmatmul.bf16.gmra.mxu0 %v4399
        %v4696 = vpop.f32.mrf.mxu0
        %v4697 = vadd.f32 0.0, %v4696
        %v4698 = vpop.f32.mrf.mxu0
        %4699 = vmatmul.bf16.gmra.mxu0 %v4402
        %v4700 = vpop.f32.mrf.mxu0
        %v4701 = vadd.f32 0.0, %v4700
        %v4702 = vpop.f32.mrf.mxu0
        %4703 = vmatmul.bf16.gmra.mxu0 %v4405
        %v4704 = vpop.f32.mrf.mxu0
        %v4705 = vadd.f32 0.0, %v4704
        %v4706 = vpop.f32.mrf.mxu0
        %4707 = vmatmul.bf16.gmra.mxu0 %v4408
        %v4708 = vpop.f32.mrf.mxu0
        %v4709 = vadd.f32 0.0, %v4708
        %v4710 = vpop.f32.mrf.mxu0
        %4711 = vmatmul.bf16.gmra.mxu0 %v4411
        %v4712 = vpop.f32.mrf.mxu0
        %v4713 = vadd.f32 0.0, %v4712
        %v4714 = vpop.f32.mrf.mxu0
        %4715 = vdwg.mxu0
        %v4744 = vrot.slane %v4605, 1
        %v4745 = vrot.slane %v4609, 1
        %v4746 = vrot.slane %v4613, 1
        %v4747 = vrot.slane %v4617, 1
        %v4748 = vrot.slane %v4621, 1
        %v4749 = vrot.slane %v4625, 1
        %v4750 = vrot.slane %v4629, 1
        %v4751 = vrot.slane %v4633, 1
        %v4752 = vrot.slane %v4637, 1
        %v4753 = vrot.slane %v4641, 1
        %v4754 = vrot.slane %v4645, 1
        %v4755 = vrot.slane %v4649, 1
        %v4756 = vrot.slane %v4653, 1
        %v4757 = vrot.slane %v4657, 1
        %v4758 = vrot.slane %v4661, 1
        %v4759 = vrot.slane %v4665, 1
        %v4760 = vrot.slane %v4669, 1
        %v4761 = vrot.slane %v4673, 1
        %v4762 = vrot.slane %v4677, 1
        %v4763 = vrot.slane %v4681, 1
        %v4764 = vrot.slane %v4685, 1
        %v4765 = vrot.slane %v4689, 1
        %v4766 = vrot.slane %v4693, 1
        %v4767 = vrot.slane %v4697, 1
        %v4768 = vrot.slane %v4701, 1
        %v4769 = vrot.slane %v4705, 1
        %v4770 = vrot.slane %v4709, 1
        %v4771 = vrot.slane %v4713, 1
        %v4800 = vadd.f32 %v4534, %v4744
        %v4801 = vadd.f32 %v4535, %v4745
        %v4802 = vadd.f32 %v4536, %v4746
        %v4803 = vadd.f32 %v4537, %v4747
        %v4804 = vadd.f32 %v4538, %v4748
        %v4805 = vadd.f32 %v4539, %v4749
        %v4806 = vadd.f32 %v4540, %v4750
        %v4807 = vadd.f32 %v4541, %v4751
        %v4808 = vadd.f32 %v4542, %v4752
        %v4809 = vadd.f32 %v4543, %v4753
        %v4810 = vadd.f32 %v4544, %v4754
        %v4811 = vadd.f32 %v4545, %v4755
        %v4812 = vadd.f32 %v4546, %v4756
        %v4813 = vadd.f32 %v4547, %v4757
        %v4814 = vadd.f32 %v4548, %v4758
        %v4815 = vadd.f32 %v4549, %v4759
        %v4816 = vadd.f32 %v4550, %v4760
        %v4817 = vadd.f32 %v4551, %v4761
        %v4818 = vadd.f32 %v4552, %v4762
        %v4819 = vadd.f32 %v4553, %v4763
        %v4820 = vadd.f32 %v4554, %v4764
        %v4821 = vadd.f32 %v4555, %v4765
        %v4822 = vadd.f32 %v4556, %v4766
        %v4823 = vadd.f32 %v4557, %v4767
        %v4824 = vadd.f32 %v4558, %v4768
        %v4825 = vadd.f32 %v4559, %v4769
        %v4826 = vadd.f32 %v4560, %v4770
        %v4827 = vadd.f32 %v4561, %v4771
        %s4828 = scalar_lea.vmem %s3, 64
        %v4829 = vld [vmem:[%s4828] sm:$0xf]
        %v4830 = vld [vmem:[%s4828 + $0x4] sm:$0xf]
        %v4831 = vld [vmem:[%s4828 + $0x8] sm:$0xf]
        %v4832 = vld [vmem:[%s4828 + $0xc] sm:$0xf]
        %v4833 = vld [vmem:[%s4828 + $0x10] sm:$0xf]
        %v4834 = vld [vmem:[%s4828 + $0x14] sm:$0xf]
        %v4835 = vld [vmem:[%s4828 + $0x18] sm:$0xf]
        %v4836 = vld [vmem:[%s4828 + $0x1c] sm:$0xf]
        %v4845 = vunpack.c.l.b16 %v4829
        %v4846 = vunpack.c.l.b16 %v4830
        %v4847 = vunpack.c.l.b16 %v4831
        %v4848 = vunpack.c.l.b16 %v4832
        %v4849 = vunpack.c.l.b16 %v4833
        %v4850 = vunpack.c.l.b16 %v4834
        %v4851 = vunpack.c.l.b16 %v4835
        %v4852 = vunpack.c.l.b16 %v4836
        %v4853 = vpack.c.b16 %v4846, %v4845
        %v4854 = vpack.c.b16 %v4848, %v4847
        %v4855 = vpack.c.b16 %v4850, %v4849
        %v4856 = vpack.c.b16 %v4852, %v4851
        %4861 = vmatpush.bf16.msra.mxu0 0
        %4862 = vmatpush.bf16.msra.mxu0 0
        %4863 = vmatpush.bf16.msra.mxu0 0
        %4864 = vmatpush.bf16.msra.mxu0 0
        %4865 = vmatpush.bf16.msra.mxu0 %v4856
        %4866 = vmatpush.bf16.msra.mxu0 %v4855
        %4867 = vmatpush.bf16.msra.mxu0 %v4854
        %4868 = vmatpush.bf16.msra.mxu0 %v4853
        %4869 = vmatmul.bf16.gmra.mxu0 %v4330
        %v4870 = vpop.f32.mrf.mxu0
        %v4871 = vadd.f32 0.0, %v4870
        %v4872 = vpop.f32.mrf.mxu0
        %v4873 = vadd.f32 0.0, %v4872
        %4874 = vmatmul.bf16.gmra.mxu0 %v4333
        %v4875 = vpop.f32.mrf.mxu0
        %v4876 = vadd.f32 0.0, %v4875
        %v4877 = vpop.f32.mrf.mxu0
        %v4878 = vadd.f32 0.0, %v4877
        %4879 = vmatmul.bf16.gmra.mxu0 %v4336
        %v4880 = vpop.f32.mrf.mxu0
        %v4881 = vadd.f32 0.0, %v4880
        %v4882 = vpop.f32.mrf.mxu0
        %v4883 = vadd.f32 0.0, %v4882
        %4884 = vmatmul.bf16.gmra.mxu0 %v4339
        %v4885 = vpop.f32.mrf.mxu0
        %v4886 = vadd.f32 0.0, %v4885
        %v4887 = vpop.f32.mrf.mxu0
        %v4888 = vadd.f32 0.0, %v4887
        %4889 = vmatmul.bf16.gmra.mxu0 %v4342
        %v4890 = vpop.f32.mrf.mxu0
        %v4891 = vadd.f32 0.0, %v4890
        %v4892 = vpop.f32.mrf.mxu0
        %v4893 = vadd.f32 0.0, %v4892
        %4894 = vmatmul.bf16.gmra.mxu0 %v4345
        %v4895 = vpop.f32.mrf.mxu0
        %v4896 = vadd.f32 0.0, %v4895
        %v4897 = vpop.f32.mrf.mxu0
        %v4898 = vadd.f32 0.0, %v4897
        %4899 = vmatmul.bf16.gmra.mxu0 %v4348
        %v4900 = vpop.f32.mrf.mxu0
        %v4901 = vadd.f32 0.0, %v4900
        %v4902 = vpop.f32.mrf.mxu0
        %v4903 = vadd.f32 0.0, %v4902
        %4904 = vmatmul.bf16.gmra.mxu0 %v4351
        %v4905 = vpop.f32.mrf.mxu0
        %v4906 = vadd.f32 0.0, %v4905
        %v4907 = vpop.f32.mrf.mxu0
        %v4908 = vadd.f32 0.0, %v4907
        %4909 = vmatmul.bf16.gmra.mxu0 %v4354
        %v4910 = vpop.f32.mrf.mxu0
        %v4911 = vadd.f32 0.0, %v4910
        %v4912 = vpop.f32.mrf.mxu0
        %v4913 = vadd.f32 0.0, %v4912
        %4914 = vmatmul.bf16.gmra.mxu0 %v4357
        %v4915 = vpop.f32.mrf.mxu0
        %v4916 = vadd.f32 0.0, %v4915
        %v4917 = vpop.f32.mrf.mxu0
        %v4918 = vadd.f32 0.0, %v4917
        %4919 = vmatmul.bf16.gmra.mxu0 %v4360
        %v4920 = vpop.f32.mrf.mxu0
        %v4921 = vadd.f32 0.0, %v4920
        %v4922 = vpop.f32.mrf.mxu0
        %v4923 = vadd.f32 0.0, %v4922
        %4924 = vmatmul.bf16.gmra.mxu0 %v4363
        %v4925 = vpop.f32.mrf.mxu0
        %v4926 = vadd.f32 0.0, %v4925
        %v4927 = vpop.f32.mrf.mxu0
        %v4928 = vadd.f32 0.0, %v4927
        %4929 = vmatmul.bf16.gmra.mxu0 %v4366
        %v4930 = vpop.f32.mrf.mxu0
        %v4931 = vadd.f32 0.0, %v4930
        %v4932 = vpop.f32.mrf.mxu0
        %v4933 = vadd.f32 0.0, %v4932
        %4934 = vmatmul.bf16.gmra.mxu0 %v4369
        %v4935 = vpop.f32.mrf.mxu0
        %v4936 = vadd.f32 0.0, %v4935
        %v4937 = vpop.f32.mrf.mxu0
        %v4938 = vadd.f32 0.0, %v4937
        %4939 = vmatmul.bf16.gmra.mxu0 %v4372
        %v4940 = vpop.f32.mrf.mxu0
        %v4941 = vadd.f32 0.0, %v4940
        %v4942 = vpop.f32.mrf.mxu0
        %v4943 = vadd.f32 0.0, %v4942
        %4944 = vmatmul.bf16.gmra.mxu0 %v4375
        %v4945 = vpop.f32.mrf.mxu0
        %v4946 = vadd.f32 0.0, %v4945
        %v4947 = vpop.f32.mrf.mxu0
        %v4948 = vadd.f32 0.0, %v4947
        %4949 = vmatmul.bf16.gmra.mxu0 %v4378
        %v4950 = vpop.f32.mrf.mxu0
        %v4951 = vadd.f32 0.0, %v4950
        %v4952 = vpop.f32.mrf.mxu0
        %v4953 = vadd.f32 0.0, %v4952
        %4954 = vmatmul.bf16.gmra.mxu0 %v4381
        %v4955 = vpop.f32.mrf.mxu0
        %v4956 = vadd.f32 0.0, %v4955
        %v4957 = vpop.f32.mrf.mxu0
        %v4958 = vadd.f32 0.0, %v4957
        %4959 = vmatmul.bf16.gmra.mxu0 %v4384
        %v4960 = vpop.f32.mrf.mxu0
        %v4961 = vadd.f32 0.0, %v4960
        %v4962 = vpop.f32.mrf.mxu0
        %v4963 = vadd.f32 0.0, %v4962
        %4964 = vmatmul.bf16.gmra.mxu0 %v4387
        %v4965 = vpop.f32.mrf.mxu0
        %v4966 = vadd.f32 0.0, %v4965
        %v4967 = vpop.f32.mrf.mxu0
        %v4968 = vadd.f32 0.0, %v4967
        %4969 = vmatmul.bf16.gmra.mxu0 %v4390
        %v4970 = vpop.f32.mrf.mxu0
        %v4971 = vadd.f32 0.0, %v4970
        %v4972 = vpop.f32.mrf.mxu0
        %v4973 = vadd.f32 0.0, %v4972
        %4974 = vmatmul.bf16.gmra.mxu0 %v4393
        %v4975 = vpop.f32.mrf.mxu0
        %v4976 = vadd.f32 0.0, %v4975
        %v4977 = vpop.f32.mrf.mxu0
        %v4978 = vadd.f32 0.0, %v4977
        %4979 = vmatmul.bf16.gmra.mxu0 %v4396
        %v4980 = vpop.f32.mrf.mxu0
        %v4981 = vadd.f32 0.0, %v4980
        %v4982 = vpop.f32.mrf.mxu0
        %v4983 = vadd.f32 0.0, %v4982
        %4984 = vmatmul.bf16.gmra.mxu0 %v4399
        %v4985 = vpop.f32.mrf.mxu0
        %v4986 = vadd.f32 0.0, %v4985
        %v4987 = vpop.f32.mrf.mxu0
        %v4988 = vadd.f32 0.0, %v4987
        %4989 = vmatmul.bf16.gmra.mxu0 %v4402
        %v4990 = vpop.f32.mrf.mxu0
        %v4991 = vadd.f32 0.0, %v4990
        %v4992 = vpop.f32.mrf.mxu0
        %v4993 = vadd.f32 0.0, %v4992
        %4994 = vmatmul.bf16.gmra.mxu0 %v4405
        %v4995 = vpop.f32.mrf.mxu0
        %v4996 = vadd.f32 0.0, %v4995
        %v4997 = vpop.f32.mrf.mxu0
        %v4998 = vadd.f32 0.0, %v4997
        %4999 = vmatmul.bf16.gmra.mxu0 %v4408
        %v5000 = vpop.f32.mrf.mxu0
        %v5001 = vadd.f32 0.0, %v5000
        %v5002 = vpop.f32.mrf.mxu0
        %v5003 = vadd.f32 0.0, %v5002
        %5004 = vmatmul.bf16.gmra.mxu0 %v4411
        %v5005 = vpop.f32.mrf.mxu0
        %v5006 = vadd.f32 0.0, %v5005
        %v5007 = vpop.f32.mrf.mxu0
        %v5008 = vadd.f32 0.0, %v5007
        %5009 = vdwg.mxu0
        %vm5066 = vcmask 1045504
        %v5067 = vrot.slane %v4871, 2
        %v5068 = vrot.slane %v4873, 2
        %v5069 = vsel %vm5066, %v5067, %v5068
        %v5070 = vrot.slane %v4876, 2
        %v5071 = vrot.slane %v4878, 2
        %v5072 = vsel %vm5066, %v5070, %v5071
        %v5073 = vrot.slane %v4881, 2
        %v5074 = vrot.slane %v4883, 2
        %v5075 = vsel %vm5066, %v5073, %v5074
        %v5076 = vrot.slane %v4886, 2
        %v5077 = vrot.slane %v4888, 2
        %v5078 = vsel %vm5066, %v5076, %v5077
        %v5079 = vrot.slane %v4891, 2
        %v5080 = vrot.slane %v4893, 2
        %v5081 = vsel %vm5066, %v5079, %v5080
        %v5082 = vrot.slane %v4896, 2
        %v5083 = vrot.slane %v4898, 2
        %v5084 = vsel %vm5066, %v5082, %v5083
        %v5085 = vrot.slane %v4901, 2
        %v5086 = vrot.slane %v4903, 2
        %v5087 = vsel %vm5066, %v5085, %v5086
        %v5088 = vrot.slane %v4906, 2
        %v5089 = vrot.slane %v4908, 2
        %v5090 = vsel %vm5066, %v5088, %v5089
        %v5091 = vrot.slane %v4911, 2
        %v5092 = vrot.slane %v4913, 2
        %v5093 = vsel %vm5066, %v5091, %v5092
        %v5094 = vrot.slane %v4916, 2
        %v5095 = vrot.slane %v4918, 2
        %v5096 = vsel %vm5066, %v5094, %v5095
        %v5097 = vrot.slane %v4921, 2
        %v5098 = vrot.slane %v4923, 2
        %v5099 = vsel %vm5066, %v5097, %v5098
        %v5100 = vrot.slane %v4926, 2
        %v5101 = vrot.slane %v4928, 2
        %v5102 = vsel %vm5066, %v5100, %v5101
        %v5103 = vrot.slane %v4931, 2
        %v5104 = vrot.slane %v4933, 2
        %v5105 = vsel %vm5066, %v5103, %v5104
        %v5106 = vrot.slane %v4936, 2
        %v5107 = vrot.slane %v4938, 2
        %v5108 = vsel %vm5066, %v5106, %v5107
        %v5109 = vrot.slane %v4941, 2
        %v5110 = vrot.slane %v4943, 2
        %v5111 = vsel %vm5066, %v5109, %v5110
        %v5112 = vrot.slane %v4946, 2
        %v5113 = vrot.slane %v4948, 2
        %v5114 = vsel %vm5066, %v5112, %v5113
        %v5115 = vrot.slane %v4951, 2
        %v5116 = vrot.slane %v4953, 2
        %v5117 = vsel %vm5066, %v5115, %v5116
        %v5118 = vrot.slane %v4956, 2
        %v5119 = vrot.slane %v4958, 2
        %v5120 = vsel %vm5066, %v5118, %v5119
        %v5121 = vrot.slane %v4961, 2
        %v5122 = vrot.slane %v4963, 2
        %v5123 = vsel %vm5066, %v5121, %v5122
        %v5124 = vrot.slane %v4966, 2
        %v5125 = vrot.slane %v4968, 2
        %v5126 = vsel %vm5066, %v5124, %v5125
        %v5127 = vrot.slane %v4971, 2
        %v5128 = vrot.slane %v4973, 2
        %v5129 = vsel %vm5066, %v5127, %v5128
        %v5130 = vrot.slane %v4976, 2
        %v5131 = vrot.slane %v4978, 2
        %v5132 = vsel %vm5066, %v5130, %v5131
        %v5133 = vrot.slane %v4981, 2
        %v5134 = vrot.slane %v4983, 2
        %v5135 = vsel %vm5066, %v5133, %v5134
        %v5136 = vrot.slane %v4986, 2
        %v5137 = vrot.slane %v4988, 2
        %v5138 = vsel %vm5066, %v5136, %v5137
        %v5139 = vrot.slane %v4991, 2
        %v5140 = vrot.slane %v4993, 2
        %v5141 = vsel %vm5066, %v5139, %v5140
        %v5142 = vrot.slane %v4996, 2
        %v5143 = vrot.slane %v4998, 2
        %v5144 = vsel %vm5066, %v5142, %v5143
        %v5145 = vrot.slane %v5001, 2
        %v5146 = vrot.slane %v5003, 2
        %v5147 = vsel %vm5066, %v5145, %v5146
        %v5148 = vrot.slane %v5006, 2
        %v5149 = vrot.slane %v5008, 2
        %v5150 = vsel %vm5066, %v5148, %v5149
        %v5179 = vadd.f32 %v4800, %v5069
        %v5180 = vadd.f32 %v4801, %v5072
        %v5181 = vadd.f32 %v4802, %v5075
        %v5182 = vadd.f32 %v4803, %v5078
        %v5183 = vadd.f32 %v4804, %v5081
        %v5184 = vadd.f32 %v4805, %v5084
        %v5185 = vadd.f32 %v4806, %v5087
        %v5186 = vadd.f32 %v4807, %v5090
        %v5187 = vadd.f32 %v4808, %v5093
        %v5188 = vadd.f32 %v4809, %v5096
        %v5189 = vadd.f32 %v4810, %v5099
        %v5190 = vadd.f32 %v4811, %v5102
        %v5191 = vadd.f32 %v4812, %v5105
        %v5192 = vadd.f32 %v4813, %v5108
        %v5193 = vadd.f32 %v4814, %v5111
        %v5194 = vadd.f32 %v4815, %v5114
        %v5195 = vadd.f32 %v4816, %v5117
        %v5196 = vadd.f32 %v4817, %v5120
        %v5197 = vadd.f32 %v4818, %v5123
        %v5198 = vadd.f32 %v4819, %v5126
        %v5199 = vadd.f32 %v4820, %v5129
        %v5200 = vadd.f32 %v4821, %v5132
        %v5201 = vadd.f32 %v4822, %v5135
        %v5202 = vadd.f32 %v4823, %v5138
        %v5203 = vadd.f32 %v4824, %v5141
        %v5204 = vadd.f32 %v4825, %v5144
        %v5205 = vadd.f32 %v4826, %v5147
        %v5206 = vadd.f32 %v4827, %v5150
        %v5207 = vld [vmem:[%s2914] sm:$0xf]
        %v5208 = vld [vmem:[%s2914 + $0x4] sm:$0xf]
        %v5209 = vld [vmem:[%s2914 + $0x8] sm:$0xf]
        %v5210 = vld [vmem:[%s2914 + $0xc] sm:$0xf]
        %v5211 = vld [vmem:[%s2914 + $0x10] sm:$0xf]
        %v5212 = vld [vmem:[%s2914 + $0x14] sm:$0xf]
        %v5213 = vld [vmem:[%s2914 + $0x18] sm:$0xf]
        %v5214 = vld [vmem:[%s2914 + $0x1c] sm:$0xf]
        %v5215 = vld [vmem:[%s2914 + $0x20] sm:$0xf]
        %v5216 = vld [vmem:[%s2914 + $0x24] sm:$0xf]
        %v5217 = vld [vmem:[%s2914 + $0x28] sm:$0xf]
        %v5218 = vld [vmem:[%s2914 + $0x2c] sm:$0xf]
        %v5219 = vld [vmem:[%s2914 + $0x30] sm:$0xf]
        %v5220 = vld [vmem:[%s2914 + $0x34] sm:$0xf]
        %v5221 = vld [vmem:[%s2914 + $0x48] sm:$0xf]
        %v5222 = vld [vmem:[%s2914 + $0x4c] sm:$0xf]
        %v5223 = vld [vmem:[%s2914 + $0x50] sm:$0xf]
        %v5224 = vld [vmem:[%s2914 + $0x54] sm:$0xf]
        %v5225 = vld [vmem:[%s2914 + $0x58] sm:$0xf]
        %v5226 = vld [vmem:[%s2914 + $0x5c] sm:$0xf]
        %v5227 = vld [vmem:[%s2914 + $0x60] sm:$0xf]
        %v5228 = vld [vmem:[%s2914 + $0x64] sm:$0xf]
        %v5229 = vld [vmem:[%s2914 + $0x68] sm:$0xf]
        %v5230 = vld [vmem:[%s2914 + $0x6c] sm:$0xf]
        %v5231 = vld [vmem:[%s2914 + $0x70] sm:$0xf]
        %v5232 = vld [vmem:[%s2914 + $0x74] sm:$0xf]
        %v5233 = vld [vmem:[%s2914 + $0x78] sm:$0xf]
        %v5234 = vld [vmem:[%s2914 + $0x7c] sm:$0xf]
        %v5235 = vld [vmem:[%s2914 + $0x90] sm:$0xf]
        %v5236 = vld [vmem:[%s2914 + $0x94] sm:$0xf]
        %v5237 = vld [vmem:[%s2914 + $0x98] sm:$0xf]
        %v5238 = vld [vmem:[%s2914 + $0x9c] sm:$0xf]
        %v5239 = vld [vmem:[%s2914 + $0xa0] sm:$0xf]
        %v5240 = vld [vmem:[%s2914 + $0xa4] sm:$0xf]
        %v5241 = vld [vmem:[%s2914 + $0xa8] sm:$0xf]
        %v5242 = vld [vmem:[%s2914 + $0xac] sm:$0xf]
        %v5243 = vld [vmem:[%s2914 + $0xb0] sm:$0xf]
        %v5244 = vld [vmem:[%s2914 + $0xb4] sm:$0xf]
        %v5245 = vld [vmem:[%s2914 + $0xb8] sm:$0xf]
        %v5246 = vld [vmem:[%s2914 + $0xbc] sm:$0xf]
        %v5247 = vld [vmem:[%s2914 + $0xc0] sm:$0xf]
        %v5248 = vld [vmem:[%s2914 + $0xc4] sm:$0xf]
        %v5249 = vld [vmem:[%s2914 + $0xd8] sm:$0xf]
        %v5250 = vld [vmem:[%s2914 + $0xdc] sm:$0xf]
        %v5251 = vld [vmem:[%s2914 + $0xe0] sm:$0xf]
        %v5252 = vld [vmem:[%s2914 + $0xe4] sm:$0xf]
        %v5253 = vld [vmem:[%s2914 + $0xe8] sm:$0xf]
        %v5254 = vld [vmem:[%s2914 + $0xec] sm:$0xf]
        %v5255 = vld [vmem:[%s2914 + $0xf0] sm:$0xf]
        %v5256 = vld [vmem:[%s2914 + $0xf4] sm:$0xf]
        %v5257 = vld [vmem:[%s2914 + $0xf8] sm:$0xf]
        %v5258 = vld [vmem:[%s2914 + $0xfc] sm:$0xf]
        %v5259 = vld [vmem:[%s2914 + $0x100] sm:$0xf]
        %v5260 = vld [vmem:[%s2914 + $0x104] sm:$0xf]
        %v5261 = vld [vmem:[%s2914 + $0x108] sm:$0xf]
        %v5262 = vld [vmem:[%s2914 + $0x10c] sm:$0xf]
        %s5263 = scalar_lea.vmem %s3, 96
        %v5264 = vld [vmem:[%s5263] sm:$0xf]
        %v5265 = vld [vmem:[%s5263 + $0x4] sm:$0xf]
        %v5266 = vld [vmem:[%s5263 + $0x8] sm:$0xf]
        %v5267 = vld [vmem:[%s5263 + $0xc] sm:$0xf]
        %v5268 = vld [vmem:[%s5263 + $0x10] sm:$0xf]
        %v5269 = vld [vmem:[%s5263 + $0x14] sm:$0xf]
        %v5270 = vld [vmem:[%s5263 + $0x18] sm:$0xf]
        %v5271 = vld [vmem:[%s5263 + $0x1c] sm:$0xf]
        %v5328 = vunpack.c.l.b16 %v5207
        %v5329 = vunpack.c.l.b16 %v5208
        %v5330 = vunpack.c.l.b16 %v5209
        %v5331 = vunpack.c.l.b16 %v5210
        %v5332 = vunpack.c.l.b16 %v5211
        %v5333 = vunpack.c.l.b16 %v5212
        %v5334 = vunpack.c.l.b16 %v5213
        %v5335 = vunpack.c.l.b16 %v5214
        %v5336 = vunpack.c.l.b16 %v5215
        %v5337 = vunpack.c.l.b16 %v5216
        %v5338 = vunpack.c.l.b16 %v5217
        %v5339 = vunpack.c.l.b16 %v5218
        %v5340 = vunpack.c.l.b16 %v5219
        %v5341 = vunpack.c.l.b16 %v5220
        %v5342 = vunpack.c.l.b16 %v5221
        %v5343 = vunpack.c.l.b16 %v5222
        %v5344 = vunpack.c.l.b16 %v5223
        %v5345 = vunpack.c.l.b16 %v5224
        %v5346 = vunpack.c.l.b16 %v5225
        %v5347 = vunpack.c.l.b16 %v5226
        %v5348 = vunpack.c.l.b16 %v5227
        %v5349 = vunpack.c.l.b16 %v5228
        %v5350 = vunpack.c.l.b16 %v5229
        %v5351 = vunpack.c.l.b16 %v5230
        %v5352 = vunpack.c.l.b16 %v5231
        %v5353 = vunpack.c.l.b16 %v5232
        %v5354 = vunpack.c.l.b16 %v5233
        %v5355 = vunpack.c.l.b16 %v5234
        %v5356 = vunpack.c.l.b16 %v5235
        %v5357 = vunpack.c.l.b16 %v5236
        %v5358 = vunpack.c.l.b16 %v5237
        %v5359 = vunpack.c.l.b16 %v5238
        %v5360 = vunpack.c.l.b16 %v5239
        %v5361 = vunpack.c.l.b16 %v5240
        %v5362 = vunpack.c.l.b16 %v5241
        %v5363 = vunpack.c.l.b16 %v5242
        %v5364 = vunpack.c.l.b16 %v5243
        %v5365 = vunpack.c.l.b16 %v5244
        %v5366 = vunpack.c.l.b16 %v5245
        %v5367 = vunpack.c.l.b16 %v5246
        %v5368 = vunpack.c.l.b16 %v5247
        %v5369 = vunpack.c.l.b16 %v5248
        %v5370 = vunpack.c.l.b16 %v5249
        %v5371 = vunpack.c.l.b16 %v5250
        %v5372 = vunpack.c.l.b16 %v5251
        %v5373 = vunpack.c.l.b16 %v5252
        %v5374 = vunpack.c.l.b16 %v5253
        %v5375 = vunpack.c.l.b16 %v5254
        %v5376 = vunpack.c.l.b16 %v5255
        %v5377 = vunpack.c.l.b16 %v5256
        %v5378 = vunpack.c.l.b16 %v5257
        %v5379 = vunpack.c.l.b16 %v5258
        %v5380 = vunpack.c.l.b16 %v5259
        %v5381 = vunpack.c.l.b16 %v5260
        %v5382 = vunpack.c.l.b16 %v5261
        %v5383 = vunpack.c.l.b16 %v5262
        %v5384 = vpack.c.b16 %v5329, %v5328
        %v5385 = vpack.c.b16 %v5331, %v5330
        %v5386 = vpack.c.b16 %v5333, %v5332
        %v5387 = vpack.c.b16 %v5335, %v5334
        %v5388 = vpack.c.b16 %v5337, %v5336
        %v5389 = vpack.c.b16 %v5339, %v5338
        %v5390 = vpack.c.b16 %v5341, %v5340
        %v5391 = vpack.c.b16 %v5343, %v5342
        %v5392 = vpack.c.b16 %v5345, %v5344
        %v5393 = vpack.c.b16 %v5347, %v5346
        %v5394 = vpack.c.b16 %v5349, %v5348
        %v5395 = vpack.c.b16 %v5351, %v5350
        %v5396 = vpack.c.b16 %v5353, %v5352
        %v5397 = vpack.c.b16 %v5355, %v5354
        %v5398 = vpack.c.b16 %v5357, %v5356
        %v5399 = vpack.c.b16 %v5359, %v5358
        %v5400 = vpack.c.b16 %v5361, %v5360
        %v5401 = vpack.c.b16 %v5363, %v5362
        %v5402 = vpack.c.b16 %v5365, %v5364
        %v5403 = vpack.c.b16 %v5367, %v5366
        %v5404 = vpack.c.b16 %v5369, %v5368
        %v5405 = vpack.c.b16 %v5371, %v5370
        %v5406 = vpack.c.b16 %v5373, %v5372
        %v5407 = vpack.c.b16 %v5375, %v5374
        %v5408 = vpack.c.b16 %v5377, %v5376
        %v5409 = vpack.c.b16 %v5379, %v5378
        %v5410 = vpack.c.b16 %v5381, %v5380
        %v5411 = vpack.c.b16 %v5383, %v5382
        %v5420 = vunpack.c.l.b16 %v5264
        %v5421 = vunpack.c.l.b16 %v5265
        %v5422 = vunpack.c.l.b16 %v5266
        %v5423 = vunpack.c.l.b16 %v5267
        %v5424 = vunpack.c.l.b16 %v5268
        %v5425 = vunpack.c.l.b16 %v5269
        %v5426 = vunpack.c.l.b16 %v5270
        %v5427 = vunpack.c.l.b16 %v5271
        %v5428 = vpack.c.b16 %v5421, %v5420
        %v5429 = vpack.c.b16 %v5423, %v5422
        %v5430 = vpack.c.b16 %v5425, %v5424
        %v5431 = vpack.c.b16 %v5427, %v5426
        %v5437 = vsel %vm4328, %v5384, 0
        %v5440 = vsel %vm4328, %v5385, 0
        %v5443 = vsel %vm4328, %v5386, 0
        %v5446 = vsel %vm4328, %v5387, 0
        %v5449 = vsel %vm4328, %v5388, 0
        %v5452 = vsel %vm4328, %v5389, 0
        %v5455 = vsel %vm4328, %v5390, 0
        %v5458 = vsel %vm4328, %v5391, 0
        %v5461 = vsel %vm4328, %v5392, 0
        %v5464 = vsel %vm4328, %v5393, 0
        %v5467 = vsel %vm4328, %v5394, 0
        %v5470 = vsel %vm4328, %v5395, 0
        %v5473 = vsel %vm4328, %v5396, 0
        %v5476 = vsel %vm4328, %v5397, 0
        %v5479 = vsel %vm4328, %v5398, 0
        %v5482 = vsel %vm4328, %v5399, 0
        %v5485 = vsel %vm4328, %v5400, 0
        %v5488 = vsel %vm4328, %v5401, 0
        %v5491 = vsel %vm4328, %v5402, 0
        %v5494 = vsel %vm4328, %v5403, 0
        %v5497 = vsel %vm4328, %v5404, 0
        %v5500 = vsel %vm4328, %v5405, 0
        %v5503 = vsel %vm4328, %v5406, 0
        %v5506 = vsel %vm4328, %v5407, 0
        %v5509 = vsel %vm4328, %v5408, 0
        %v5512 = vsel %vm4328, %v5409, 0
        %v5515 = vsel %vm4328, %v5410, 0
        %v5518 = vsel %vm4328, %v5411, 0
        %5520 = vmatpush.bf16.msra.mxu0 0
        %5521 = vmatpush.bf16.msra.mxu0 0
        %5522 = vmatpush.bf16.msra.mxu0 0
        %5523 = vmatpush.bf16.msra.mxu0 0
        %5524 = vmatpush.bf16.msra.mxu0 %v5431
        %5525 = vmatpush.bf16.msra.mxu0 %v5430
        %5526 = vmatpush.bf16.msra.mxu0 %v5429
        %5527 = vmatpush.bf16.msra.mxu0 %v5428
        %5528 = vmatmul.bf16.gmra.mxu0 %v5437
        %v5529 = vpop.f32.mrf.mxu0
        %v5530 = vadd.f32 0.0, %v5529
        %v5531 = vpop.f32.mrf.mxu0
        %5532 = vmatmul.bf16.gmra.mxu0 %v5440
        %v5533 = vpop.f32.mrf.mxu0
        %v5534 = vadd.f32 0.0, %v5533
        %v5535 = vpop.f32.mrf.mxu0
        %5536 = vmatmul.bf16.gmra.mxu0 %v5443
        %v5537 = vpop.f32.mrf.mxu0
        %v5538 = vadd.f32 0.0, %v5537
        %v5539 = vpop.f32.mrf.mxu0
        %5540 = vmatmul.bf16.gmra.mxu0 %v5446
        %v5541 = vpop.f32.mrf.mxu0
        %v5542 = vadd.f32 0.0, %v5541
        %v5543 = vpop.f32.mrf.mxu0
        %5544 = vmatmul.bf16.gmra.mxu0 %v5449
        %v5545 = vpop.f32.mrf.mxu0
        %v5546 = vadd.f32 0.0, %v5545
        %v5547 = vpop.f32.mrf.mxu0
        %5548 = vmatmul.bf16.gmra.mxu0 %v5452
        %v5549 = vpop.f32.mrf.mxu0
        %v5550 = vadd.f32 0.0, %v5549
        %v5551 = vpop.f32.mrf.mxu0
        %5552 = vmatmul.bf16.gmra.mxu0 %v5455
        %v5553 = vpop.f32.mrf.mxu0
        %v5554 = vadd.f32 0.0, %v5553
        %v5555 = vpop.f32.mrf.mxu0
        %5556 = vmatmul.bf16.gmra.mxu0 %v5458
        %v5557 = vpop.f32.mrf.mxu0
        %v5558 = vadd.f32 0.0, %v5557
        %v5559 = vpop.f32.mrf.mxu0
        %5560 = vmatmul.bf16.gmra.mxu0 %v5461
        %v5561 = vpop.f32.mrf.mxu0
        %v5562 = vadd.f32 0.0, %v5561
        %v5563 = vpop.f32.mrf.mxu0
        %5564 = vmatmul.bf16.gmra.mxu0 %v5464
        %v5565 = vpop.f32.mrf.mxu0
        %v5566 = vadd.f32 0.0, %v5565
        %v5567 = vpop.f32.mrf.mxu0
        %5568 = vmatmul.bf16.gmra.mxu0 %v5467
        %v5569 = vpop.f32.mrf.mxu0
        %v5570 = vadd.f32 0.0, %v5569
        %v5571 = vpop.f32.mrf.mxu0
        %5572 = vmatmul.bf16.gmra.mxu0 %v5470
        %v5573 = vpop.f32.mrf.mxu0
        %v5574 = vadd.f32 0.0, %v5573
        %v5575 = vpop.f32.mrf.mxu0
        %5576 = vmatmul.bf16.gmra.mxu0 %v5473
        %v5577 = vpop.f32.mrf.mxu0
        %v5578 = vadd.f32 0.0, %v5577
        %v5579 = vpop.f32.mrf.mxu0
        %5580 = vmatmul.bf16.gmra.mxu0 %v5476
        %v5581 = vpop.f32.mrf.mxu0
        %v5582 = vadd.f32 0.0, %v5581
        %v5583 = vpop.f32.mrf.mxu0
        %5584 = vmatmul.bf16.gmra.mxu0 %v5479
        %v5585 = vpop.f32.mrf.mxu0
        %v5586 = vadd.f32 0.0, %v5585
        %v5587 = vpop.f32.mrf.mxu0
        %5588 = vmatmul.bf16.gmra.mxu0 %v5482
        %v5589 = vpop.f32.mrf.mxu0
        %v5590 = vadd.f32 0.0, %v5589
        %v5591 = vpop.f32.mrf.mxu0
        %5592 = vmatmul.bf16.gmra.mxu0 %v5485
        %v5593 = vpop.f32.mrf.mxu0
        %v5594 = vadd.f32 0.0, %v5593
        %v5595 = vpop.f32.mrf.mxu0
        %5596 = vmatmul.bf16.gmra.mxu0 %v5488
        %v5597 = vpop.f32.mrf.mxu0
        %v5598 = vadd.f32 0.0, %v5597
        %v5599 = vpop.f32.mrf.mxu0
        %5600 = vmatmul.bf16.gmra.mxu0 %v5491
        %v5601 = vpop.f32.mrf.mxu0
        %v5602 = vadd.f32 0.0, %v5601
        %v5603 = vpop.f32.mrf.mxu0
        %5604 = vmatmul.bf16.gmra.mxu0 %v5494
        %v5605 = vpop.f32.mrf.mxu0
        %v5606 = vadd.f32 0.0, %v5605
        %v5607 = vpop.f32.mrf.mxu0
        %5608 = vmatmul.bf16.gmra.mxu0 %v5497
        %v5609 = vpop.f32.mrf.mxu0
        %v5610 = vadd.f32 0.0, %v5609
        %v5611 = vpop.f32.mrf.mxu0
        %5612 = vmatmul.bf16.gmra.mxu0 %v5500
        %v5613 = vpop.f32.mrf.mxu0
        %v5614 = vadd.f32 0.0, %v5613
        %v5615 = vpop.f32.mrf.mxu0
        %5616 = vmatmul.bf16.gmra.mxu0 %v5503
        %v5617 = vpop.f32.mrf.mxu0
        %v5618 = vadd.f32 0.0, %v5617
        %v5619 = vpop.f32.mrf.mxu0
        %5620 = vmatmul.bf16.gmra.mxu0 %v5506
        %v5621 = vpop.f32.mrf.mxu0
        %v5622 = vadd.f32 0.0, %v5621
        %v5623 = vpop.f32.mrf.mxu0
        %5624 = vmatmul.bf16.gmra.mxu0 %v5509
        %v5625 = vpop.f32.mrf.mxu0
        %v5626 = vadd.f32 0.0, %v5625
        %v5627 = vpop.f32.mrf.mxu0
        %5628 = vmatmul.bf16.gmra.mxu0 %v5512
        %v5629 = vpop.f32.mrf.mxu0
        %v5630 = vadd.f32 0.0, %v5629
        %v5631 = vpop.f32.mrf.mxu0
        %5632 = vmatmul.bf16.gmra.mxu0 %v5515
        %v5633 = vpop.f32.mrf.mxu0
        %v5634 = vadd.f32 0.0, %v5633
        %v5635 = vpop.f32.mrf.mxu0
        %5636 = vmatmul.bf16.gmra.mxu0 %v5518
        %v5637 = vpop.f32.mrf.mxu0
        %v5638 = vadd.f32 0.0, %v5637
        %v5639 = vpop.f32.mrf.mxu0
        %5640 = vdwg.mxu0
        %v5641 = vadd.f32 %v5179, %v5530
        %v5642 = vadd.f32 %v5180, %v5534
        %v5643 = vadd.f32 %v5181, %v5538
        %v5644 = vadd.f32 %v5182, %v5542
        %v5645 = vadd.f32 %v5183, %v5546
        %v5646 = vadd.f32 %v5184, %v5550
        %v5647 = vadd.f32 %v5185, %v5554
        %v5648 = vadd.f32 %v5186, %v5558
        %v5649 = vadd.f32 %v5187, %v5562
        %v5650 = vadd.f32 %v5188, %v5566
        %v5651 = vadd.f32 %v5189, %v5570
        %v5652 = vadd.f32 %v5190, %v5574
        %v5653 = vadd.f32 %v5191, %v5578
        %v5654 = vadd.f32 %v5192, %v5582
        %v5655 = vadd.f32 %v5193, %v5586
        %v5656 = vadd.f32 %v5194, %v5590
        %v5657 = vadd.f32 %v5195, %v5594
        %v5658 = vadd.f32 %v5196, %v5598
        %v5659 = vadd.f32 %v5197, %v5602
        %v5660 = vadd.f32 %v5198, %v5606
        %v5661 = vadd.f32 %v5199, %v5610
        %v5662 = vadd.f32 %v5200, %v5614
        %v5663 = vadd.f32 %v5201, %v5618
        %v5664 = vadd.f32 %v5202, %v5622
        %v5665 = vadd.f32 %v5203, %v5626
        %v5666 = vadd.f32 %v5204, %v5630
        %v5667 = vadd.f32 %v5205, %v5634
        %v5668 = vadd.f32 %v5206, %v5638
        %s5669 = scalar_lea.vmem %s3, 128
        %v5670 = vld [vmem:[%s5669] sm:$0xf]
        %v5671 = vld [vmem:[%s5669 + $0x4] sm:$0xf]
        %v5672 = vld [vmem:[%s5669 + $0x8] sm:$0xf]
        %v5673 = vld [vmem:[%s5669 + $0xc] sm:$0xf]
        %v5674 = vld [vmem:[%s5669 + $0x10] sm:$0xf]
        %v5675 = vld [vmem:[%s5669 + $0x14] sm:$0xf]
        %v5676 = vld [vmem:[%s5669 + $0x18] sm:$0xf]
        %v5677 = vld [vmem:[%s5669 + $0x1c] sm:$0xf]
        %v5686 = vunpack.c.l.b16 %v5670
        %v5687 = vunpack.c.l.b16 %v5671
        %v5688 = vunpack.c.l.b16 %v5672
        %v5689 = vunpack.c.l.b16 %v5673
        %v5690 = vunpack.c.l.b16 %v5674
        %v5691 = vunpack.c.l.b16 %v5675
        %v5692 = vunpack.c.l.b16 %v5676
        %v5693 = vunpack.c.l.b16 %v5677
        %v5694 = vpack.c.b16 %v5687, %v5686
        %v5695 = vpack.c.b16 %v5689, %v5688
        %v5696 = vpack.c.b16 %v5691, %v5690
        %v5697 = vpack.c.b16 %v5693, %v5692
        %5702 = vmatpush.bf16.msra.mxu0 0
        %5703 = vmatpush.bf16.msra.mxu0 0
        %5704 = vmatpush.bf16.msra.mxu0 0
        %5705 = vmatpush.bf16.msra.mxu0 0
        %5706 = vmatpush.bf16.msra.mxu0 %v5697
        %5707 = vmatpush.bf16.msra.mxu0 %v5696
        %5708 = vmatpush.bf16.msra.mxu0 %v5695
        %5709 = vmatpush.bf16.msra.mxu0 %v5694
        %5710 = vmatmul.bf16.gmra.mxu0 %v5437
        %v5711 = vpop.f32.mrf.mxu0
        %v5712 = vadd.f32 0.0, %v5711
        %v5713 = vpop.f32.mrf.mxu0
        %5714 = vmatmul.bf16.gmra.mxu0 %v5440
        %v5715 = vpop.f32.mrf.mxu0
        %v5716 = vadd.f32 0.0, %v5715
        %v5717 = vpop.f32.mrf.mxu0
        %5718 = vmatmul.bf16.gmra.mxu0 %v5443
        %v5719 = vpop.f32.mrf.mxu0
        %v5720 = vadd.f32 0.0, %v5719
        %v5721 = vpop.f32.mrf.mxu0
        %5722 = vmatmul.bf16.gmra.mxu0 %v5446
        %v5723 = vpop.f32.mrf.mxu0
        %v5724 = vadd.f32 0.0, %v5723
        %v5725 = vpop.f32.mrf.mxu0
        %5726 = vmatmul.bf16.gmra.mxu0 %v5449
        %v5727 = vpop.f32.mrf.mxu0
        %v5728 = vadd.f32 0.0, %v5727
        %v5729 = vpop.f32.mrf.mxu0
        %5730 = vmatmul.bf16.gmra.mxu0 %v5452
        %v5731 = vpop.f32.mrf.mxu0
        %v5732 = vadd.f32 0.0, %v5731
        %v5733 = vpop.f32.mrf.mxu0
        %5734 = vmatmul.bf16.gmra.mxu0 %v5455
        %v5735 = vpop.f32.mrf.mxu0
        %v5736 = vadd.f32 0.0, %v5735
        %v5737 = vpop.f32.mrf.mxu0
        %5738 = vmatmul.bf16.gmra.mxu0 %v5458
        %v5739 = vpop.f32.mrf.mxu0
        %v5740 = vadd.f32 0.0, %v5739
        %v5741 = vpop.f32.mrf.mxu0
        %5742 = vmatmul.bf16.gmra.mxu0 %v5461
        %v5743 = vpop.f32.mrf.mxu0
        %v5744 = vadd.f32 0.0, %v5743
        %v5745 = vpop.f32.mrf.mxu0
        %5746 = vmatmul.bf16.gmra.mxu0 %v5464
        %v5747 = vpop.f32.mrf.mxu0
        %v5748 = vadd.f32 0.0, %v5747
        %v5749 = vpop.f32.mrf.mxu0
        %5750 = vmatmul.bf16.gmra.mxu0 %v5467
        %v5751 = vpop.f32.mrf.mxu0
        %v5752 = vadd.f32 0.0, %v5751
        %v5753 = vpop.f32.mrf.mxu0
        %5754 = vmatmul.bf16.gmra.mxu0 %v5470
        %v5755 = vpop.f32.mrf.mxu0
        %v5756 = vadd.f32 0.0, %v5755
        %v5757 = vpop.f32.mrf.mxu0
        %5758 = vmatmul.bf16.gmra.mxu0 %v5473
        %v5759 = vpop.f32.mrf.mxu0
        %v5760 = vadd.f32 0.0, %v5759
        %v5761 = vpop.f32.mrf.mxu0
        %5762 = vmatmul.bf16.gmra.mxu0 %v5476
        %v5763 = vpop.f32.mrf.mxu0
        %v5764 = vadd.f32 0.0, %v5763
        %v5765 = vpop.f32.mrf.mxu0
        %5766 = vmatmul.bf16.gmra.mxu0 %v5479
        %v5767 = vpop.f32.mrf.mxu0
        %v5768 = vadd.f32 0.0, %v5767
        %v5769 = vpop.f32.mrf.mxu0
        %5770 = vmatmul.bf16.gmra.mxu0 %v5482
        %v5771 = vpop.f32.mrf.mxu0
        %v5772 = vadd.f32 0.0, %v5771
        %v5773 = vpop.f32.mrf.mxu0
        %5774 = vmatmul.bf16.gmra.mxu0 %v5485
        %v5775 = vpop.f32.mrf.mxu0
        %v5776 = vadd.f32 0.0, %v5775
        %v5777 = vpop.f32.mrf.mxu0
        %5778 = vmatmul.bf16.gmra.mxu0 %v5488
        %v5779 = vpop.f32.mrf.mxu0
        %v5780 = vadd.f32 0.0, %v5779
        %v5781 = vpop.f32.mrf.mxu0
        %5782 = vmatmul.bf16.gmra.mxu0 %v5491
        %v5783 = vpop.f32.mrf.mxu0
        %v5784 = vadd.f32 0.0, %v5783
        %v5785 = vpop.f32.mrf.mxu0
        %5786 = vmatmul.bf16.gmra.mxu0 %v5494
        %v5787 = vpop.f32.mrf.mxu0
        %v5788 = vadd.f32 0.0, %v5787
        %v5789 = vpop.f32.mrf.mxu0
        %5790 = vmatmul.bf16.gmra.mxu0 %v5497
        %v5791 = vpop.f32.mrf.mxu0
        %v5792 = vadd.f32 0.0, %v5791
        %v5793 = vpop.f32.mrf.mxu0
        %5794 = vmatmul.bf16.gmra.mxu0 %v5500
        %v5795 = vpop.f32.mrf.mxu0
        %v5796 = vadd.f32 0.0, %v5795
        %v5797 = vpop.f32.mrf.mxu0
        %5798 = vmatmul.bf16.gmra.mxu0 %v5503
        %v5799 = vpop.f32.mrf.mxu0
        %v5800 = vadd.f32 0.0, %v5799
        %v5801 = vpop.f32.mrf.mxu0
        %5802 = vmatmul.bf16.gmra.mxu0 %v5506
        %v5803 = vpop.f32.mrf.mxu0
        %v5804 = vadd.f32 0.0, %v5803
        %v5805 = vpop.f32.mrf.mxu0
        %5806 = vmatmul.bf16.gmra.mxu0 %v5509
        %v5807 = vpop.f32.mrf.mxu0
        %v5808 = vadd.f32 0.0, %v5807
        %v5809 = vpop.f32.mrf.mxu0
        %5810 = vmatmul.bf16.gmra.mxu0 %v5512
        %v5811 = vpop.f32.mrf.mxu0
        %v5812 = vadd.f32 0.0, %v5811
        %v5813 = vpop.f32.mrf.mxu0
        %5814 = vmatmul.bf16.gmra.mxu0 %v5515
        %v5815 = vpop.f32.mrf.mxu0
        %v5816 = vadd.f32 0.0, %v5815
        %v5817 = vpop.f32.mrf.mxu0
        %5818 = vmatmul.bf16.gmra.mxu0 %v5518
        %v5819 = vpop.f32.mrf.mxu0
        %v5820 = vadd.f32 0.0, %v5819
        %v5821 = vpop.f32.mrf.mxu0
        %5822 = vdwg.mxu0
        %v5851 = vrot.slane %v5712, 1
        %v5852 = vrot.slane %v5716, 1
        %v5853 = vrot.slane %v5720, 1
        %v5854 = vrot.slane %v5724, 1
        %v5855 = vrot.slane %v5728, 1
        %v5856 = vrot.slane %v5732, 1
        %v5857 = vrot.slane %v5736, 1
        %v5858 = vrot.slane %v5740, 1
        %v5859 = vrot.slane %v5744, 1
        %v5860 = vrot.slane %v5748, 1
        %v5861 = vrot.slane %v5752, 1
        %v5862 = vrot.slane %v5756, 1
        %v5863 = vrot.slane %v5760, 1
        %v5864 = vrot.slane %v5764, 1
        %v5865 = vrot.slane %v5768, 1
        %v5866 = vrot.slane %v5772, 1
        %v5867 = vrot.slane %v5776, 1
        %v5868 = vrot.slane %v5780, 1
        %v5869 = vrot.slane %v5784, 1
        %v5870 = vrot.slane %v5788, 1
        %v5871 = vrot.slane %v5792, 1
        %v5872 = vrot.slane %v5796, 1
        %v5873 = vrot.slane %v5800, 1
        %v5874 = vrot.slane %v5804, 1
        %v5875 = vrot.slane %v5808, 1
        %v5876 = vrot.slane %v5812, 1
        %v5877 = vrot.slane %v5816, 1
        %v5878 = vrot.slane %v5820, 1
        %v5907 = vadd.f32 %v5641, %v5851
        %v5908 = vadd.f32 %v5642, %v5852
        %v5909 = vadd.f32 %v5643, %v5853
        %v5910 = vadd.f32 %v5644, %v5854
        %v5911 = vadd.f32 %v5645, %v5855
        %v5912 = vadd.f32 %v5646, %v5856
        %v5913 = vadd.f32 %v5647, %v5857
        %v5914 = vadd.f32 %v5648, %v5858
        %v5915 = vadd.f32 %v5649, %v5859
        %v5916 = vadd.f32 %v5650, %v5860
        %v5917 = vadd.f32 %v5651, %v5861
        %v5918 = vadd.f32 %v5652, %v5862
        %v5919 = vadd.f32 %v5653, %v5863
        %v5920 = vadd.f32 %v5654, %v5864
        %v5921 = vadd.f32 %v5655, %v5865
        %v5922 = vadd.f32 %v5656, %v5866
        %v5923 = vadd.f32 %v5657, %v5867
        %v5924 = vadd.f32 %v5658, %v5868
        %v5925 = vadd.f32 %v5659, %v5869
        %v5926 = vadd.f32 %v5660, %v5870
        %v5927 = vadd.f32 %v5661, %v5871
        %v5928 = vadd.f32 %v5662, %v5872
        %v5929 = vadd.f32 %v5663, %v5873
        %v5930 = vadd.f32 %v5664, %v5874
        %v5931 = vadd.f32 %v5665, %v5875
        %v5932 = vadd.f32 %v5666, %v5876
        %v5933 = vadd.f32 %v5667, %v5877
        %v5934 = vadd.f32 %v5668, %v5878
        %s5935 = scalar_lea.vmem %s3, 160
        %v5936 = vld [vmem:[%s5935] sm:$0xf]
        %v5937 = vld [vmem:[%s5935 + $0x4] sm:$0xf]
        %v5938 = vld [vmem:[%s5935 + $0x8] sm:$0xf]
        %v5939 = vld [vmem:[%s5935 + $0xc] sm:$0xf]
        %v5940 = vld [vmem:[%s5935 + $0x10] sm:$0xf]
        %v5941 = vld [vmem:[%s5935 + $0x14] sm:$0xf]
        %v5942 = vld [vmem:[%s5935 + $0x18] sm:$0xf]
        %v5943 = vld [vmem:[%s5935 + $0x1c] sm:$0xf]
        %v5952 = vunpack.c.l.b16 %v5936
        %v5953 = vunpack.c.l.b16 %v5937
        %v5954 = vunpack.c.l.b16 %v5938
        %v5955 = vunpack.c.l.b16 %v5939
        %v5956 = vunpack.c.l.b16 %v5940
        %v5957 = vunpack.c.l.b16 %v5941
        %v5958 = vunpack.c.l.b16 %v5942
        %v5959 = vunpack.c.l.b16 %v5943
        %v5960 = vpack.c.b16 %v5953, %v5952
        %v5961 = vpack.c.b16 %v5955, %v5954
        %v5962 = vpack.c.b16 %v5957, %v5956
        %v5963 = vpack.c.b16 %v5959, %v5958
        %5968 = vmatpush.bf16.msra.mxu0 0
        %5969 = vmatpush.bf16.msra.mxu0 0
        %5970 = vmatpush.bf16.msra.mxu0 0
        %5971 = vmatpush.bf16.msra.mxu0 0
        %5972 = vmatpush.bf16.msra.mxu0 %v5963
        %5973 = vmatpush.bf16.msra.mxu0 %v5962
        %5974 = vmatpush.bf16.msra.mxu0 %v5961
        %5975 = vmatpush.bf16.msra.mxu0 %v5960
        %5976 = vmatmul.bf16.gmra.mxu0 %v5437
        %v5977 = vpop.f32.mrf.mxu0
        %v5978 = vadd.f32 0.0, %v5977
        %v5979 = vpop.f32.mrf.mxu0
        %v5980 = vadd.f32 0.0, %v5979
        %5981 = vmatmul.bf16.gmra.mxu0 %v5440
        %v5982 = vpop.f32.mrf.mxu0
        %v5983 = vadd.f32 0.0, %v5982
        %v5984 = vpop.f32.mrf.mxu0
        %v5985 = vadd.f32 0.0, %v5984
        %5986 = vmatmul.bf16.gmra.mxu0 %v5443
        %v5987 = vpop.f32.mrf.mxu0
        %v5988 = vadd.f32 0.0, %v5987
        %v5989 = vpop.f32.mrf.mxu0
        %v5990 = vadd.f32 0.0, %v5989
        %5991 = vmatmul.bf16.gmra.mxu0 %v5446
        %v5992 = vpop.f32.mrf.mxu0
        %v5993 = vadd.f32 0.0, %v5992
        %v5994 = vpop.f32.mrf.mxu0
        %v5995 = vadd.f32 0.0, %v5994
        %5996 = vmatmul.bf16.gmra.mxu0 %v5449
        %v5997 = vpop.f32.mrf.mxu0
        %v5998 = vadd.f32 0.0, %v5997
        %v5999 = vpop.f32.mrf.mxu0
        %v6000 = vadd.f32 0.0, %v5999
        %6001 = vmatmul.bf16.gmra.mxu0 %v5452
        %v6002 = vpop.f32.mrf.mxu0
        %v6003 = vadd.f32 0.0, %v6002
        %v6004 = vpop.f32.mrf.mxu0
        %v6005 = vadd.f32 0.0, %v6004
        %6006 = vmatmul.bf16.gmra.mxu0 %v5455
        %v6007 = vpop.f32.mrf.mxu0
        %v6008 = vadd.f32 0.0, %v6007
        %v6009 = vpop.f32.mrf.mxu0
        %v6010 = vadd.f32 0.0, %v6009
        %6011 = vmatmul.bf16.gmra.mxu0 %v5458
        %v6012 = vpop.f32.mrf.mxu0
        %v6013 = vadd.f32 0.0, %v6012
        %v6014 = vpop.f32.mrf.mxu0
        %v6015 = vadd.f32 0.0, %v6014
        %6016 = vmatmul.bf16.gmra.mxu0 %v5461
        %v6017 = vpop.f32.mrf.mxu0
        %v6018 = vadd.f32 0.0, %v6017
        %v6019 = vpop.f32.mrf.mxu0
        %v6020 = vadd.f32 0.0, %v6019
        %6021 = vmatmul.bf16.gmra.mxu0 %v5464
        %v6022 = vpop.f32.mrf.mxu0
        %v6023 = vadd.f32 0.0, %v6022
        %v6024 = vpop.f32.mrf.mxu0
        %v6025 = vadd.f32 0.0, %v6024
        %6026 = vmatmul.bf16.gmra.mxu0 %v5467
        %v6027 = vpop.f32.mrf.mxu0
        %v6028 = vadd.f32 0.0, %v6027
        %v6029 = vpop.f32.mrf.mxu0
        %v6030 = vadd.f32 0.0, %v6029
        %6031 = vmatmul.bf16.gmra.mxu0 %v5470
        %v6032 = vpop.f32.mrf.mxu0
        %v6033 = vadd.f32 0.0, %v6032
        %v6034 = vpop.f32.mrf.mxu0
        %v6035 = vadd.f32 0.0, %v6034
        %6036 = vmatmul.bf16.gmra.mxu0 %v5473
        %v6037 = vpop.f32.mrf.mxu0
        %v6038 = vadd.f32 0.0, %v6037
        %v6039 = vpop.f32.mrf.mxu0
        %v6040 = vadd.f32 0.0, %v6039
        %6041 = vmatmul.bf16.gmra.mxu0 %v5476
        %v6042 = vpop.f32.mrf.mxu0
        %v6043 = vadd.f32 0.0, %v6042
        %v6044 = vpop.f32.mrf.mxu0
        %v6045 = vadd.f32 0.0, %v6044
        %6046 = vmatmul.bf16.gmra.mxu0 %v5479
        %v6047 = vpop.f32.mrf.mxu0
        %v6048 = vadd.f32 0.0, %v6047
        %v6049 = vpop.f32.mrf.mxu0
        %v6050 = vadd.f32 0.0, %v6049
        %6051 = vmatmul.bf16.gmra.mxu0 %v5482
        %v6052 = vpop.f32.mrf.mxu0
        %v6053 = vadd.f32 0.0, %v6052
        %v6054 = vpop.f32.mrf.mxu0
        %v6055 = vadd.f32 0.0, %v6054
        %6056 = vmatmul.bf16.gmra.mxu0 %v5485
        %v6057 = vpop.f32.mrf.mxu0
        %v6058 = vadd.f32 0.0, %v6057
        %v6059 = vpop.f32.mrf.mxu0
        %v6060 = vadd.f32 0.0, %v6059
        %6061 = vmatmul.bf16.gmra.mxu0 %v5488
        %v6062 = vpop.f32.mrf.mxu0
        %v6063 = vadd.f32 0.0, %v6062
        %v6064 = vpop.f32.mrf.mxu0
        %v6065 = vadd.f32 0.0, %v6064
        %6066 = vmatmul.bf16.gmra.mxu0 %v5491
        %v6067 = vpop.f32.mrf.mxu0
        %v6068 = vadd.f32 0.0, %v6067
        %v6069 = vpop.f32.mrf.mxu0
        %v6070 = vadd.f32 0.0, %v6069
        %6071 = vmatmul.bf16.gmra.mxu0 %v5494
        %v6072 = vpop.f32.mrf.mxu0
        %v6073 = vadd.f32 0.0, %v6072
        %v6074 = vpop.f32.mrf.mxu0
        %v6075 = vadd.f32 0.0, %v6074
        %6076 = vmatmul.bf16.gmra.mxu0 %v5497
        %v6077 = vpop.f32.mrf.mxu0
        %v6078 = vadd.f32 0.0, %v6077
        %v6079 = vpop.f32.mrf.mxu0
        %v6080 = vadd.f32 0.0, %v6079
        %6081 = vmatmul.bf16.gmra.mxu0 %v5500
        %v6082 = vpop.f32.mrf.mxu0
        %v6083 = vadd.f32 0.0, %v6082
        %v6084 = vpop.f32.mrf.mxu0
        %v6085 = vadd.f32 0.0, %v6084
        %6086 = vmatmul.bf16.gmra.mxu0 %v5503
        %v6087 = vpop.f32.mrf.mxu0
        %v6088 = vadd.f32 0.0, %v6087
        %v6089 = vpop.f32.mrf.mxu0
        %v6090 = vadd.f32 0.0, %v6089
        %6091 = vmatmul.bf16.gmra.mxu0 %v5506
        %v6092 = vpop.f32.mrf.mxu0
        %v6093 = vadd.f32 0.0, %v6092
        %v6094 = vpop.f32.mrf.mxu0
        %v6095 = vadd.f32 0.0, %v6094
        %6096 = vmatmul.bf16.gmra.mxu0 %v5509
        %v6097 = vpop.f32.mrf.mxu0
        %v6098 = vadd.f32 0.0, %v6097
        %v6099 = vpop.f32.mrf.mxu0
        %v6100 = vadd.f32 0.0, %v6099
        %6101 = vmatmul.bf16.gmra.mxu0 %v5512
        %v6102 = vpop.f32.mrf.mxu0
        %v6103 = vadd.f32 0.0, %v6102
        %v6104 = vpop.f32.mrf.mxu0
        %v6105 = vadd.f32 0.0, %v6104
        %6106 = vmatmul.bf16.gmra.mxu0 %v5515
        %v6107 = vpop.f32.mrf.mxu0
        %v6108 = vadd.f32 0.0, %v6107
        %v6109 = vpop.f32.mrf.mxu0
        %v6110 = vadd.f32 0.0, %v6109
        %6111 = vmatmul.bf16.gmra.mxu0 %v5518
        %v6112 = vpop.f32.mrf.mxu0
        %v6113 = vadd.f32 0.0, %v6112
        %v6114 = vpop.f32.mrf.mxu0
        %v6115 = vadd.f32 0.0, %v6114
        %6116 = vdwg.mxu0
        %v6173 = vrot.slane %v5978, 2
        %v6174 = vrot.slane %v5980, 2
        %v6175 = vsel %vm5066, %v6173, %v6174
        %v6176 = vrot.slane %v5983, 2
        %v6177 = vrot.slane %v5985, 2
        %v6178 = vsel %vm5066, %v6176, %v6177
        %v6179 = vrot.slane %v5988, 2
        %v6180 = vrot.slane %v5990, 2
        %v6181 = vsel %vm5066, %v6179, %v6180
        %v6182 = vrot.slane %v5993, 2
        %v6183 = vrot.slane %v5995, 2
        %v6184 = vsel %vm5066, %v6182, %v6183
        %v6185 = vrot.slane %v5998, 2
        %v6186 = vrot.slane %v6000, 2
        %v6187 = vsel %vm5066, %v6185, %v6186
        %v6188 = vrot.slane %v6003, 2
        %v6189 = vrot.slane %v6005, 2
        %v6190 = vsel %vm5066, %v6188, %v6189
        %v6191 = vrot.slane %v6008, 2
        %v6192 = vrot.slane %v6010, 2
        %v6193 = vsel %vm5066, %v6191, %v6192
        %v6194 = vrot.slane %v6013, 2
        %v6195 = vrot.slane %v6015, 2
        %v6196 = vsel %vm5066, %v6194, %v6195
        %v6197 = vrot.slane %v6018, 2
        %v6198 = vrot.slane %v6020, 2
        %v6199 = vsel %vm5066, %v6197, %v6198
        %v6200 = vrot.slane %v6023, 2
        %v6201 = vrot.slane %v6025, 2
        %v6202 = vsel %vm5066, %v6200, %v6201
        %v6203 = vrot.slane %v6028, 2
        %v6204 = vrot.slane %v6030, 2
        %v6205 = vsel %vm5066, %v6203, %v6204
        %v6206 = vrot.slane %v6033, 2
        %v6207 = vrot.slane %v6035, 2
        %v6208 = vsel %vm5066, %v6206, %v6207
        %v6209 = vrot.slane %v6038, 2
        %v6210 = vrot.slane %v6040, 2
        %v6211 = vsel %vm5066, %v6209, %v6210
        %v6212 = vrot.slane %v6043, 2
        %v6213 = vrot.slane %v6045, 2
        %v6214 = vsel %vm5066, %v6212, %v6213
        %v6215 = vrot.slane %v6048, 2
        %v6216 = vrot.slane %v6050, 2
        %v6217 = vsel %vm5066, %v6215, %v6216
        %v6218 = vrot.slane %v6053, 2
        %v6219 = vrot.slane %v6055, 2
        %v6220 = vsel %vm5066, %v6218, %v6219
        %v6221 = vrot.slane %v6058, 2
        %v6222 = vrot.slane %v6060, 2
        %v6223 = vsel %vm5066, %v6221, %v6222
        %v6224 = vrot.slane %v6063, 2
        %v6225 = vrot.slane %v6065, 2
        %v6226 = vsel %vm5066, %v6224, %v6225
        %v6227 = vrot.slane %v6068, 2
        %v6228 = vrot.slane %v6070, 2
        %v6229 = vsel %vm5066, %v6227, %v6228
        %v6230 = vrot.slane %v6073, 2
        %v6231 = vrot.slane %v6075, 2
        %v6232 = vsel %vm5066, %v6230, %v6231
        %v6233 = vrot.slane %v6078, 2
        %v6234 = vrot.slane %v6080, 2
        %v6235 = vsel %vm5066, %v6233, %v6234
        %v6236 = vrot.slane %v6083, 2
        %v6237 = vrot.slane %v6085, 2
        %v6238 = vsel %vm5066, %v6236, %v6237
        %v6239 = vrot.slane %v6088, 2
        %v6240 = vrot.slane %v6090, 2
        %v6241 = vsel %vm5066, %v6239, %v6240
        %v6242 = vrot.slane %v6093, 2
        %v6243 = vrot.slane %v6095, 2
        %v6244 = vsel %vm5066, %v6242, %v6243
        %v6245 = vrot.slane %v6098, 2
        %v6246 = vrot.slane %v6100, 2
        %v6247 = vsel %vm5066, %v6245, %v6246
        %v6248 = vrot.slane %v6103, 2
        %v6249 = vrot.slane %v6105, 2
        %v6250 = vsel %vm5066, %v6248, %v6249
        %v6251 = vrot.slane %v6108, 2
        %v6252 = vrot.slane %v6110, 2
        %v6253 = vsel %vm5066, %v6251, %v6252
        %v6254 = vrot.slane %v6113, 2
        %v6255 = vrot.slane %v6115, 2
        %v6256 = vsel %vm5066, %v6254, %v6255
        %v6285 = vadd.f32 %v5907, %v6175
        %v6286 = vadd.f32 %v5908, %v6178
        %v6287 = vadd.f32 %v5909, %v6181
        %v6288 = vadd.f32 %v5910, %v6184
        %v6289 = vadd.f32 %v5911, %v6187
        %v6290 = vadd.f32 %v5912, %v6190
        %v6291 = vadd.f32 %v5913, %v6193
        %v6292 = vadd.f32 %v5914, %v6196
        %v6293 = vadd.f32 %v5915, %v6199
        %v6294 = vadd.f32 %v5916, %v6202
        %v6295 = vadd.f32 %v5917, %v6205
        %v6296 = vadd.f32 %v5918, %v6208
        %v6297 = vadd.f32 %v5919, %v6211
        %v6298 = vadd.f32 %v5920, %v6214
        %v6299 = vadd.f32 %v5921, %v6217
        %v6300 = vadd.f32 %v5922, %v6220
        %v6301 = vadd.f32 %v5923, %v6223
        %v6302 = vadd.f32 %v5924, %v6226
        %v6303 = vadd.f32 %v5925, %v6229
        %v6304 = vadd.f32 %v5926, %v6232
        %v6305 = vadd.f32 %v5927, %v6235
        %v6306 = vadd.f32 %v5928, %v6238
        %v6307 = vadd.f32 %v5929, %v6241
        %v6308 = vadd.f32 %v5930, %v6244
        %v6309 = vadd.f32 %v5931, %v6247
        %v6310 = vadd.f32 %v5932, %v6250
        %v6311 = vadd.f32 %v5933, %v6253
        %v6312 = vadd.f32 %v5934, %v6256
        %s6313 = scalar_lea.vmem [#allocation2], 16
        %v6314 = vld [vmem:[%s6313] sm:$0xf]
        %v6315 = vld [vmem:[%s6313 + $0x4] sm:$0xf]
        %v6316 = vld [vmem:[%s6313 + $0x8] sm:$0xf]
        %v6317 = vld [vmem:[%s6313 + $0xc] sm:$0xf]
        %v6318 = vld [vmem:[%s6313 + $0x10] sm:$0xf]
        %v6319 = vld [vmem:[%s6313 + $0x14] sm:$0xf]
        %v6320 = vld [vmem:[%s6313 + $0x18] sm:$0xf]
        %v6321 = vld [vmem:[%s6313 + $0x1c] sm:$0xf]
        %v6322 = vld [vmem:[%s6313 + $0x20] sm:$0xf]
        %v6323 = vld [vmem:[%s6313 + $0x24] sm:$0xf]
        %v6324 = vld [vmem:[%s6313 + $0x28] sm:$0xf]
        %v6325 = vld [vmem:[%s6313 + $0x2c] sm:$0xf]
        %v6326 = vld [vmem:[%s6313 + $0x30] sm:$0xf]
        %v6327 = vld [vmem:[%s6313 + $0x34] sm:$0xf]
        %v6328 = vld [vmem:[%s6313 + $0x48] sm:$0xf]
        %v6329 = vld [vmem:[%s6313 + $0x4c] sm:$0xf]
        %v6330 = vld [vmem:[%s6313 + $0x50] sm:$0xf]
        %v6331 = vld [vmem:[%s6313 + $0x54] sm:$0xf]
        %v6332 = vld [vmem:[%s6313 + $0x58] sm:$0xf]
        %v6333 = vld [vmem:[%s6313 + $0x5c] sm:$0xf]
        %v6334 = vld [vmem:[%s6313 + $0x60] sm:$0xf]
        %v6335 = vld [vmem:[%s6313 + $0x64] sm:$0xf]
        %v6336 = vld [vmem:[%s6313 + $0x68] sm:$0xf]
        %v6337 = vld [vmem:[%s6313 + $0x6c] sm:$0xf]
        %v6338 = vld [vmem:[%s6313 + $0x70] sm:$0xf]
        %v6339 = vld [vmem:[%s6313 + $0x74] sm:$0xf]
        %v6340 = vld [vmem:[%s6313 + $0x78] sm:$0xf]
        %v6341 = vld [vmem:[%s6313 + $0x7c] sm:$0xf]
        %v6342 = vld [vmem:[%s6313 + $0x90] sm:$0xf]
        %v6343 = vld [vmem:[%s6313 + $0x94] sm:$0xf]
        %v6344 = vld [vmem:[%s6313 + $0x98] sm:$0xf]
        %v6345 = vld [vmem:[%s6313 + $0x9c] sm:$0xf]
        %v6346 = vld [vmem:[%s6313 + $0xa0] sm:$0xf]
        %v6347 = vld [vmem:[%s6313 + $0xa4] sm:$0xf]
        %v6348 = vld [vmem:[%s6313 + $0xa8] sm:$0xf]
        %v6349 = vld [vmem:[%s6313 + $0xac] sm:$0xf]
        %v6350 = vld [vmem:[%s6313 + $0xb0] sm:$0xf]
        %v6351 = vld [vmem:[%s6313 + $0xb4] sm:$0xf]
        %v6352 = vld [vmem:[%s6313 + $0xb8] sm:$0xf]
        %v6353 = vld [vmem:[%s6313 + $0xbc] sm:$0xf]
        %v6354 = vld [vmem:[%s6313 + $0xc0] sm:$0xf]
        %v6355 = vld [vmem:[%s6313 + $0xc4] sm:$0xf]
        %v6356 = vld [vmem:[%s6313 + $0xd8] sm:$0xf]
        %v6357 = vld [vmem:[%s6313 + $0xdc] sm:$0xf]
        %v6358 = vld [vmem:[%s6313 + $0xe0] sm:$0xf]
        %v6359 = vld [vmem:[%s6313 + $0xe4] sm:$0xf]
        %v6360 = vld [vmem:[%s6313 + $0xe8] sm:$0xf]
        %v6361 = vld [vmem:[%s6313 + $0xec] sm:$0xf]
        %v6362 = vld [vmem:[%s6313 + $0xf0] sm:$0xf]
        %v6363 = vld [vmem:[%s6313 + $0xf4] sm:$0xf]
        %v6364 = vld [vmem:[%s6313 + $0xf8] sm:$0xf]
        %v6365 = vld [vmem:[%s6313 + $0xfc] sm:$0xf]
        %v6366 = vld [vmem:[%s6313 + $0x100] sm:$0xf]
        %v6367 = vld [vmem:[%s6313 + $0x104] sm:$0xf]
        %v6368 = vld [vmem:[%s6313 + $0x108] sm:$0xf]
        %v6369 = vld [vmem:[%s6313 + $0x10c] sm:$0xf]
        %s6370 = scalar_lea.vmem %s3, 192
        %v6371 = vld [vmem:[%s6370] sm:$0xf]
        %v6372 = vld [vmem:[%s6370 + $0x4] sm:$0xf]
        %v6373 = vld [vmem:[%s6370 + $0x8] sm:$0xf]
        %v6374 = vld [vmem:[%s6370 + $0xc] sm:$0xf]
        %v6375 = vld [vmem:[%s6370 + $0x10] sm:$0xf]
        %v6376 = vld [vmem:[%s6370 + $0x14] sm:$0xf]
        %v6377 = vld [vmem:[%s6370 + $0x18] sm:$0xf]
        %v6378 = vld [vmem:[%s6370 + $0x1c] sm:$0xf]
        %v6435 = vunpack.c.l.b16 %v6314
        %v6436 = vunpack.c.l.b16 %v6315
        %v6437 = vunpack.c.l.b16 %v6316
        %v6438 = vunpack.c.l.b16 %v6317
        %v6439 = vunpack.c.l.b16 %v6318
        %v6440 = vunpack.c.l.b16 %v6319
        %v6441 = vunpack.c.l.b16 %v6320
        %v6442 = vunpack.c.l.b16 %v6321
        %v6443 = vunpack.c.l.b16 %v6322
        %v6444 = vunpack.c.l.b16 %v6323
        %v6445 = vunpack.c.l.b16 %v6324
        %v6446 = vunpack.c.l.b16 %v6325
        %v6447 = vunpack.c.l.b16 %v6326
        %v6448 = vunpack.c.l.b16 %v6327
        %v6449 = vunpack.c.l.b16 %v6328
        %v6450 = vunpack.c.l.b16 %v6329
        %v6451 = vunpack.c.l.b16 %v6330
        %v6452 = vunpack.c.l.b16 %v6331
        %v6453 = vunpack.c.l.b16 %v6332
        %v6454 = vunpack.c.l.b16 %v6333
        %v6455 = vunpack.c.l.b16 %v6334
        %v6456 = vunpack.c.l.b16 %v6335
        %v6457 = vunpack.c.l.b16 %v6336
        %v6458 = vunpack.c.l.b16 %v6337
        %v6459 = vunpack.c.l.b16 %v6338
        %v6460 = vunpack.c.l.b16 %v6339
        %v6461 = vunpack.c.l.b16 %v6340
        %v6462 = vunpack.c.l.b16 %v6341
        %v6463 = vunpack.c.l.b16 %v6342
        %v6464 = vunpack.c.l.b16 %v6343
        %v6465 = vunpack.c.l.b16 %v6344
        %v6466 = vunpack.c.l.b16 %v6345
        %v6467 = vunpack.c.l.b16 %v6346
        %v6468 = vunpack.c.l.b16 %v6347
        %v6469 = vunpack.c.l.b16 %v6348
        %v6470 = vunpack.c.l.b16 %v6349
        %v6471 = vunpack.c.l.b16 %v6350
        %v6472 = vunpack.c.l.b16 %v6351
        %v6473 = vunpack.c.l.b16 %v6352
        %v6474 = vunpack.c.l.b16 %v6353
        %v6475 = vunpack.c.l.b16 %v6354
        %v6476 = vunpack.c.l.b16 %v6355
        %v6477 = vunpack.c.l.b16 %v6356
        %v6478 = vunpack.c.l.b16 %v6357
        %v6479 = vunpack.c.l.b16 %v6358
        %v6480 = vunpack.c.l.b16 %v6359
        %v6481 = vunpack.c.l.b16 %v6360
        %v6482 = vunpack.c.l.b16 %v6361
        %v6483 = vunpack.c.l.b16 %v6362
        %v6484 = vunpack.c.l.b16 %v6363
        %v6485 = vunpack.c.l.b16 %v6364
        %v6486 = vunpack.c.l.b16 %v6365
        %v6487 = vunpack.c.l.b16 %v6366
        %v6488 = vunpack.c.l.b16 %v6367
        %v6489 = vunpack.c.l.b16 %v6368
        %v6490 = vunpack.c.l.b16 %v6369
        %v6491 = vpack.c.b16 %v6436, %v6435
        %v6492 = vpack.c.b16 %v6438, %v6437
        %v6493 = vpack.c.b16 %v6440, %v6439
        %v6494 = vpack.c.b16 %v6442, %v6441
        %v6495 = vpack.c.b16 %v6444, %v6443
        %v6496 = vpack.c.b16 %v6446, %v6445
        %v6497 = vpack.c.b16 %v6448, %v6447
        %v6498 = vpack.c.b16 %v6450, %v6449
        %v6499 = vpack.c.b16 %v6452, %v6451
        %v6500 = vpack.c.b16 %v6454, %v6453
        %v6501 = vpack.c.b16 %v6456, %v6455
        %v6502 = vpack.c.b16 %v6458, %v6457
        %v6503 = vpack.c.b16 %v6460, %v6459
        %v6504 = vpack.c.b16 %v6462, %v6461
        %v6505 = vpack.c.b16 %v6464, %v6463
        %v6506 = vpack.c.b16 %v6466, %v6465
        %v6507 = vpack.c.b16 %v6468, %v6467
        %v6508 = vpack.c.b16 %v6470, %v6469
        %v6509 = vpack.c.b16 %v6472, %v6471
        %v6510 = vpack.c.b16 %v6474, %v6473
        %v6511 = vpack.c.b16 %v6476, %v6475
        %v6512 = vpack.c.b16 %v6478, %v6477
        %v6513 = vpack.c.b16 %v6480, %v6479
        %v6514 = vpack.c.b16 %v6482, %v6481
        %v6515 = vpack.c.b16 %v6484, %v6483
        %v6516 = vpack.c.b16 %v6486, %v6485
        %v6517 = vpack.c.b16 %v6488, %v6487
        %v6518 = vpack.c.b16 %v6490, %v6489
        %v6527 = vunpack.c.l.b16 %v6371
        %v6528 = vunpack.c.l.b16 %v6372
        %v6529 = vunpack.c.l.b16 %v6373
        %v6530 = vunpack.c.l.b16 %v6374
        %v6531 = vunpack.c.l.b16 %v6375
        %v6532 = vunpack.c.l.b16 %v6376
        %v6533 = vunpack.c.l.b16 %v6377
        %v6534 = vunpack.c.l.b16 %v6378
        %v6535 = vpack.c.b16 %v6528, %v6527
        %v6536 = vpack.c.b16 %v6530, %v6529
        %v6537 = vpack.c.b16 %v6532, %v6531
        %v6538 = vpack.c.b16 %v6534, %v6533
        %v6544 = vsel %vm4328, %v6491, 0
        %v6547 = vsel %vm4328, %v6492, 0
        %v6550 = vsel %vm4328, %v6493, 0
        %v6553 = vsel %vm4328, %v6494, 0
        %v6556 = vsel %vm4328, %v6495, 0
        %v6559 = vsel %vm4328, %v6496, 0
        %v6562 = vsel %vm4328, %v6497, 0
        %v6565 = vsel %vm4328, %v6498, 0
        %v6568 = vsel %vm4328, %v6499, 0
        %v6571 = vsel %vm4328, %v6500, 0
        %v6574 = vsel %vm4328, %v6501, 0
        %v6577 = vsel %vm4328, %v6502, 0
        %v6580 = vsel %vm4328, %v6503, 0
        %v6583 = vsel %vm4328, %v6504, 0
        %v6586 = vsel %vm4328, %v6505, 0
        %v6589 = vsel %vm4328, %v6506, 0
        %v6592 = vsel %vm4328, %v6507, 0
        %v6595 = vsel %vm4328, %v6508, 0
        %v6598 = vsel %vm4328, %v6509, 0
        %v6601 = vsel %vm4328, %v6510, 0
        %v6604 = vsel %vm4328, %v6511, 0
        %v6607 = vsel %vm4328, %v6512, 0
        %v6610 = vsel %vm4328, %v6513, 0
        %v6613 = vsel %vm4328, %v6514, 0
        %v6616 = vsel %vm4328, %v6515, 0
        %v6619 = vsel %vm4328, %v6516, 0
        %v6622 = vsel %vm4328, %v6517, 0
        %v6625 = vsel %vm4328, %v6518, 0
        %6627 = vmatpush.bf16.msra.mxu0 0
        %6628 = vmatpush.bf16.msra.mxu0 0
        %6629 = vmatpush.bf16.msra.mxu0 0
        %6630 = vmatpush.bf16.msra.mxu0 0
        %6631 = vmatpush.bf16.msra.mxu0 %v6538
        %6632 = vmatpush.bf16.msra.mxu0 %v6537
        %6633 = vmatpush.bf16.msra.mxu0 %v6536
        %6634 = vmatpush.bf16.msra.mxu0 %v6535
        %6635 = vmatmul.bf16.gmra.mxu0 %v6544
        %v6636 = vpop.f32.mrf.mxu0
        %v6637 = vadd.f32 0.0, %v6636
        %v6638 = vpop.f32.mrf.mxu0
        %6639 = vmatmul.bf16.gmra.mxu0 %v6547
        %v6640 = vpop.f32.mrf.mxu0
        %v6641 = vadd.f32 0.0, %v6640
        %v6642 = vpop.f32.mrf.mxu0
        %6643 = vmatmul.bf16.gmra.mxu0 %v6550
        %v6644 = vpop.f32.mrf.mxu0
        %v6645 = vadd.f32 0.0, %v6644
        %v6646 = vpop.f32.mrf.mxu0
        %6647 = vmatmul.bf16.gmra.mxu0 %v6553
        %v6648 = vpop.f32.mrf.mxu0
        %v6649 = vadd.f32 0.0, %v6648
        %v6650 = vpop.f32.mrf.mxu0
        %6651 = vmatmul.bf16.gmra.mxu0 %v6556
        %v6652 = vpop.f32.mrf.mxu0
        %v6653 = vadd.f32 0.0, %v6652
        %v6654 = vpop.f32.mrf.mxu0
        %6655 = vmatmul.bf16.gmra.mxu0 %v6559
        %v6656 = vpop.f32.mrf.mxu0
        %v6657 = vadd.f32 0.0, %v6656
        %v6658 = vpop.f32.mrf.mxu0
        %6659 = vmatmul.bf16.gmra.mxu0 %v6562
        %v6660 = vpop.f32.mrf.mxu0
        %v6661 = vadd.f32 0.0, %v6660
        %v6662 = vpop.f32.mrf.mxu0
        %6663 = vmatmul.bf16.gmra.mxu0 %v6565
        %v6664 = vpop.f32.mrf.mxu0
        %v6665 = vadd.f32 0.0, %v6664
        %v6666 = vpop.f32.mrf.mxu0
        %6667 = vmatmul.bf16.gmra.mxu0 %v6568
        %v6668 = vpop.f32.mrf.mxu0
        %v6669 = vadd.f32 0.0, %v6668
        %v6670 = vpop.f32.mrf.mxu0
        %6671 = vmatmul.bf16.gmra.mxu0 %v6571
        %v6672 = vpop.f32.mrf.mxu0
        %v6673 = vadd.f32 0.0, %v6672
        %v6674 = vpop.f32.mrf.mxu0
        %6675 = vmatmul.bf16.gmra.mxu0 %v6574
        %v6676 = vpop.f32.mrf.mxu0
        %v6677 = vadd.f32 0.0, %v6676
        %v6678 = vpop.f32.mrf.mxu0
        %6679 = vmatmul.bf16.gmra.mxu0 %v6577
        %v6680 = vpop.f32.mrf.mxu0
        %v6681 = vadd.f32 0.0, %v6680
        %v6682 = vpop.f32.mrf.mxu0
        %6683 = vmatmul.bf16.gmra.mxu0 %v6580
        %v6684 = vpop.f32.mrf.mxu0
        %v6685 = vadd.f32 0.0, %v6684
        %v6686 = vpop.f32.mrf.mxu0
        %6687 = vmatmul.bf16.gmra.mxu0 %v6583
        %v6688 = vpop.f32.mrf.mxu0
        %v6689 = vadd.f32 0.0, %v6688
        %v6690 = vpop.f32.mrf.mxu0
        %6691 = vmatmul.bf16.gmra.mxu0 %v6586
        %v6692 = vpop.f32.mrf.mxu0
        %v6693 = vadd.f32 0.0, %v6692
        %v6694 = vpop.f32.mrf.mxu0
        %6695 = vmatmul.bf16.gmra.mxu0 %v6589
        %v6696 = vpop.f32.mrf.mxu0
        %v6697 = vadd.f32 0.0, %v6696
        %v6698 = vpop.f32.mrf.mxu0
        %6699 = vmatmul.bf16.gmra.mxu0 %v6592
        %v6700 = vpop.f32.mrf.mxu0
        %v6701 = vadd.f32 0.0, %v6700
        %v6702 = vpop.f32.mrf.mxu0
        %6703 = vmatmul.bf16.gmra.mxu0 %v6595
        %v6704 = vpop.f32.mrf.mxu0
        %v6705 = vadd.f32 0.0, %v6704
        %v6706 = vpop.f32.mrf.mxu0
        %6707 = vmatmul.bf16.gmra.mxu0 %v6598
        %v6708 = vpop.f32.mrf.mxu0
        %v6709 = vadd.f32 0.0, %v6708
        %v6710 = vpop.f32.mrf.mxu0
        %6711 = vmatmul.bf16.gmra.mxu0 %v6601
        %v6712 = vpop.f32.mrf.mxu0
        %v6713 = vadd.f32 0.0, %v6712
        %v6714 = vpop.f32.mrf.mxu0
        %6715 = vmatmul.bf16.gmra.mxu0 %v6604
        %v6716 = vpop.f32.mrf.mxu0
        %v6717 = vadd.f32 0.0, %v6716
        %v6718 = vpop.f32.mrf.mxu0
        %6719 = vmatmul.bf16.gmra.mxu0 %v6607
        %v6720 = vpop.f32.mrf.mxu0
        %v6721 = vadd.f32 0.0, %v6720
        %v6722 = vpop.f32.mrf.mxu0
        %6723 = vmatmul.bf16.gmra.mxu0 %v6610
        %v6724 = vpop.f32.mrf.mxu0
        %v6725 = vadd.f32 0.0, %v6724
        %v6726 = vpop.f32.mrf.mxu0
        %6727 = vmatmul.bf16.gmra.mxu0 %v6613
        %v6728 = vpop.f32.mrf.mxu0
        %v6729 = vadd.f32 0.0, %v6728
        %v6730 = vpop.f32.mrf.mxu0
        %6731 = vmatmul.bf16.gmra.mxu0 %v6616
        %v6732 = vpop.f32.mrf.mxu0
        %v6733 = vadd.f32 0.0, %v6732
        %v6734 = vpop.f32.mrf.mxu0
        %6735 = vmatmul.bf16.gmra.mxu0 %v6619
        %v6736 = vpop.f32.mrf.mxu0
        %v6737 = vadd.f32 0.0, %v6736
        %v6738 = vpop.f32.mrf.mxu0
        %6739 = vmatmul.bf16.gmra.mxu0 %v6622
        %v6740 = vpop.f32.mrf.mxu0
        %v6741 = vadd.f32 0.0, %v6740
        %v6742 = vpop.f32.mrf.mxu0
        %6743 = vmatmul.bf16.gmra.mxu0 %v6625
        %v6744 = vpop.f32.mrf.mxu0
        %v6745 = vadd.f32 0.0, %v6744
        %v6746 = vpop.f32.mrf.mxu0
        %6747 = vdwg.mxu0
        %v6748 = vadd.f32 %v6285, %v6637
        %v6749 = vadd.f32 %v6286, %v6641
        %v6750 = vadd.f32 %v6287, %v6645
        %v6751 = vadd.f32 %v6288, %v6649
        %v6752 = vadd.f32 %v6289, %v6653
        %v6753 = vadd.f32 %v6290, %v6657
        %v6754 = vadd.f32 %v6291, %v6661
        %v6755 = vadd.f32 %v6292, %v6665
        %v6756 = vadd.f32 %v6293, %v6669
        %v6757 = vadd.f32 %v6294, %v6673
        %v6758 = vadd.f32 %v6295, %v6677
        %v6759 = vadd.f32 %v6296, %v6681
        %v6760 = vadd.f32 %v6297, %v6685
        %v6761 = vadd.f32 %v6298, %v6689
        %v6762 = vadd.f32 %v6299, %v6693
        %v6763 = vadd.f32 %v6300, %v6697
        %v6764 = vadd.f32 %v6301, %v6701
        %v6765 = vadd.f32 %v6302, %v6705
        %v6766 = vadd.f32 %v6303, %v6709
        %v6767 = vadd.f32 %v6304, %v6713
        %v6768 = vadd.f32 %v6305, %v6717
        %v6769 = vadd.f32 %v6306, %v6721
        %v6770 = vadd.f32 %v6307, %v6725
        %v6771 = vadd.f32 %v6308, %v6729
        %v6772 = vadd.f32 %v6309, %v6733
        %v6773 = vadd.f32 %v6310, %v6737
        %v6774 = vadd.f32 %v6311, %v6741
        %v6775 = vadd.f32 %v6312, %v6745
        %s6776 = scalar_lea.vmem %s3, 224
        %v6777 = vld [vmem:[%s6776] sm:$0xf]
        %v6778 = vld [vmem:[%s6776 + $0x4] sm:$0xf]
        %v6779 = vld [vmem:[%s6776 + $0x8] sm:$0xf]
        %v6780 = vld [vmem:[%s6776 + $0xc] sm:$0xf]
        %v6781 = vld [vmem:[%s6776 + $0x10] sm:$0xf]
        %v6782 = vld [vmem:[%s6776 + $0x14] sm:$0xf]
        %v6783 = vld [vmem:[%s6776 + $0x18] sm:$0xf]
        %v6784 = vld [vmem:[%s6776 + $0x1c] sm:$0xf]
        %v6793 = vunpack.c.l.b16 %v6777
        %v6794 = vunpack.c.l.b16 %v6778
        %v6795 = vunpack.c.l.b16 %v6779
        %v6796 = vunpack.c.l.b16 %v6780
        %v6797 = vunpack.c.l.b16 %v6781
        %v6798 = vunpack.c.l.b16 %v6782
        %v6799 = vunpack.c.l.b16 %v6783
        %v6800 = vunpack.c.l.b16 %v6784
        %v6801 = vpack.c.b16 %v6794, %v6793
        %v6802 = vpack.c.b16 %v6796, %v6795
        %v6803 = vpack.c.b16 %v6798, %v6797
        %v6804 = vpack.c.b16 %v6800, %v6799
        %6809 = vmatpush.bf16.msra.mxu0 0
        %6810 = vmatpush.bf16.msra.mxu0 0
        %6811 = vmatpush.bf16.msra.mxu0 0
        %6812 = vmatpush.bf16.msra.mxu0 0
        %6813 = vmatpush.bf16.msra.mxu0 %v6804
        %6814 = vmatpush.bf16.msra.mxu0 %v6803
        %6815 = vmatpush.bf16.msra.mxu0 %v6802
        %6816 = vmatpush.bf16.msra.mxu0 %v6801
        %6817 = vmatmul.bf16.gmra.mxu0 %v6544
        %v6818 = vpop.f32.mrf.mxu0
        %v6819 = vadd.f32 0.0, %v6818
        %v6820 = vpop.f32.mrf.mxu0
        %6821 = vmatmul.bf16.gmra.mxu0 %v6547
        %v6822 = vpop.f32.mrf.mxu0
        %v6823 = vadd.f32 0.0, %v6822
        %v6824 = vpop.f32.mrf.mxu0
        %6825 = vmatmul.bf16.gmra.mxu0 %v6550
        %v6826 = vpop.f32.mrf.mxu0
        %v6827 = vadd.f32 0.0, %v6826
        %v6828 = vpop.f32.mrf.mxu0
        %6829 = vmatmul.bf16.gmra.mxu0 %v6553
        %v6830 = vpop.f32.mrf.mxu0
        %v6831 = vadd.f32 0.0, %v6830
        %v6832 = vpop.f32.mrf.mxu0
        %6833 = vmatmul.bf16.gmra.mxu0 %v6556
        %v6834 = vpop.f32.mrf.mxu0
        %v6835 = vadd.f32 0.0, %v6834
        %v6836 = vpop.f32.mrf.mxu0
        %6837 = vmatmul.bf16.gmra.mxu0 %v6559
        %v6838 = vpop.f32.mrf.mxu0
        %v6839 = vadd.f32 0.0, %v6838
        %v6840 = vpop.f32.mrf.mxu0
        %6841 = vmatmul.bf16.gmra.mxu0 %v6562
        %v6842 = vpop.f32.mrf.mxu0
        %v6843 = vadd.f32 0.0, %v6842
        %v6844 = vpop.f32.mrf.mxu0
        %6845 = vmatmul.bf16.gmra.mxu0 %v6565
        %v6846 = vpop.f32.mrf.mxu0
        %v6847 = vadd.f32 0.0, %v6846
        %v6848 = vpop.f32.mrf.mxu0
        %6849 = vmatmul.bf16.gmra.mxu0 %v6568
        %v6850 = vpop.f32.mrf.mxu0
        %v6851 = vadd.f32 0.0, %v6850
        %v6852 = vpop.f32.mrf.mxu0
        %6853 = vmatmul.bf16.gmra.mxu0 %v6571
        %v6854 = vpop.f32.mrf.mxu0
        %v6855 = vadd.f32 0.0, %v6854
        %v6856 = vpop.f32.mrf.mxu0
        %6857 = vmatmul.bf16.gmra.mxu0 %v6574
        %v6858 = vpop.f32.mrf.mxu0
        %v6859 = vadd.f32 0.0, %v6858
        %v6860 = vpop.f32.mrf.mxu0
        %6861 = vmatmul.bf16.gmra.mxu0 %v6577
        %v6862 = vpop.f32.mrf.mxu0
        %v6863 = vadd.f32 0.0, %v6862
        %v6864 = vpop.f32.mrf.mxu0
        %6865 = vmatmul.bf16.gmra.mxu0 %v6580
        %v6866 = vpop.f32.mrf.mxu0
        %v6867 = vadd.f32 0.0, %v6866
        %v6868 = vpop.f32.mrf.mxu0
        %6869 = vmatmul.bf16.gmra.mxu0 %v6583
        %v6870 = vpop.f32.mrf.mxu0
        %v6871 = vadd.f32 0.0, %v6870
        %v6872 = vpop.f32.mrf.mxu0
        %6873 = vmatmul.bf16.gmra.mxu0 %v6586
        %v6874 = vpop.f32.mrf.mxu0
        %v6875 = vadd.f32 0.0, %v6874
        %v6876 = vpop.f32.mrf.mxu0
        %6877 = vmatmul.bf16.gmra.mxu0 %v6589
        %v6878 = vpop.f32.mrf.mxu0
        %v6879 = vadd.f32 0.0, %v6878
        %v6880 = vpop.f32.mrf.mxu0
        %6881 = vmatmul.bf16.gmra.mxu0 %v6592
        %v6882 = vpop.f32.mrf.mxu0
        %v6883 = vadd.f32 0.0, %v6882
        %v6884 = vpop.f32.mrf.mxu0
        %6885 = vmatmul.bf16.gmra.mxu0 %v6595
        %v6886 = vpop.f32.mrf.mxu0
        %v6887 = vadd.f32 0.0, %v6886
        %v6888 = vpop.f32.mrf.mxu0
        %6889 = vmatmul.bf16.gmra.mxu0 %v6598
        %v6890 = vpop.f32.mrf.mxu0
        %v6891 = vadd.f32 0.0, %v6890
        %v6892 = vpop.f32.mrf.mxu0
        %6893 = vmatmul.bf16.gmra.mxu0 %v6601
        %v6894 = vpop.f32.mrf.mxu0
        %v6895 = vadd.f32 0.0, %v6894
        %v6896 = vpop.f32.mrf.mxu0
        %6897 = vmatmul.bf16.gmra.mxu0 %v6604
        %v6898 = vpop.f32.mrf.mxu0
        %v6899 = vadd.f32 0.0, %v6898
        %v6900 = vpop.f32.mrf.mxu0
        %6901 = vmatmul.bf16.gmra.mxu0 %v6607
        %v6902 = vpop.f32.mrf.mxu0
        %v6903 = vadd.f32 0.0, %v6902
        %v6904 = vpop.f32.mrf.mxu0
        %6905 = vmatmul.bf16.gmra.mxu0 %v6610
        %v6906 = vpop.f32.mrf.mxu0
        %v6907 = vadd.f32 0.0, %v6906
        %v6908 = vpop.f32.mrf.mxu0
        %6909 = vmatmul.bf16.gmra.mxu0 %v6613
        %v6910 = vpop.f32.mrf.mxu0
        %v6911 = vadd.f32 0.0, %v6910
        %v6912 = vpop.f32.mrf.mxu0
        %6913 = vmatmul.bf16.gmra.mxu0 %v6616
        %v6914 = vpop.f32.mrf.mxu0
        %v6915 = vadd.f32 0.0, %v6914
        %v6916 = vpop.f32.mrf.mxu0
        %6917 = vmatmul.bf16.gmra.mxu0 %v6619
        %v6918 = vpop.f32.mrf.mxu0
        %v6919 = vadd.f32 0.0, %v6918
        %v6920 = vpop.f32.mrf.mxu0
        %6921 = vmatmul.bf16.gmra.mxu0 %v6622
        %v6922 = vpop.f32.mrf.mxu0
        %v6923 = vadd.f32 0.0, %v6922
        %v6924 = vpop.f32.mrf.mxu0
        %6925 = vmatmul.bf16.gmra.mxu0 %v6625
        %v6926 = vpop.f32.mrf.mxu0
        %v6927 = vadd.f32 0.0, %v6926
        %v6928 = vpop.f32.mrf.mxu0
        %6929 = vdwg.mxu0
        %v6958 = vrot.slane %v6819, 1
        %v6959 = vrot.slane %v6823, 1
        %v6960 = vrot.slane %v6827, 1
        %v6961 = vrot.slane %v6831, 1
        %v6962 = vrot.slane %v6835, 1
        %v6963 = vrot.slane %v6839, 1
        %v6964 = vrot.slane %v6843, 1
        %v6965 = vrot.slane %v6847, 1
        %v6966 = vrot.slane %v6851, 1
        %v6967 = vrot.slane %v6855, 1
        %v6968 = vrot.slane %v6859, 1
        %v6969 = vrot.slane %v6863, 1
        %v6970 = vrot.slane %v6867, 1
        %v6971 = vrot.slane %v6871, 1
        %v6972 = vrot.slane %v6875, 1
        %v6973 = vrot.slane %v6879, 1
        %v6974 = vrot.slane %v6883, 1
        %v6975 = vrot.slane %v6887, 1
        %v6976 = vrot.slane %v6891, 1
        %v6977 = vrot.slane %v6895, 1
        %v6978 = vrot.slane %v6899, 1
        %v6979 = vrot.slane %v6903, 1
        %v6980 = vrot.slane %v6907, 1
        %v6981 = vrot.slane %v6911, 1
        %v6982 = vrot.slane %v6915, 1
        %v6983 = vrot.slane %v6919, 1
        %v6984 = vrot.slane %v6923, 1
        %v6985 = vrot.slane %v6927, 1
        %v7014 = vadd.f32 %v6748, %v6958
        %v7015 = vadd.f32 %v6749, %v6959
        %v7016 = vadd.f32 %v6750, %v6960
        %v7017 = vadd.f32 %v6751, %v6961
        %v7018 = vadd.f32 %v6752, %v6962
        %v7019 = vadd.f32 %v6753, %v6963
        %v7020 = vadd.f32 %v6754, %v6964
        %v7021 = vadd.f32 %v6755, %v6965
        %v7022 = vadd.f32 %v6756, %v6966
        %v7023 = vadd.f32 %v6757, %v6967
        %v7024 = vadd.f32 %v6758, %v6968
        %v7025 = vadd.f32 %v6759, %v6969
        %v7026 = vadd.f32 %v6760, %v6970
        %v7027 = vadd.f32 %v6761, %v6971
        %v7028 = vadd.f32 %v6762, %v6972
        %v7029 = vadd.f32 %v6763, %v6973
        %v7030 = vadd.f32 %v6764, %v6974
        %v7031 = vadd.f32 %v6765, %v6975
        %v7032 = vadd.f32 %v6766, %v6976
        %v7033 = vadd.f32 %v6767, %v6977
        %v7034 = vadd.f32 %v6768, %v6978
        %v7035 = vadd.f32 %v6769, %v6979
        %v7036 = vadd.f32 %v6770, %v6980
        %v7037 = vadd.f32 %v6771, %v6981
        %v7038 = vadd.f32 %v6772, %v6982
        %v7039 = vadd.f32 %v6773, %v6983
        %v7040 = vadd.f32 %v6774, %v6984
        %v7041 = vadd.f32 %v6775, %v6985
        %s7042 = scalar_lea.vmem %s3, 256
        %v7043 = vld [vmem:[%s7042] sm:$0xf]
        %v7044 = vld [vmem:[%s7042 + $0x4] sm:$0xf]
        %v7045 = vld [vmem:[%s7042 + $0x8] sm:$0xf]
        %v7046 = vld [vmem:[%s7042 + $0xc] sm:$0xf]
        %v7047 = vld [vmem:[%s7042 + $0x10] sm:$0xf]
        %v7048 = vld [vmem:[%s7042 + $0x14] sm:$0xf]
        %v7049 = vld [vmem:[%s7042 + $0x18] sm:$0xf]
        %v7050 = vld [vmem:[%s7042 + $0x1c] sm:$0xf]
        %v7059 = vunpack.c.l.b16 %v7043
        %v7060 = vunpack.c.l.b16 %v7044
        %v7061 = vunpack.c.l.b16 %v7045
        %v7062 = vunpack.c.l.b16 %v7046
        %v7063 = vunpack.c.l.b16 %v7047
        %v7064 = vunpack.c.l.b16 %v7048
        %v7065 = vunpack.c.l.b16 %v7049
        %v7066 = vunpack.c.l.b16 %v7050
        %v7067 = vpack.c.b16 %v7060, %v7059
        %v7068 = vpack.c.b16 %v7062, %v7061
        %v7069 = vpack.c.b16 %v7064, %v7063
        %v7070 = vpack.c.b16 %v7066, %v7065
        %7075 = vmatpush.bf16.msra.mxu0 0
        %7076 = vmatpush.bf16.msra.mxu0 0
        %7077 = vmatpush.bf16.msra.mxu0 0
        %7078 = vmatpush.bf16.msra.mxu0 0
        %7079 = vmatpush.bf16.msra.mxu0 %v7070
        %7080 = vmatpush.bf16.msra.mxu0 %v7069
        %7081 = vmatpush.bf16.msra.mxu0 %v7068
        %7082 = vmatpush.bf16.msra.mxu0 %v7067
        %7083 = vmatmul.bf16.gmra.mxu0 %v6544
        %v7084 = vpop.f32.mrf.mxu0
        %v7085 = vadd.f32 0.0, %v7084
        %v7086 = vpop.f32.mrf.mxu0
        %v7087 = vadd.f32 0.0, %v7086
        %7088 = vmatmul.bf16.gmra.mxu0 %v6547
        %v7089 = vpop.f32.mrf.mxu0
        %v7090 = vadd.f32 0.0, %v7089
        %v7091 = vpop.f32.mrf.mxu0
        %v7092 = vadd.f32 0.0, %v7091
        %7093 = vmatmul.bf16.gmra.mxu0 %v6550
        %v7094 = vpop.f32.mrf.mxu0
        %v7095 = vadd.f32 0.0, %v7094
        %v7096 = vpop.f32.mrf.mxu0
        %v7097 = vadd.f32 0.0, %v7096
        %7098 = vmatmul.bf16.gmra.mxu0 %v6553
        %v7099 = vpop.f32.mrf.mxu0
        %v7100 = vadd.f32 0.0, %v7099
        %v7101 = vpop.f32.mrf.mxu0
        %v7102 = vadd.f32 0.0, %v7101
        %7103 = vmatmul.bf16.gmra.mxu0 %v6556
        %v7104 = vpop.f32.mrf.mxu0
        %v7105 = vadd.f32 0.0, %v7104
        %v7106 = vpop.f32.mrf.mxu0
        %v7107 = vadd.f32 0.0, %v7106
        %7108 = vmatmul.bf16.gmra.mxu0 %v6559
        %v7109 = vpop.f32.mrf.mxu0
        %v7110 = vadd.f32 0.0, %v7109
        %v7111 = vpop.f32.mrf.mxu0
        %v7112 = vadd.f32 0.0, %v7111
        %7113 = vmatmul.bf16.gmra.mxu0 %v6562
        %v7114 = vpop.f32.mrf.mxu0
        %v7115 = vadd.f32 0.0, %v7114
        %v7116 = vpop.f32.mrf.mxu0
        %v7117 = vadd.f32 0.0, %v7116
        %7118 = vmatmul.bf16.gmra.mxu0 %v6565
        %v7119 = vpop.f32.mrf.mxu0
        %v7120 = vadd.f32 0.0, %v7119
        %v7121 = vpop.f32.mrf.mxu0
        %v7122 = vadd.f32 0.0, %v7121
        %7123 = vmatmul.bf16.gmra.mxu0 %v6568
        %v7124 = vpop.f32.mrf.mxu0
        %v7125 = vadd.f32 0.0, %v7124
        %v7126 = vpop.f32.mrf.mxu0
        %v7127 = vadd.f32 0.0, %v7126
        %7128 = vmatmul.bf16.gmra.mxu0 %v6571
        %v7129 = vpop.f32.mrf.mxu0
        %v7130 = vadd.f32 0.0, %v7129
        %v7131 = vpop.f32.mrf.mxu0
        %v7132 = vadd.f32 0.0, %v7131
        %7133 = vmatmul.bf16.gmra.mxu0 %v6574
        %v7134 = vpop.f32.mrf.mxu0
        %v7135 = vadd.f32 0.0, %v7134
        %v7136 = vpop.f32.mrf.mxu0
        %v7137 = vadd.f32 0.0, %v7136
        %7138 = vmatmul.bf16.gmra.mxu0 %v6577
        %v7139 = vpop.f32.mrf.mxu0
        %v7140 = vadd.f32 0.0, %v7139
        %v7141 = vpop.f32.mrf.mxu0
        %v7142 = vadd.f32 0.0, %v7141
        %7143 = vmatmul.bf16.gmra.mxu0 %v6580
        %v7144 = vpop.f32.mrf.mxu0
        %v7145 = vadd.f32 0.0, %v7144
        %v7146 = vpop.f32.mrf.mxu0
        %v7147 = vadd.f32 0.0, %v7146
        %7148 = vmatmul.bf16.gmra.mxu0 %v6583
        %v7149 = vpop.f32.mrf.mxu0
        %v7150 = vadd.f32 0.0, %v7149
        %v7151 = vpop.f32.mrf.mxu0
        %v7152 = vadd.f32 0.0, %v7151
        %7153 = vmatmul.bf16.gmra.mxu0 %v6586
        %v7154 = vpop.f32.mrf.mxu0
        %v7155 = vadd.f32 0.0, %v7154
        %v7156 = vpop.f32.mrf.mxu0
        %v7157 = vadd.f32 0.0, %v7156
        %7158 = vmatmul.bf16.gmra.mxu0 %v6589
        %v7159 = vpop.f32.mrf.mxu0
        %v7160 = vadd.f32 0.0, %v7159
        %v7161 = vpop.f32.mrf.mxu0
        %v7162 = vadd.f32 0.0, %v7161
        %7163 = vmatmul.bf16.gmra.mxu0 %v6592
        %v7164 = vpop.f32.mrf.mxu0
        %v7165 = vadd.f32 0.0, %v7164
        %v7166 = vpop.f32.mrf.mxu0
        %v7167 = vadd.f32 0.0, %v7166
        %7168 = vmatmul.bf16.gmra.mxu0 %v6595
        %v7169 = vpop.f32.mrf.mxu0
        %v7170 = vadd.f32 0.0, %v7169
        %v7171 = vpop.f32.mrf.mxu0
        %v7172 = vadd.f32 0.0, %v7171
        %7173 = vmatmul.bf16.gmra.mxu0 %v6598
        %v7174 = vpop.f32.mrf.mxu0
        %v7175 = vadd.f32 0.0, %v7174
        %v7176 = vpop.f32.mrf.mxu0
        %v7177 = vadd.f32 0.0, %v7176
        %7178 = vmatmul.bf16.gmra.mxu0 %v6601
        %v7179 = vpop.f32.mrf.mxu0
        %v7180 = vadd.f32 0.0, %v7179
        %v7181 = vpop.f32.mrf.mxu0
        %v7182 = vadd.f32 0.0, %v7181
        %7183 = vmatmul.bf16.gmra.mxu0 %v6604
        %v7184 = vpop.f32.mrf.mxu0
        %v7185 = vadd.f32 0.0, %v7184
        %v7186 = vpop.f32.mrf.mxu0
        %v7187 = vadd.f32 0.0, %v7186
        %7188 = vmatmul.bf16.gmra.mxu0 %v6607
        %v7189 = vpop.f32.mrf.mxu0
        %v7190 = vadd.f32 0.0, %v7189
        %v7191 = vpop.f32.mrf.mxu0
        %v7192 = vadd.f32 0.0, %v7191
        %7193 = vmatmul.bf16.gmra.mxu0 %v6610
        %v7194 = vpop.f32.mrf.mxu0
        %v7195 = vadd.f32 0.0, %v7194
        %v7196 = vpop.f32.mrf.mxu0
        %v7197 = vadd.f32 0.0, %v7196
        %7198 = vmatmul.bf16.gmra.mxu0 %v6613
        %v7199 = vpop.f32.mrf.mxu0
        %v7200 = vadd.f32 0.0, %v7199
        %v7201 = vpop.f32.mrf.mxu0
        %v7202 = vadd.f32 0.0, %v7201
        %7203 = vmatmul.bf16.gmra.mxu0 %v6616
        %v7204 = vpop.f32.mrf.mxu0
        %v7205 = vadd.f32 0.0, %v7204
        %v7206 = vpop.f32.mrf.mxu0
        %v7207 = vadd.f32 0.0, %v7206
        %7208 = vmatmul.bf16.gmra.mxu0 %v6619
        %v7209 = vpop.f32.mrf.mxu0
        %v7210 = vadd.f32 0.0, %v7209
        %v7211 = vpop.f32.mrf.mxu0
        %v7212 = vadd.f32 0.0, %v7211
        %7213 = vmatmul.bf16.gmra.mxu0 %v6622
        %v7214 = vpop.f32.mrf.mxu0
        %v7215 = vadd.f32 0.0, %v7214
        %v7216 = vpop.f32.mrf.mxu0
        %v7217 = vadd.f32 0.0, %v7216
        %7218 = vmatmul.bf16.gmra.mxu0 %v6625
        %v7219 = vpop.f32.mrf.mxu0
        %v7220 = vadd.f32 0.0, %v7219
        %v7221 = vpop.f32.mrf.mxu0
        %v7222 = vadd.f32 0.0, %v7221
        %7223 = vdwg.mxu0
        %v7280 = vrot.slane %v7085, 2
        %v7281 = vrot.slane %v7087, 2
        %v7282 = vsel %vm5066, %v7280, %v7281
        %v7283 = vrot.slane %v7090, 2
        %v7284 = vrot.slane %v7092, 2
        %v7285 = vsel %vm5066, %v7283, %v7284
        %v7286 = vrot.slane %v7095, 2
        %v7287 = vrot.slane %v7097, 2
        %v7288 = vsel %vm5066, %v7286, %v7287
        %v7289 = vrot.slane %v7100, 2
        %v7290 = vrot.slane %v7102, 2
        %v7291 = vsel %vm5066, %v7289, %v7290
        %v7292 = vrot.slane %v7105, 2
        %v7293 = vrot.slane %v7107, 2
        %v7294 = vsel %vm5066, %v7292, %v7293
        %v7295 = vrot.slane %v7110, 2
        %v7296 = vrot.slane %v7112, 2
        %v7297 = vsel %vm5066, %v7295, %v7296
        %v7298 = vrot.slane %v7115, 2
        %v7299 = vrot.slane %v7117, 2
        %v7300 = vsel %vm5066, %v7298, %v7299
        %v7301 = vrot.slane %v7120, 2
        %v7302 = vrot.slane %v7122, 2
        %v7303 = vsel %vm5066, %v7301, %v7302
        %v7304 = vrot.slane %v7125, 2
        %v7305 = vrot.slane %v7127, 2
        %v7306 = vsel %vm5066, %v7304, %v7305
        %v7307 = vrot.slane %v7130, 2
        %v7308 = vrot.slane %v7132, 2
        %v7309 = vsel %vm5066, %v7307, %v7308
        %v7310 = vrot.slane %v7135, 2
        %v7311 = vrot.slane %v7137, 2
        %v7312 = vsel %vm5066, %v7310, %v7311
        %v7313 = vrot.slane %v7140, 2
        %v7314 = vrot.slane %v7142, 2
        %v7315 = vsel %vm5066, %v7313, %v7314
        %v7316 = vrot.slane %v7145, 2
        %v7317 = vrot.slane %v7147, 2
        %v7318 = vsel %vm5066, %v7316, %v7317
        %v7319 = vrot.slane %v7150, 2
        %v7320 = vrot.slane %v7152, 2
        %v7321 = vsel %vm5066, %v7319, %v7320
        %v7322 = vrot.slane %v7155, 2
        %v7323 = vrot.slane %v7157, 2
        %v7324 = vsel %vm5066, %v7322, %v7323
        %v7325 = vrot.slane %v7160, 2
        %v7326 = vrot.slane %v7162, 2
        %v7327 = vsel %vm5066, %v7325, %v7326
        %v7328 = vrot.slane %v7165, 2
        %v7329 = vrot.slane %v7167, 2
        %v7330 = vsel %vm5066, %v7328, %v7329
        %v7331 = vrot.slane %v7170, 2
        %v7332 = vrot.slane %v7172, 2
        %v7333 = vsel %vm5066, %v7331, %v7332
        %v7334 = vrot.slane %v7175, 2
        %v7335 = vrot.slane %v7177, 2
        %v7336 = vsel %vm5066, %v7334, %v7335
        %v7337 = vrot.slane %v7180, 2
        %v7338 = vrot.slane %v7182, 2
        %v7339 = vsel %vm5066, %v7337, %v7338
        %v7340 = vrot.slane %v7185, 2
        %v7341 = vrot.slane %v7187, 2
        %v7342 = vsel %vm5066, %v7340, %v7341
        %v7343 = vrot.slane %v7190, 2
        %v7344 = vrot.slane %v7192, 2
        %v7345 = vsel %vm5066, %v7343, %v7344
        %v7346 = vrot.slane %v7195, 2
        %v7347 = vrot.slane %v7197, 2
        %v7348 = vsel %vm5066, %v7346, %v7347
        %v7349 = vrot.slane %v7200, 2
        %v7350 = vrot.slane %v7202, 2
        %v7351 = vsel %vm5066, %v7349, %v7350
        %v7352 = vrot.slane %v7205, 2
        %v7353 = vrot.slane %v7207, 2
        %v7354 = vsel %vm5066, %v7352, %v7353
        %v7355 = vrot.slane %v7210, 2
        %v7356 = vrot.slane %v7212, 2
        %v7357 = vsel %vm5066, %v7355, %v7356
        %v7358 = vrot.slane %v7215, 2
        %v7359 = vrot.slane %v7217, 2
        %v7360 = vsel %vm5066, %v7358, %v7359
        %v7361 = vrot.slane %v7220, 2
        %v7362 = vrot.slane %v7222, 2
        %v7363 = vsel %vm5066, %v7361, %v7362
        %v7392 = vadd.f32 %v7014, %v7282
        %v7393 = vadd.f32 %v7015, %v7285
        %v7394 = vadd.f32 %v7016, %v7288
        %v7395 = vadd.f32 %v7017, %v7291
        %v7396 = vadd.f32 %v7018, %v7294
        %v7397 = vadd.f32 %v7019, %v7297
        %v7398 = vadd.f32 %v7020, %v7300
        %v7399 = vadd.f32 %v7021, %v7303
        %v7400 = vadd.f32 %v7022, %v7306
        %v7401 = vadd.f32 %v7023, %v7309
        %v7402 = vadd.f32 %v7024, %v7312
        %v7403 = vadd.f32 %v7025, %v7315
        %v7404 = vadd.f32 %v7026, %v7318
        %v7405 = vadd.f32 %v7027, %v7321
        %v7406 = vadd.f32 %v7028, %v7324
        %v7407 = vadd.f32 %v7029, %v7327
        %v7408 = vadd.f32 %v7030, %v7330
        %v7409 = vadd.f32 %v7031, %v7333
        %v7410 = vadd.f32 %v7032, %v7336
        %v7411 = vadd.f32 %v7033, %v7339
        %v7412 = vadd.f32 %v7034, %v7342
        %v7413 = vadd.f32 %v7035, %v7345
        %v7414 = vadd.f32 %v7036, %v7348
        %v7415 = vadd.f32 %v7037, %v7351
        %v7416 = vadd.f32 %v7038, %v7354
        %v7417 = vadd.f32 %v7039, %v7357
        %v7418 = vadd.f32 %v7040, %v7360
        %v7419 = vadd.f32 %v7041, %v7363
        %7448 = vrot.lane.b32.xlu0 %v7392, 96
        %v7449 = vpop.permute.xlu0 %7448
        %7450 = vrot.lane.b32.xlu0 %v7393, 96
        %v7451 = vpop.permute.xlu0 %7450
        %7452 = vrot.lane.b32.xlu0 %v7394, 96
        %v7453 = vpop.permute.xlu0 %7452
        %7454 = vrot.lane.b32.xlu0 %v7395, 96
        %v7455 = vpop.permute.xlu0 %7454
        %7456 = vrot.lane.b32.xlu0 %v7396, 96
        %v7457 = vpop.permute.xlu0 %7456
        %7458 = vrot.lane.b32.xlu0 %v7397, 96
        %v7459 = vpop.permute.xlu0 %7458
        %7460 = vrot.lane.b32.xlu0 %v7398, 96
        %v7461 = vpop.permute.xlu0 %7460
        %7462 = vrot.lane.b32.xlu0 %v7399, 96
        %v7463 = vpop.permute.xlu0 %7462
        %7464 = vrot.lane.b32.xlu0 %v7400, 96
        %v7465 = vpop.permute.xlu0 %7464
        %7466 = vrot.lane.b32.xlu0 %v7401, 96
        %v7467 = vpop.permute.xlu0 %7466
        %7468 = vrot.lane.b32.xlu0 %v7402, 96
        %v7469 = vpop.permute.xlu0 %7468
        %7470 = vrot.lane.b32.xlu0 %v7403, 96
        %v7471 = vpop.permute.xlu0 %7470
        %7472 = vrot.lane.b32.xlu0 %v7404, 96
        %v7473 = vpop.permute.xlu0 %7472
        %7474 = vrot.lane.b32.xlu0 %v7405, 96
        %v7475 = vpop.permute.xlu0 %7474
        %7476 = vrot.lane.b32.xlu0 %v7406, 96
        %v7477 = vpop.permute.xlu0 %7476
        %7478 = vrot.lane.b32.xlu0 %v7407, 96
        %v7479 = vpop.permute.xlu0 %7478
        %7480 = vrot.lane.b32.xlu0 %v7408, 96
        %v7481 = vpop.permute.xlu0 %7480
        %7482 = vrot.lane.b32.xlu0 %v7409, 96
        %v7483 = vpop.permute.xlu0 %7482
        %7484 = vrot.lane.b32.xlu0 %v7410, 96
        %v7485 = vpop.permute.xlu0 %7484
        %7486 = vrot.lane.b32.xlu0 %v7411, 96
        %v7487 = vpop.permute.xlu0 %7486
        %7488 = vrot.lane.b32.xlu0 %v7412, 96
        %v7489 = vpop.permute.xlu0 %7488
        %7490 = vrot.lane.b32.xlu0 %v7413, 96
        %v7491 = vpop.permute.xlu0 %7490
        %7492 = vrot.lane.b32.xlu0 %v7414, 96
        %v7493 = vpop.permute.xlu0 %7492
        %7494 = vrot.lane.b32.xlu0 %v7415, 96
        %v7495 = vpop.permute.xlu0 %7494
        %7496 = vrot.lane.b32.xlu0 %v7416, 96
        %v7497 = vpop.permute.xlu0 %7496
        %7498 = vrot.lane.b32.xlu0 %v7417, 96
        %v7499 = vpop.permute.xlu0 %7498
        %7500 = vrot.lane.b32.xlu0 %v7418, 96
        %v7501 = vpop.permute.xlu0 %7500
        %7502 = vrot.lane.b32.xlu0 %v7419, 96
        %v7503 = vpop.permute.xlu0 %7502
        %v7532 = vmax.f32 %v7392, %v7449
        %v7533 = vmax.f32 %v7393, %v7451
        %v7534 = vmax.f32 %v7394, %v7453
        %v7535 = vmax.f32 %v7395, %v7455
        %v7536 = vmax.f32 %v7396, %v7457
        %v7537 = vmax.f32 %v7397, %v7459
        %v7538 = vmax.f32 %v7398, %v7461
        %v7539 = vmax.f32 %v7399, %v7463
        %v7540 = vmax.f32 %v7400, %v7465
        %v7541 = vmax.f32 %v7401, %v7467
        %v7542 = vmax.f32 %v7402, %v7469
        %v7543 = vmax.f32 %v7403, %v7471
        %v7544 = vmax.f32 %v7404, %v7473
        %v7545 = vmax.f32 %v7405, %v7475
        %v7546 = vmax.f32 %v7406, %v7477
        %v7547 = vmax.f32 %v7407, %v7479
        %v7548 = vmax.f32 %v7408, %v7481
        %v7549 = vmax.f32 %v7409, %v7483
        %v7550 = vmax.f32 %v7410, %v7485
        %v7551 = vmax.f32 %v7411, %v7487
        %v7552 = vmax.f32 %v7412, %v7489
        %v7553 = vmax.f32 %v7413, %v7491
        %v7554 = vmax.f32 %v7414, %v7493
        %v7555 = vmax.f32 %v7415, %v7495
        %v7556 = vmax.f32 %v7416, %v7497
        %v7557 = vmax.f32 %v7417, %v7499
        %v7558 = vmax.f32 %v7418, %v7501
        %v7559 = vmax.f32 %v7419, %v7503
        %7588 = vrot.lane.b32.xlu0 %v7532, 64
        %v7589 = vpop.permute.xlu0 %7588
        %7590 = vrot.lane.b32.xlu0 %v7533, 64
        %v7591 = vpop.permute.xlu0 %7590
        %7592 = vrot.lane.b32.xlu0 %v7534, 64
        %v7593 = vpop.permute.xlu0 %7592
        %7594 = vrot.lane.b32.xlu0 %v7535, 64
        %v7595 = vpop.permute.xlu0 %7594
        %7596 = vrot.lane.b32.xlu0 %v7536, 64
        %v7597 = vpop.permute.xlu0 %7596
        %7598 = vrot.lane.b32.xlu0 %v7537, 64
        %v7599 = vpop.permute.xlu0 %7598
        %7600 = vrot.lane.b32.xlu0 %v7538, 64
        %v7601 = vpop.permute.xlu0 %7600
        %7602 = vrot.lane.b32.xlu0 %v7539, 64
        %v7603 = vpop.permute.xlu0 %7602
        %7604 = vrot.lane.b32.xlu0 %v7540, 64
        %v7605 = vpop.permute.xlu0 %7604
        %7606 = vrot.lane.b32.xlu0 %v7541, 64
        %v7607 = vpop.permute.xlu0 %7606
        %7608 = vrot.lane.b32.xlu0 %v7542, 64
        %v7609 = vpop.permute.xlu0 %7608
        %7610 = vrot.lane.b32.xlu0 %v7543, 64
        %v7611 = vpop.permute.xlu0 %7610
        %7612 = vrot.lane.b32.xlu0 %v7544, 64
        %v7613 = vpop.permute.xlu0 %7612
        %7614 = vrot.lane.b32.xlu0 %v7545, 64
        %v7615 = vpop.permute.xlu0 %7614
        %7616 = vrot.lane.b32.xlu0 %v7546, 64
        %v7617 = vpop.permute.xlu0 %7616
        %7618 = vrot.lane.b32.xlu0 %v7547, 64
        %v7619 = vpop.permute.xlu0 %7618
        %7620 = vrot.lane.b32.xlu0 %v7548, 64
        %v7621 = vpop.permute.xlu0 %7620
        %7622 = vrot.lane.b32.xlu0 %v7549, 64
        %v7623 = vpop.permute.xlu0 %7622
        %7624 = vrot.lane.b32.xlu0 %v7550, 64
        %v7625 = vpop.permute.xlu0 %7624
        %7626 = vrot.lane.b32.xlu0 %v7551, 64
        %v7627 = vpop.permute.xlu0 %7626
        %7628 = vrot.lane.b32.xlu0 %v7552, 64
        %v7629 = vpop.permute.xlu0 %7628
        %7630 = vrot.lane.b32.xlu0 %v7553, 64
        %v7631 = vpop.permute.xlu0 %7630
        %7632 = vrot.lane.b32.xlu0 %v7554, 64
        %v7633 = vpop.permute.xlu0 %7632
        %7634 = vrot.lane.b32.xlu0 %v7555, 64
        %v7635 = vpop.permute.xlu0 %7634
        %7636 = vrot.lane.b32.xlu0 %v7556, 64
        %v7637 = vpop.permute.xlu0 %7636
        %7638 = vrot.lane.b32.xlu0 %v7557, 64
        %v7639 = vpop.permute.xlu0 %7638
        %7640 = vrot.lane.b32.xlu0 %v7558, 64
        %v7641 = vpop.permute.xlu0 %7640
        %7642 = vrot.lane.b32.xlu0 %v7559, 64
        %v7643 = vpop.permute.xlu0 %7642
        %v7672 = vmax.f32 %v7532, %v7589
        %v7673 = vmax.f32 %v7533, %v7591
        %v7674 = vmax.f32 %v7534, %v7593
        %v7675 = vmax.f32 %v7535, %v7595
        %v7676 = vmax.f32 %v7536, %v7597
        %v7677 = vmax.f32 %v7537, %v7599
        %v7678 = vmax.f32 %v7538, %v7601
        %v7679 = vmax.f32 %v7539, %v7603
        %v7680 = vmax.f32 %v7540, %v7605
        %v7681 = vmax.f32 %v7541, %v7607
        %v7682 = vmax.f32 %v7542, %v7609
        %v7683 = vmax.f32 %v7543, %v7611
        %v7684 = vmax.f32 %v7544, %v7613
        %v7685 = vmax.f32 %v7545, %v7615
        %v7686 = vmax.f32 %v7546, %v7617
        %v7687 = vmax.f32 %v7547, %v7619
        %v7688 = vmax.f32 %v7548, %v7621
        %v7689 = vmax.f32 %v7549, %v7623
        %v7690 = vmax.f32 %v7550, %v7625
        %v7691 = vmax.f32 %v7551, %v7627
        %v7692 = vmax.f32 %v7552, %v7629
        %v7693 = vmax.f32 %v7553, %v7631
        %v7694 = vmax.f32 %v7554, %v7633
        %v7695 = vmax.f32 %v7555, %v7635
        %v7696 = vmax.f32 %v7556, %v7637
        %v7697 = vmax.f32 %v7557, %v7639
        %v7698 = vmax.f32 %v7558, %v7641
        %v7699 = vmax.f32 %v7559, %v7643
        %v7700 = vld [vmem:[%s4] sm:$0x1]
        %v7702 = vperm.slane %v7700, 0
        %v7704 = vadd.f32 %v7672, %v7702
        %v7705 = vadd.f32 %v7673, %v7702
        %v7706 = vadd.f32 %v7674, %v7702
        %v7707 = vadd.f32 %v7675, %v7702
        %v7708 = vadd.f32 %v7676, %v7702
        %v7709 = vadd.f32 %v7677, %v7702
        %v7710 = vadd.f32 %v7678, %v7702
        %v7711 = vadd.f32 %v7679, %v7702
        %v7712 = vadd.f32 %v7680, %v7702
        %v7713 = vadd.f32 %v7681, %v7702
        %v7714 = vadd.f32 %v7682, %v7702
        %v7715 = vadd.f32 %v7683, %v7702
        %v7716 = vadd.f32 %v7684, %v7702
        %v7717 = vadd.f32 %v7685, %v7702
        %v7718 = vadd.f32 %v7686, %v7702
        %v7719 = vadd.f32 %v7687, %v7702
        %v7720 = vadd.f32 %v7688, %v7702
        %v7721 = vadd.f32 %v7689, %v7702
        %v7722 = vadd.f32 %v7690, %v7702
        %v7723 = vadd.f32 %v7691, %v7702
        %v7724 = vadd.f32 %v7692, %v7702
        %v7725 = vadd.f32 %v7693, %v7702
        %v7726 = vadd.f32 %v7694, %v7702
        %v7727 = vadd.f32 %v7695, %v7702
        %v7728 = vadd.f32 %v7696, %v7702
        %v7729 = vadd.f32 %v7697, %v7702
        %v7730 = vadd.f32 %v7698, %v7702
        %v7731 = vadd.f32 %v7699, %v7702
        %v7732 = vmax.f32 %v7704, 0.0
        %v7733 = vmax.f32 %v7705, 0.0
        %v7734 = vmax.f32 %v7706, 0.0
        %v7735 = vmax.f32 %v7707, 0.0
        %v7736 = vmax.f32 %v7708, 0.0
        %v7737 = vmax.f32 %v7709, 0.0
        %v7738 = vmax.f32 %v7710, 0.0
        %v7739 = vmax.f32 %v7711, 0.0
        %v7740 = vmax.f32 %v7712, 0.0
        %v7741 = vmax.f32 %v7713, 0.0
        %v7742 = vmax.f32 %v7714, 0.0
        %v7743 = vmax.f32 %v7715, 0.0
        %v7744 = vmax.f32 %v7716, 0.0
        %v7745 = vmax.f32 %v7717, 0.0
        %v7746 = vmax.f32 %v7718, 0.0
        %v7747 = vmax.f32 %v7719, 0.0
        %v7748 = vmax.f32 %v7720, 0.0
        %v7749 = vmax.f32 %v7721, 0.0
        %v7750 = vmax.f32 %v7722, 0.0
        %v7751 = vmax.f32 %v7723, 0.0
        %v7752 = vmax.f32 %v7724, 0.0
        %v7753 = vmax.f32 %v7725, 0.0
        %v7754 = vmax.f32 %v7726, 0.0
        %v7755 = vmax.f32 %v7727, 0.0
        %v7756 = vmax.f32 %v7728, 0.0
        %v7757 = vmax.f32 %v7729, 0.0
        %v7758 = vmax.f32 %v7730, 0.0
        %v7759 = vmax.f32 %v7731, 0.0
        %v7760 = vpack.c.bf16 %v7732, %v7732
        %v7761 = vpack.c.bf16 %v7733, %v7733
        %v7762 = vpack.c.bf16 %v7734, %v7734
        %v7763 = vpack.c.bf16 %v7735, %v7735
        %v7764 = vpack.c.bf16 %v7736, %v7736
        %v7765 = vpack.c.bf16 %v7737, %v7737
        %v7766 = vpack.c.bf16 %v7738, %v7738
        %v7767 = vpack.c.bf16 %v7739, %v7739
        %v7768 = vpack.c.bf16 %v7740, %v7740
        %v7769 = vpack.c.bf16 %v7741, %v7741
        %v7770 = vpack.c.bf16 %v7742, %v7742
        %v7771 = vpack.c.bf16 %v7743, %v7743
        %v7772 = vpack.c.bf16 %v7744, %v7744
        %v7773 = vpack.c.bf16 %v7745, %v7745
        %v7774 = vpack.c.bf16 %v7746, %v7746
        %v7775 = vpack.c.bf16 %v7747, %v7747
        %v7776 = vpack.c.bf16 %v7748, %v7748
        %v7777 = vpack.c.bf16 %v7749, %v7749
        %v7778 = vpack.c.bf16 %v7750, %v7750
        %v7779 = vpack.c.bf16 %v7751, %v7751
        %v7780 = vpack.c.bf16 %v7752, %v7752
        %v7781 = vpack.c.bf16 %v7753, %v7753
        %v7782 = vpack.c.bf16 %v7754, %v7754
        %v7783 = vpack.c.bf16 %v7755, %v7755
        %v7784 = vpack.c.bf16 %v7756, %v7756
        %v7785 = vpack.c.bf16 %v7757, %v7757
        %v7786 = vpack.c.bf16 %v7758, %v7758
        %v7787 = vpack.c.bf16 %v7759, %v7759
        %v7792 = vunpack.c.l.b16 %v7760
        %v7793 = vunpack.c.l.b16 %v7767
        %v7794 = vunpack.c.l.b16 %v7774
        %v7795 = vunpack.c.l.b16 %v7781
        %v7796 = vpack.c.b16 %v7792, %v7792
        %v7797 = vpack.c.b16 %v7793, %v7793
        %v7798 = vpack.c.b16 %v7794, %v7794
        %v7799 = vpack.c.b16 %v7795, %v7795
        %v7800 = vunpack.c.l.b16 %v7796
        %v7801 = vunpack.c.l.b16 %v7797
        %v7802 = vunpack.c.l.b16 %v7798
        %v7803 = vunpack.c.l.b16 %v7799
        %v7804 = vrot.slane %v7801, 7
        %vm7805 = vcmask 1041409
        %v7806 = vsel %vm7805, %v7804, %v7800
        %v7807 = vrot.slane %v7802, 6
        %vm7808 = vcmask 1042434
        %v7809 = vsel %vm7808, %v7807, %v7806
        %v7810 = vrot.slane %v7803, 5
        %vm7811 = vcmask 1043459
        %v7812 = vsel %vm7811, %v7810, %v7809
        %v7813 = vpack.c.b16 %v7812, %v7812
        %v7814 = vrot.slane %v7800, 1
        %v7815 = vsel %vm7805, %v7801, %v7814
        %v7816 = vrot.slane %v7802, 7
        %v7817 = vsel %vm7808, %v7816, %v7815
        %v7818 = vrot.slane %v7803, 6
        %v7819 = vsel %vm7811, %v7818, %v7817
        %v7820 = vpack.c.b16 %v7819, %v7819
        %7821 = vrot.lane.b32.xlu0 %v7820, 32
        %v7822 = vpop.permute.xlu0 %7821
        %v7823 = vrot.slane %v7800, 2
        %v7824 = vrot.slane %v7801, 1
        %v7825 = vsel %vm7805, %v7824, %v7823
        %v7826 = vsel %vm7808, %v7802, %v7825
        %v7827 = vrot.slane %v7803, 7
        %v7828 = vsel %vm7811, %v7827, %v7826
        %v7829 = vpack.c.b16 %v7828, %v7828
        %7830 = vrot.lane.b32.xlu0 %v7829, 64
        %v7831 = vpop.permute.xlu0 %7830
        %v7832 = vrot.slane %v7800, 3
        %v7833 = vrot.slane %v7801, 2
        %v7834 = vsel %vm7805, %v7833, %v7832
        %v7835 = vrot.slane %v7802, 1
        %v7836 = vsel %vm7808, %v7835, %v7834
        %v7837 = vsel %vm7811, %v7803, %v7836
        %v7838 = vpack.c.b16 %v7837, %v7837
        %7839 = vrot.lane.b32.xlu0 %v7838, 96
        %v7840 = vpop.permute.xlu0 %7839
        %v7841 = vrot.slane %v7800, 4
        %v7842 = vrot.slane %v7801, 3
        %v7843 = vsel %vm7805, %v7842, %v7841
        %v7844 = vrot.slane %v7802, 2
        %v7845 = vsel %vm7808, %v7844, %v7843
        %v7846 = vrot.slane %v7803, 1
        %v7847 = vsel %vm7811, %v7846, %v7845
        %v7848 = vpack.c.b16 %v7847, %v7847
        %v7849 = vrot.slane %v7800, 5
        %v7850 = vrot.slane %v7801, 4
        %v7851 = vsel %vm7805, %v7850, %v7849
        %v7852 = vrot.slane %v7802, 3
        %v7853 = vsel %vm7808, %v7852, %v7851
        %v7854 = vrot.slane %v7803, 2
        %v7855 = vsel %vm7811, %v7854, %v7853
        %v7856 = vpack.c.b16 %v7855, %v7855
        %7857 = vrot.lane.b32.xlu0 %v7856, 32
        %v7858 = vpop.permute.xlu0 %7857
        %v7859 = vrot.slane %v7800, 6
        %v7860 = vrot.slane %v7801, 5
        %v7861 = vsel %vm7805, %v7860, %v7859
        %v7862 = vrot.slane %v7802, 4
        %v7863 = vsel %vm7808, %v7862, %v7861
        %v7864 = vrot.slane %v7803, 3
        %v7865 = vsel %vm7811, %v7864, %v7863
        %v7866 = vpack.c.b16 %v7865, %v7865
        %7867 = vrot.lane.b32.xlu0 %v7866, 64
        %v7868 = vpop.permute.xlu0 %7867
        %v7873 = vunpack.c.l.b16 %v7761
        %v7874 = vunpack.c.l.b16 %v7768
        %v7875 = vunpack.c.l.b16 %v7775
        %v7876 = vunpack.c.l.b16 %v7782
        %v7877 = vpack.c.b16 %v7873, %v7873
        %v7878 = vpack.c.b16 %v7874, %v7874
        %v7879 = vpack.c.b16 %v7875, %v7875
        %v7880 = vpack.c.b16 %v7876, %v7876
        %v7881 = vunpack.c.l.b16 %v7877
        %v7882 = vunpack.c.l.b16 %v7878
        %v7883 = vunpack.c.l.b16 %v7879
        %v7884 = vunpack.c.l.b16 %v7880
        %v7885 = vrot.slane %v7882, 7
        %v7886 = vsel %vm7805, %v7885, %v7881
        %v7887 = vrot.slane %v7883, 6
        %v7888 = vsel %vm7808, %v7887, %v7886
        %v7889 = vrot.slane %v7884, 5
        %v7890 = vsel %vm7811, %v7889, %v7888
        %v7891 = vpack.c.b16 %v7890, %v7890
        %7892 = vrot.lane.b32.xlu0 %v7891, 96
        %v7893 = vpop.permute.xlu0 %7892
        %v7894 = vrot.slane %v7881, 1
        %v7895 = vsel %vm7805, %v7882, %v7894
        %v7896 = vrot.slane %v7883, 7
        %v7897 = vsel %vm7808, %v7896, %v7895
        %v7898 = vrot.slane %v7884, 6
        %v7899 = vsel %vm7811, %v7898, %v7897
        %v7900 = vpack.c.b16 %v7899, %v7899
        %v7901 = vrot.slane %v7881, 2
        %v7902 = vrot.slane %v7882, 1
        %v7903 = vsel %vm7805, %v7902, %v7901
        %v7904 = vsel %vm7808, %v7883, %v7903
        %v7905 = vrot.slane %v7884, 7
        %v7906 = vsel %vm7811, %v7905, %v7904
        %v7907 = vpack.c.b16 %v7906, %v7906
        %7908 = vrot.lane.b32.xlu0 %v7907, 32
        %v7909 = vpop.permute.xlu0 %7908
        %v7910 = vrot.slane %v7881, 3
        %v7911 = vrot.slane %v7882, 2
        %v7912 = vsel %vm7805, %v7911, %v7910
        %v7913 = vrot.slane %v7883, 1
        %v7914 = vsel %vm7808, %v7913, %v7912
        %v7915 = vsel %vm7811, %v7884, %v7914
        %v7916 = vpack.c.b16 %v7915, %v7915
        %7917 = vrot.lane.b32.xlu0 %v7916, 64
        %v7918 = vpop.permute.xlu0 %7917
        %v7919 = vrot.slane %v7881, 4
        %v7920 = vrot.slane %v7882, 3
        %v7921 = vsel %vm7805, %v7920, %v7919
        %v7922 = vrot.slane %v7883, 2
        %v7923 = vsel %vm7808, %v7922, %v7921
        %v7924 = vrot.slane %v7884, 1
        %v7925 = vsel %vm7811, %v7924, %v7923
        %v7926 = vpack.c.b16 %v7925, %v7925
        %7927 = vrot.lane.b32.xlu0 %v7926, 96
        %v7928 = vpop.permute.xlu0 %7927
        %v7929 = vrot.slane %v7881, 5
        %v7930 = vrot.slane %v7882, 4
        %v7931 = vsel %vm7805, %v7930, %v7929
        %v7932 = vrot.slane %v7883, 3
        %v7933 = vsel %vm7808, %v7932, %v7931
        %v7934 = vrot.slane %v7884, 2
        %v7935 = vsel %vm7811, %v7934, %v7933
        %v7936 = vpack.c.b16 %v7935, %v7935
        %v7937 = vrot.slane %v7881, 6
        %v7938 = vrot.slane %v7882, 5
        %v7939 = vsel %vm7805, %v7938, %v7937
        %v7940 = vrot.slane %v7883, 4
        %v7941 = vsel %vm7808, %v7940, %v7939
        %v7942 = vrot.slane %v7884, 3
        %v7943 = vsel %vm7811, %v7942, %v7941
        %v7944 = vpack.c.b16 %v7943, %v7943
        %7945 = vrot.lane.b32.xlu0 %v7944, 32
        %v7946 = vpop.permute.xlu0 %7945
        %v7951 = vunpack.c.l.b16 %v7762
        %v7952 = vunpack.c.l.b16 %v7769
        %v7953 = vunpack.c.l.b16 %v7776
        %v7954 = vunpack.c.l.b16 %v7783
        %v7955 = vpack.c.b16 %v7951, %v7951
        %v7956 = vpack.c.b16 %v7952, %v7952
        %v7957 = vpack.c.b16 %v7953, %v7953
        %v7958 = vpack.c.b16 %v7954, %v7954
        %v7959 = vunpack.c.l.b16 %v7955
        %v7960 = vunpack.c.l.b16 %v7956
        %v7961 = vunpack.c.l.b16 %v7957
        %v7962 = vunpack.c.l.b16 %v7958
        %v7963 = vrot.slane %v7960, 7
        %v7964 = vsel %vm7805, %v7963, %v7959
        %v7965 = vrot.slane %v7961, 6
        %v7966 = vsel %vm7808, %v7965, %v7964
        %v7967 = vrot.slane %v7962, 5
        %v7968 = vsel %vm7811, %v7967, %v7966
        %v7969 = vpack.c.b16 %v7968, %v7968
        %7970 = vrot.lane.b32.xlu0 %v7969, 64
        %v7971 = vpop.permute.xlu0 %7970
        %v7972 = vrot.slane %v7959, 1
        %v7973 = vsel %vm7805, %v7960, %v7972
        %v7974 = vrot.slane %v7961, 7
        %v7975 = vsel %vm7808, %v7974, %v7973
        %v7976 = vrot.slane %v7962, 6
        %v7977 = vsel %vm7811, %v7976, %v7975
        %v7978 = vpack.c.b16 %v7977, %v7977
        %7979 = vrot.lane.b32.xlu0 %v7978, 96
        %v7980 = vpop.permute.xlu0 %7979
        %vm7981 = vcmask 261120
        %v7984 = vsel %vm7981, %v7813, %v7822
        %v7986 = vsel %vm4328, %v7984, %v7831
        %vm7987 = vcmask 785408
        %v7989 = vsel %vm7987, %v7986, %v7840
        %v7993 = vsel %vm7981, %v7848, %v7858
        %v7995 = vsel %vm4328, %v7993, %v7868
        %v7997 = vsel %vm7987, %v7995, %v7893
        %v8001 = vsel %vm7981, %v7900, %v7909
        %v8003 = vsel %vm4328, %v8001, %v7918
        %v8005 = vsel %vm7987, %v8003, %v7928
        %v8009 = vsel %vm7981, %v7936, %v7946
        %v8011 = vsel %vm4328, %v8009, %v7971
        %v8013 = vsel %vm7987, %v8011, %v7980
        %v8015 = vsel %vm7811, %v7963, %v7959
        %vm8016 = vcmask 1044484
        %v8017 = vsel %vm8016, %v7965, %v8015
        %vm8018 = vcmask 1045509
        %v8019 = vsel %vm8018, %v7967, %v8017
        %v8020 = vpack.c.b16 %v8019, %v8019
        %v8021 = vsel %vm7811, %v7960, %v7972
        %v8022 = vsel %vm8016, %v7974, %v8021
        %v8023 = vsel %vm8018, %v7976, %v8022
        %v8024 = vpack.c.b16 %v8023, %v8023
        %8025 = vrot.lane.b32.xlu0 %v8024, 32
        %v8026 = vpop.permute.xlu0 %8025
        %v8027 = vrot.slane %v7959, 2
        %v8028 = vrot.slane %v7960, 1
        %v8029 = vsel %vm7811, %v8028, %v8027
        %v8030 = vsel %vm8016, %v7961, %v8029
        %v8031 = vrot.slane %v7962, 7
        %v8032 = vsel %vm8018, %v8031, %v8030
        %v8033 = vpack.c.b16 %v8032, %v8032
        %8034 = vrot.lane.b32.xlu0 %v8033, 64
        %v8035 = vpop.permute.xlu0 %8034
        %v8036 = vrot.slane %v7959, 3
        %v8037 = vrot.slane %v7960, 2
        %v8038 = vsel %vm7811, %v8037, %v8036
        %v8039 = vrot.slane %v7961, 1
        %v8040 = vsel %vm8016, %v8039, %v8038
        %v8041 = vsel %vm8018, %v7962, %v8040
        %v8042 = vpack.c.b16 %v8041, %v8041
        %8043 = vrot.lane.b32.xlu0 %v8042, 96
        %v8044 = vpop.permute.xlu0 %8043
        %v8045 = vrot.slane %v7959, 4
        %v8046 = vrot.slane %v7960, 3
        %v8047 = vsel %vm7811, %v8046, %v8045
        %v8048 = vrot.slane %v7961, 2
        %v8049 = vsel %vm8016, %v8048, %v8047
        %v8050 = vrot.slane %v7962, 1
        %v8051 = vsel %vm8018, %v8050, %v8049
        %v8052 = vpack.c.b16 %v8051, %v8051
        %v8057 = vunpack.c.l.b16 %v7763
        %v8058 = vunpack.c.l.b16 %v7770
        %v8059 = vunpack.c.l.b16 %v7777
        %v8060 = vunpack.c.l.b16 %v7784
        %v8061 = vpack.c.b16 %v8057, %v8057
        %v8062 = vpack.c.b16 %v8058, %v8058
        %v8063 = vpack.c.b16 %v8059, %v8059
        %v8064 = vpack.c.b16 %v8060, %v8060
        %v8065 = vunpack.c.l.b16 %v8061
        %v8066 = vunpack.c.l.b16 %v8062
        %v8067 = vunpack.c.l.b16 %v8063
        %v8068 = vunpack.c.l.b16 %v8064
        %v8069 = vrot.slane %v8065, 6
        %v8070 = vrot.slane %v8066, 5
        %v8071 = vsel %vm7811, %v8070, %v8069
        %v8072 = vrot.slane %v8067, 4
        %v8073 = vsel %vm8016, %v8072, %v8071
        %v8074 = vrot.slane %v8068, 3
        %v8075 = vsel %vm8018, %v8074, %v8073
        %v8076 = vpack.c.b16 %v8075, %v8075
        %8077 = vrot.lane.b32.xlu0 %v8076, 32
        %v8078 = vpop.permute.xlu0 %8077
        %v8079 = vrot.slane %v8065, 7
        %v8080 = vrot.slane %v8066, 6
        %v8081 = vsel %vm7811, %v8080, %v8079
        %v8082 = vrot.slane %v8067, 5
        %v8083 = vsel %vm8016, %v8082, %v8081
        %v8084 = vrot.slane %v8068, 4
        %v8085 = vsel %vm8018, %v8084, %v8083
        %v8086 = vpack.c.b16 %v8085, %v8085
        %8087 = vrot.lane.b32.xlu0 %v8086, 64
        %v8088 = vpop.permute.xlu0 %8087
        %v8089 = vrot.slane %v8066, 7
        %v8090 = vsel %vm7811, %v8089, %v8065
        %v8091 = vrot.slane %v8067, 6
        %v8092 = vsel %vm8016, %v8091, %v8090
        %v8093 = vrot.slane %v8068, 5
        %v8094 = vsel %vm8018, %v8093, %v8092
        %v8095 = vpack.c.b16 %v8094, %v8094
        %8096 = vrot.lane.b32.xlu0 %v8095, 96
        %v8097 = vpop.permute.xlu0 %8096
        %v8098 = vrot.slane %v8065, 1
        %v8099 = vsel %vm7811, %v8066, %v8098
        %v8100 = vrot.slane %v8067, 7
        %v8101 = vsel %vm8016, %v8100, %v8099
        %v8102 = vrot.slane %v8068, 6
        %v8103 = vsel %vm8018, %v8102, %v8101
        %v8104 = vpack.c.b16 %v8103, %v8103
        %v8105 = vrot.slane %v8065, 2
        %v8106 = vrot.slane %v8066, 1
        %v8107 = vsel %vm7811, %v8106, %v8105
        %v8108 = vsel %vm8016, %v8067, %v8107
        %v8109 = vrot.slane %v8068, 7
        %v8110 = vsel %vm8018, %v8109, %v8108
        %v8111 = vpack.c.b16 %v8110, %v8110
        %8112 = vrot.lane.b32.xlu0 %v8111, 32
        %v8113 = vpop.permute.xlu0 %8112
        %v8114 = vrot.slane %v8065, 3
        %v8115 = vrot.slane %v8066, 2
        %v8116 = vsel %vm7811, %v8115, %v8114
        %v8117 = vrot.slane %v8067, 1
        %v8118 = vsel %vm8016, %v8117, %v8116
        %v8119 = vsel %vm8018, %v8068, %v8118
        %v8120 = vpack.c.b16 %v8119, %v8119
        %8121 = vrot.lane.b32.xlu0 %v8120, 64
        %v8122 = vpop.permute.xlu0 %8121
        %v8123 = vrot.slane %v8065, 4
        %v8124 = vrot.slane %v8066, 3
        %v8125 = vsel %vm7811, %v8124, %v8123
        %v8126 = vrot.slane %v8067, 2
        %v8127 = vsel %vm8016, %v8126, %v8125
        %v8128 = vrot.slane %v8068, 1
        %v8129 = vsel %vm8018, %v8128, %v8127
        %v8130 = vpack.c.b16 %v8129, %v8129
        %8131 = vrot.lane.b32.xlu0 %v8130, 96
        %v8132 = vpop.permute.xlu0 %8131
        %v8137 = vunpack.c.l.b16 %v7764
        %v8138 = vunpack.c.l.b16 %v7771
        %v8139 = vunpack.c.l.b16 %v7778
        %v8140 = vunpack.c.l.b16 %v7785
        %v8141 = vpack.c.b16 %v8137, %v8137
        %v8142 = vpack.c.b16 %v8138, %v8138
        %v8143 = vpack.c.b16 %v8139, %v8139
        %v8144 = vpack.c.b16 %v8140, %v8140
        %v8145 = vunpack.c.l.b16 %v8141
        %v8146 = vunpack.c.l.b16 %v8142
        %v8147 = vunpack.c.l.b16 %v8143
        %v8148 = vunpack.c.l.b16 %v8144
        %v8149 = vrot.slane %v8145, 6
        %v8150 = vrot.slane %v8146, 5
        %v8151 = vsel %vm7811, %v8150, %v8149
        %v8152 = vrot.slane %v8147, 4
        %v8153 = vsel %vm8016, %v8152, %v8151
        %v8154 = vrot.slane %v8148, 3
        %v8155 = vsel %vm8018, %v8154, %v8153
        %v8156 = vpack.c.b16 %v8155, %v8155
        %v8157 = vrot.slane %v8145, 7
        %v8158 = vrot.slane %v8146, 6
        %v8159 = vsel %vm7811, %v8158, %v8157
        %v8160 = vrot.slane %v8147, 5
        %v8161 = vsel %vm8016, %v8160, %v8159
        %v8162 = vrot.slane %v8148, 4
        %v8163 = vsel %vm8018, %v8162, %v8161
        %v8164 = vpack.c.b16 %v8163, %v8163
        %8165 = vrot.lane.b32.xlu0 %v8164, 32
        %v8166 = vpop.permute.xlu0 %8165
        %v8167 = vrot.slane %v8146, 7
        %v8168 = vsel %vm7811, %v8167, %v8145
        %v8169 = vrot.slane %v8147, 6
        %v8170 = vsel %vm8016, %v8169, %v8168
        %v8171 = vrot.slane %v8148, 5
        %v8172 = vsel %vm8018, %v8171, %v8170
        %v8173 = vpack.c.b16 %v8172, %v8172
        %8174 = vrot.lane.b32.xlu0 %v8173, 64
        %v8175 = vpop.permute.xlu0 %8174
        %v8176 = vrot.slane %v8145, 1
        %v8177 = vsel %vm7811, %v8146, %v8176
        %v8178 = vrot.slane %v8147, 7
        %v8179 = vsel %vm8016, %v8178, %v8177
        %v8180 = vrot.slane %v8148, 6
        %v8181 = vsel %vm8018, %v8180, %v8179
        %v8182 = vpack.c.b16 %v8181, %v8181
        %8183 = vrot.lane.b32.xlu0 %v8182, 96
        %v8184 = vpop.permute.xlu0 %8183
        %v8187 = vsel %vm7981, %v8020, %v8026
        %v8189 = vsel %vm4328, %v8187, %v8035
        %v8191 = vsel %vm7987, %v8189, %v8044
        %v8194 = vsel %vm7981, %v8052, %v8078
        %v8196 = vsel %vm4328, %v8194, %v8088
        %v8198 = vsel %vm7987, %v8196, %v8097
        %v8201 = vsel %vm7981, %v8104, %v8113
        %v8203 = vsel %vm4328, %v8201, %v8122
        %v8205 = vsel %vm7987, %v8203, %v8132
        %v8208 = vsel %vm7981, %v8156, %v8166
        %v8210 = vsel %vm4328, %v8208, %v8175
        %v8212 = vsel %vm7987, %v8210, %v8184
        %v8213 = vsel %vm8018, %v8167, %v8145
        %vm8214 = vcmask 1046534
        %v8215 = vsel %vm8214, %v8169, %v8213
        %vm8216 = vcmask 1047559
        %v8217 = vsel %vm8216, %v8171, %v8215
        %v8218 = vpack.c.b16 %v8217, %v8217
        %v8219 = vsel %vm8018, %v8146, %v8176
        %v8220 = vsel %vm8214, %v8178, %v8219
        %v8221 = vsel %vm8216, %v8180, %v8220
        %v8222 = vpack.c.b16 %v8221, %v8221
        %8223 = vrot.lane.b32.xlu0 %v8222, 32
        %v8224 = vpop.permute.xlu0 %8223
        %v8225 = vrot.slane %v8145, 2
        %v8226 = vrot.slane %v8146, 1
        %v8227 = vsel %vm8018, %v8226, %v8225
        %v8228 = vsel %vm8214, %v8147, %v8227
        %v8229 = vrot.slane %v8148, 7
        %v8230 = vsel %vm8216, %v8229, %v8228
        %v8231 = vpack.c.b16 %v8230, %v8230
        %8232 = vrot.lane.b32.xlu0 %v8231, 64
        %v8233 = vpop.permute.xlu0 %8232
        %v8238 = vunpack.c.l.b16 %v7765
        %v8239 = vunpack.c.l.b16 %v7772
        %v8240 = vunpack.c.l.b16 %v7779
        %v8241 = vunpack.c.l.b16 %v7786
        %v8242 = vpack.c.b16 %v8238, %v8238
        %v8243 = vpack.c.b16 %v8239, %v8239
        %v8244 = vpack.c.b16 %v8240, %v8240
        %v8245 = vpack.c.b16 %v8241, %v8241
        %v8246 = vunpack.c.l.b16 %v8242
        %v8247 = vunpack.c.l.b16 %v8243
        %v8248 = vunpack.c.l.b16 %v8244
        %v8249 = vunpack.c.l.b16 %v8245
        %v8250 = vrot.slane %v8246, 4
        %v8251 = vrot.slane %v8247, 3
        %v8252 = vsel %vm8018, %v8251, %v8250
        %v8253 = vrot.slane %v8248, 2
        %v8254 = vsel %vm8214, %v8253, %v8252
        %v8255 = vrot.slane %v8249, 1
        %v8256 = vsel %vm8216, %v8255, %v8254
        %v8257 = vpack.c.b16 %v8256, %v8256
        %8258 = vrot.lane.b32.xlu0 %v8257, 96
        %v8259 = vpop.permute.xlu0 %8258
        %v8260 = vrot.slane %v8246, 5
        %v8261 = vrot.slane %v8247, 4
        %v8262 = vsel %vm8018, %v8261, %v8260
        %v8263 = vrot.slane %v8248, 3
        %v8264 = vsel %vm8214, %v8263, %v8262
        %v8265 = vrot.slane %v8249, 2
        %v8266 = vsel %vm8216, %v8265, %v8264
        %v8267 = vpack.c.b16 %v8266, %v8266
        %v8268 = vrot.slane %v8246, 6
        %v8269 = vrot.slane %v8247, 5
        %v8270 = vsel %vm8018, %v8269, %v8268
        %v8271 = vrot.slane %v8248, 4
        %v8272 = vsel %vm8214, %v8271, %v8270
        %v8273 = vrot.slane %v8249, 3
        %v8274 = vsel %vm8216, %v8273, %v8272
        %v8275 = vpack.c.b16 %v8274, %v8274
        %8276 = vrot.lane.b32.xlu0 %v8275, 32
        %v8277 = vpop.permute.xlu0 %8276
        %v8278 = vrot.slane %v8246, 7
        %v8279 = vrot.slane %v8247, 6
        %v8280 = vsel %vm8018, %v8279, %v8278
        %v8281 = vrot.slane %v8248, 5
        %v8282 = vsel %vm8214, %v8281, %v8280
        %v8283 = vrot.slane %v8249, 4
        %v8284 = vsel %vm8216, %v8283, %v8282
        %v8285 = vpack.c.b16 %v8284, %v8284
        %8286 = vrot.lane.b32.xlu0 %v8285, 64
        %v8287 = vpop.permute.xlu0 %8286
        %v8288 = vrot.slane %v8247, 7
        %v8289 = vsel %vm8018, %v8288, %v8246
        %v8290 = vrot.slane %v8248, 6
        %v8291 = vsel %vm8214, %v8290, %v8289
        %v8292 = vrot.slane %v8249, 5
        %v8293 = vsel %vm8216, %v8292, %v8291
        %v8294 = vpack.c.b16 %v8293, %v8293
        %8295 = vrot.lane.b32.xlu0 %v8294, 96
        %v8296 = vpop.permute.xlu0 %8295
        %v8297 = vrot.slane %v8246, 1
        %v8298 = vsel %vm8018, %v8247, %v8297
        %v8299 = vrot.slane %v8248, 7
        %v8300 = vsel %vm8214, %v8299, %v8298
        %v8301 = vrot.slane %v8249, 6
        %v8302 = vsel %vm8216, %v8301, %v8300
        %v8303 = vpack.c.b16 %v8302, %v8302
        %v8304 = vrot.slane %v8246, 2
        %v8305 = vrot.slane %v8247, 1
        %v8306 = vsel %vm8018, %v8305, %v8304
        %v8307 = vsel %vm8214, %v8248, %v8306
        %v8308 = vrot.slane %v8249, 7
        %v8309 = vsel %vm8216, %v8308, %v8307
        %v8310 = vpack.c.b16 %v8309, %v8309
        %8311 = vrot.lane.b32.xlu0 %v8310, 32
        %v8312 = vpop.permute.xlu0 %8311
        %v8317 = vunpack.c.l.b16 %v7766
        %v8318 = vunpack.c.l.b16 %v7773
        %v8319 = vunpack.c.l.b16 %v7780
        %v8320 = vunpack.c.l.b16 %v7787
        %v8321 = vpack.c.b16 %v8317, %v8317
        %v8322 = vpack.c.b16 %v8318, %v8318
        %v8323 = vpack.c.b16 %v8319, %v8319
        %v8324 = vpack.c.b16 %v8320, %v8320
        %v8325 = vunpack.c.l.b16 %v8321
        %v8326 = vunpack.c.l.b16 %v8322
        %v8327 = vunpack.c.l.b16 %v8323
        %v8328 = vunpack.c.l.b16 %v8324
        %v8329 = vrot.slane %v8325, 4
        %v8330 = vrot.slane %v8326, 3
        %v8331 = vsel %vm8018, %v8330, %v8329
        %v8332 = vrot.slane %v8327, 2
        %v8333 = vsel %vm8214, %v8332, %v8331
        %v8334 = vrot.slane %v8328, 1
        %v8335 = vsel %vm8216, %v8334, %v8333
        %v8336 = vpack.c.b16 %v8335, %v8335
        %8337 = vrot.lane.b32.xlu0 %v8336, 64
        %v8338 = vpop.permute.xlu0 %8337
        %v8339 = vrot.slane %v8325, 5
        %v8340 = vrot.slane %v8326, 4
        %v8341 = vsel %vm8018, %v8340, %v8339
        %v8342 = vrot.slane %v8327, 3
        %v8343 = vsel %vm8214, %v8342, %v8341
        %v8344 = vrot.slane %v8328, 2
        %v8345 = vsel %vm8216, %v8344, %v8343
        %v8346 = vpack.c.b16 %v8345, %v8345
        %8347 = vrot.lane.b32.xlu0 %v8346, 96
        %v8348 = vpop.permute.xlu0 %8347
        %v8349 = vrot.slane %v8325, 6
        %v8350 = vrot.slane %v8326, 5
        %v8351 = vsel %vm8018, %v8350, %v8349
        %v8352 = vrot.slane %v8327, 4
        %v8353 = vsel %vm8214, %v8352, %v8351
        %v8354 = vrot.slane %v8328, 3
        %v8355 = vsel %vm8216, %v8354, %v8353
        %v8356 = vpack.c.b16 %v8355, %v8355
        %v8357 = vrot.slane %v8325, 7
        %v8358 = vrot.slane %v8326, 6
        %v8359 = vsel %vm8018, %v8358, %v8357
        %v8360 = vrot.slane %v8327, 5
        %v8361 = vsel %vm8214, %v8360, %v8359
        %v8362 = vrot.slane %v8328, 4
        %v8363 = vsel %vm8216, %v8362, %v8361
        %v8364 = vpack.c.b16 %v8363, %v8363
        %8365 = vrot.lane.b32.xlu0 %v8364, 32
        %v8366 = vpop.permute.xlu0 %8365
        %v8367 = vrot.slane %v8326, 7
        %v8368 = vsel %vm8018, %v8367, %v8325
        %v8369 = vrot.slane %v8327, 6
        %v8370 = vsel %vm8214, %v8369, %v8368
        %v8371 = vrot.slane %v8328, 5
        %v8372 = vsel %vm8216, %v8371, %v8370
        %v8373 = vpack.c.b16 %v8372, %v8372
        %8374 = vrot.lane.b32.xlu0 %v8373, 64
        %v8375 = vpop.permute.xlu0 %8374
        %v8376 = vrot.slane %v8325, 1
        %v8377 = vsel %vm8018, %v8326, %v8376
        %v8378 = vrot.slane %v8327, 7
        %v8379 = vsel %vm8214, %v8378, %v8377
        %v8380 = vrot.slane %v8328, 6
        %v8381 = vsel %vm8216, %v8380, %v8379
        %v8382 = vpack.c.b16 %v8381, %v8381
        %8383 = vrot.lane.b32.xlu0 %v8382, 96
        %v8384 = vpop.permute.xlu0 %8383
        %v8387 = vsel %vm7981, %v8218, %v8224
        %v8389 = vsel %vm4328, %v8387, %v8233
        %v8391 = vsel %vm7987, %v8389, %v8259
        %v8394 = vsel %vm7981, %v8267, %v8277
        %v8396 = vsel %vm4328, %v8394, %v8287
        %v8398 = vsel %vm7987, %v8396, %v8296
        %v8401 = vsel %vm7981, %v8303, %v8312
        %v8403 = vsel %vm4328, %v8401, %v8338
        %v8405 = vsel %vm7987, %v8403, %v8348
        %v8408 = vsel %vm7981, %v8356, %v8366
        %v8410 = vsel %vm4328, %v8408, %v8375
        %v8412 = vsel %vm7987, %v8410, %v8384
        %v8417 = vrot.slane %v8191, 1
        %v8418 = vrot.slane %v8198, 1
        %v8419 = vrot.slane %v8205, 1
        %v8420 = vrot.slane %v8212, 1
        %v8429 = vrot.slane %v8391, 2
        %v8430 = vrot.slane %v8398, 2
        %v8431 = vrot.slane %v8405, 2
        %v8432 = vrot.slane %v8412, 2
        %v8437 = vsel %vm7805, %v8350, %v8349
        %v8438 = vsel %vm7808, %v8352, %v8437
        %v8439 = vsel %vm7811, %v8354, %v8438
        %v8440 = vpack.c.b16 %v8439, %v8439
        %v8441 = vld [vmem:[%s5] sm:$0xf]
        %v8442 = vld [vmem:[%s5 + $0x4] sm:$0xf]
        %v8443 = vld [vmem:[%s5 + $0x8] sm:$0xf]
        %v8444 = vld [vmem:[%s5 + $0xc] sm:$0xf]
        %v8445 = vld [vmem:[%s5 + $0x10] sm:$0xf]
        %v8446 = vld [vmem:[%s5 + $0x14] sm:$0xf]
        %v8447 = vld [vmem:[%s5 + $0x18] sm:$0xf]
        %v8448 = vld [vmem:[%s5 + $0x1c] sm:$0xf]
        %v8449 = vld [vmem:[%s5 + $0x20] sm:$0xf]
        %v8450 = vld [vmem:[%s5 + $0x24] sm:$0xf]
        %v8451 = vld [vmem:[%s5 + $0x28] sm:$0xf]
        %v8452 = vld [vmem:[%s5 + $0x2c] sm:$0xf]
        %v8453 = vld [vmem:[%s5 + $0x30] sm:$0xf]
        %v8454 = vld [vmem:[%s5 + $0x34] sm:$0xf]
        %v8455 = vld [vmem:[%s5 + $0x38] sm:$0xf]
        %v8456 = vld [vmem:[%s5 + $0x3c] sm:$0xf]
        %v8457 = vld [vmem:[%s5 + $0x40] sm:$0xf]
        %v8458 = vld [vmem:[%s5 + $0x44] sm:$0xf]
        %v8459 = vld [vmem:[%s5 + $0x48] sm:$0xf]
        %v8460 = vld [vmem:[%s5 + $0x4c] sm:$0xf]
        %v8461 = vld [vmem:[%s5 + $0x50] sm:$0xf]
        %v8462 = vld [vmem:[%s5 + $0x54] sm:$0xf]
        %v8463 = vld [vmem:[%s5 + $0x58] sm:$0xf]
        %v8464 = vld [vmem:[%s5 + $0x5c] sm:$0xf]
        %v8465 = vld [vmem:[%s5 + $0x60] sm:$0xf]
        %v8466 = vld [vmem:[%s5 + $0x64] sm:$0xf]
        %v8467 = vld [vmem:[%s5 + $0x68] sm:$0xf]
        %v8468 = vld [vmem:[%s5 + $0x6c] sm:$0xf]
        %v8469 = vld [vmem:[%s5 + $0x70] sm:$0xf]
        %v8470 = vld [vmem:[%s5 + $0x74] sm:$0xf]
        %v8471 = vld [vmem:[%s5 + $0x78] sm:$0xf]
        %v8472 = vld [vmem:[%s5 + $0x7c] sm:$0xf]
        %v8473 = vld [vmem:[%s5 + $0x80] sm:$0xf]
        %v8474 = vld [vmem:[%s5 + $0x84] sm:$0xf]
        %v8475 = vld [vmem:[%s5 + $0x88] sm:$0xf]
        %v8476 = vld [vmem:[%s5 + $0x8c] sm:$0xf]
        %v8477 = vld [vmem:[%s5 + $0x90] sm:$0xf]
        %v8478 = vld [vmem:[%s5 + $0x94] sm:$0xf]
        %v8479 = vld [vmem:[%s5 + $0x98] sm:$0xf]
        %v8480 = vld [vmem:[%s5 + $0x9c] sm:$0xf]
        %v8481 = vld [vmem:[%s5 + $0xa0] sm:$0xf]
        %v8482 = vld [vmem:[%s5 + $0xa4] sm:$0xf]
        %v8483 = vld [vmem:[%s5 + $0xa8] sm:$0xf]
        %v8484 = vld [vmem:[%s5 + $0xac] sm:$0xf]
        %v8485 = vld [vmem:[%s5 + $0xb0] sm:$0xf]
        %v8486 = vld [vmem:[%s5 + $0xb4] sm:$0xf]
        %v8487 = vld [vmem:[%s5 + $0xb8] sm:$0xf]
        %v8488 = vld [vmem:[%s5 + $0xbc] sm:$0xf]
        %v8489 = vld [vmem:[%s5 + $0xc0] sm:$0xf]
        %v8490 = vld [vmem:[%s5 + $0xc4] sm:$0xf]
        %v8491 = vld [vmem:[%s5 + $0xc8] sm:$0xf]
        %v8492 = vld [vmem:[%s5 + $0xcc] sm:$0xf]
        %v8493 = vld [vmem:[%s5 + $0xd0] sm:$0xf]
        %v8494 = vld [vmem:[%s5 + $0xd4] sm:$0xf]
        %v8495 = vld [vmem:[%s5 + $0xd8] sm:$0xf]
        %v8496 = vld [vmem:[%s5 + $0xdc] sm:$0xf]
        %v8497 = vld [vmem:[%s5 + $0xe0] sm:$0xf]
        %v8498 = vld [vmem:[%s5 + $0xe4] sm:$0xf]
        %v8499 = vld [vmem:[%s5 + $0xe8] sm:$0xf]
        %v8500 = vld [vmem:[%s5 + $0xec] sm:$0xf]
        %v8501 = vld [vmem:[%s5 + $0xf0] sm:$0xf]
        %v8502 = vld [vmem:[%s5 + $0xf4] sm:$0xf]
        %v8503 = vld [vmem:[%s5 + $0xf8] sm:$0xf]
        %v8504 = vld [vmem:[%s5 + $0xfc] sm:$0xf]
        %v8505 = vld [vmem:[%s5 + $0x100] sm:$0xf]
        %v8506 = vld [vmem:[%s5 + $0x104] sm:$0xf]
        %v8507 = vld [vmem:[%s5 + $0x108] sm:$0xf]
        %v8508 = vld [vmem:[%s5 + $0x10c] sm:$0xf]
        %v8509 = vld [vmem:[%s5 + $0x110] sm:$0xf]
        %v8510 = vld [vmem:[%s5 + $0x114] sm:$0xf]
        %v8511 = vld [vmem:[%s5 + $0x118] sm:$0xf]
        %v8512 = vld [vmem:[%s5 + $0x11c] sm:$0xf]
        %v8513 = vld [vmem:[%s5 + $0x120] sm:$0xf]
        %v8514 = vld [vmem:[%s5 + $0x124] sm:$0xf]
        %v8515 = vld [vmem:[%s5 + $0x128] sm:$0xf]
        %v8516 = vld [vmem:[%s5 + $0x12c] sm:$0xf]
        %v8517 = vld [vmem:[%s5 + $0x130] sm:$0xf]
        %v8518 = vld [vmem:[%s5 + $0x134] sm:$0xf]
        %v8519 = vld [vmem:[%s5 + $0x138] sm:$0xf]
        %v8520 = vld [vmem:[%s5 + $0x13c] sm:$0xf]
        %v8521 = vld [vmem:[%s5 + $0x140] sm:$0xf]
        %v8522 = vld [vmem:[%s5 + $0x144] sm:$0xf]
        %v8523 = vld [vmem:[%s5 + $0x148] sm:$0xf]
        %v8524 = vld [vmem:[%s5 + $0x14c] sm:$0xf]
        %v8525 = vld [vmem:[%s5 + $0x150] sm:$0xf]
        %v8526 = vld [vmem:[%s5 + $0x154] sm:$0xf]
        %v8527 = vld [vmem:[%s5 + $0x158] sm:$0xf]
        %v8528 = vld [vmem:[%s5 + $0x15c] sm:$0xf]
        %v8529 = vld [vmem:[%s5 + $0x160] sm:$0xf]
        %v8530 = vld [vmem:[%s5 + $0x164] sm:$0xf]
        %v8531 = vld [vmem:[%s5 + $0x168] sm:$0xf]
        %v8532 = vld [vmem:[%s5 + $0x16c] sm:$0xf]
        %v8533 = vld [vmem:[%s5 + $0x170] sm:$0xf]
        %v8534 = vld [vmem:[%s5 + $0x174] sm:$0xf]
        %v8535 = vld [vmem:[%s5 + $0x178] sm:$0xf]
        %v8536 = vld [vmem:[%s5 + $0x17c] sm:$0xf]
        %v8537 = vld [vmem:[%s5 + $0x180] sm:$0xf]
        %v8538 = vld [vmem:[%s5 + $0x184] sm:$0xf]
        %v8539 = vld [vmem:[%s5 + $0x188] sm:$0xf]
        %v8540 = vld [vmem:[%s5 + $0x18c] sm:$0xf]
        %v8541 = vld [vmem:[%s5 + $0x190] sm:$0xf]
        %v8542 = vld [vmem:[%s5 + $0x194] sm:$0xf]
        %v8543 = vld [vmem:[%s5 + $0x198] sm:$0xf]
        %v8544 = vld [vmem:[%s5 + $0x19c] sm:$0xf]
        %v8545 = vld [vmem:[%s5 + $0x1a0] sm:$0xf]
        %v8546 = vld [vmem:[%s5 + $0x1a4] sm:$0xf]
        %v8547 = vld [vmem:[%s5 + $0x1a8] sm:$0xf]
        %v8548 = vld [vmem:[%s5 + $0x1ac] sm:$0xf]
        %v8549 = vld [vmem:[%s5 + $0x1b0] sm:$0xf]
        %v8550 = vld [vmem:[%s5 + $0x1b4] sm:$0xf]
        %v8551 = vld [vmem:[%s5 + $0x1b8] sm:$0xf]
        %v8552 = vld [vmem:[%s5 + $0x1bc] sm:$0xf]
        %v8553 = vld [vmem:[%s5 + $0x1c0] sm:$0xf]
        %v8554 = vld [vmem:[%s5 + $0x1c4] sm:$0xf]
        %v8555 = vld [vmem:[%s5 + $0x1c8] sm:$0xf]
        %v8556 = vld [vmem:[%s5 + $0x1cc] sm:$0xf]
        %v8557 = vld [vmem:[%s5 + $0x1d0] sm:$0xf]
        %v8558 = vld [vmem:[%s5 + $0x1d4] sm:$0xf]
        %v8559 = vld [vmem:[%s5 + $0x1d8] sm:$0xf]
        %v8560 = vld [vmem:[%s5 + $0x1dc] sm:$0xf]
        %v8561 = vld [vmem:[%s5 + $0x1e0] sm:$0xf]
        %v8562 = vld [vmem:[%s5 + $0x1e4] sm:$0xf]
        %v8563 = vld [vmem:[%s5 + $0x1e8] sm:$0xf]
        %v8564 = vld [vmem:[%s5 + $0x1ec] sm:$0xf]
        %v8565 = vld [vmem:[%s5 + $0x1f0] sm:$0xf]
        %v8566 = vld [vmem:[%s5 + $0x1f4] sm:$0xf]
        %v8567 = vld [vmem:[%s5 + $0x1f8] sm:$0xf]
        %v8568 = vld [vmem:[%s5 + $0x1fc] sm:$0xf]
        %v8569 = vld [vmem:[%s5 + $0x200] sm:$0xf]
        %v8570 = vld [vmem:[%s5 + $0x204] sm:$0xf]
        %v8571 = vld [vmem:[%s5 + $0x208] sm:$0xf]
        %v8572 = vld [vmem:[%s5 + $0x20c] sm:$0xf]
        %v8573 = vld [vmem:[%s5 + $0x210] sm:$0xf]
        %v8574 = vld [vmem:[%s5 + $0x214] sm:$0xf]
        %v8575 = vld [vmem:[%s5 + $0x218] sm:$0xf]
        %v8576 = vld [vmem:[%s5 + $0x21c] sm:$0xf]
        %v8577 = vld [vmem:[%s5 + $0x220] sm:$0xf]
        %v8578 = vld [vmem:[%s5 + $0x224] sm:$0xf]
        %v8579 = vld [vmem:[%s5 + $0x228] sm:$0xf]
        %v8580 = vld [vmem:[%s5 + $0x22c] sm:$0xf]
        %v8581 = vld [vmem:[%s5 + $0x230] sm:$0xf]
        %v8582 = vld [vmem:[%s5 + $0x234] sm:$0xf]
        %v8583 = vld [vmem:[%s5 + $0x238] sm:$0xf]
        %v8584 = vld [vmem:[%s5 + $0x23c] sm:$0xf]
        %v8585 = vld [vmem:[%s5 + $0x240] sm:$0xf]
        %v8586 = vld [vmem:[%s5 + $0x244] sm:$0xf]
        %v8587 = vld [vmem:[%s5 + $0x248] sm:$0xf]
        %v8588 = vld [vmem:[%s5 + $0x24c] sm:$0xf]
        %v8589 = vld [vmem:[%s5 + $0x250] sm:$0xf]
        %v8590 = vld [vmem:[%s5 + $0x254] sm:$0xf]
        %v8591 = vld [vmem:[%s5 + $0x258] sm:$0xf]
        %v8592 = vld [vmem:[%s5 + $0x25c] sm:$0xf]
        %v8593 = vld [vmem:[%s5 + $0x260] sm:$0xf]
        %v8594 = vld [vmem:[%s5 + $0x264] sm:$0xf]
        %v8595 = vld [vmem:[%s5 + $0x268] sm:$0xf]
        %v8596 = vld [vmem:[%s5 + $0x26c] sm:$0xf]
        %v8597 = vld [vmem:[%s5 + $0x270] sm:$0xf]
        %v8598 = vld [vmem:[%s5 + $0x274] sm:$0xf]
        %v8599 = vld [vmem:[%s5 + $0x278] sm:$0xf]
        %v8600 = vld [vmem:[%s5 + $0x27c] sm:$0xf]
        %v8601 = vld [vmem:[%s5 + $0x280] sm:$0xf]
        %v8602 = vld [vmem:[%s5 + $0x284] sm:$0xf]
        %v8603 = vld [vmem:[%s5 + $0x288] sm:$0xf]
        %v8604 = vld [vmem:[%s5 + $0x28c] sm:$0xf]
        %v8605 = vld [vmem:[%s5 + $0x290] sm:$0xf]
        %v8606 = vld [vmem:[%s5 + $0x294] sm:$0xf]
        %v8607 = vld [vmem:[%s5 + $0x298] sm:$0xf]
        %v8608 = vld [vmem:[%s5 + $0x29c] sm:$0xf]
        %v8609 = vld [vmem:[%s5 + $0x2a0] sm:$0xf]
        %v8610 = vld [vmem:[%s5 + $0x2a4] sm:$0xf]
        %v8611 = vld [vmem:[%s5 + $0x2a8] sm:$0xf]
        %v8612 = vld [vmem:[%s5 + $0x2ac] sm:$0xf]
        %v8613 = vld [vmem:[%s5 + $0x2b0] sm:$0xf]
        %v8614 = vld [vmem:[%s5 + $0x2b4] sm:$0xf]
        %v8615 = vld [vmem:[%s5 + $0x2b8] sm:$0xf]
        %v8616 = vld [vmem:[%s5 + $0x2bc] sm:$0xf]
        %v8617 = vld [vmem:[%s5 + $0x2c0] sm:$0xf]
        %v8618 = vld [vmem:[%s5 + $0x2c4] sm:$0xf]
        %v8619 = vld [vmem:[%s5 + $0x2c8] sm:$0xf]
        %v8620 = vld [vmem:[%s5 + $0x2cc] sm:$0xf]
        %v8621 = vld [vmem:[%s5 + $0x2d0] sm:$0xf]
        %v8622 = vld [vmem:[%s5 + $0x2d4] sm:$0xf]
        %v8623 = vld [vmem:[%s5 + $0x2d8] sm:$0xf]
        %v8624 = vld [vmem:[%s5 + $0x2dc] sm:$0xf]
        %v8625 = vld [vmem:[%s5 + $0x2e0] sm:$0xf]
        %v8626 = vld [vmem:[%s5 + $0x2e4] sm:$0xf]
        %v8627 = vld [vmem:[%s5 + $0x2e8] sm:$0xf]
        %v8628 = vld [vmem:[%s5 + $0x2ec] sm:$0xf]
        %v8629 = vld [vmem:[%s5 + $0x2f0] sm:$0xf]
        %v8630 = vld [vmem:[%s5 + $0x2f4] sm:$0xf]
        %v8631 = vld [vmem:[%s5 + $0x2f8] sm:$0xf]
        %v8632 = vld [vmem:[%s5 + $0x2fc] sm:$0xf]
        %v8633 = vld [vmem:[%s5 + $0x300] sm:$0xf]
        %v8634 = vld [vmem:[%s5 + $0x304] sm:$0xf]
        %v8635 = vld [vmem:[%s5 + $0x308] sm:$0xf]
        %v8636 = vld [vmem:[%s5 + $0x30c] sm:$0xf]
        %v8637 = vld [vmem:[%s6] sm:$0x1]
        %v8639 = vperm.slane %v8637, 0
        %v8837 = vunpack.c.l.b16 %v8441
        %v8838 = vunpack.c.l.b16 %v8442
        %v8839 = vunpack.c.l.b16 %v8443
        %v8840 = vunpack.c.l.b16 %v8444
        %v8841 = vunpack.c.l.b16 %v8445
        %v8842 = vunpack.c.l.b16 %v8446
        %v8843 = vunpack.c.l.b16 %v8447
        %v8844 = vunpack.c.l.b16 %v8448
        %v8845 = vunpack.c.l.b16 %v8449
        %v8846 = vunpack.c.l.b16 %v8450
        %v8847 = vunpack.c.l.b16 %v8451
        %v8848 = vunpack.c.l.b16 %v8452
        %v8849 = vunpack.c.l.b16 %v8453
        %v8850 = vunpack.c.l.b16 %v8454
        %v8851 = vunpack.c.l.b16 %v8455
        %v8852 = vunpack.c.l.b16 %v8456
        %v8853 = vunpack.c.l.b16 %v8457
        %v8854 = vunpack.c.l.b16 %v8458
        %v8855 = vunpack.c.l.b16 %v8459
        %v8856 = vunpack.c.l.b16 %v8460
        %v8857 = vunpack.c.l.b16 %v8461
        %v8858 = vunpack.c.l.b16 %v8462
        %v8859 = vunpack.c.l.b16 %v8463
        %v8860 = vunpack.c.l.b16 %v8464
        %v8861 = vunpack.c.l.b16 %v8465
        %v8862 = vunpack.c.l.b16 %v8466
        %v8863 = vunpack.c.l.b16 %v8467
        %v8864 = vunpack.c.l.b16 %v8468
        %v8865 = vunpack.c.l.b16 %v8469
        %v8866 = vunpack.c.l.b16 %v8470
        %v8867 = vunpack.c.l.b16 %v8471
        %v8868 = vunpack.c.l.b16 %v8472
        %v8869 = vunpack.c.l.b16 %v8473
        %v8870 = vunpack.c.l.b16 %v8474
        %v8871 = vunpack.c.l.b16 %v8475
        %v8872 = vunpack.c.l.b16 %v8476
        %v8873 = vunpack.c.l.b16 %v8477
        %v8874 = vunpack.c.l.b16 %v8478
        %v8875 = vunpack.c.l.b16 %v8479
        %v8876 = vunpack.c.l.b16 %v8480
        %v8877 = vunpack.c.l.b16 %v8481
        %v8878 = vunpack.c.l.b16 %v8482
        %v8879 = vunpack.c.l.b16 %v8483
        %v8880 = vunpack.c.l.b16 %v8484
        %v8881 = vunpack.c.l.b16 %v8485
        %v8882 = vunpack.c.l.b16 %v8486
        %v8883 = vunpack.c.l.b16 %v8487
        %v8884 = vunpack.c.l.b16 %v8488
        %v8885 = vunpack.c.l.b16 %v8489
        %v8886 = vunpack.c.l.b16 %v8490
        %v8887 = vunpack.c.l.b16 %v8491
        %v8888 = vunpack.c.l.b16 %v8492
        %v8889 = vunpack.c.l.b16 %v8493
        %v8890 = vunpack.c.l.b16 %v8494
        %v8891 = vunpack.c.l.b16 %v8495
        %v8892 = vunpack.c.l.b16 %v8496
        %v8893 = vunpack.c.l.b16 %v8497
        %v8894 = vunpack.c.l.b16 %v8498
        %v8895 = vunpack.c.l.b16 %v8499
        %v8896 = vunpack.c.l.b16 %v8500
        %v8897 = vunpack.c.l.b16 %v8501
        %v8898 = vunpack.c.l.b16 %v8502
        %v8899 = vunpack.c.l.b16 %v8503
        %v8900 = vunpack.c.l.b16 %v8504
        %v8901 = vunpack.c.l.b16 %v8505
        %v8902 = vunpack.c.l.b16 %v8506
        %v8903 = vunpack.c.l.b16 %v8507
        %v8904 = vunpack.c.l.b16 %v8508
        %v8905 = vunpack.c.l.b16 %v8509
        %v8906 = vunpack.c.l.b16 %v8510
        %v8907 = vunpack.c.l.b16 %v8511
        %v8908 = vunpack.c.l.b16 %v8512
        %v8909 = vunpack.c.l.b16 %v8513
        %v8910 = vunpack.c.l.b16 %v8514
        %v8911 = vunpack.c.l.b16 %v8515
        %v8912 = vunpack.c.l.b16 %v8516
        %v8913 = vunpack.c.l.b16 %v8517
        %v8914 = vunpack.c.l.b16 %v8518
        %v8915 = vunpack.c.l.b16 %v8519
        %v8916 = vunpack.c.l.b16 %v8520
        %v8917 = vunpack.c.l.b16 %v8521
        %v8918 = vunpack.c.l.b16 %v8522
        %v8919 = vunpack.c.l.b16 %v8523
        %v8920 = vunpack.c.l.b16 %v8524
        %v8921 = vunpack.c.l.b16 %v8525
        %v8922 = vunpack.c.l.b16 %v8526
        %v8923 = vunpack.c.l.b16 %v8527
        %v8924 = vunpack.c.l.b16 %v8528
        %v8925 = vunpack.c.l.b16 %v8529
        %v8926 = vunpack.c.l.b16 %v8530
        %v8927 = vunpack.c.l.b16 %v8531
        %v8928 = vunpack.c.l.b16 %v8532
        %v8929 = vunpack.c.l.b16 %v8533
        %v8930 = vunpack.c.l.b16 %v8534
        %v8931 = vunpack.c.l.b16 %v8535
        %v8932 = vunpack.c.l.b16 %v8536
        %v8933 = vunpack.c.l.b16 %v8537
        %v8934 = vunpack.c.l.b16 %v8538
        %v8935 = vunpack.c.l.b16 %v8539
        %v8936 = vunpack.c.l.b16 %v8540
        %v8937 = vunpack.c.l.b16 %v8541
        %v8938 = vunpack.c.l.b16 %v8542
        %v8939 = vunpack.c.l.b16 %v8543
        %v8940 = vunpack.c.l.b16 %v8544
        %v8941 = vunpack.c.l.b16 %v8545
        %v8942 = vunpack.c.l.b16 %v8546
        %v8943 = vunpack.c.l.b16 %v8547
        %v8944 = vunpack.c.l.b16 %v8548
        %v8945 = vunpack.c.l.b16 %v8549
        %v8946 = vunpack.c.l.b16 %v8550
        %v8947 = vunpack.c.l.b16 %v8551
        %v8948 = vunpack.c.l.b16 %v8552
        %v8949 = vunpack.c.l.b16 %v8553
        %v8950 = vunpack.c.l.b16 %v8554
        %v8951 = vunpack.c.l.b16 %v8555
        %v8952 = vunpack.c.l.b16 %v8556
        %v8953 = vunpack.c.l.b16 %v8557
        %v8954 = vunpack.c.l.b16 %v8558
        %v8955 = vunpack.c.l.b16 %v8559
        %v8956 = vunpack.c.l.b16 %v8560
        %v8957 = vunpack.c.l.b16 %v8561
        %v8958 = vunpack.c.l.b16 %v8562
        %v8959 = vunpack.c.l.b16 %v8563
        %v8960 = vunpack.c.l.b16 %v8564
        %v8961 = vunpack.c.l.b16 %v8565
        %v8962 = vunpack.c.l.b16 %v8566
        %v8963 = vunpack.c.l.b16 %v8567
        %v8964 = vunpack.c.l.b16 %v8568
        %v8965 = vunpack.c.l.b16 %v8569
        %v8966 = vunpack.c.l.b16 %v8570
        %v8967 = vunpack.c.l.b16 %v8571
        %v8968 = vunpack.c.l.b16 %v8572
        %v8969 = vunpack.c.l.b16 %v8573
        %v8970 = vunpack.c.l.b16 %v8574
        %v8971 = vunpack.c.l.b16 %v8575
        %v8972 = vunpack.c.l.b16 %v8576
        %v8973 = vunpack.c.l.b16 %v8577
        %v8974 = vunpack.c.l.b16 %v8578
        %v8975 = vunpack.c.l.b16 %v8579
        %v8976 = vunpack.c.l.b16 %v8580
        %v8977 = vunpack.c.l.b16 %v8581
        %v8978 = vunpack.c.l.b16 %v8582
        %v8979 = vunpack.c.l.b16 %v8583
        %v8980 = vunpack.c.l.b16 %v8584
        %v8981 = vunpack.c.l.b16 %v8585
        %v8982 = vunpack.c.l.b16 %v8586
        %v8983 = vunpack.c.l.b16 %v8587
        %v8984 = vunpack.c.l.b16 %v8588
        %v8985 = vunpack.c.l.b16 %v8589
        %v8986 = vunpack.c.l.b16 %v8590
        %v8987 = vunpack.c.l.b16 %v8591
        %v8988 = vunpack.c.l.b16 %v8592
        %v8989 = vunpack.c.l.b16 %v8593
        %v8990 = vunpack.c.l.b16 %v8594
        %v8991 = vunpack.c.l.b16 %v8595
        %v8992 = vunpack.c.l.b16 %v8596
        %v8993 = vunpack.c.l.b16 %v8597
        %v8994 = vunpack.c.l.b16 %v8598
        %v8995 = vunpack.c.l.b16 %v8599
        %v8996 = vunpack.c.l.b16 %v8600
        %v8997 = vunpack.c.l.b16 %v8601
        %v8998 = vunpack.c.l.b16 %v8602
        %v8999 = vunpack.c.l.b16 %v8603
        %v9000 = vunpack.c.l.b16 %v8604
        %v9001 = vunpack.c.l.b16 %v8605
        %v9002 = vunpack.c.l.b16 %v8606
        %v9003 = vunpack.c.l.b16 %v8607
        %v9004 = vunpack.c.l.b16 %v8608
        %v9005 = vunpack.c.l.b16 %v8609
        %v9006 = vunpack.c.l.b16 %v8610
        %v9007 = vunpack.c.l.b16 %v8611
        %v9008 = vunpack.c.l.b16 %v8612
        %v9009 = vunpack.c.l.b16 %v8613
        %v9010 = vunpack.c.l.b16 %v8614
        %v9011 = vunpack.c.l.b16 %v8615
        %v9012 = vunpack.c.l.b16 %v8616
        %v9013 = vunpack.c.l.b16 %v8617
        %v9014 = vunpack.c.l.b16 %v8618
        %v9015 = vunpack.c.l.b16 %v8619
        %v9016 = vunpack.c.l.b16 %v8620
        %v9017 = vunpack.c.l.b16 %v8621
        %v9018 = vunpack.c.l.b16 %v8622
        %v9019 = vunpack.c.l.b16 %v8623
        %v9020 = vunpack.c.l.b16 %v8624
        %v9021 = vunpack.c.l.b16 %v8625
        %v9022 = vunpack.c.l.b16 %v8626
        %v9023 = vunpack.c.l.b16 %v8627
        %v9024 = vunpack.c.l.b16 %v8628
        %v9025 = vunpack.c.l.b16 %v8629
        %v9026 = vunpack.c.l.b16 %v8630
        %v9027 = vunpack.c.l.b16 %v8631
        %v9028 = vunpack.c.l.b16 %v8632
        %v9029 = vunpack.c.l.b16 %v8633
        %v9030 = vunpack.c.l.b16 %v8634
        %v9031 = vunpack.c.l.b16 %v8635
        %v9032 = vunpack.c.l.b16 %v8636
        %v9033 = vpack.c.b16 %v8838, %v8837
        %v9034 = vpack.c.b16 %v8840, %v8839
        %v9035 = vpack.c.b16 %v8842, %v8841
        %v9036 = vpack.c.b16 %v8844, %v8843
        %v9037 = vpack.c.b16 %v8846, %v8845
        %v9038 = vpack.c.b16 %v8848, %v8847
        %v9039 = vpack.c.b16 %v8850, %v8849
        %v9040 = vpack.c.b16 %v8852, %v8851
        %v9041 = vpack.c.b16 %v8854, %v8853
        %v9042 = vpack.c.b16 %v8856, %v8855
        %v9043 = vpack.c.b16 %v8858, %v8857
        %v9044 = vpack.c.b16 %v8860, %v8859
        %v9045 = vpack.c.b16 %v8862, %v8861
        %v9046 = vpack.c.b16 %v8864, %v8863
        %v9047 = vpack.c.b16 %v8866, %v8865
        %v9048 = vpack.c.b16 %v8868, %v8867
        %v9049 = vpack.c.b16 %v8870, %v8869
        %v9050 = vpack.c.b16 %v8872, %v8871
        %v9051 = vpack.c.b16 %v8874, %v8873
        %v9052 = vpack.c.b16 %v8876, %v8875
        %v9053 = vpack.c.b16 %v8878, %v8877
        %v9054 = vpack.c.b16 %v8880, %v8879
        %v9055 = vpack.c.b16 %v8882, %v8881
        %v9056 = vpack.c.b16 %v8884, %v8883
        %v9057 = vpack.c.b16 %v8886, %v8885
        %v9058 = vpack.c.b16 %v8888, %v8887
        %v9059 = vpack.c.b16 %v8890, %v8889
        %v9060 = vpack.c.b16 %v8892, %v8891
        %v9061 = vpack.c.b16 %v8894, %v8893
        %v9062 = vpack.c.b16 %v8896, %v8895
        %v9063 = vpack.c.b16 %v8898, %v8897
        %v9064 = vpack.c.b16 %v8900, %v8899
        %v9065 = vpack.c.b16 %v8902, %v8901
        %v9066 = vpack.c.b16 %v8904, %v8903
        %v9067 = vpack.c.b16 %v8906, %v8905
        %v9068 = vpack.c.b16 %v8908, %v8907
        %v9069 = vpack.c.b16 %v8910, %v8909
        %v9070 = vpack.c.b16 %v8912, %v8911
        %v9071 = vpack.c.b16 %v8914, %v8913
        %v9072 = vpack.c.b16 %v8916, %v8915
        %v9073 = vpack.c.b16 %v8918, %v8917
        %v9074 = vpack.c.b16 %v8920, %v8919
        %v9075 = vpack.c.b16 %v8922, %v8921
        %v9076 = vpack.c.b16 %v8924, %v8923
        %v9077 = vpack.c.b16 %v8926, %v8925
        %v9078 = vpack.c.b16 %v8928, %v8927
        %v9079 = vpack.c.b16 %v8930, %v8929
        %v9080 = vpack.c.b16 %v8932, %v8931
        %v9081 = vpack.c.b16 %v8934, %v8933
        %v9082 = vpack.c.b16 %v8936, %v8935
        %v9083 = vpack.c.b16 %v8938, %v8937
        %v9084 = vpack.c.b16 %v8940, %v8939
        %v9085 = vpack.c.b16 %v8942, %v8941
        %v9086 = vpack.c.b16 %v8944, %v8943
        %v9087 = vpack.c.b16 %v8946, %v8945
        %v9088 = vpack.c.b16 %v8948, %v8947
        %v9089 = vpack.c.b16 %v8950, %v8949
        %v9090 = vpack.c.b16 %v8952, %v8951
        %v9091 = vpack.c.b16 %v8954, %v8953
        %v9092 = vpack.c.b16 %v8956, %v8955
        %v9093 = vpack.c.b16 %v8958, %v8957
        %v9094 = vpack.c.b16 %v8960, %v8959
        %v9095 = vpack.c.b16 %v8962, %v8961
        %v9096 = vpack.c.b16 %v8964, %v8963
        %v9097 = vpack.c.b16 %v8966, %v8965
        %v9098 = vpack.c.b16 %v8968, %v8967
        %v9099 = vpack.c.b16 %v8970, %v8969
        %v9100 = vpack.c.b16 %v8972, %v8971
        %v9101 = vpack.c.b16 %v8974, %v8973
        %v9102 = vpack.c.b16 %v8976, %v8975
        %v9103 = vpack.c.b16 %v8978, %v8977
        %v9104 = vpack.c.b16 %v8980, %v8979
        %v9105 = vpack.c.b16 %v8982, %v8981
        %v9106 = vpack.c.b16 %v8984, %v8983
        %v9107 = vpack.c.b16 %v8986, %v8985
        %v9108 = vpack.c.b16 %v8988, %v8987
        %v9109 = vpack.c.b16 %v8990, %v8989
        %v9110 = vpack.c.b16 %v8992, %v8991
        %v9111 = vpack.c.b16 %v8994, %v8993
        %v9112 = vpack.c.b16 %v8996, %v8995
        %v9113 = vpack.c.b16 %v8998, %v8997
        %v9114 = vpack.c.b16 %v9000, %v8999
        %v9115 = vpack.c.b16 %v9002, %v9001
        %v9116 = vpack.c.b16 %v9004, %v9003
        %v9117 = vpack.c.b16 %v9006, %v9005
        %v9118 = vpack.c.b16 %v9008, %v9007
        %v9119 = vpack.c.b16 %v9010, %v9009
        %v9120 = vpack.c.b16 %v9012, %v9011
        %v9121 = vpack.c.b16 %v9014, %v9013
        %v9122 = vpack.c.b16 %v9016, %v9015
        %v9123 = vpack.c.b16 %v9018, %v9017
        %v9124 = vpack.c.b16 %v9020, %v9019
        %v9125 = vpack.c.b16 %v9022, %v9021
        %v9126 = vpack.c.b16 %v9024, %v9023
        %v9127 = vpack.c.b16 %v9026, %v9025
        %v9128 = vpack.c.b16 %v9028, %v9027
        %v9129 = vpack.c.b16 %v9030, %v9029
        %v9130 = vpack.c.b16 %v9032, %v9031
        %v9230 = vsel %vm7981, %v8440, 0
        %9232 = vmatpush.bf16.msra.mxu0 %v9040
        %9233 = vmatpush.bf16.msra.mxu0 %v9039
        %9234 = vmatpush.bf16.msra.mxu0 %v9038
        %9235 = vmatpush.bf16.msra.mxu0 %v9037
        %9236 = vmatpush.bf16.msra.mxu0 %v9036
        %9237 = vmatpush.bf16.msra.mxu0 %v9035
        %9238 = vmatpush.bf16.msra.mxu0 %v9034
        %9239 = vmatpush.bf16.msra.mxu0 %v9033
        %9240 = vmatmul.bf16.gmra.mxu0 %v7989
        %v9241 = vpop.f32.mrf.mxu0
        %v9242 = vadd.f32 %v8639, %v9241
        %v9243 = vpop.f32.mrf.mxu0
        %9244 = vdwg.mxu0
        %9245 = vmatpush.bf16.msra.mxu0 %v9048
        %9246 = vmatpush.bf16.msra.mxu0 %v9047
        %9247 = vmatpush.bf16.msra.mxu0 %v9046
        %9248 = vmatpush.bf16.msra.mxu0 %v9045
        %9249 = vmatpush.bf16.msra.mxu0 %v9044
        %9250 = vmatpush.bf16.msra.mxu0 %v9043
        %9251 = vmatpush.bf16.msra.mxu0 %v9042
        %9252 = vmatpush.bf16.msra.mxu0 %v9041
        %9253 = vmatmul.bf16.gmra.mxu0 %v7997
        %v9254 = vpop.f32.mrf.mxu0
        %v9255 = vadd.f32 %v9242, %v9254
        %v9256 = vpop.f32.mrf.mxu0
        %9257 = vdwg.mxu0
        %9258 = vmatpush.bf16.msra.mxu0 %v9056
        %9259 = vmatpush.bf16.msra.mxu0 %v9055
        %9260 = vmatpush.bf16.msra.mxu0 %v9054
        %9261 = vmatpush.bf16.msra.mxu0 %v9053
        %9262 = vmatpush.bf16.msra.mxu0 %v9052
        %9263 = vmatpush.bf16.msra.mxu0 %v9051
        %9264 = vmatpush.bf16.msra.mxu0 %v9050
        %9265 = vmatpush.bf16.msra.mxu0 %v9049
        %9266 = vmatmul.bf16.gmra.mxu0 %v8005
        %v9267 = vpop.f32.mrf.mxu0
        %v9268 = vadd.f32 %v9255, %v9267
        %v9269 = vpop.f32.mrf.mxu0
        %9270 = vdwg.mxu0
        %9271 = vmatpush.bf16.msra.mxu0 %v9064
        %9272 = vmatpush.bf16.msra.mxu0 %v9063
        %9273 = vmatpush.bf16.msra.mxu0 %v9062
        %9274 = vmatpush.bf16.msra.mxu0 %v9061
        %9275 = vmatpush.bf16.msra.mxu0 %v9060
        %9276 = vmatpush.bf16.msra.mxu0 %v9059
        %9277 = vmatpush.bf16.msra.mxu0 %v9058
        %9278 = vmatpush.bf16.msra.mxu0 %v9057
        %9279 = vmatmul.bf16.gmra.mxu0 %v8013
        %v9280 = vpop.f32.mrf.mxu0
        %v9281 = vadd.f32 %v9268, %v9280
        %v9282 = vpop.f32.mrf.mxu0
        %9283 = vdwg.mxu0
        %9284 = vmatpush.bf16.msra.mxu0 %v9072
        %9285 = vmatpush.bf16.msra.mxu0 %v9071
        %9286 = vmatpush.bf16.msra.mxu0 %v9070
        %9287 = vmatpush.bf16.msra.mxu0 %v9069
        %9288 = vmatpush.bf16.msra.mxu0 %v9068
        %9289 = vmatpush.bf16.msra.mxu0 %v9067
        %9290 = vmatpush.bf16.msra.mxu0 %v9066
        %9291 = vmatpush.bf16.msra.mxu0 %v9065
        %9292 = vmatmul.bf16.gmra.mxu0 %v8417
        %v9293 = vpop.f32.mrf.mxu0
        %v9294 = vadd.f32 %v9281, %v9293
        %v9295 = vpop.f32.mrf.mxu0
        %9296 = vdwg.mxu0
        %9297 = vmatpush.bf16.msra.mxu0 %v9080
        %9298 = vmatpush.bf16.msra.mxu0 %v9079
        %9299 = vmatpush.bf16.msra.mxu0 %v9078
        %9300 = vmatpush.bf16.msra.mxu0 %v9077
        %9301 = vmatpush.bf16.msra.mxu0 %v9076
        %9302 = vmatpush.bf16.msra.mxu0 %v9075
        %9303 = vmatpush.bf16.msra.mxu0 %v9074
        %9304 = vmatpush.bf16.msra.mxu0 %v9073
        %9305 = vmatmul.bf16.gmra.mxu0 %v8418
        %v9306 = vpop.f32.mrf.mxu0
        %v9307 = vadd.f32 %v9294, %v9306
        %v9308 = vpop.f32.mrf.mxu0
        %9309 = vdwg.mxu0
        %9310 = vmatpush.bf16.msra.mxu0 %v9088
        %9311 = vmatpush.bf16.msra.mxu0 %v9087
        %9312 = vmatpush.bf16.msra.mxu0 %v9086
        %9313 = vmatpush.bf16.msra.mxu0 %v9085
        %9314 = vmatpush.bf16.msra.mxu0 %v9084
        %9315 = vmatpush.bf16.msra.mxu0 %v9083
        %9316 = vmatpush.bf16.msra.mxu0 %v9082
        %9317 = vmatpush.bf16.msra.mxu0 %v9081
        %9318 = vmatmul.bf16.gmra.mxu0 %v8419
        %v9319 = vpop.f32.mrf.mxu0
        %v9320 = vadd.f32 %v9307, %v9319
        %v9321 = vpop.f32.mrf.mxu0
        %9322 = vdwg.mxu0
        %9323 = vmatpush.bf16.msra.mxu0 %v9096
        %9324 = vmatpush.bf16.msra.mxu0 %v9095
        %9325 = vmatpush.bf16.msra.mxu0 %v9094
        %9326 = vmatpush.bf16.msra.mxu0 %v9093
        %9327 = vmatpush.bf16.msra.mxu0 %v9092
        %9328 = vmatpush.bf16.msra.mxu0 %v9091
        %9329 = vmatpush.bf16.msra.mxu0 %v9090
        %9330 = vmatpush.bf16.msra.mxu0 %v9089
        %9331 = vmatmul.bf16.gmra.mxu0 %v8420
        %v9332 = vpop.f32.mrf.mxu0
        %v9333 = vadd.f32 %v9320, %v9332
        %v9334 = vpop.f32.mrf.mxu0
        %9335 = vdwg.mxu0
        %9336 = vmatpush.bf16.msra.mxu0 %v9104
        %9337 = vmatpush.bf16.msra.mxu0 %v9103
        %9338 = vmatpush.bf16.msra.mxu0 %v9102
        %9339 = vmatpush.bf16.msra.mxu0 %v9101
        %9340 = vmatpush.bf16.msra.mxu0 %v9100
        %9341 = vmatpush.bf16.msra.mxu0 %v9099
        %9342 = vmatpush.bf16.msra.mxu0 %v9098
        %9343 = vmatpush.bf16.msra.mxu0 %v9097
        %9344 = vmatmul.bf16.gmra.mxu0 %v8429
        %v9345 = vpop.f32.mrf.mxu0
        %v9346 = vadd.f32 %v9333, %v9345
        %v9347 = vpop.f32.mrf.mxu0
        %9348 = vdwg.mxu0
        %9349 = vmatpush.bf16.msra.mxu0 %v9112
        %9350 = vmatpush.bf16.msra.mxu0 %v9111
        %9351 = vmatpush.bf16.msra.mxu0 %v9110
        %9352 = vmatpush.bf16.msra.mxu0 %v9109
        %9353 = vmatpush.bf16.msra.mxu0 %v9108
        %9354 = vmatpush.bf16.msra.mxu0 %v9107
        %9355 = vmatpush.bf16.msra.mxu0 %v9106
        %9356 = vmatpush.bf16.msra.mxu0 %v9105
        %9357 = vmatmul.bf16.gmra.mxu0 %v8430
        %v9358 = vpop.f32.mrf.mxu0
        %v9359 = vadd.f32 %v9346, %v9358
        %v9360 = vpop.f32.mrf.mxu0
        %9361 = vdwg.mxu0
        %9362 = vmatpush.bf16.msra.mxu0 %v9120
        %9363 = vmatpush.bf16.msra.mxu0 %v9119
        %9364 = vmatpush.bf16.msra.mxu0 %v9118
        %9365 = vmatpush.bf16.msra.mxu0 %v9117
        %9366 = vmatpush.bf16.msra.mxu0 %v9116
        %9367 = vmatpush.bf16.msra.mxu0 %v9115
        %9368 = vmatpush.bf16.msra.mxu0 %v9114
        %9369 = vmatpush.bf16.msra.mxu0 %v9113
        %9370 = vmatmul.bf16.gmra.mxu0 %v8431
        %v9371 = vpop.f32.mrf.mxu0
        %v9372 = vadd.f32 %v9359, %v9371
        %v9373 = vpop.f32.mrf.mxu0
        %9374 = vdwg.mxu0
        %9375 = vmatpush.bf16.msra.mxu0 %v9128
        %9376 = vmatpush.bf16.msra.mxu0 %v9127
        %9377 = vmatpush.bf16.msra.mxu0 %v9126
        %9378 = vmatpush.bf16.msra.mxu0 %v9125
        %9379 = vmatpush.bf16.msra.mxu0 %v9124
        %9380 = vmatpush.bf16.msra.mxu0 %v9123
        %9381 = vmatpush.bf16.msra.mxu0 %v9122
        %9382 = vmatpush.bf16.msra.mxu0 %v9121
        %9383 = vmatmul.bf16.gmra.mxu0 %v8432
        %v9384 = vpop.f32.mrf.mxu0
        %v9385 = vadd.f32 %v9372, %v9384
        %v9386 = vpop.f32.mrf.mxu0
        %9387 = vdwg.mxu0
        %9388 = vmatpush.bf16.msra.mxu0 0
        %9389 = vmatpush.bf16.msra.mxu0 0
        %9390 = vmatpush.bf16.msra.mxu0 0
        %9391 = vmatpush.bf16.msra.mxu0 0
        %9392 = vmatpush.bf16.msra.mxu0 0
        %9393 = vmatpush.bf16.msra.mxu0 0
        %9394 = vmatpush.bf16.msra.mxu0 %v9130
        %9395 = vmatpush.bf16.msra.mxu0 %v9129
        %9396 = vmatmul.bf16.gmra.mxu0 %v9230
        %v9397 = vpop.f32.mrf.mxu0
        %v9398 = vadd.f32 %v9385, %v9397
        %v9399 = vpop.f32.mrf.mxu0
        %9400 = vdwg.mxu0
        %9401 = vst [vmem:[%s274] sm:$0xf] %v9398
        %s9402 = sand.u32 %s181, 1
        %s9403 = scalar_lea.sflag [#allocation4], %s9402
        %s9404 = sand.u32 %s181, 1
        %s9405 = smul.addr %s9404, 4
        %s9406 = scalar_lea.vmem [#allocation3], %s9405
        // Predicated region
        $region49: #{cnn_forward.1} parent=47 // pred_check
          %p9407 = pneg %p191
        $region50: #{cnn_forward.1} parent=47 // pred_check_branch
          %9409 = sbr.rel (%p9407) target = $region52
        $region51: #{cnn_forward.1} parent=47 // pred_region
          %9411 = vsyncadd %s9403, 0
          %s9412 = smul.addr %s21, 4
          %s9413 = scalar_lea.hbm %s7, %s9412
          %s9415 = sshll.u32 %s9406, 4
          %s9416 = int_to_ptr.vmem [resolvable:$true] %s9415
          %s9417 = sshll.u32 %s9413, 4
          %s9418 = int_to_ptr.hbm [resolvable:$true] %s9417
          %9420 = dma.vmem_to_hbm [thread:$0]  %s9416, 64, %s9418, %s9403
        $region52: #{cnn_forward.1} parent=47 // pred_fallthru
          _
      $region48: #{cnn_forward.1} parent=5 // pred_fallthru
        _
      %p9421 = scmp.le.s32.totalorder 2, %s16
      // Predicated region
      $region53: #{cnn_forward.1} parent=5 // pred_check
        %p9422 = pneg %p9421
      $region54: #{cnn_forward.1} parent=5 // pred_check_branch
        %9424 = sbr.rel (%p9422) target = $region56
      $region55: #{cnn_forward.1} parent=5 // pred_region
        %s9425 = ssub.s32 %s16, 2
        // Predicated region
        $region57: #{cnn_forward.1} parent=55 // pred_check
          %p9426 = pneg %p197
        $region58: #{cnn_forward.1} parent=55 // pred_check_branch
          %9428 = sbr.rel (%p9426) target = $region60
        $region59: #{cnn_forward.1} parent=55 // pred_region
          %s9429 = sand.u32 %s182, 1
          %s9430 = scalar_lea.sflag [#allocation4], %s9429
          %s9431 = sand.u32 %s182, 1
          %s9432 = smul.addr %s9431, 4
          %s9433 = scalar_lea.vmem [#allocation3], %s9432
          %9435 = dma.done %s9430, 64
        $region60: #{cnn_forward.1} parent=55 // pred_fallthru
          _
      $region56: #{cnn_forward.1} parent=5 // pred_fallthru
        _
    $region6: #{cnn_forward.1} parent=1 // loop_footer
      %s20 = sadd.s32 1, %s16
    $region7: #{cnn_forward.1} parent=1 // loop_footer_branch
      %15 = sbr.rel target = $region3
    $region8: #{cnn_forward.1} parent=1 // loop_exit
      _
    %9436 = vsyncpa [#allocation4], 1
    %s9437 = scalar_lea.sflag [#allocation4], 1
    %9438 = vsyncpa %s9437, 1

</llo_original>
